<compile_context>
chip_gen: v7x
topology: tpu7x:2x2x1
jax: 0.10.0
libtpu: 0.0.40
codegen_flags: <defaults>
</compile_context>

<pallas_src>
import jax
import jax.numpy as jnp
from jax.experimental import pallas as pl
from jax.experimental.pallas import tpu as pltpu


def _round_up(x, m):
    return ((x + m - 1) // m) * m


def _pick_block_bytes():
    """Per-generation streaming tile size (bytes per buffer)."""
    try:
        kind = jax.devices()[0].device_kind.lower()
    except Exception:  # pragma: no cover - conservative fallback
        return 2 << 20
    if "v6" in kind or "v7" in kind:
        # v6e/v7x: 32 MiB default scoped VMEM -> 4 MiB * (in+out) * 2 buf = 16 MiB.
        return 4 << 20
    # v5e (16 MiB scoped) and unknown chips: 2 MiB * 4 = 8 MiB footprint.
    return 2 << 20


def _make_cutoff_kernel(cutoff_radius, healing_length):
    cutoff = float(cutoff_radius)
    heal = float(healing_length)
    lower = cutoff - heal
    inv_heal = 1.0 / heal

    def kernel(d_ref, out_ref):
        d = d_ref[...].astype(jnp.float32)
        r = (d - lower) * inv_heal
        r_fn = 1.0 + r * r * (2.0 * r - 3.0)
        switch = jnp.where(d > lower, r_fn, 1.0)
        switch = jnp.where(d > cutoff, 0.0, switch)
        out_ref[...] = switch.astype(out_ref.dtype)

    return kernel


def _cutoff_jnp(distances, cutoff_radius, healing_length):
    """Fused plain-jnp path for tiny inputs (launch overhead dominates)."""
    cutoff = jnp.asarray(cutoff_radius, distances.dtype)
    heal = jnp.asarray(healing_length, distances.dtype)
    lower = cutoff - heal
    r = (distances - lower) / heal
    r_fn = 1.0 + r ** 2 * (2.0 * r - 3.0)
    switch = jnp.where(distances > lower, r_fn, jnp.ones_like(distances))
    return jnp.where(distances > cutoff, jnp.zeros_like(distances), switch)


def custom_cutoff(distances, cutoff_radius, healing_length=0.3405, *,
                  block_bytes=None, min_pallas_bytes=256 << 10,
                  force_pallas=False):
    """Pallas implementation of CustomCutoff.forward.

    `distances`: array of any shape; returns same shape and dtype.
    """
    orig_shape = distances.shape
    dtype = distances.dtype
    n = distances.size
    itemsize = jnp.dtype(dtype).itemsize

    if n == 0:
        return distances

    # Escape hatch: below a few hundred KiB let XLA fuse it with neighbours.
    if (not force_pallas) and n * itemsize < min_pallas_bytes:
        return _cutoff_jnp(distances, cutoff_radius, healing_length)

    if block_bytes is None:
        block_bytes = _pick_block_bytes()

    flat = distances.reshape(-1)

    # Lane-dense slab width: widest power-of-two multiple of 128 that divides
    # the element count exactly (free reshape).  Otherwise pad to 1024 lanes —
    # never fall back to a narrow (<128) trailing axis.
    lanes = None
    for cand in (1024, 512, 256, 128):
        if n % cand == 0:
            lanes = cand
            break
    if lanes is None:
        lanes = 1024
        padded_n = _round_up(n, lanes)
        flat = jnp.pad(flat, (0, padded_n - n))
    else:
        padded_n = n

    rows = padded_n // lanes
    d2 = flat.reshape(rows, lanes)
    total_bytes = padded_n * itemsize

    # Row tile: ~block_bytes per buffer, rebalanced so all grid steps carry a
    # similar number of rows, and >= 2 steps above ~2 MiB (keeps both v7x TCs fed).
    max_block_rows = max(8, (block_bytes // (lanes * itemsize)) // 8 * 8)
    n_tiles = pl.cdiv(rows, max_block_rows)
    if total_bytes > (2 << 20):
        n_tiles = max(n_tiles, 2)
    block_rows = _round_up(pl.cdiv(rows, n_tiles), 8)
    if block_rows >= rows:
        block_rows = rows  # block == full dim is legal
    grid = (pl.cdiv(rows, block_rows),)

    kernel = _make_cutoff_kernel(cutoff_radius, healing_length)

    cost = pl.CostEstimate(
        flops=8 * padded_n,
        transcendentals=0,
        bytes_accessed=2 * padded_n * itemsize,
    )

    out = pl.pallas_call(
        kernel,
        out_shape=jax.ShapeDtypeStruct((rows, lanes), dtype),
        grid=grid,
        in_specs=[pl.BlockSpec((block_rows, lanes), lambda i: (i, 0))],
        out_specs=pl.BlockSpec((block_rows, lanes), lambda i: (i, 0)),
        compiler_params=pltpu.CompilerParams(
            dimension_semantics=("parallel",)),
        cost_estimate=cost,
    )(d2)

    out_flat = out.reshape(-1)
    if padded_n != n:
        out_flat = out_flat[:n]
    return out_flat.reshape(orig_shape)


if __name__ == "__main__":
    key = jax.random.PRNGKey(0)
    cutoff_radius = 5.0
    healing_length = 0.3405

    def ref_fn(d):
        d = d.astype(jnp.float32)
        r = (d - (cutoff_radius - healing_length)) / healing_length
        r_fn = 1.0 + r ** 2 * (2.0 * r - 3.0)
        out = jnp.where(d > cutoff_radius - healing_length, r_fn,
                        jnp.ones_like(d))
        return jnp.where(d > cutoff_radius, jnp.zeros_like(d), out)

    k1, k2 = jax.random.split(key)

    # 1) Streaming-sized (batch, n_atoms, n_neighbors): multi-tile Pallas path.
    d_big = jax.random.uniform(k1, (8, 128, 1000), dtype=jnp.float32,
                               minval=0.5, maxval=7.0)
    out_big = jax.block_until_ready(
        custom_cutoff(d_big, cutoff_radius, healing_length))
    assert out_big.shape == d_big.shape and out_big.dtype == d_big.dtype
    assert jnp.allclose(out_big, ref_fn(d_big), atol=1e-6), "big mismatch"

    # 2) Tiny schnetpack-like shape with ragged neighbor axis: jnp escape hatch.
    d_small = jax.random.uniform(k2, (2, 8, 50), dtype=jnp.float32,
                                 minval=0.5, maxval=7.0)
    out_small = jax.block_until_ready(
        custom_cutoff(d_small, cutoff_radius, healing_length))
    assert jnp.allclose(out_small, ref_fn(d_small), atol=1e-6), "small mismatch"

    # 3) Same tiny ragged shape forced through Pallas: exercises pad/slice path.
    out_small_p = jax.block_until_ready(
        custom_cutoff(d_small, cutoff_radius, healing_length,
                      force_pallas=True))
    assert jnp.allclose(out_small_p, ref_fn(d_small), atol=1e-6), \
        "forced-pallas mismatch"

    # 4) bf16 streaming (packed sublanes) through the padded Pallas path.
    d_bf16 = d_small.astype(jnp.bfloat16)
    out_bf16 = jax.block_until_ready(
        custom_cutoff(d_bf16, cutoff_radius, healing_length,
                      force_pallas=True))
    ref_bf16 = ref_fn(d_bf16).astype(jnp.bfloat16)
    assert out_bf16.dtype == jnp.bfloat16
    assert jnp.allclose(out_bf16.astype(jnp.float32),
                        ref_bf16.astype(jnp.float32), atol=2e-2), "bf16 mismatch"

    print("KERNEL_OK")
</pallas_src>

<mosaic_0001>
module attributes {stable_mosaic.version = 11 : i64} {
  func.func @kernel(%arg0: i32, %arg1: memref<504x1024xf32, #tpu.memory_space<vmem>>, %arg2: memref<504x1024xf32, #tpu.memory_space<vmem>>) attributes {dimension_semantics = [#tpu.dimension_semantics<parallel>], iteration_bounds = array<i64: 2>, scalar_prefetch = 0 : i64, scratch_operands = 0 : i64, tpu.core_type = #tpu.core_type<tc>, window_params = [{transform_indices = @transform_0, window_bounds = array<i64: 504, 1024>}, {transform_indices = @transform_1, window_bounds = array<i64: 504, 1024>}]} {
    %c0 = arith.constant 0 : index
    %c0_0 = arith.constant 0 : index
    %0 = vector.load %arg1[%c0, %c0_0] : memref<504x1024xf32, #tpu.memory_space<vmem>>, vector<504x1024xf32>
    %cst = arith.constant 4.659500e+00 : f32
    %1 = vector.broadcast %cst : f32 to vector<504x1024xf32>
    %2 = arith.subf %0, %1 : vector<504x1024xf32>
    %cst_1 = arith.constant 2.93685746 : f32
    %3 = vector.broadcast %cst_1 : f32 to vector<504x1024xf32>
    %4 = arith.mulf %2, %3 : vector<504x1024xf32>
    %5 = arith.mulf %4, %4 : vector<504x1024xf32>
    %cst_2 = arith.constant 2.000000e+00 : f32
    %6 = vector.broadcast %cst_2 : f32 to vector<504x1024xf32>
    %7 = arith.mulf %6, %4 : vector<504x1024xf32>
    %cst_3 = arith.constant 3.000000e+00 : f32
    %8 = vector.broadcast %cst_3 : f32 to vector<504x1024xf32>
    %9 = arith.subf %7, %8 : vector<504x1024xf32>
    %10 = arith.mulf %5, %9 : vector<504x1024xf32>
    %cst_4 = arith.constant 1.000000e+00 : f32
    %11 = vector.broadcast %cst_4 : f32 to vector<504x1024xf32>
    %12 = arith.addf %11, %10 : vector<504x1024xf32>
    %cst_5 = arith.constant 4.659500e+00 : f32
    %13 = vector.broadcast %cst_5 : f32 to vector<504x1024xf32>
    %14 = arith.cmpf ogt, %0, %13 : vector<504x1024xf32>
    %cst_6 = arith.constant 1.000000e+00 : f32
    %15 = vector.broadcast %cst_6 : f32 to vector<504x1024xf32>
    %16 = arith.select %14, %12, %15 : vector<504x1024xi1>, vector<504x1024xf32>
    %cst_7 = arith.constant 5.000000e+00 : f32
    %17 = vector.broadcast %cst_7 : f32 to vector<504x1024xf32>
    %18 = arith.cmpf ogt, %0, %17 : vector<504x1024xf32>
    %cst_8 = arith.constant 0.000000e+00 : f32
    %19 = vector.broadcast %cst_8 : f32 to vector<504x1024xf32>
    %20 = arith.select %18, %19, %16 : vector<504x1024xi1>, vector<504x1024xf32>
    %c0_9 = arith.constant 0 : index
    %c0_10 = arith.constant 0 : index
    %21 = vector.load %arg2[%c0_9, %c0_10] : memref<504x1024xf32, #tpu.memory_space<vmem>>, vector<504x1024xf32>
    tpu.vector_store %arg2[%c0_9, %c0_10], %20 {strides = array<i32>} : memref<504x1024xf32, #tpu.memory_space<vmem>>, vector<504x1024xf32>,
    return
  }
  func.func @transform_0(%arg0: i32) -> (i32, i32) {
    %c0_i32 = arith.constant 0 : i32
    %c0_i32_0 = arith.constant 0 : i32
    return %arg0, %c0_i32 : i32, i32
  }
  func.func @transform_1(%arg0: i32) -> (i32, i32) {
    %c0_i32 = arith.constant 0 : i32
    %c0_i32_0 = arith.constant 0 : i32
    return %arg0, %c0_i32 : i32, i32
  }
}

</mosaic_0001>

<llo_original>
// kernel: tpu_custom_call.1
$region0: #{tpu_custom_call.1}
  #allocation0 [shape = 'u32[]', space=smem, size = 0x4, offset = 0x4, fixed_abs, tag = 'smem constant byte address 0x4 - core index']
  #allocation1 [shape = 'u32[144,128]{1,0:T(1,128)}', space=vmem, size = 0x12000, scoped, tag = 'internal scratch']
  %s0 = inlined_call_operand.hbm [shape: f32[1000,1024], index: 0, kind: input, shape index: {}]
  %s1 = inlined_call_operand.hbm [shape: f32[1000,1024], index: 1, kind: output, shape index: {}]
  %s2 = sld [smem:[#allocation0]]
  $region41: #{tpu_custom_call.1} parent=0
    _
  %s4 = ssub.s32 1, %s2
  %s5 = scalar_select 0, %s4, %s2
  $region1: #{tpu_custom_call.1} parent=0
    #allocation2 [shape = 'u8[4128768]{0}', space=vmem, size = 0x3f0000, scoped, tag = 'input window, operand 0']
    #allocation3 [shape = 's32[2]{0}', space=sflag, size = 0x8, scoped, tag = 'scoped memory for tpu_custom_call.1']
    #allocation4 [shape = 's32[2]{0}', space=sflag, size = 0x8, scoped, tag = 'scoped memory for tpu_custom_call.1']
    #allocation5 [shape = 'u8[4128768]{0}', space=vmem, size = 0x3f0000, scoped, tag = 'output window, operand 0']
    %6 = vsyncpa [#allocation3], 0
    %s7 = scalar_lea.sflag [#allocation3], 1
    %8 = vsyncpa %s7, 0
    %9 = vsyncpa [#allocation4], 0
    %s10 = scalar_lea.sflag [#allocation4], 1
    %11 = vsyncpa %s10, 0
    loop: start=0, step=1, limit=4
    $region2: #{tpu_custom_call.1} parent=1 // loop_pre_header
      _
    $region3: #{tpu_custom_call.1} parent=1 // loop_header
      %s13 = sphi 0, %s17
      %p14 = scmp.ge.s32.totalorder %s13, 4
      %s23 = sphi 0, %s25
      %s26 = sphi 0, %s23
      %s27 = sphi 0, %s26
      %s43 = sphi 0, %s27
      %s49 = sphi 0, %s51
      %s52 = sphi 0, %s49
      %s53 = sphi 0, %s52
      %s69 = sphi 0, %s53
    $region4: #{tpu_custom_call.1} parent=1 // loop_header_branch
      %16 = sbr.rel (%p14) target = $region8
    $region5: #{tpu_custom_call.1} parent=1 // loop_body
      %s18 = ssub.s32 %s13, 1
      %s19 = ssub.s32 %s13, 2
      %s20 = sadd.s32 %s13, 1
      %s21 = ssub.s32 %s13, %s20
      %p22 = scmp.eq.s32.totalorder %s21, 0
      %s24 = sadd.s32 %s23, 1
      %s25 = scalar_select %p22, %s23, %s24
      %p28 = pneg %p22
      %p29 = scmp.eq.s32.totalorder %s13, 1
      %p30 = por %p28, %p29
      %p31 = scmp.ne.s32.totalorder %s23, %s26
      %p32 = scmp.eq.s32.totalorder %s13, 0
      %p33 = por %p31, %p32
      %p34 = scmp.ne.s32.totalorder %s23, %s26
      %p35 = scmp.eq.s32.totalorder %s18, 1
      %p36 = por %p34, %p35
      %p37 = scmp.ne.s32.totalorder %s26, %s27
      %p38 = scmp.eq.s32.totalorder %s18, 0
      %p39 = por %p37, %p38
      %p40 = scmp.ne.s32.totalorder %s26, %s27
      %p41 = scmp.eq.s32.totalorder %s19, 1
      %p42 = por %p40, %p41
      %p44 = scmp.ne.s32.totalorder %s27, %s43
      %p45 = scmp.eq.s32.totalorder %s19, 0
      %p46 = por %p44, %p45
      %s47 = ssub.s32 %s13, %s20
      %p48 = scmp.eq.s32.totalorder %s47, 0
      %s50 = sadd.s32 %s49, 1
      %s51 = scalar_select %p48, %s49, %s50
      %p54 = pneg %p48
      %p55 = scmp.eq.s32.totalorder %s13, 1
      %p56 = por %p54, %p55
      %p57 = scmp.ne.s32.totalorder %s49, %s52
      %p58 = scmp.eq.s32.totalorder %s13, 0
      %p59 = por %p57, %p58
      %p60 = scmp.ne.s32.totalorder %s49, %s52
      %p61 = scmp.eq.s32.totalorder %s18, 1
      %p62 = por %p60, %p61
      %p63 = scmp.ne.s32.totalorder %s52, %s53
      %p64 = scmp.eq.s32.totalorder %s18, 0
      %p65 = por %p63, %p64
      %p66 = scmp.ne.s32.totalorder %s52, %s53
      %p67 = scmp.eq.s32.totalorder %s19, 1
      %p68 = por %p66, %p67
      %p70 = scmp.ne.s32.totalorder %s53, %s69
      %p71 = scmp.eq.s32.totalorder %s19, 0
      %p72 = por %p70, %p71
      %p73 = scmp.le.s32.totalorder 1, %s13
      %p74 = scmp.lt.s32.totalorder %s13, 3
      %p75 = pnand %p73, %p74
      %p76 = pneg %p75
      // Predicated region
      $region9: #{tpu_custom_call.1} parent=5 // pred_check
        _
      $region10: #{tpu_custom_call.1} parent=5 // pred_check_branch
        %78 = sbr.rel (%p75) target = $region12
      $region11: #{tpu_custom_call.1} parent=5 // pred_region
        %s79 = ssub.s32 %s13, 1
      $region12: #{tpu_custom_call.1} parent=5 // pred_fallthru
        _
      %p80 = scmp.lt.s32.totalorder %s13, 2
      // Predicated region
      $region13: #{tpu_custom_call.1} parent=5 // pred_check
        %p81 = pneg %p80
      $region14: #{tpu_custom_call.1} parent=5 // pred_check_branch
        %83 = sbr.rel (%p81) target = $region16
      $region15: #{tpu_custom_call.1} parent=5 // pred_region
        // Predicated region
        $region17: #{tpu_custom_call.1} parent=15 // pred_check
          %p84 = pneg %p33
        $region18: #{tpu_custom_call.1} parent=15 // pred_check_branch
          %86 = sbr.rel (%p84) target = $region20
        $region19: #{tpu_custom_call.1} parent=15 // pred_region
          %s87 = sand.u32 %s23, 1
          %s88 = scalar_lea.sflag [#allocation3], %s87
          %s89 = sand.u32 %s23, 1
          %s90 = smul.addr %s89, 4032
          %s91 = scalar_lea.vmem [#allocation2], %s90
          %s92 = smul.u32 63, %s13
          %s93 = ssub.s32 125, %s92
          %p94 = scmp.lt.s32.totalorder %s93, 63
          %s95 = scalar_select %p94, %s93, 63
          %s96 = smul.u32 128, %s95
          %s97 = smul.u32 %s96, 8
          %s99 = ssub.s32 64512, %s97
          %100 = vsyncadd %s88, %s99
          %p101 = scmp.ne.s32.totalorder 0, %s97
          %s102 = smul.addr %s92, 8
          %s103 = smul.addr %s102, 128
          %s104 = scalar_lea.hbm %s0, %s103
          %s105 = smul.u32 64, %s95
          %s106 = sshll.u32 %s91, 4
          %s107 = int_to_ptr.vmem [resolvable:$true] %s106
          %s108 = sshll.u32 %s105, 4
          %112 = dma.hbm_to_vmem [thread:$0]  (%p101), %s104, %s108, %s107, %s88, 1024, 1024, 64
        $region20: #{tpu_custom_call.1} parent=15 // pred_fallthru
          _
      $region16: #{tpu_custom_call.1} parent=5 // pred_fallthru
        _
      %p113 = scmp.le.s32.totalorder 1, %s13
      %p114 = scmp.lt.s32.totalorder %s13, 3
      %p115 = pnand %p113, %p114
      %p116 = pneg %p115
      // Predicated region
      $region21: #{tpu_custom_call.1} parent=5 // pred_check
        _
      $region22: #{tpu_custom_call.1} parent=5 // pred_check_branch
        %118 = sbr.rel (%p115) target = $region24
      $region23: #{tpu_custom_call.1} parent=5 // pred_region
        %s119 = ssub.s32 %s13, 1
        %s120 = sand.u32 %s26, 1
        %s121 = scalar_lea.sflag [#allocation3], %s120
        %s122 = sand.u32 %s26, 1
        %s123 = smul.addr %s122, 4032
        %s124 = scalar_lea.vmem [#allocation2], %s123
        // Predicated region
        $region25: #{tpu_custom_call.1} parent=23 // pred_check
          %p125 = pneg %p39
        $region26: #{tpu_custom_call.1} parent=23 // pred_check_branch
          %127 = sbr.rel (%p125) target = $region28
        $region27: #{tpu_custom_call.1} parent=23 // pred_region
          %128 = dma.done %s121, 64512
        $region28: #{tpu_custom_call.1} parent=23 // pred_fallthru
          _
        %s129 = sand.u32 %s26, 1
        %s130 = scalar_lea.sflag [#allocation3], %s129
        %s131 = sand.u32 %s26, 1
        %s132 = smul.addr %s131, 4032
        %s133 = scalar_lea.vmem [#allocation2], %s132
        %p134 = pneg %p39
        %p135 = pneg %p36
        %p136 = pneg %p65
        %p137 = pneg %p62
        %s138 = sand.u32 %s52, 1
        %s139 = scalar_lea.sflag [#allocation4], %s138
        %s140 = sand.u32 %s52, 1
        %s141 = smul.addr %s140, 4032
        %s142 = scalar_lea.vmem [#allocation5], %s141
        %s143 = smul.u32 63, %s18
        %s144 = ssub.s32 125, %s143
        %p145 = scmp.lt.s32.totalorder %s144, 63
        %s146 = scalar_select %p145, %s144, 63
        %s147 = smul.u32 128, %s146
        %s148 = smul.u32 %s147, 8
        %s149 = smul.u32 63, %s18
        %s150 = ssub.s32 125, %s149
        %p151 = scmp.lt.s32.totalorder %s150, 63
        %s152 = scalar_select %p151, %s150, 63
        %s153 = smul.u32 128, %s152
        %s154 = smul.u32 %s153, 8
        %v155 = vld [vmem:[%s124] sm:$0xff]
        %v156 = vld [vmem:[%s124 + $0x8] sm:$0xff]
        %v157 = vld [vmem:[%s124 + $0x10] sm:$0xff]
        %v158 = vld [vmem:[%s124 + $0x18] sm:$0xff]
        %v159 = vld [vmem:[%s124 + $0x20] sm:$0xff]
        %v160 = vld [vmem:[%s124 + $0x28] sm:$0xff]
        %v161 = vld [vmem:[%s124 + $0x30] sm:$0xff]
        %v162 = vld [vmem:[%s124 + $0x38] sm:$0xff]
        %v163 = vld [vmem:[%s124 + $0x40] sm:$0xff]
        %v164 = vld [vmem:[%s124 + $0x48] sm:$0xff]
        %v165 = vld [vmem:[%s124 + $0x50] sm:$0xff]
        %v166 = vld [vmem:[%s124 + $0x58] sm:$0xff]
        %v167 = vld [vmem:[%s124 + $0x60] sm:$0xff]
        %v168 = vld [vmem:[%s124 + $0x68] sm:$0xff]
        %v169 = vld [vmem:[%s124 + $0x70] sm:$0xff]
        %v170 = vld [vmem:[%s124 + $0x78] sm:$0xff]
        %v171 = vld [vmem:[%s124 + $0x80] sm:$0xff]
        %v172 = vld [vmem:[%s124 + $0x88] sm:$0xff]
        %v173 = vld [vmem:[%s124 + $0x90] sm:$0xff]
        %v174 = vld [vmem:[%s124 + $0x98] sm:$0xff]
        %v175 = vld [vmem:[%s124 + $0xa0] sm:$0xff]
        %v176 = vld [vmem:[%s124 + $0xa8] sm:$0xff]
        %v177 = vld [vmem:[%s124 + $0xb0] sm:$0xff]
        %v178 = vld [vmem:[%s124 + $0xb8] sm:$0xff]
        %v179 = vld [vmem:[%s124 + $0xc0] sm:$0xff]
        %v180 = vld [vmem:[%s124 + $0xc8] sm:$0xff]
        %v181 = vld [vmem:[%s124 + $0xd0] sm:$0xff]
        %v182 = vld [vmem:[%s124 + $0xd8] sm:$0xff]
        %v183 = vld [vmem:[%s124 + $0xe0] sm:$0xff]
        %v184 = vld [vmem:[%s124 + $0xe8] sm:$0xff]
        %v185 = vld [vmem:[%s124 + $0xf0] sm:$0xff]
        %v186 = vld [vmem:[%s124 + $0xf8] sm:$0xff]
        %v187 = vld [vmem:[%s124 + $0x100] sm:$0xff]
        %v188 = vld [vmem:[%s124 + $0x108] sm:$0xff]
        %v189 = vld [vmem:[%s124 + $0x110] sm:$0xff]
        %v190 = vld [vmem:[%s124 + $0x118] sm:$0xff]
        %v191 = vld [vmem:[%s124 + $0x120] sm:$0xff]
        %v192 = vld [vmem:[%s124 + $0x128] sm:$0xff]
        %v193 = vld [vmem:[%s124 + $0x130] sm:$0xff]
        %v194 = vld [vmem:[%s124 + $0x138] sm:$0xff]
        %v195 = vld [vmem:[%s124 + $0x140] sm:$0xff]
        %v196 = vld [vmem:[%s124 + $0x148] sm:$0xff]
        %v197 = vld [vmem:[%s124 + $0x150] sm:$0xff]
        %v198 = vld [vmem:[%s124 + $0x158] sm:$0xff]
        %v199 = vld [vmem:[%s124 + $0x160] sm:$0xff]
        %v200 = vld [vmem:[%s124 + $0x168] sm:$0xff]
        %v201 = vld [vmem:[%s124 + $0x170] sm:$0xff]
        %v202 = vld [vmem:[%s124 + $0x178] sm:$0xff]
        %v203 = vld [vmem:[%s124 + $0x180] sm:$0xff]
        %v204 = vld [vmem:[%s124 + $0x188] sm:$0xff]
        %v205 = vld [vmem:[%s124 + $0x190] sm:$0xff]
        %v206 = vld [vmem:[%s124 + $0x198] sm:$0xff]
        %v207 = vld [vmem:[%s124 + $0x1a0] sm:$0xff]
        %v208 = vld [vmem:[%s124 + $0x1a8] sm:$0xff]
        %v209 = vld [vmem:[%s124 + $0x1b0] sm:$0xff]
        %v210 = vld [vmem:[%s124 + $0x1b8] sm:$0xff]
        %v211 = vld [vmem:[%s124 + $0x1c0] sm:$0xff]
        %v212 = vld [vmem:[%s124 + $0x1c8] sm:$0xff]
        %v213 = vld [vmem:[%s124 + $0x1d0] sm:$0xff]
        %v214 = vld [vmem:[%s124 + $0x1d8] sm:$0xff]
        %v215 = vld [vmem:[%s124 + $0x1e0] sm:$0xff]
        %v216 = vld [vmem:[%s124 + $0x1e8] sm:$0xff]
        %v217 = vld [vmem:[%s124 + $0x1f0] sm:$0xff]
        %v218 = vld [vmem:[%s124 + $0x1f8] sm:$0xff]
        %v219 = vld [vmem:[%s124 + $0x200] sm:$0xff]
        %v220 = vld [vmem:[%s124 + $0x208] sm:$0xff]
        %v221 = vld [vmem:[%s124 + $0x210] sm:$0xff]
        %v222 = vld [vmem:[%s124 + $0x218] sm:$0xff]
        %v223 = vld [vmem:[%s124 + $0x220] sm:$0xff]
        %v224 = vld [vmem:[%s124 + $0x228] sm:$0xff]
        %v225 = vld [vmem:[%s124 + $0x230] sm:$0xff]
        %v226 = vld [vmem:[%s124 + $0x238] sm:$0xff]
        %v227 = vld [vmem:[%s124 + $0x240] sm:$0xff]
        %v228 = vld [vmem:[%s124 + $0x248] sm:$0xff]
        %v229 = vld [vmem:[%s124 + $0x250] sm:$0xff]
        %v230 = vld [vmem:[%s124 + $0x258] sm:$0xff]
        %v231 = vld [vmem:[%s124 + $0x260] sm:$0xff]
        %v232 = vld [vmem:[%s124 + $0x268] sm:$0xff]
        %v233 = vld [vmem:[%s124 + $0x270] sm:$0xff]
        %v234 = vld [vmem:[%s124 + $0x278] sm:$0xff]
        %v235 = vld [vmem:[%s124 + $0x280] sm:$0xff]
        %v236 = vld [vmem:[%s124 + $0x288] sm:$0xff]
        %v237 = vld [vmem:[%s124 + $0x290] sm:$0xff]
        %v238 = vld [vmem:[%s124 + $0x298] sm:$0xff]
        %v239 = vld [vmem:[%s124 + $0x2a0] sm:$0xff]
        %v240 = vld [vmem:[%s124 + $0x2a8] sm:$0xff]
        %v241 = vld [vmem:[%s124 + $0x2b0] sm:$0xff]
        %v242 = vld [vmem:[%s124 + $0x2b8] sm:$0xff]
        %v243 = vld [vmem:[%s124 + $0x2c0] sm:$0xff]
        %v244 = vld [vmem:[%s124 + $0x2c8] sm:$0xff]
        %v245 = vld [vmem:[%s124 + $0x2d0] sm:$0xff]
        %v246 = vld [vmem:[%s124 + $0x2d8] sm:$0xff]
        %v247 = vld [vmem:[%s124 + $0x2e0] sm:$0xff]
        %v248 = vld [vmem:[%s124 + $0x2e8] sm:$0xff]
        %v249 = vld [vmem:[%s124 + $0x2f0] sm:$0xff]
        %v250 = vld [vmem:[%s124 + $0x2f8] sm:$0xff]
        %v251 = vld [vmem:[%s124 + $0x300] sm:$0xff]
        %v252 = vld [vmem:[%s124 + $0x308] sm:$0xff]
        %v253 = vld [vmem:[%s124 + $0x310] sm:$0xff]
        %v254 = vld [vmem:[%s124 + $0x318] sm:$0xff]
        %v255 = vld [vmem:[%s124 + $0x320] sm:$0xff]
        %v256 = vld [vmem:[%s124 + $0x328] sm:$0xff]
        %v257 = vld [vmem:[%s124 + $0x330] sm:$0xff]
        %v258 = vld [vmem:[%s124 + $0x338] sm:$0xff]
        %v259 = vld [vmem:[%s124 + $0x340] sm:$0xff]
        %v260 = vld [vmem:[%s124 + $0x348] sm:$0xff]
        %v261 = vld [vmem:[%s124 + $0x350] sm:$0xff]
        %v262 = vld [vmem:[%s124 + $0x358] sm:$0xff]
        %v263 = vld [vmem:[%s124 + $0x360] sm:$0xff]
        %v264 = vld [vmem:[%s124 + $0x368] sm:$0xff]
        %v265 = vld [vmem:[%s124 + $0x370] sm:$0xff]
        %v266 = vld [vmem:[%s124 + $0x378] sm:$0xff]
        %v267 = vld [vmem:[%s124 + $0x380] sm:$0xff]
        %v268 = vld [vmem:[%s124 + $0x388] sm:$0xff]
        %v269 = vld [vmem:[%s124 + $0x390] sm:$0xff]
        %v270 = vld [vmem:[%s124 + $0x398] sm:$0xff]
        %v271 = vld [vmem:[%s124 + $0x3a0] sm:$0xff]
        %v272 = vld [vmem:[%s124 + $0x3a8] sm:$0xff]
        %v273 = vld [vmem:[%s124 + $0x3b0] sm:$0xff]
        %v274 = vld [vmem:[%s124 + $0x3b8] sm:$0xff]
        %v275 = vld [vmem:[%s124 + $0x3c0] sm:$0xff]
        %v276 = vld [vmem:[%s124 + $0x3c8] sm:$0xff]
        %v277 = vld [vmem:[%s124 + $0x3d0] sm:$0xff]
        %v278 = vld [vmem:[%s124 + $0x3d8] sm:$0xff]
        %v279 = vld [vmem:[%s124 + $0x3e0] sm:$0xff]
        %v280 = vld [vmem:[%s124 + $0x3e8] sm:$0xff]
        %v281 = vld [vmem:[%s124 + $0x3f0] sm:$0xff]
        %v282 = vld [vmem:[%s124 + $0x3f8] sm:$0xff]
        %v283 = vld [vmem:[%s124 + $0x400] sm:$0xff]
        %v284 = vld [vmem:[%s124 + $0x408] sm:$0xff]
        %v285 = vld [vmem:[%s124 + $0x410] sm:$0xff]
        %v286 = vld [vmem:[%s124 + $0x418] sm:$0xff]
        %v287 = vld [vmem:[%s124 + $0x420] sm:$0xff]
        %v288 = vld [vmem:[%s124 + $0x428] sm:$0xff]
        %v289 = vld [vmem:[%s124 + $0x430] sm:$0xff]
        %v290 = vld [vmem:[%s124 + $0x438] sm:$0xff]
        %v291 = vld [vmem:[%s124 + $0x440] sm:$0xff]
        %v292 = vld [vmem:[%s124 + $0x448] sm:$0xff]
        %v293 = vld [vmem:[%s124 + $0x450] sm:$0xff]
        %v294 = vld [vmem:[%s124 + $0x458] sm:$0xff]
        %v295 = vld [vmem:[%s124 + $0x460] sm:$0xff]
        %v296 = vld [vmem:[%s124 + $0x468] sm:$0xff]
        %v297 = vld [vmem:[%s124 + $0x470] sm:$0xff]
        %v298 = vld [vmem:[%s124 + $0x478] sm:$0xff]
        %v299 = vld [vmem:[%s124 + $0x480] sm:$0xff]
        %v300 = vld [vmem:[%s124 + $0x488] sm:$0xff]
        %v301 = vld [vmem:[%s124 + $0x490] sm:$0xff]
        %v302 = vld [vmem:[%s124 + $0x498] sm:$0xff]
        %v303 = vld [vmem:[%s124 + $0x4a0] sm:$0xff]
        %v304 = vld [vmem:[%s124 + $0x4a8] sm:$0xff]
        %v305 = vld [vmem:[%s124 + $0x4b0] sm:$0xff]
        %v306 = vld [vmem:[%s124 + $0x4b8] sm:$0xff]
        %v307 = vld [vmem:[%s124 + $0x4c0] sm:$0xff]
        %v308 = vld [vmem:[%s124 + $0x4c8] sm:$0xff]
        %v309 = vld [vmem:[%s124 + $0x4d0] sm:$0xff]
        %v310 = vld [vmem:[%s124 + $0x4d8] sm:$0xff]
        %v311 = vld [vmem:[%s124 + $0x4e0] sm:$0xff]
        %v312 = vld [vmem:[%s124 + $0x4e8] sm:$0xff]
        %v313 = vld [vmem:[%s124 + $0x4f0] sm:$0xff]
        %v314 = vld [vmem:[%s124 + $0x4f8] sm:$0xff]
        %v315 = vld [vmem:[%s124 + $0x500] sm:$0xff]
        %v316 = vld [vmem:[%s124 + $0x508] sm:$0xff]
        %v317 = vld [vmem:[%s124 + $0x510] sm:$0xff]
        %v318 = vld [vmem:[%s124 + $0x518] sm:$0xff]
        %v319 = vld [vmem:[%s124 + $0x520] sm:$0xff]
        %v320 = vld [vmem:[%s124 + $0x528] sm:$0xff]
        %v321 = vld [vmem:[%s124 + $0x530] sm:$0xff]
        %v322 = vld [vmem:[%s124 + $0x538] sm:$0xff]
        %v323 = vld [vmem:[%s124 + $0x540] sm:$0xff]
        %v324 = vld [vmem:[%s124 + $0x548] sm:$0xff]
        %v325 = vld [vmem:[%s124 + $0x550] sm:$0xff]
        %v326 = vld [vmem:[%s124 + $0x558] sm:$0xff]
        %v327 = vld [vmem:[%s124 + $0x560] sm:$0xff]
        %v328 = vld [vmem:[%s124 + $0x568] sm:$0xff]
        %v329 = vld [vmem:[%s124 + $0x570] sm:$0xff]
        %v330 = vld [vmem:[%s124 + $0x578] sm:$0xff]
        %v331 = vld [vmem:[%s124 + $0x580] sm:$0xff]
        %v332 = vld [vmem:[%s124 + $0x588] sm:$0xff]
        %v333 = vld [vmem:[%s124 + $0x590] sm:$0xff]
        %v334 = vld [vmem:[%s124 + $0x598] sm:$0xff]
        %v335 = vld [vmem:[%s124 + $0x5a0] sm:$0xff]
        %v336 = vld [vmem:[%s124 + $0x5a8] sm:$0xff]
        %v337 = vld [vmem:[%s124 + $0x5b0] sm:$0xff]
        %v338 = vld [vmem:[%s124 + $0x5b8] sm:$0xff]
        %v339 = vld [vmem:[%s124 + $0x5c0] sm:$0xff]
        %v340 = vld [vmem:[%s124 + $0x5c8] sm:$0xff]
        %v341 = vld [vmem:[%s124 + $0x5d0] sm:$0xff]
        %v342 = vld [vmem:[%s124 + $0x5d8] sm:$0xff]
        %v343 = vld [vmem:[%s124 + $0x5e0] sm:$0xff]
        %v344 = vld [vmem:[%s124 + $0x5e8] sm:$0xff]
        %v345 = vld [vmem:[%s124 + $0x5f0] sm:$0xff]
        %v346 = vld [vmem:[%s124 + $0x5f8] sm:$0xff]
        %v347 = vld [vmem:[%s124 + $0x600] sm:$0xff]
        %v348 = vld [vmem:[%s124 + $0x608] sm:$0xff]
        %v349 = vld [vmem:[%s124 + $0x610] sm:$0xff]
        %v350 = vld [vmem:[%s124 + $0x618] sm:$0xff]
        %v351 = vld [vmem:[%s124 + $0x620] sm:$0xff]
        %v352 = vld [vmem:[%s124 + $0x628] sm:$0xff]
        %v353 = vld [vmem:[%s124 + $0x630] sm:$0xff]
        %v354 = vld [vmem:[%s124 + $0x638] sm:$0xff]
        %v355 = vld [vmem:[%s124 + $0x640] sm:$0xff]
        %v356 = vld [vmem:[%s124 + $0x648] sm:$0xff]
        %v357 = vld [vmem:[%s124 + $0x650] sm:$0xff]
        %v358 = vld [vmem:[%s124 + $0x658] sm:$0xff]
        %v359 = vld [vmem:[%s124 + $0x660] sm:$0xff]
        %v360 = vld [vmem:[%s124 + $0x668] sm:$0xff]
        %v361 = vld [vmem:[%s124 + $0x670] sm:$0xff]
        %v362 = vld [vmem:[%s124 + $0x678] sm:$0xff]
        %v363 = vld [vmem:[%s124 + $0x680] sm:$0xff]
        %v364 = vld [vmem:[%s124 + $0x688] sm:$0xff]
        %v365 = vld [vmem:[%s124 + $0x690] sm:$0xff]
        %v366 = vld [vmem:[%s124 + $0x698] sm:$0xff]
        %v367 = vld [vmem:[%s124 + $0x6a0] sm:$0xff]
        %v368 = vld [vmem:[%s124 + $0x6a8] sm:$0xff]
        %v369 = vld [vmem:[%s124 + $0x6b0] sm:$0xff]
        %v370 = vld [vmem:[%s124 + $0x6b8] sm:$0xff]
        %v371 = vld [vmem:[%s124 + $0x6c0] sm:$0xff]
        %v372 = vld [vmem:[%s124 + $0x6c8] sm:$0xff]
        %v373 = vld [vmem:[%s124 + $0x6d0] sm:$0xff]
        %v374 = vld [vmem:[%s124 + $0x6d8] sm:$0xff]
        %v375 = vld [vmem:[%s124 + $0x6e0] sm:$0xff]
        %v376 = vld [vmem:[%s124 + $0x6e8] sm:$0xff]
        %v377 = vld [vmem:[%s124 + $0x6f0] sm:$0xff]
        %v378 = vld [vmem:[%s124 + $0x6f8] sm:$0xff]
        %v379 = vld [vmem:[%s124 + $0x700] sm:$0xff]
        %v380 = vld [vmem:[%s124 + $0x708] sm:$0xff]
        %v381 = vld [vmem:[%s124 + $0x710] sm:$0xff]
        %v382 = vld [vmem:[%s124 + $0x718] sm:$0xff]
        %v383 = vld [vmem:[%s124 + $0x720] sm:$0xff]
        %v384 = vld [vmem:[%s124 + $0x728] sm:$0xff]
        %v385 = vld [vmem:[%s124 + $0x730] sm:$0xff]
        %v386 = vld [vmem:[%s124 + $0x738] sm:$0xff]
        %v387 = vld [vmem:[%s124 + $0x740] sm:$0xff]
        %v388 = vld [vmem:[%s124 + $0x748] sm:$0xff]
        %v389 = vld [vmem:[%s124 + $0x750] sm:$0xff]
        %v390 = vld [vmem:[%s124 + $0x758] sm:$0xff]
        %v391 = vld [vmem:[%s124 + $0x760] sm:$0xff]
        %v392 = vld [vmem:[%s124 + $0x768] sm:$0xff]
        %v393 = vld [vmem:[%s124 + $0x770] sm:$0xff]
        %v394 = vld [vmem:[%s124 + $0x778] sm:$0xff]
        %v395 = vld [vmem:[%s124 + $0x780] sm:$0xff]
        %v396 = vld [vmem:[%s124 + $0x788] sm:$0xff]
        %v397 = vld [vmem:[%s124 + $0x790] sm:$0xff]
        %v398 = vld [vmem:[%s124 + $0x798] sm:$0xff]
        %v399 = vld [vmem:[%s124 + $0x7a0] sm:$0xff]
        %v400 = vld [vmem:[%s124 + $0x7a8] sm:$0xff]
        %v401 = vld [vmem:[%s124 + $0x7b0] sm:$0xff]
        %v402 = vld [vmem:[%s124 + $0x7b8] sm:$0xff]
        %v403 = vld [vmem:[%s124 + $0x7c0] sm:$0xff]
        %v404 = vld [vmem:[%s124 + $0x7c8] sm:$0xff]
        %v405 = vld [vmem:[%s124 + $0x7d0] sm:$0xff]
        %v406 = vld [vmem:[%s124 + $0x7d8] sm:$0xff]
        %v407 = vld [vmem:[%s124 + $0x7e0] sm:$0xff]
        %v408 = vld [vmem:[%s124 + $0x7e8] sm:$0xff]
        %v409 = vld [vmem:[%s124 + $0x7f0] sm:$0xff]
        %v410 = vld [vmem:[%s124 + $0x7f8] sm:$0xff]
        %v411 = vld [vmem:[%s124 + $0x800] sm:$0xff]
        %v412 = vld [vmem:[%s124 + $0x808] sm:$0xff]
        %v413 = vld [vmem:[%s124 + $0x810] sm:$0xff]
        %v414 = vld [vmem:[%s124 + $0x818] sm:$0xff]
        %v415 = vld [vmem:[%s124 + $0x820] sm:$0xff]
        %v416 = vld [vmem:[%s124 + $0x828] sm:$0xff]
        %v417 = vld [vmem:[%s124 + $0x830] sm:$0xff]
        %v418 = vld [vmem:[%s124 + $0x838] sm:$0xff]
        %v419 = vld [vmem:[%s124 + $0x840] sm:$0xff]
        %v420 = vld [vmem:[%s124 + $0x848] sm:$0xff]
        %v421 = vld [vmem:[%s124 + $0x850] sm:$0xff]
        %v422 = vld [vmem:[%s124 + $0x858] sm:$0xff]
        %v423 = vld [vmem:[%s124 + $0x860] sm:$0xff]
        %v424 = vld [vmem:[%s124 + $0x868] sm:$0xff]
        %v425 = vld [vmem:[%s124 + $0x870] sm:$0xff]
        %v426 = vld [vmem:[%s124 + $0x878] sm:$0xff]
        %v427 = vld [vmem:[%s124 + $0x880] sm:$0xff]
        %v428 = vld [vmem:[%s124 + $0x888] sm:$0xff]
        %v429 = vld [vmem:[%s124 + $0x890] sm:$0xff]
        %v430 = vld [vmem:[%s124 + $0x898] sm:$0xff]
        %v431 = vld [vmem:[%s124 + $0x8a0] sm:$0xff]
        %v432 = vld [vmem:[%s124 + $0x8a8] sm:$0xff]
        %v433 = vld [vmem:[%s124 + $0x8b0] sm:$0xff]
        %v434 = vld [vmem:[%s124 + $0x8b8] sm:$0xff]
        %v435 = vld [vmem:[%s124 + $0x8c0] sm:$0xff]
        %v436 = vld [vmem:[%s124 + $0x8c8] sm:$0xff]
        %v437 = vld [vmem:[%s124 + $0x8d0] sm:$0xff]
        %v438 = vld [vmem:[%s124 + $0x8d8] sm:$0xff]
        %v439 = vld [vmem:[%s124 + $0x8e0] sm:$0xff]
        %v440 = vld [vmem:[%s124 + $0x8e8] sm:$0xff]
        %v441 = vld [vmem:[%s124 + $0x8f0] sm:$0xff]
        %v442 = vld [vmem:[%s124 + $0x8f8] sm:$0xff]
        %v443 = vld [vmem:[%s124 + $0x900] sm:$0xff]
        %v444 = vld [vmem:[%s124 + $0x908] sm:$0xff]
        %v445 = vld [vmem:[%s124 + $0x910] sm:$0xff]
        %v446 = vld [vmem:[%s124 + $0x918] sm:$0xff]
        %v447 = vld [vmem:[%s124 + $0x920] sm:$0xff]
        %v448 = vld [vmem:[%s124 + $0x928] sm:$0xff]
        %v449 = vld [vmem:[%s124 + $0x930] sm:$0xff]
        %v450 = vld [vmem:[%s124 + $0x938] sm:$0xff]
        %v451 = vld [vmem:[%s124 + $0x940] sm:$0xff]
        %v452 = vld [vmem:[%s124 + $0x948] sm:$0xff]
        %v453 = vld [vmem:[%s124 + $0x950] sm:$0xff]
        %v454 = vld [vmem:[%s124 + $0x958] sm:$0xff]
        %v455 = vld [vmem:[%s124 + $0x960] sm:$0xff]
        %v456 = vld [vmem:[%s124 + $0x968] sm:$0xff]
        %v457 = vld [vmem:[%s124 + $0x970] sm:$0xff]
        %v458 = vld [vmem:[%s124 + $0x978] sm:$0xff]
        %v459 = vld [vmem:[%s124 + $0x980] sm:$0xff]
        %v460 = vld [vmem:[%s124 + $0x988] sm:$0xff]
        %v461 = vld [vmem:[%s124 + $0x990] sm:$0xff]
        %v462 = vld [vmem:[%s124 + $0x998] sm:$0xff]
        %v463 = vld [vmem:[%s124 + $0x9a0] sm:$0xff]
        %v464 = vld [vmem:[%s124 + $0x9a8] sm:$0xff]
        %v465 = vld [vmem:[%s124 + $0x9b0] sm:$0xff]
        %v466 = vld [vmem:[%s124 + $0x9b8] sm:$0xff]
        %v467 = vld [vmem:[%s124 + $0x9c0] sm:$0xff]
        %v468 = vld [vmem:[%s124 + $0x9c8] sm:$0xff]
        %v469 = vld [vmem:[%s124 + $0x9d0] sm:$0xff]
        %v470 = vld [vmem:[%s124 + $0x9d8] sm:$0xff]
        %v471 = vld [vmem:[%s124 + $0x9e0] sm:$0xff]
        %v472 = vld [vmem:[%s124 + $0x9e8] sm:$0xff]
        %v473 = vld [vmem:[%s124 + $0x9f0] sm:$0xff]
        %v474 = vld [vmem:[%s124 + $0x9f8] sm:$0xff]
        %v475 = vld [vmem:[%s124 + $0xa00] sm:$0xff]
        %v476 = vld [vmem:[%s124 + $0xa08] sm:$0xff]
        %v477 = vld [vmem:[%s124 + $0xa10] sm:$0xff]
        %v478 = vld [vmem:[%s124 + $0xa18] sm:$0xff]
        %v479 = vld [vmem:[%s124 + $0xa20] sm:$0xff]
        %v480 = vld [vmem:[%s124 + $0xa28] sm:$0xff]
        %v481 = vld [vmem:[%s124 + $0xa30] sm:$0xff]
        %v482 = vld [vmem:[%s124 + $0xa38] sm:$0xff]
        %v483 = vld [vmem:[%s124 + $0xa40] sm:$0xff]
        %v484 = vld [vmem:[%s124 + $0xa48] sm:$0xff]
        %v485 = vld [vmem:[%s124 + $0xa50] sm:$0xff]
        %v486 = vld [vmem:[%s124 + $0xa58] sm:$0xff]
        %v487 = vld [vmem:[%s124 + $0xa60] sm:$0xff]
        %v488 = vld [vmem:[%s124 + $0xa68] sm:$0xff]
        %v489 = vld [vmem:[%s124 + $0xa70] sm:$0xff]
        %v490 = vld [vmem:[%s124 + $0xa78] sm:$0xff]
        %v491 = vld [vmem:[%s124 + $0xa80] sm:$0xff]
        %v492 = vld [vmem:[%s124 + $0xa88] sm:$0xff]
        %v493 = vld [vmem:[%s124 + $0xa90] sm:$0xff]
        %v494 = vld [vmem:[%s124 + $0xa98] sm:$0xff]
        %v495 = vld [vmem:[%s124 + $0xaa0] sm:$0xff]
        %v496 = vld [vmem:[%s124 + $0xaa8] sm:$0xff]
        %v497 = vld [vmem:[%s124 + $0xab0] sm:$0xff]
        %v498 = vld [vmem:[%s124 + $0xab8] sm:$0xff]
        %v499 = vld [vmem:[%s124 + $0xac0] sm:$0xff]
        %v500 = vld [vmem:[%s124 + $0xac8] sm:$0xff]
        %v501 = vld [vmem:[%s124 + $0xad0] sm:$0xff]
        %v502 = vld [vmem:[%s124 + $0xad8] sm:$0xff]
        %v503 = vld [vmem:[%s124 + $0xae0] sm:$0xff]
        %v504 = vld [vmem:[%s124 + $0xae8] sm:$0xff]
        %v505 = vld [vmem:[%s124 + $0xaf0] sm:$0xff]
        %v506 = vld [vmem:[%s124 + $0xaf8] sm:$0xff]
        %v507 = vld [vmem:[%s124 + $0xb00] sm:$0xff]
        %v508 = vld [vmem:[%s124 + $0xb08] sm:$0xff]
        %v509 = vld [vmem:[%s124 + $0xb10] sm:$0xff]
        %v510 = vld [vmem:[%s124 + $0xb18] sm:$0xff]
        %v511 = vld [vmem:[%s124 + $0xb20] sm:$0xff]
        %v512 = vld [vmem:[%s124 + $0xb28] sm:$0xff]
        %v513 = vld [vmem:[%s124 + $0xb30] sm:$0xff]
        %v514 = vld [vmem:[%s124 + $0xb38] sm:$0xff]
        %v515 = vld [vmem:[%s124 + $0xb40] sm:$0xff]
        %v516 = vld [vmem:[%s124 + $0xb48] sm:$0xff]
        %v517 = vld [vmem:[%s124 + $0xb50] sm:$0xff]
        %v518 = vld [vmem:[%s124 + $0xb58] sm:$0xff]
        %v519 = vld [vmem:[%s124 + $0xb60] sm:$0xff]
        %v520 = vld [vmem:[%s124 + $0xb68] sm:$0xff]
        %v521 = vld [vmem:[%s124 + $0xb70] sm:$0xff]
        %v522 = vld [vmem:[%s124 + $0xb78] sm:$0xff]
        %v523 = vld [vmem:[%s124 + $0xb80] sm:$0xff]
        %v524 = vld [vmem:[%s124 + $0xb88] sm:$0xff]
        %v525 = vld [vmem:[%s124 + $0xb90] sm:$0xff]
        %v526 = vld [vmem:[%s124 + $0xb98] sm:$0xff]
        %v527 = vld [vmem:[%s124 + $0xba0] sm:$0xff]
        %v528 = vld [vmem:[%s124 + $0xba8] sm:$0xff]
        %v529 = vld [vmem:[%s124 + $0xbb0] sm:$0xff]
        %v530 = vld [vmem:[%s124 + $0xbb8] sm:$0xff]
        %v531 = vld [vmem:[%s124 + $0xbc0] sm:$0xff]
        %v532 = vld [vmem:[%s124 + $0xbc8] sm:$0xff]
        %v533 = vld [vmem:[%s124 + $0xbd0] sm:$0xff]
        %v534 = vld [vmem:[%s124 + $0xbd8] sm:$0xff]
        %v535 = vld [vmem:[%s124 + $0xbe0] sm:$0xff]
        %v536 = vld [vmem:[%s124 + $0xbe8] sm:$0xff]
        %v537 = vld [vmem:[%s124 + $0xbf0] sm:$0xff]
        %v538 = vld [vmem:[%s124 + $0xbf8] sm:$0xff]
        %v539 = vld [vmem:[%s124 + $0xc00] sm:$0xff]
        %v540 = vld [vmem:[%s124 + $0xc08] sm:$0xff]
        %v541 = vld [vmem:[%s124 + $0xc10] sm:$0xff]
        %v542 = vld [vmem:[%s124 + $0xc18] sm:$0xff]
        %v543 = vld [vmem:[%s124 + $0xc20] sm:$0xff]
        %v544 = vld [vmem:[%s124 + $0xc28] sm:$0xff]
        %v545 = vld [vmem:[%s124 + $0xc30] sm:$0xff]
        %v546 = vld [vmem:[%s124 + $0xc38] sm:$0xff]
        %v547 = vld [vmem:[%s124 + $0xc40] sm:$0xff]
        %v548 = vld [vmem:[%s124 + $0xc48] sm:$0xff]
        %v549 = vld [vmem:[%s124 + $0xc50] sm:$0xff]
        %v550 = vld [vmem:[%s124 + $0xc58] sm:$0xff]
        %v551 = vld [vmem:[%s124 + $0xc60] sm:$0xff]
        %v552 = vld [vmem:[%s124 + $0xc68] sm:$0xff]
        %v553 = vld [vmem:[%s124 + $0xc70] sm:$0xff]
        %v554 = vld [vmem:[%s124 + $0xc78] sm:$0xff]
        %v555 = vld [vmem:[%s124 + $0xc80] sm:$0xff]
        %v556 = vld [vmem:[%s124 + $0xc88] sm:$0xff]
        %v557 = vld [vmem:[%s124 + $0xc90] sm:$0xff]
        %v558 = vld [vmem:[%s124 + $0xc98] sm:$0xff]
        %v559 = vld [vmem:[%s124 + $0xca0] sm:$0xff]
        %v560 = vld [vmem:[%s124 + $0xca8] sm:$0xff]
        %v561 = vld [vmem:[%s124 + $0xcb0] sm:$0xff]
        %v562 = vld [vmem:[%s124 + $0xcb8] sm:$0xff]
        %v563 = vld [vmem:[%s124 + $0xcc0] sm:$0xff]
        %v564 = vld [vmem:[%s124 + $0xcc8] sm:$0xff]
        %v565 = vld [vmem:[%s124 + $0xcd0] sm:$0xff]
        %v566 = vld [vmem:[%s124 + $0xcd8] sm:$0xff]
        %v567 = vld [vmem:[%s124 + $0xce0] sm:$0xff]
        %v568 = vld [vmem:[%s124 + $0xce8] sm:$0xff]
        %v569 = vld [vmem:[%s124 + $0xcf0] sm:$0xff]
        %v570 = vld [vmem:[%s124 + $0xcf8] sm:$0xff]
        %v571 = vld [vmem:[%s124 + $0xd00] sm:$0xff]
        %v572 = vld [vmem:[%s124 + $0xd08] sm:$0xff]
        %v573 = vld [vmem:[%s124 + $0xd10] sm:$0xff]
        %v574 = vld [vmem:[%s124 + $0xd18] sm:$0xff]
        %v575 = vld [vmem:[%s124 + $0xd20] sm:$0xff]
        %v576 = vld [vmem:[%s124 + $0xd28] sm:$0xff]
        %v577 = vld [vmem:[%s124 + $0xd30] sm:$0xff]
        %v578 = vld [vmem:[%s124 + $0xd38] sm:$0xff]
        %v579 = vld [vmem:[%s124 + $0xd40] sm:$0xff]
        %v580 = vld [vmem:[%s124 + $0xd48] sm:$0xff]
        %v581 = vld [vmem:[%s124 + $0xd50] sm:$0xff]
        %v582 = vld [vmem:[%s124 + $0xd58] sm:$0xff]
        %v583 = vld [vmem:[%s124 + $0xd60] sm:$0xff]
        %v584 = vld [vmem:[%s124 + $0xd68] sm:$0xff]
        %v585 = vld [vmem:[%s124 + $0xd70] sm:$0xff]
        %v586 = vld [vmem:[%s124 + $0xd78] sm:$0xff]
        %v587 = vld [vmem:[%s124 + $0xd80] sm:$0xff]
        %v588 = vld [vmem:[%s124 + $0xd88] sm:$0xff]
        %v589 = vld [vmem:[%s124 + $0xd90] sm:$0xff]
        %v590 = vld [vmem:[%s124 + $0xd98] sm:$0xff]
        %v591 = vld [vmem:[%s124 + $0xda0] sm:$0xff]
        %v592 = vld [vmem:[%s124 + $0xda8] sm:$0xff]
        %v593 = vld [vmem:[%s124 + $0xdb0] sm:$0xff]
        %v594 = vld [vmem:[%s124 + $0xdb8] sm:$0xff]
        %v595 = vld [vmem:[%s124 + $0xdc0] sm:$0xff]
        %v596 = vld [vmem:[%s124 + $0xdc8] sm:$0xff]
        %v597 = vld [vmem:[%s124 + $0xdd0] sm:$0xff]
        %v598 = vld [vmem:[%s124 + $0xdd8] sm:$0xff]
        %v599 = vld [vmem:[%s124 + $0xde0] sm:$0xff]
        %v600 = vld [vmem:[%s124 + $0xde8] sm:$0xff]
        %v601 = vld [vmem:[%s124 + $0xdf0] sm:$0xff]
        %v602 = vld [vmem:[%s124 + $0xdf8] sm:$0xff]
        %v603 = vld [vmem:[%s124 + $0xe00] sm:$0xff]
        %v604 = vld [vmem:[%s124 + $0xe08] sm:$0xff]
        %v605 = vld [vmem:[%s124 + $0xe10] sm:$0xff]
        %v606 = vld [vmem:[%s124 + $0xe18] sm:$0xff]
        %v607 = vld [vmem:[%s124 + $0xe20] sm:$0xff]
        %v608 = vld [vmem:[%s124 + $0xe28] sm:$0xff]
        %v609 = vld [vmem:[%s124 + $0xe30] sm:$0xff]
        %v610 = vld [vmem:[%s124 + $0xe38] sm:$0xff]
        %v611 = vld [vmem:[%s124 + $0xe40] sm:$0xff]
        %v612 = vld [vmem:[%s124 + $0xe48] sm:$0xff]
        %v613 = vld [vmem:[%s124 + $0xe50] sm:$0xff]
        %v614 = vld [vmem:[%s124 + $0xe58] sm:$0xff]
        %v615 = vld [vmem:[%s124 + $0xe60] sm:$0xff]
        %v616 = vld [vmem:[%s124 + $0xe68] sm:$0xff]
        %v617 = vld [vmem:[%s124 + $0xe70] sm:$0xff]
        %v618 = vld [vmem:[%s124 + $0xe78] sm:$0xff]
        %v619 = vld [vmem:[%s124 + $0xe80] sm:$0xff]
        %v620 = vld [vmem:[%s124 + $0xe88] sm:$0xff]
        %v621 = vld [vmem:[%s124 + $0xe90] sm:$0xff]
        %v622 = vld [vmem:[%s124 + $0xe98] sm:$0xff]
        %v623 = vld [vmem:[%s124 + $0xea0] sm:$0xff]
        %v624 = vld [vmem:[%s124 + $0xea8] sm:$0xff]
        %v625 = vld [vmem:[%s124 + $0xeb0] sm:$0xff]
        %v626 = vld [vmem:[%s124 + $0xeb8] sm:$0xff]
        %v627 = vld [vmem:[%s124 + $0xec0] sm:$0xff]
        %v628 = vld [vmem:[%s124 + $0xec8] sm:$0xff]
        %v629 = vld [vmem:[%s124 + $0xed0] sm:$0xff]
        %v630 = vld [vmem:[%s124 + $0xed8] sm:$0xff]
        %v631 = vld [vmem:[%s124 + $0xee0] sm:$0xff]
        %v632 = vld [vmem:[%s124 + $0xee8] sm:$0xff]
        %v633 = vld [vmem:[%s124 + $0xef0] sm:$0xff]
        %v634 = vld [vmem:[%s124 + $0xef8] sm:$0xff]
        %v635 = vld [vmem:[%s124 + $0xf00] sm:$0xff]
        %v636 = vld [vmem:[%s124 + $0xf08] sm:$0xff]
        %v637 = vld [vmem:[%s124 + $0xf10] sm:$0xff]
        %v638 = vld [vmem:[%s124 + $0xf18] sm:$0xff]
        %v639 = vld [vmem:[%s124 + $0xf20] sm:$0xff]
        %v640 = vld [vmem:[%s124 + $0xf28] sm:$0xff]
        %v641 = vld [vmem:[%s124 + $0xf30] sm:$0xff]
        %v642 = vld [vmem:[%s124 + $0xf38] sm:$0xff]
        %v643 = vld [vmem:[%s124 + $0xf40] sm:$0xff]
        %v644 = vld [vmem:[%s124 + $0xf48] sm:$0xff]
        %v645 = vld [vmem:[%s124 + $0xf50] sm:$0xff]
        %v646 = vld [vmem:[%s124 + $0xf58] sm:$0xff]
        %v647 = vld [vmem:[%s124 + $0xf60] sm:$0xff]
        %v648 = vld [vmem:[%s124 + $0xf68] sm:$0xff]
        %v649 = vld [vmem:[%s124 + $0xf70] sm:$0xff]
        %v650 = vld [vmem:[%s124 + $0xf78] sm:$0xff]
        %v651 = vld [vmem:[%s124 + $0xf80] sm:$0xff]
        %v652 = vld [vmem:[%s124 + $0xf88] sm:$0xff]
        %v653 = vld [vmem:[%s124 + $0xf90] sm:$0xff]
        %v654 = vld [vmem:[%s124 + $0xf98] sm:$0xff]
        %v655 = vld [vmem:[%s124 + $0xfa0] sm:$0xff]
        %v656 = vld [vmem:[%s124 + $0xfa8] sm:$0xff]
        %v657 = vld [vmem:[%s124 + $0xfb0] sm:$0xff]
        %v658 = vld [vmem:[%s124 + $0xfb8] sm:$0xff]
        %v659 = vsub.f32 %v155, 4.6595
        %v660 = vsub.f32 %v156, 4.6595
        %v661 = vsub.f32 %v157, 4.6595
        %v662 = vsub.f32 %v158, 4.6595
        %v663 = vsub.f32 %v159, 4.6595
        %v664 = vsub.f32 %v160, 4.6595
        %v665 = vsub.f32 %v161, 4.6595
        %v666 = vsub.f32 %v162, 4.6595
        %v667 = vsub.f32 %v163, 4.6595
        %v668 = vsub.f32 %v164, 4.6595
        %v669 = vsub.f32 %v165, 4.6595
        %v670 = vsub.f32 %v166, 4.6595
        %v671 = vsub.f32 %v167, 4.6595
        %v672 = vsub.f32 %v168, 4.6595
        %v673 = vsub.f32 %v169, 4.6595
        %v674 = vsub.f32 %v170, 4.6595
        %v675 = vsub.f32 %v171, 4.6595
        %v676 = vsub.f32 %v172, 4.6595
        %v677 = vsub.f32 %v173, 4.6595
        %v678 = vsub.f32 %v174, 4.6595
        %v679 = vsub.f32 %v175, 4.6595
        %v680 = vsub.f32 %v176, 4.6595
        %v681 = vsub.f32 %v177, 4.6595
        %v682 = vsub.f32 %v178, 4.6595
        %v683 = vsub.f32 %v179, 4.6595
        %v684 = vsub.f32 %v180, 4.6595
        %v685 = vsub.f32 %v181, 4.6595
        %v686 = vsub.f32 %v182, 4.6595
        %v687 = vsub.f32 %v183, 4.6595
        %v688 = vsub.f32 %v184, 4.6595
        %v689 = vsub.f32 %v185, 4.6595
        %v690 = vsub.f32 %v186, 4.6595
        %v691 = vsub.f32 %v187, 4.6595
        %v692 = vsub.f32 %v188, 4.6595
        %v693 = vsub.f32 %v189, 4.6595
        %v694 = vsub.f32 %v190, 4.6595
        %v695 = vsub.f32 %v191, 4.6595
        %v696 = vsub.f32 %v192, 4.6595
        %v697 = vsub.f32 %v193, 4.6595
        %v698 = vsub.f32 %v194, 4.6595
        %v699 = vsub.f32 %v195, 4.6595
        %v700 = vsub.f32 %v196, 4.6595
        %v701 = vsub.f32 %v197, 4.6595
        %v702 = vsub.f32 %v198, 4.6595
        %v703 = vsub.f32 %v199, 4.6595
        %v704 = vsub.f32 %v200, 4.6595
        %v705 = vsub.f32 %v201, 4.6595
        %v706 = vsub.f32 %v202, 4.6595
        %v707 = vsub.f32 %v203, 4.6595
        %v708 = vsub.f32 %v204, 4.6595
        %v709 = vsub.f32 %v205, 4.6595
        %v710 = vsub.f32 %v206, 4.6595
        %v711 = vsub.f32 %v207, 4.6595
        %v712 = vsub.f32 %v208, 4.6595
        %v713 = vsub.f32 %v209, 4.6595
        %v714 = vsub.f32 %v210, 4.6595
        %v715 = vsub.f32 %v211, 4.6595
        %v716 = vsub.f32 %v212, 4.6595
        %v717 = vsub.f32 %v213, 4.6595
        %v718 = vsub.f32 %v214, 4.6595
        %v719 = vsub.f32 %v215, 4.6595
        %v720 = vsub.f32 %v216, 4.6595
        %v721 = vsub.f32 %v217, 4.6595
        %v722 = vsub.f32 %v218, 4.6595
        %v723 = vsub.f32 %v219, 4.6595
        %v724 = vsub.f32 %v220, 4.6595
        %v725 = vsub.f32 %v221, 4.6595
        %v726 = vsub.f32 %v222, 4.6595
        %v727 = vsub.f32 %v223, 4.6595
        %v728 = vsub.f32 %v224, 4.6595
        %v729 = vsub.f32 %v225, 4.6595
        %v730 = vsub.f32 %v226, 4.6595
        %v731 = vsub.f32 %v227, 4.6595
        %v732 = vsub.f32 %v228, 4.6595
        %v733 = vsub.f32 %v229, 4.6595
        %v734 = vsub.f32 %v230, 4.6595
        %v735 = vsub.f32 %v231, 4.6595
        %v736 = vsub.f32 %v232, 4.6595
        %v737 = vsub.f32 %v233, 4.6595
        %v738 = vsub.f32 %v234, 4.6595
        %v739 = vsub.f32 %v235, 4.6595
        %v740 = vsub.f32 %v236, 4.6595
        %v741 = vsub.f32 %v237, 4.6595
        %v742 = vsub.f32 %v238, 4.6595
        %v743 = vsub.f32 %v239, 4.6595
        %v744 = vsub.f32 %v240, 4.6595
        %v745 = vsub.f32 %v241, 4.6595
        %v746 = vsub.f32 %v242, 4.6595
        %v747 = vsub.f32 %v243, 4.6595
        %v748 = vsub.f32 %v244, 4.6595
        %v749 = vsub.f32 %v245, 4.6595
        %v750 = vsub.f32 %v246, 4.6595
        %v751 = vsub.f32 %v247, 4.6595
        %v752 = vsub.f32 %v248, 4.6595
        %v753 = vsub.f32 %v249, 4.6595
        %v754 = vsub.f32 %v250, 4.6595
        %v755 = vsub.f32 %v251, 4.6595
        %v756 = vsub.f32 %v252, 4.6595
        %v757 = vsub.f32 %v253, 4.6595
        %v758 = vsub.f32 %v254, 4.6595
        %v759 = vsub.f32 %v255, 4.6595
        %v760 = vsub.f32 %v256, 4.6595
        %v761 = vsub.f32 %v257, 4.6595
        %v762 = vsub.f32 %v258, 4.6595
        %v763 = vsub.f32 %v259, 4.6595
        %v764 = vsub.f32 %v260, 4.6595
        %v765 = vsub.f32 %v261, 4.6595
        %v766 = vsub.f32 %v262, 4.6595
        %v767 = vsub.f32 %v263, 4.6595
        %v768 = vsub.f32 %v264, 4.6595
        %v769 = vsub.f32 %v265, 4.6595
        %v770 = vsub.f32 %v266, 4.6595
        %v771 = vsub.f32 %v267, 4.6595
        %v772 = vsub.f32 %v268, 4.6595
        %v773 = vsub.f32 %v269, 4.6595
        %v774 = vsub.f32 %v270, 4.6595
        %v775 = vsub.f32 %v271, 4.6595
        %v776 = vsub.f32 %v272, 4.6595
        %v777 = vsub.f32 %v273, 4.6595
        %v778 = vsub.f32 %v274, 4.6595
        %v779 = vsub.f32 %v275, 4.6595
        %v780 = vsub.f32 %v276, 4.6595
        %v781 = vsub.f32 %v277, 4.6595
        %v782 = vsub.f32 %v278, 4.6595
        %v783 = vsub.f32 %v279, 4.6595
        %v784 = vsub.f32 %v280, 4.6595
        %v785 = vsub.f32 %v281, 4.6595
        %v786 = vsub.f32 %v282, 4.6595
        %v787 = vsub.f32 %v283, 4.6595
        %v788 = vsub.f32 %v284, 4.6595
        %v789 = vsub.f32 %v285, 4.6595
        %v790 = vsub.f32 %v286, 4.6595
        %v791 = vsub.f32 %v287, 4.6595
        %v792 = vsub.f32 %v288, 4.6595
        %v793 = vsub.f32 %v289, 4.6595
        %v794 = vsub.f32 %v290, 4.6595
        %v795 = vsub.f32 %v291, 4.6595
        %v796 = vsub.f32 %v292, 4.6595
        %v797 = vsub.f32 %v293, 4.6595
        %v798 = vsub.f32 %v294, 4.6595
        %v799 = vsub.f32 %v295, 4.6595
        %v800 = vsub.f32 %v296, 4.6595
        %v801 = vsub.f32 %v297, 4.6595
        %v802 = vsub.f32 %v298, 4.6595
        %v803 = vsub.f32 %v299, 4.6595
        %v804 = vsub.f32 %v300, 4.6595
        %v805 = vsub.f32 %v301, 4.6595
        %v806 = vsub.f32 %v302, 4.6595
        %v807 = vsub.f32 %v303, 4.6595
        %v808 = vsub.f32 %v304, 4.6595
        %v809 = vsub.f32 %v305, 4.6595
        %v810 = vsub.f32 %v306, 4.6595
        %v811 = vsub.f32 %v307, 4.6595
        %v812 = vsub.f32 %v308, 4.6595
        %v813 = vsub.f32 %v309, 4.6595
        %v814 = vsub.f32 %v310, 4.6595
        %v815 = vsub.f32 %v311, 4.6595
        %v816 = vsub.f32 %v312, 4.6595
        %v817 = vsub.f32 %v313, 4.6595
        %v818 = vsub.f32 %v314, 4.6595
        %v819 = vsub.f32 %v315, 4.6595
        %v820 = vsub.f32 %v316, 4.6595
        %v821 = vsub.f32 %v317, 4.6595
        %v822 = vsub.f32 %v318, 4.6595
        %v823 = vsub.f32 %v319, 4.6595
        %v824 = vsub.f32 %v320, 4.6595
        %v825 = vsub.f32 %v321, 4.6595
        %v826 = vsub.f32 %v322, 4.6595
        %v827 = vsub.f32 %v323, 4.6595
        %v828 = vsub.f32 %v324, 4.6595
        %v829 = vsub.f32 %v325, 4.6595
        %v830 = vsub.f32 %v326, 4.6595
        %v831 = vsub.f32 %v327, 4.6595
        %v832 = vsub.f32 %v328, 4.6595
        %v833 = vsub.f32 %v329, 4.6595
        %v834 = vsub.f32 %v330, 4.6595
        %v835 = vsub.f32 %v331, 4.6595
        %v836 = vsub.f32 %v332, 4.6595
        %v837 = vsub.f32 %v333, 4.6595
        %v838 = vsub.f32 %v334, 4.6595
        %v839 = vsub.f32 %v335, 4.6595
        %v840 = vsub.f32 %v336, 4.6595
        %v841 = vsub.f32 %v337, 4.6595
        %v842 = vsub.f32 %v338, 4.6595
        %v843 = vsub.f32 %v339, 4.6595
        %v844 = vsub.f32 %v340, 4.6595
        %v845 = vsub.f32 %v341, 4.6595
        %v846 = vsub.f32 %v342, 4.6595
        %v847 = vsub.f32 %v343, 4.6595
        %v848 = vsub.f32 %v344, 4.6595
        %v849 = vsub.f32 %v345, 4.6595
        %v850 = vsub.f32 %v346, 4.6595
        %v851 = vsub.f32 %v347, 4.6595
        %v852 = vsub.f32 %v348, 4.6595
        %v853 = vsub.f32 %v349, 4.6595
        %v854 = vsub.f32 %v350, 4.6595
        %v855 = vsub.f32 %v351, 4.6595
        %v856 = vsub.f32 %v352, 4.6595
        %v857 = vsub.f32 %v353, 4.6595
        %v858 = vsub.f32 %v354, 4.6595
        %v859 = vsub.f32 %v355, 4.6595
        %v860 = vsub.f32 %v356, 4.6595
        %v861 = vsub.f32 %v357, 4.6595
        %v862 = vsub.f32 %v358, 4.6595
        %v863 = vsub.f32 %v359, 4.6595
        %v864 = vsub.f32 %v360, 4.6595
        %v865 = vsub.f32 %v361, 4.6595
        %v866 = vsub.f32 %v362, 4.6595
        %v867 = vsub.f32 %v363, 4.6595
        %v868 = vsub.f32 %v364, 4.6595
        %v869 = vsub.f32 %v365, 4.6595
        %v870 = vsub.f32 %v366, 4.6595
        %v871 = vsub.f32 %v367, 4.6595
        %v872 = vsub.f32 %v368, 4.6595
        %v873 = vsub.f32 %v369, 4.6595
        %v874 = vsub.f32 %v370, 4.6595
        %v875 = vsub.f32 %v371, 4.6595
        %v876 = vsub.f32 %v372, 4.6595
        %v877 = vsub.f32 %v373, 4.6595
        %v878 = vsub.f32 %v374, 4.6595
        %v879 = vsub.f32 %v375, 4.6595
        %v880 = vsub.f32 %v376, 4.6595
        %v881 = vsub.f32 %v377, 4.6595
        %v882 = vsub.f32 %v378, 4.6595
        %v883 = vsub.f32 %v379, 4.6595
        %v884 = vsub.f32 %v380, 4.6595
        %v885 = vsub.f32 %v381, 4.6595
        %v886 = vsub.f32 %v382, 4.6595
        %v887 = vsub.f32 %v383, 4.6595
        %v888 = vsub.f32 %v384, 4.6595
        %v889 = vsub.f32 %v385, 4.6595
        %v890 = vsub.f32 %v386, 4.6595
        %v891 = vsub.f32 %v387, 4.6595
        %v892 = vsub.f32 %v388, 4.6595
        %v893 = vsub.f32 %v389, 4.6595
        %v894 = vsub.f32 %v390, 4.6595
        %v895 = vsub.f32 %v391, 4.6595
        %v896 = vsub.f32 %v392, 4.6595
        %v897 = vsub.f32 %v393, 4.6595
        %v898 = vsub.f32 %v394, 4.6595
        %v899 = vsub.f32 %v395, 4.6595
        %v900 = vsub.f32 %v396, 4.6595
        %v901 = vsub.f32 %v397, 4.6595
        %v902 = vsub.f32 %v398, 4.6595
        %v903 = vsub.f32 %v399, 4.6595
        %v904 = vsub.f32 %v400, 4.6595
        %v905 = vsub.f32 %v401, 4.6595
        %v906 = vsub.f32 %v402, 4.6595
        %v907 = vsub.f32 %v403, 4.6595
        %v908 = vsub.f32 %v404, 4.6595
        %v909 = vsub.f32 %v405, 4.6595
        %v910 = vsub.f32 %v406, 4.6595
        %v911 = vsub.f32 %v407, 4.6595
        %v912 = vsub.f32 %v408, 4.6595
        %v913 = vsub.f32 %v409, 4.6595
        %v914 = vsub.f32 %v410, 4.6595
        %v915 = vsub.f32 %v411, 4.6595
        %v916 = vsub.f32 %v412, 4.6595
        %v917 = vsub.f32 %v413, 4.6595
        %v918 = vsub.f32 %v414, 4.6595
        %v919 = vsub.f32 %v415, 4.6595
        %v920 = vsub.f32 %v416, 4.6595
        %v921 = vsub.f32 %v417, 4.6595
        %v922 = vsub.f32 %v418, 4.6595
        %v923 = vsub.f32 %v419, 4.6595
        %v924 = vsub.f32 %v420, 4.6595
        %v925 = vsub.f32 %v421, 4.6595
        %v926 = vsub.f32 %v422, 4.6595
        %v927 = vsub.f32 %v423, 4.6595
        %v928 = vsub.f32 %v424, 4.6595
        %v929 = vsub.f32 %v425, 4.6595
        %v930 = vsub.f32 %v426, 4.6595
        %v931 = vsub.f32 %v427, 4.6595
        %v932 = vsub.f32 %v428, 4.6595
        %v933 = vsub.f32 %v429, 4.6595
        %v934 = vsub.f32 %v430, 4.6595
        %v935 = vsub.f32 %v431, 4.6595
        %v936 = vsub.f32 %v432, 4.6595
        %v937 = vsub.f32 %v433, 4.6595
        %v938 = vsub.f32 %v434, 4.6595
        %v939 = vsub.f32 %v435, 4.6595
        %v940 = vsub.f32 %v436, 4.6595
        %v941 = vsub.f32 %v437, 4.6595
        %v942 = vsub.f32 %v438, 4.6595
        %v943 = vsub.f32 %v439, 4.6595
        %v944 = vsub.f32 %v440, 4.6595
        %v945 = vsub.f32 %v441, 4.6595
        %v946 = vsub.f32 %v442, 4.6595
        %v947 = vsub.f32 %v443, 4.6595
        %v948 = vsub.f32 %v444, 4.6595
        %v949 = vsub.f32 %v445, 4.6595
        %v950 = vsub.f32 %v446, 4.6595
        %v951 = vsub.f32 %v447, 4.6595
        %v952 = vsub.f32 %v448, 4.6595
        %v953 = vsub.f32 %v449, 4.6595
        %v954 = vsub.f32 %v450, 4.6595
        %v955 = vsub.f32 %v451, 4.6595
        %v956 = vsub.f32 %v452, 4.6595
        %v957 = vsub.f32 %v453, 4.6595
        %v958 = vsub.f32 %v454, 4.6595
        %v959 = vsub.f32 %v455, 4.6595
        %v960 = vsub.f32 %v456, 4.6595
        %v961 = vsub.f32 %v457, 4.6595
        %v962 = vsub.f32 %v458, 4.6595
        %v963 = vsub.f32 %v459, 4.6595
        %v964 = vsub.f32 %v460, 4.6595
        %v965 = vsub.f32 %v461, 4.6595
        %v966 = vsub.f32 %v462, 4.6595
        %v967 = vsub.f32 %v463, 4.6595
        %v968 = vsub.f32 %v464, 4.6595
        %v969 = vsub.f32 %v465, 4.6595
        %v970 = vsub.f32 %v466, 4.6595
        %v971 = vsub.f32 %v467, 4.6595
        %v972 = vsub.f32 %v468, 4.6595
        %v973 = vsub.f32 %v469, 4.6595
        %v974 = vsub.f32 %v470, 4.6595
        %v975 = vsub.f32 %v471, 4.6595
        %v976 = vsub.f32 %v472, 4.6595
        %v977 = vsub.f32 %v473, 4.6595
        %v978 = vsub.f32 %v474, 4.6595
        %v979 = vsub.f32 %v475, 4.6595
        %v980 = vsub.f32 %v476, 4.6595
        %v981 = vsub.f32 %v477, 4.6595
        %v982 = vsub.f32 %v478, 4.6595
        %v983 = vsub.f32 %v479, 4.6595
        %v984 = vsub.f32 %v480, 4.6595
        %v985 = vsub.f32 %v481, 4.6595
        %v986 = vsub.f32 %v482, 4.6595
        %v987 = vsub.f32 %v483, 4.6595
        %v988 = vsub.f32 %v484, 4.6595
        %v989 = vsub.f32 %v485, 4.6595
        %v990 = vsub.f32 %v486, 4.6595
        %v991 = vsub.f32 %v487, 4.6595
        %v992 = vsub.f32 %v488, 4.6595
        %v993 = vsub.f32 %v489, 4.6595
        %v994 = vsub.f32 %v490, 4.6595
        %v995 = vsub.f32 %v491, 4.6595
        %v996 = vsub.f32 %v492, 4.6595
        %v997 = vsub.f32 %v493, 4.6595
        %v998 = vsub.f32 %v494, 4.6595
        %v999 = vsub.f32 %v495, 4.6595
        %v1000 = vsub.f32 %v496, 4.6595
        %v1001 = vsub.f32 %v497, 4.6595
        %v1002 = vsub.f32 %v498, 4.6595
        %v1003 = vsub.f32 %v499, 4.6595
        %v1004 = vsub.f32 %v500, 4.6595
        %v1005 = vsub.f32 %v501, 4.6595
        %v1006 = vsub.f32 %v502, 4.6595
        %v1007 = vsub.f32 %v503, 4.6595
        %v1008 = vsub.f32 %v504, 4.6595
        %v1009 = vsub.f32 %v505, 4.6595
        %v1010 = vsub.f32 %v506, 4.6595
        %v1011 = vsub.f32 %v507, 4.6595
        %v1012 = vsub.f32 %v508, 4.6595
        %v1013 = vsub.f32 %v509, 4.6595
        %v1014 = vsub.f32 %v510, 4.6595
        %v1015 = vsub.f32 %v511, 4.6595
        %v1016 = vsub.f32 %v512, 4.6595
        %v1017 = vsub.f32 %v513, 4.6595
        %v1018 = vsub.f32 %v514, 4.6595
        %v1019 = vsub.f32 %v515, 4.6595
        %v1020 = vsub.f32 %v516, 4.6595
        %v1021 = vsub.f32 %v517, 4.6595
        %v1022 = vsub.f32 %v518, 4.6595
        %v1023 = vsub.f32 %v519, 4.6595
        %v1024 = vsub.f32 %v520, 4.6595
        %v1025 = vsub.f32 %v521, 4.6595
        %v1026 = vsub.f32 %v522, 4.6595
        %v1027 = vsub.f32 %v523, 4.6595
        %v1028 = vsub.f32 %v524, 4.6595
        %v1029 = vsub.f32 %v525, 4.6595
        %v1030 = vsub.f32 %v526, 4.6595
        %v1031 = vsub.f32 %v527, 4.6595
        %v1032 = vsub.f32 %v528, 4.6595
        %v1033 = vsub.f32 %v529, 4.6595
        %v1034 = vsub.f32 %v530, 4.6595
        %v1035 = vsub.f32 %v531, 4.6595
        %v1036 = vsub.f32 %v532, 4.6595
        %v1037 = vsub.f32 %v533, 4.6595
        %v1038 = vsub.f32 %v534, 4.6595
        %v1039 = vsub.f32 %v535, 4.6595
        %v1040 = vsub.f32 %v536, 4.6595
        %v1041 = vsub.f32 %v537, 4.6595
        %v1042 = vsub.f32 %v538, 4.6595
        %v1043 = vsub.f32 %v539, 4.6595
        %v1044 = vsub.f32 %v540, 4.6595
        %v1045 = vsub.f32 %v541, 4.6595
        %v1046 = vsub.f32 %v542, 4.6595
        %v1047 = vsub.f32 %v543, 4.6595
        %v1048 = vsub.f32 %v544, 4.6595
        %v1049 = vsub.f32 %v545, 4.6595
        %v1050 = vsub.f32 %v546, 4.6595
        %v1051 = vsub.f32 %v547, 4.6595
        %v1052 = vsub.f32 %v548, 4.6595
        %v1053 = vsub.f32 %v549, 4.6595
        %v1054 = vsub.f32 %v550, 4.6595
        %v1055 = vsub.f32 %v551, 4.6595
        %v1056 = vsub.f32 %v552, 4.6595
        %v1057 = vsub.f32 %v553, 4.6595
        %v1058 = vsub.f32 %v554, 4.6595
        %v1059 = vsub.f32 %v555, 4.6595
        %v1060 = vsub.f32 %v556, 4.6595
        %v1061 = vsub.f32 %v557, 4.6595
        %v1062 = vsub.f32 %v558, 4.6595
        %v1063 = vsub.f32 %v559, 4.6595
        %v1064 = vsub.f32 %v560, 4.6595
        %v1065 = vsub.f32 %v561, 4.6595
        %v1066 = vsub.f32 %v562, 4.6595
        %v1067 = vsub.f32 %v563, 4.6595
        %v1068 = vsub.f32 %v564, 4.6595
        %v1069 = vsub.f32 %v565, 4.6595
        %v1070 = vsub.f32 %v566, 4.6595
        %v1071 = vsub.f32 %v567, 4.6595
        %v1072 = vsub.f32 %v568, 4.6595
        %v1073 = vsub.f32 %v569, 4.6595
        %v1074 = vsub.f32 %v570, 4.6595
        %v1075 = vsub.f32 %v571, 4.6595
        %v1076 = vsub.f32 %v572, 4.6595
        %v1077 = vsub.f32 %v573, 4.6595
        %v1078 = vsub.f32 %v574, 4.6595
        %v1079 = vsub.f32 %v575, 4.6595
        %v1080 = vsub.f32 %v576, 4.6595
        %v1081 = vsub.f32 %v577, 4.6595
        %v1082 = vsub.f32 %v578, 4.6595
        %v1083 = vsub.f32 %v579, 4.6595
        %v1084 = vsub.f32 %v580, 4.6595
        %v1085 = vsub.f32 %v581, 4.6595
        %v1086 = vsub.f32 %v582, 4.6595
        %v1087 = vsub.f32 %v583, 4.6595
        %v1088 = vsub.f32 %v584, 4.6595
        %v1089 = vsub.f32 %v585, 4.6595
        %v1090 = vsub.f32 %v586, 4.6595
        %v1091 = vsub.f32 %v587, 4.6595
        %v1092 = vsub.f32 %v588, 4.6595
        %v1093 = vsub.f32 %v589, 4.6595
        %v1094 = vsub.f32 %v590, 4.6595
        %v1095 = vsub.f32 %v591, 4.6595
        %v1096 = vsub.f32 %v592, 4.6595
        %v1097 = vsub.f32 %v593, 4.6595
        %v1098 = vsub.f32 %v594, 4.6595
        %v1099 = vsub.f32 %v595, 4.6595
        %v1100 = vsub.f32 %v596, 4.6595
        %v1101 = vsub.f32 %v597, 4.6595
        %v1102 = vsub.f32 %v598, 4.6595
        %v1103 = vsub.f32 %v599, 4.6595
        %v1104 = vsub.f32 %v600, 4.6595
        %v1105 = vsub.f32 %v601, 4.6595
        %v1106 = vsub.f32 %v602, 4.6595
        %v1107 = vsub.f32 %v603, 4.6595
        %v1108 = vsub.f32 %v604, 4.6595
        %v1109 = vsub.f32 %v605, 4.6595
        %v1110 = vsub.f32 %v606, 4.6595
        %v1111 = vsub.f32 %v607, 4.6595
        %v1112 = vsub.f32 %v608, 4.6595
        %v1113 = vsub.f32 %v609, 4.6595
        %v1114 = vsub.f32 %v610, 4.6595
        %v1115 = vsub.f32 %v611, 4.6595
        %v1116 = vsub.f32 %v612, 4.6595
        %v1117 = vsub.f32 %v613, 4.6595
        %v1118 = vsub.f32 %v614, 4.6595
        %v1119 = vsub.f32 %v615, 4.6595
        %v1120 = vsub.f32 %v616, 4.6595
        %v1121 = vsub.f32 %v617, 4.6595
        %v1122 = vsub.f32 %v618, 4.6595
        %v1123 = vsub.f32 %v619, 4.6595
        %v1124 = vsub.f32 %v620, 4.6595
        %v1125 = vsub.f32 %v621, 4.6595
        %v1126 = vsub.f32 %v622, 4.6595
        %v1127 = vsub.f32 %v623, 4.6595
        %v1128 = vsub.f32 %v624, 4.6595
        %v1129 = vsub.f32 %v625, 4.6595
        %v1130 = vsub.f32 %v626, 4.6595
        %v1131 = vsub.f32 %v627, 4.6595
        %v1132 = vsub.f32 %v628, 4.6595
        %v1133 = vsub.f32 %v629, 4.6595
        %v1134 = vsub.f32 %v630, 4.6595
        %v1135 = vsub.f32 %v631, 4.6595
        %v1136 = vsub.f32 %v632, 4.6595
        %v1137 = vsub.f32 %v633, 4.6595
        %v1138 = vsub.f32 %v634, 4.6595
        %v1139 = vsub.f32 %v635, 4.6595
        %v1140 = vsub.f32 %v636, 4.6595
        %v1141 = vsub.f32 %v637, 4.6595
        %v1142 = vsub.f32 %v638, 4.6595
        %v1143 = vsub.f32 %v639, 4.6595
        %v1144 = vsub.f32 %v640, 4.6595
        %v1145 = vsub.f32 %v641, 4.6595
        %v1146 = vsub.f32 %v642, 4.6595
        %v1147 = vsub.f32 %v643, 4.6595
        %v1148 = vsub.f32 %v644, 4.6595
        %v1149 = vsub.f32 %v645, 4.6595
        %v1150 = vsub.f32 %v646, 4.6595
        %v1151 = vsub.f32 %v647, 4.6595
        %v1152 = vsub.f32 %v648, 4.6595
        %v1153 = vsub.f32 %v649, 4.6595
        %v1154 = vsub.f32 %v650, 4.6595
        %v1155 = vsub.f32 %v651, 4.6595
        %v1156 = vsub.f32 %v652, 4.6595
        %v1157 = vsub.f32 %v653, 4.6595
        %v1158 = vsub.f32 %v654, 4.6595
        %v1159 = vsub.f32 %v655, 4.6595
        %v1160 = vsub.f32 %v656, 4.6595
        %v1161 = vsub.f32 %v657, 4.6595
        %v1162 = vsub.f32 %v658, 4.6595
        %v1163 = vmul.f32 %v659, 2.9368575
        %v1164 = vmul.f32 %v660, 2.9368575
        %v1165 = vmul.f32 %v661, 2.9368575
        %v1166 = vmul.f32 %v662, 2.9368575
        %v1167 = vmul.f32 %v663, 2.9368575
        %v1168 = vmul.f32 %v664, 2.9368575
        %v1169 = vmul.f32 %v665, 2.9368575
        %v1170 = vmul.f32 %v666, 2.9368575
        %v1171 = vmul.f32 %v667, 2.9368575
        %v1172 = vmul.f32 %v668, 2.9368575
        %v1173 = vmul.f32 %v669, 2.9368575
        %v1174 = vmul.f32 %v670, 2.9368575
        %v1175 = vmul.f32 %v671, 2.9368575
        %v1176 = vmul.f32 %v672, 2.9368575
        %v1177 = vmul.f32 %v673, 2.9368575
        %v1178 = vmul.f32 %v674, 2.9368575
        %v1179 = vmul.f32 %v675, 2.9368575
        %v1180 = vmul.f32 %v676, 2.9368575
        %v1181 = vmul.f32 %v677, 2.9368575
        %v1182 = vmul.f32 %v678, 2.9368575
        %v1183 = vmul.f32 %v679, 2.9368575
        %v1184 = vmul.f32 %v680, 2.9368575
        %v1185 = vmul.f32 %v681, 2.9368575
        %v1186 = vmul.f32 %v682, 2.9368575
        %v1187 = vmul.f32 %v683, 2.9368575
        %v1188 = vmul.f32 %v684, 2.9368575
        %v1189 = vmul.f32 %v685, 2.9368575
        %v1190 = vmul.f32 %v686, 2.9368575
        %v1191 = vmul.f32 %v687, 2.9368575
        %v1192 = vmul.f32 %v688, 2.9368575
        %v1193 = vmul.f32 %v689, 2.9368575
        %v1194 = vmul.f32 %v690, 2.9368575
        %v1195 = vmul.f32 %v691, 2.9368575
        %v1196 = vmul.f32 %v692, 2.9368575
        %v1197 = vmul.f32 %v693, 2.9368575
        %v1198 = vmul.f32 %v694, 2.9368575
        %v1199 = vmul.f32 %v695, 2.9368575
        %v1200 = vmul.f32 %v696, 2.9368575
        %v1201 = vmul.f32 %v697, 2.9368575
        %v1202 = vmul.f32 %v698, 2.9368575
        %v1203 = vmul.f32 %v699, 2.9368575
        %v1204 = vmul.f32 %v700, 2.9368575
        %v1205 = vmul.f32 %v701, 2.9368575
        %v1206 = vmul.f32 %v702, 2.9368575
        %v1207 = vmul.f32 %v703, 2.9368575
        %v1208 = vmul.f32 %v704, 2.9368575
        %v1209 = vmul.f32 %v705, 2.9368575
        %v1210 = vmul.f32 %v706, 2.9368575
        %v1211 = vmul.f32 %v707, 2.9368575
        %v1212 = vmul.f32 %v708, 2.9368575
        %v1213 = vmul.f32 %v709, 2.9368575
        %v1214 = vmul.f32 %v710, 2.9368575
        %v1215 = vmul.f32 %v711, 2.9368575
        %v1216 = vmul.f32 %v712, 2.9368575
        %v1217 = vmul.f32 %v713, 2.9368575
        %v1218 = vmul.f32 %v714, 2.9368575
        %v1219 = vmul.f32 %v715, 2.9368575
        %v1220 = vmul.f32 %v716, 2.9368575
        %v1221 = vmul.f32 %v717, 2.9368575
        %v1222 = vmul.f32 %v718, 2.9368575
        %v1223 = vmul.f32 %v719, 2.9368575
        %v1224 = vmul.f32 %v720, 2.9368575
        %v1225 = vmul.f32 %v721, 2.9368575
        %v1226 = vmul.f32 %v722, 2.9368575
        %v1227 = vmul.f32 %v723, 2.9368575
        %v1228 = vmul.f32 %v724, 2.9368575
        %v1229 = vmul.f32 %v725, 2.9368575
        %v1230 = vmul.f32 %v726, 2.9368575
        %v1231 = vmul.f32 %v727, 2.9368575
        %v1232 = vmul.f32 %v728, 2.9368575
        %v1233 = vmul.f32 %v729, 2.9368575
        %v1234 = vmul.f32 %v730, 2.9368575
        %v1235 = vmul.f32 %v731, 2.9368575
        %v1236 = vmul.f32 %v732, 2.9368575
        %v1237 = vmul.f32 %v733, 2.9368575
        %v1238 = vmul.f32 %v734, 2.9368575
        %v1239 = vmul.f32 %v735, 2.9368575
        %v1240 = vmul.f32 %v736, 2.9368575
        %v1241 = vmul.f32 %v737, 2.9368575
        %v1242 = vmul.f32 %v738, 2.9368575
        %v1243 = vmul.f32 %v739, 2.9368575
        %v1244 = vmul.f32 %v740, 2.9368575
        %v1245 = vmul.f32 %v741, 2.9368575
        %v1246 = vmul.f32 %v742, 2.9368575
        %v1247 = vmul.f32 %v743, 2.9368575
        %v1248 = vmul.f32 %v744, 2.9368575
        %v1249 = vmul.f32 %v745, 2.9368575
        %v1250 = vmul.f32 %v746, 2.9368575
        %v1251 = vmul.f32 %v747, 2.9368575
        %v1252 = vmul.f32 %v748, 2.9368575
        %v1253 = vmul.f32 %v749, 2.9368575
        %v1254 = vmul.f32 %v750, 2.9368575
        %v1255 = vmul.f32 %v751, 2.9368575
        %v1256 = vmul.f32 %v752, 2.9368575
        %v1257 = vmul.f32 %v753, 2.9368575
        %v1258 = vmul.f32 %v754, 2.9368575
        %v1259 = vmul.f32 %v755, 2.9368575
        %v1260 = vmul.f32 %v756, 2.9368575
        %v1261 = vmul.f32 %v757, 2.9368575
        %v1262 = vmul.f32 %v758, 2.9368575
        %v1263 = vmul.f32 %v759, 2.9368575
        %v1264 = vmul.f32 %v760, 2.9368575
        %v1265 = vmul.f32 %v761, 2.9368575
        %v1266 = vmul.f32 %v762, 2.9368575
        %v1267 = vmul.f32 %v763, 2.9368575
        %v1268 = vmul.f32 %v764, 2.9368575
        %v1269 = vmul.f32 %v765, 2.9368575
        %v1270 = vmul.f32 %v766, 2.9368575
        %v1271 = vmul.f32 %v767, 2.9368575
        %v1272 = vmul.f32 %v768, 2.9368575
        %v1273 = vmul.f32 %v769, 2.9368575
        %v1274 = vmul.f32 %v770, 2.9368575
        %v1275 = vmul.f32 %v771, 2.9368575
        %v1276 = vmul.f32 %v772, 2.9368575
        %v1277 = vmul.f32 %v773, 2.9368575
        %v1278 = vmul.f32 %v774, 2.9368575
        %v1279 = vmul.f32 %v775, 2.9368575
        %v1280 = vmul.f32 %v776, 2.9368575
        %v1281 = vmul.f32 %v777, 2.9368575
        %v1282 = vmul.f32 %v778, 2.9368575
        %v1283 = vmul.f32 %v779, 2.9368575
        %v1284 = vmul.f32 %v780, 2.9368575
        %v1285 = vmul.f32 %v781, 2.9368575
        %v1286 = vmul.f32 %v782, 2.9368575
        %v1287 = vmul.f32 %v783, 2.9368575
        %v1288 = vmul.f32 %v784, 2.9368575
        %v1289 = vmul.f32 %v785, 2.9368575
        %v1290 = vmul.f32 %v786, 2.9368575
        %v1291 = vmul.f32 %v787, 2.9368575
        %v1292 = vmul.f32 %v788, 2.9368575
        %v1293 = vmul.f32 %v789, 2.9368575
        %v1294 = vmul.f32 %v790, 2.9368575
        %v1295 = vmul.f32 %v791, 2.9368575
        %v1296 = vmul.f32 %v792, 2.9368575
        %v1297 = vmul.f32 %v793, 2.9368575
        %v1298 = vmul.f32 %v794, 2.9368575
        %v1299 = vmul.f32 %v795, 2.9368575
        %v1300 = vmul.f32 %v796, 2.9368575
        %v1301 = vmul.f32 %v797, 2.9368575
        %v1302 = vmul.f32 %v798, 2.9368575
        %v1303 = vmul.f32 %v799, 2.9368575
        %v1304 = vmul.f32 %v800, 2.9368575
        %v1305 = vmul.f32 %v801, 2.9368575
        %v1306 = vmul.f32 %v802, 2.9368575
        %v1307 = vmul.f32 %v803, 2.9368575
        %v1308 = vmul.f32 %v804, 2.9368575
        %v1309 = vmul.f32 %v805, 2.9368575
        %v1310 = vmul.f32 %v806, 2.9368575
        %v1311 = vmul.f32 %v807, 2.9368575
        %v1312 = vmul.f32 %v808, 2.9368575
        %v1313 = vmul.f32 %v809, 2.9368575
        %v1314 = vmul.f32 %v810, 2.9368575
        %v1315 = vmul.f32 %v811, 2.9368575
        %v1316 = vmul.f32 %v812, 2.9368575
        %v1317 = vmul.f32 %v813, 2.9368575
        %v1318 = vmul.f32 %v814, 2.9368575
        %v1319 = vmul.f32 %v815, 2.9368575
        %v1320 = vmul.f32 %v816, 2.9368575
        %v1321 = vmul.f32 %v817, 2.9368575
        %v1322 = vmul.f32 %v818, 2.9368575
        %v1323 = vmul.f32 %v819, 2.9368575
        %v1324 = vmul.f32 %v820, 2.9368575
        %v1325 = vmul.f32 %v821, 2.9368575
        %v1326 = vmul.f32 %v822, 2.9368575
        %v1327 = vmul.f32 %v823, 2.9368575
        %v1328 = vmul.f32 %v824, 2.9368575
        %v1329 = vmul.f32 %v825, 2.9368575
        %v1330 = vmul.f32 %v826, 2.9368575
        %v1331 = vmul.f32 %v827, 2.9368575
        %v1332 = vmul.f32 %v828, 2.9368575
        %v1333 = vmul.f32 %v829, 2.9368575
        %v1334 = vmul.f32 %v830, 2.9368575
        %v1335 = vmul.f32 %v831, 2.9368575
        %v1336 = vmul.f32 %v832, 2.9368575
        %v1337 = vmul.f32 %v833, 2.9368575
        %v1338 = vmul.f32 %v834, 2.9368575
        %v1339 = vmul.f32 %v835, 2.9368575
        %v1340 = vmul.f32 %v836, 2.9368575
        %v1341 = vmul.f32 %v837, 2.9368575
        %v1342 = vmul.f32 %v838, 2.9368575
        %v1343 = vmul.f32 %v839, 2.9368575
        %v1344 = vmul.f32 %v840, 2.9368575
        %v1345 = vmul.f32 %v841, 2.9368575
        %v1346 = vmul.f32 %v842, 2.9368575
        %v1347 = vmul.f32 %v843, 2.9368575
        %v1348 = vmul.f32 %v844, 2.9368575
        %v1349 = vmul.f32 %v845, 2.9368575
        %v1350 = vmul.f32 %v846, 2.9368575
        %v1351 = vmul.f32 %v847, 2.9368575
        %v1352 = vmul.f32 %v848, 2.9368575
        %v1353 = vmul.f32 %v849, 2.9368575
        %v1354 = vmul.f32 %v850, 2.9368575
        %v1355 = vmul.f32 %v851, 2.9368575
        %v1356 = vmul.f32 %v852, 2.9368575
        %v1357 = vmul.f32 %v853, 2.9368575
        %v1358 = vmul.f32 %v854, 2.9368575
        %v1359 = vmul.f32 %v855, 2.9368575
        %v1360 = vmul.f32 %v856, 2.9368575
        %v1361 = vmul.f32 %v857, 2.9368575
        %v1362 = vmul.f32 %v858, 2.9368575
        %v1363 = vmul.f32 %v859, 2.9368575
        %v1364 = vmul.f32 %v860, 2.9368575
        %v1365 = vmul.f32 %v861, 2.9368575
        %v1366 = vmul.f32 %v862, 2.9368575
        %v1367 = vmul.f32 %v863, 2.9368575
        %v1368 = vmul.f32 %v864, 2.9368575
        %v1369 = vmul.f32 %v865, 2.9368575
        %v1370 = vmul.f32 %v866, 2.9368575
        %v1371 = vmul.f32 %v867, 2.9368575
        %v1372 = vmul.f32 %v868, 2.9368575
        %v1373 = vmul.f32 %v869, 2.9368575
        %v1374 = vmul.f32 %v870, 2.9368575
        %v1375 = vmul.f32 %v871, 2.9368575
        %v1376 = vmul.f32 %v872, 2.9368575
        %v1377 = vmul.f32 %v873, 2.9368575
        %v1378 = vmul.f32 %v874, 2.9368575
        %v1379 = vmul.f32 %v875, 2.9368575
        %v1380 = vmul.f32 %v876, 2.9368575
        %v1381 = vmul.f32 %v877, 2.9368575
        %v1382 = vmul.f32 %v878, 2.9368575
        %v1383 = vmul.f32 %v879, 2.9368575
        %v1384 = vmul.f32 %v880, 2.9368575
        %v1385 = vmul.f32 %v881, 2.9368575
        %v1386 = vmul.f32 %v882, 2.9368575
        %v1387 = vmul.f32 %v883, 2.9368575
        %v1388 = vmul.f32 %v884, 2.9368575
        %v1389 = vmul.f32 %v885, 2.9368575
        %v1390 = vmul.f32 %v886, 2.9368575
        %v1391 = vmul.f32 %v887, 2.9368575
        %v1392 = vmul.f32 %v888, 2.9368575
        %v1393 = vmul.f32 %v889, 2.9368575
        %v1394 = vmul.f32 %v890, 2.9368575
        %v1395 = vmul.f32 %v891, 2.9368575
        %v1396 = vmul.f32 %v892, 2.9368575
        %v1397 = vmul.f32 %v893, 2.9368575
        %v1398 = vmul.f32 %v894, 2.9368575
        %v1399 = vmul.f32 %v895, 2.9368575
        %v1400 = vmul.f32 %v896, 2.9368575
        %v1401 = vmul.f32 %v897, 2.9368575
        %v1402 = vmul.f32 %v898, 2.9368575
        %v1403 = vmul.f32 %v899, 2.9368575
        %v1404 = vmul.f32 %v900, 2.9368575
        %v1405 = vmul.f32 %v901, 2.9368575
        %v1406 = vmul.f32 %v902, 2.9368575
        %v1407 = vmul.f32 %v903, 2.9368575
        %v1408 = vmul.f32 %v904, 2.9368575
        %v1409 = vmul.f32 %v905, 2.9368575
        %v1410 = vmul.f32 %v906, 2.9368575
        %v1411 = vmul.f32 %v907, 2.9368575
        %v1412 = vmul.f32 %v908, 2.9368575
        %v1413 = vmul.f32 %v909, 2.9368575
        %v1414 = vmul.f32 %v910, 2.9368575
        %v1415 = vmul.f32 %v911, 2.9368575
        %v1416 = vmul.f32 %v912, 2.9368575
        %v1417 = vmul.f32 %v913, 2.9368575
        %v1418 = vmul.f32 %v914, 2.9368575
        %v1419 = vmul.f32 %v915, 2.9368575
        %v1420 = vmul.f32 %v916, 2.9368575
        %v1421 = vmul.f32 %v917, 2.9368575
        %v1422 = vmul.f32 %v918, 2.9368575
        %v1423 = vmul.f32 %v919, 2.9368575
        %v1424 = vmul.f32 %v920, 2.9368575
        %v1425 = vmul.f32 %v921, 2.9368575
        %v1426 = vmul.f32 %v922, 2.9368575
        %v1427 = vmul.f32 %v923, 2.9368575
        %v1428 = vmul.f32 %v924, 2.9368575
        %v1429 = vmul.f32 %v925, 2.9368575
        %v1430 = vmul.f32 %v926, 2.9368575
        %v1431 = vmul.f32 %v927, 2.9368575
        %v1432 = vmul.f32 %v928, 2.9368575
        %v1433 = vmul.f32 %v929, 2.9368575
        %v1434 = vmul.f32 %v930, 2.9368575
        %v1435 = vmul.f32 %v931, 2.9368575
        %v1436 = vmul.f32 %v932, 2.9368575
        %v1437 = vmul.f32 %v933, 2.9368575
        %v1438 = vmul.f32 %v934, 2.9368575
        %v1439 = vmul.f32 %v935, 2.9368575
        %v1440 = vmul.f32 %v936, 2.9368575
        %v1441 = vmul.f32 %v937, 2.9368575
        %v1442 = vmul.f32 %v938, 2.9368575
        %v1443 = vmul.f32 %v939, 2.9368575
        %v1444 = vmul.f32 %v940, 2.9368575
        %v1445 = vmul.f32 %v941, 2.9368575
        %v1446 = vmul.f32 %v942, 2.9368575
        %v1447 = vmul.f32 %v943, 2.9368575
        %v1448 = vmul.f32 %v944, 2.9368575
        %v1449 = vmul.f32 %v945, 2.9368575
        %v1450 = vmul.f32 %v946, 2.9368575
        %v1451 = vmul.f32 %v947, 2.9368575
        %v1452 = vmul.f32 %v948, 2.9368575
        %v1453 = vmul.f32 %v949, 2.9368575
        %v1454 = vmul.f32 %v950, 2.9368575
        %v1455 = vmul.f32 %v951, 2.9368575
        %v1456 = vmul.f32 %v952, 2.9368575
        %v1457 = vmul.f32 %v953, 2.9368575
        %v1458 = vmul.f32 %v954, 2.9368575
        %v1459 = vmul.f32 %v955, 2.9368575
        %v1460 = vmul.f32 %v956, 2.9368575
        %v1461 = vmul.f32 %v957, 2.9368575
        %v1462 = vmul.f32 %v958, 2.9368575
        %v1463 = vmul.f32 %v959, 2.9368575
        %v1464 = vmul.f32 %v960, 2.9368575
        %v1465 = vmul.f32 %v961, 2.9368575
        %v1466 = vmul.f32 %v962, 2.9368575
        %v1467 = vmul.f32 %v963, 2.9368575
        %v1468 = vmul.f32 %v964, 2.9368575
        %v1469 = vmul.f32 %v965, 2.9368575
        %v1470 = vmul.f32 %v966, 2.9368575
        %v1471 = vmul.f32 %v967, 2.9368575
        %v1472 = vmul.f32 %v968, 2.9368575
        %v1473 = vmul.f32 %v969, 2.9368575
        %v1474 = vmul.f32 %v970, 2.9368575
        %v1475 = vmul.f32 %v971, 2.9368575
        %v1476 = vmul.f32 %v972, 2.9368575
        %v1477 = vmul.f32 %v973, 2.9368575
        %v1478 = vmul.f32 %v974, 2.9368575
        %v1479 = vmul.f32 %v975, 2.9368575
        %v1480 = vmul.f32 %v976, 2.9368575
        %v1481 = vmul.f32 %v977, 2.9368575
        %v1482 = vmul.f32 %v978, 2.9368575
        %v1483 = vmul.f32 %v979, 2.9368575
        %v1484 = vmul.f32 %v980, 2.9368575
        %v1485 = vmul.f32 %v981, 2.9368575
        %v1486 = vmul.f32 %v982, 2.9368575
        %v1487 = vmul.f32 %v983, 2.9368575
        %v1488 = vmul.f32 %v984, 2.9368575
        %v1489 = vmul.f32 %v985, 2.9368575
        %v1490 = vmul.f32 %v986, 2.9368575
        %v1491 = vmul.f32 %v987, 2.9368575
        %v1492 = vmul.f32 %v988, 2.9368575
        %v1493 = vmul.f32 %v989, 2.9368575
        %v1494 = vmul.f32 %v990, 2.9368575
        %v1495 = vmul.f32 %v991, 2.9368575
        %v1496 = vmul.f32 %v992, 2.9368575
        %v1497 = vmul.f32 %v993, 2.9368575
        %v1498 = vmul.f32 %v994, 2.9368575
        %v1499 = vmul.f32 %v995, 2.9368575
        %v1500 = vmul.f32 %v996, 2.9368575
        %v1501 = vmul.f32 %v997, 2.9368575
        %v1502 = vmul.f32 %v998, 2.9368575
        %v1503 = vmul.f32 %v999, 2.9368575
        %v1504 = vmul.f32 %v1000, 2.9368575
        %v1505 = vmul.f32 %v1001, 2.9368575
        %v1506 = vmul.f32 %v1002, 2.9368575
        %v1507 = vmul.f32 %v1003, 2.9368575
        %v1508 = vmul.f32 %v1004, 2.9368575
        %v1509 = vmul.f32 %v1005, 2.9368575
        %v1510 = vmul.f32 %v1006, 2.9368575
        %v1511 = vmul.f32 %v1007, 2.9368575
        %v1512 = vmul.f32 %v1008, 2.9368575
        %v1513 = vmul.f32 %v1009, 2.9368575
        %v1514 = vmul.f32 %v1010, 2.9368575
        %v1515 = vmul.f32 %v1011, 2.9368575
        %v1516 = vmul.f32 %v1012, 2.9368575
        %v1517 = vmul.f32 %v1013, 2.9368575
        %v1518 = vmul.f32 %v1014, 2.9368575
        %v1519 = vmul.f32 %v1015, 2.9368575
        %v1520 = vmul.f32 %v1016, 2.9368575
        %v1521 = vmul.f32 %v1017, 2.9368575
        %v1522 = vmul.f32 %v1018, 2.9368575
        %v1523 = vmul.f32 %v1019, 2.9368575
        %v1524 = vmul.f32 %v1020, 2.9368575
        %v1525 = vmul.f32 %v1021, 2.9368575
        %v1526 = vmul.f32 %v1022, 2.9368575
        %v1527 = vmul.f32 %v1023, 2.9368575
        %v1528 = vmul.f32 %v1024, 2.9368575
        %v1529 = vmul.f32 %v1025, 2.9368575
        %v1530 = vmul.f32 %v1026, 2.9368575
        %v1531 = vmul.f32 %v1027, 2.9368575
        %v1532 = vmul.f32 %v1028, 2.9368575
        %v1533 = vmul.f32 %v1029, 2.9368575
        %v1534 = vmul.f32 %v1030, 2.9368575
        %v1535 = vmul.f32 %v1031, 2.9368575
        %v1536 = vmul.f32 %v1032, 2.9368575
        %v1537 = vmul.f32 %v1033, 2.9368575
        %v1538 = vmul.f32 %v1034, 2.9368575
        %v1539 = vmul.f32 %v1035, 2.9368575
        %v1540 = vmul.f32 %v1036, 2.9368575
        %v1541 = vmul.f32 %v1037, 2.9368575
        %v1542 = vmul.f32 %v1038, 2.9368575
        %v1543 = vmul.f32 %v1039, 2.9368575
        %v1544 = vmul.f32 %v1040, 2.9368575
        %v1545 = vmul.f32 %v1041, 2.9368575
        %v1546 = vmul.f32 %v1042, 2.9368575
        %v1547 = vmul.f32 %v1043, 2.9368575
        %v1548 = vmul.f32 %v1044, 2.9368575
        %v1549 = vmul.f32 %v1045, 2.9368575
        %v1550 = vmul.f32 %v1046, 2.9368575
        %v1551 = vmul.f32 %v1047, 2.9368575
        %v1552 = vmul.f32 %v1048, 2.9368575
        %v1553 = vmul.f32 %v1049, 2.9368575
        %v1554 = vmul.f32 %v1050, 2.9368575
        %v1555 = vmul.f32 %v1051, 2.9368575
        %v1556 = vmul.f32 %v1052, 2.9368575
        %v1557 = vmul.f32 %v1053, 2.9368575
        %v1558 = vmul.f32 %v1054, 2.9368575
        %v1559 = vmul.f32 %v1055, 2.9368575
        %v1560 = vmul.f32 %v1056, 2.9368575
        %v1561 = vmul.f32 %v1057, 2.9368575
        %v1562 = vmul.f32 %v1058, 2.9368575
        %v1563 = vmul.f32 %v1059, 2.9368575
        %v1564 = vmul.f32 %v1060, 2.9368575
        %v1565 = vmul.f32 %v1061, 2.9368575
        %v1566 = vmul.f32 %v1062, 2.9368575
        %v1567 = vmul.f32 %v1063, 2.9368575
        %v1568 = vmul.f32 %v1064, 2.9368575
        %v1569 = vmul.f32 %v1065, 2.9368575
        %v1570 = vmul.f32 %v1066, 2.9368575
        %v1571 = vmul.f32 %v1067, 2.9368575
        %v1572 = vmul.f32 %v1068, 2.9368575
        %v1573 = vmul.f32 %v1069, 2.9368575
        %v1574 = vmul.f32 %v1070, 2.9368575
        %v1575 = vmul.f32 %v1071, 2.9368575
        %v1576 = vmul.f32 %v1072, 2.9368575
        %v1577 = vmul.f32 %v1073, 2.9368575
        %v1578 = vmul.f32 %v1074, 2.9368575
        %v1579 = vmul.f32 %v1075, 2.9368575
        %v1580 = vmul.f32 %v1076, 2.9368575
        %v1581 = vmul.f32 %v1077, 2.9368575
        %v1582 = vmul.f32 %v1078, 2.9368575
        %v1583 = vmul.f32 %v1079, 2.9368575
        %v1584 = vmul.f32 %v1080, 2.9368575
        %v1585 = vmul.f32 %v1081, 2.9368575
        %v1586 = vmul.f32 %v1082, 2.9368575
        %v1587 = vmul.f32 %v1083, 2.9368575
        %v1588 = vmul.f32 %v1084, 2.9368575
        %v1589 = vmul.f32 %v1085, 2.9368575
        %v1590 = vmul.f32 %v1086, 2.9368575
        %v1591 = vmul.f32 %v1087, 2.9368575
        %v1592 = vmul.f32 %v1088, 2.9368575
        %v1593 = vmul.f32 %v1089, 2.9368575
        %v1594 = vmul.f32 %v1090, 2.9368575
        %v1595 = vmul.f32 %v1091, 2.9368575
        %v1596 = vmul.f32 %v1092, 2.9368575
        %v1597 = vmul.f32 %v1093, 2.9368575
        %v1598 = vmul.f32 %v1094, 2.9368575
        %v1599 = vmul.f32 %v1095, 2.9368575
        %v1600 = vmul.f32 %v1096, 2.9368575
        %v1601 = vmul.f32 %v1097, 2.9368575
        %v1602 = vmul.f32 %v1098, 2.9368575
        %v1603 = vmul.f32 %v1099, 2.9368575
        %v1604 = vmul.f32 %v1100, 2.9368575
        %v1605 = vmul.f32 %v1101, 2.9368575
        %v1606 = vmul.f32 %v1102, 2.9368575
        %v1607 = vmul.f32 %v1103, 2.9368575
        %v1608 = vmul.f32 %v1104, 2.9368575
        %v1609 = vmul.f32 %v1105, 2.9368575
        %v1610 = vmul.f32 %v1106, 2.9368575
        %v1611 = vmul.f32 %v1107, 2.9368575
        %v1612 = vmul.f32 %v1108, 2.9368575
        %v1613 = vmul.f32 %v1109, 2.9368575
        %v1614 = vmul.f32 %v1110, 2.9368575
        %v1615 = vmul.f32 %v1111, 2.9368575
        %v1616 = vmul.f32 %v1112, 2.9368575
        %v1617 = vmul.f32 %v1113, 2.9368575
        %v1618 = vmul.f32 %v1114, 2.9368575
        %v1619 = vmul.f32 %v1115, 2.9368575
        %v1620 = vmul.f32 %v1116, 2.9368575
        %v1621 = vmul.f32 %v1117, 2.9368575
        %v1622 = vmul.f32 %v1118, 2.9368575
        %v1623 = vmul.f32 %v1119, 2.9368575
        %v1624 = vmul.f32 %v1120, 2.9368575
        %v1625 = vmul.f32 %v1121, 2.9368575
        %v1626 = vmul.f32 %v1122, 2.9368575
        %v1627 = vmul.f32 %v1123, 2.9368575
        %v1628 = vmul.f32 %v1124, 2.9368575
        %v1629 = vmul.f32 %v1125, 2.9368575
        %v1630 = vmul.f32 %v1126, 2.9368575
        %v1631 = vmul.f32 %v1127, 2.9368575
        %v1632 = vmul.f32 %v1128, 2.9368575
        %v1633 = vmul.f32 %v1129, 2.9368575
        %v1634 = vmul.f32 %v1130, 2.9368575
        %v1635 = vmul.f32 %v1131, 2.9368575
        %v1636 = vmul.f32 %v1132, 2.9368575
        %v1637 = vmul.f32 %v1133, 2.9368575
        %v1638 = vmul.f32 %v1134, 2.9368575
        %v1639 = vmul.f32 %v1135, 2.9368575
        %v1640 = vmul.f32 %v1136, 2.9368575
        %v1641 = vmul.f32 %v1137, 2.9368575
        %v1642 = vmul.f32 %v1138, 2.9368575
        %v1643 = vmul.f32 %v1139, 2.9368575
        %v1644 = vmul.f32 %v1140, 2.9368575
        %v1645 = vmul.f32 %v1141, 2.9368575
        %v1646 = vmul.f32 %v1142, 2.9368575
        %v1647 = vmul.f32 %v1143, 2.9368575
        %v1648 = vmul.f32 %v1144, 2.9368575
        %v1649 = vmul.f32 %v1145, 2.9368575
        %v1650 = vmul.f32 %v1146, 2.9368575
        %v1651 = vmul.f32 %v1147, 2.9368575
        %v1652 = vmul.f32 %v1148, 2.9368575
        %v1653 = vmul.f32 %v1149, 2.9368575
        %v1654 = vmul.f32 %v1150, 2.9368575
        %v1655 = vmul.f32 %v1151, 2.9368575
        %v1656 = vmul.f32 %v1152, 2.9368575
        %v1657 = vmul.f32 %v1153, 2.9368575
        %v1658 = vmul.f32 %v1154, 2.9368575
        %v1659 = vmul.f32 %v1155, 2.9368575
        %v1660 = vmul.f32 %v1156, 2.9368575
        %v1661 = vmul.f32 %v1157, 2.9368575
        %v1662 = vmul.f32 %v1158, 2.9368575
        %v1663 = vmul.f32 %v1159, 2.9368575
        %v1664 = vmul.f32 %v1160, 2.9368575
        %v1665 = vmul.f32 %v1161, 2.9368575
        %v1666 = vmul.f32 %v1162, 2.9368575
        %v1667 = vmul.f32 %v1163, %v1163
        %v1668 = vmul.f32 %v1164, %v1164
        %v1669 = vmul.f32 %v1165, %v1165
        %v1670 = vmul.f32 %v1166, %v1166
        %v1671 = vmul.f32 %v1167, %v1167
        %v1672 = vmul.f32 %v1168, %v1168
        %v1673 = vmul.f32 %v1169, %v1169
        %v1674 = vmul.f32 %v1170, %v1170
        %v1675 = vmul.f32 %v1171, %v1171
        %v1676 = vmul.f32 %v1172, %v1172
        %v1677 = vmul.f32 %v1173, %v1173
        %v1678 = vmul.f32 %v1174, %v1174
        %v1679 = vmul.f32 %v1175, %v1175
        %v1680 = vmul.f32 %v1176, %v1176
        %v1681 = vmul.f32 %v1177, %v1177
        %v1682 = vmul.f32 %v1178, %v1178
        %v1683 = vmul.f32 %v1179, %v1179
        %v1684 = vmul.f32 %v1180, %v1180
        %v1685 = vmul.f32 %v1181, %v1181
        %v1686 = vmul.f32 %v1182, %v1182
        %v1687 = vmul.f32 %v1183, %v1183
        %v1688 = vmul.f32 %v1184, %v1184
        %v1689 = vmul.f32 %v1185, %v1185
        %v1690 = vmul.f32 %v1186, %v1186
        %v1691 = vmul.f32 %v1187, %v1187
        %v1692 = vmul.f32 %v1188, %v1188
        %v1693 = vmul.f32 %v1189, %v1189
        %v1694 = vmul.f32 %v1190, %v1190
        %v1695 = vmul.f32 %v1191, %v1191
        %v1696 = vmul.f32 %v1192, %v1192
        %v1697 = vmul.f32 %v1193, %v1193
        %v1698 = vmul.f32 %v1194, %v1194
        %v1699 = vmul.f32 %v1195, %v1195
        %v1700 = vmul.f32 %v1196, %v1196
        %v1701 = vmul.f32 %v1197, %v1197
        %v1702 = vmul.f32 %v1198, %v1198
        %v1703 = vmul.f32 %v1199, %v1199
        %v1704 = vmul.f32 %v1200, %v1200
        %v1705 = vmul.f32 %v1201, %v1201
        %v1706 = vmul.f32 %v1202, %v1202
        %v1707 = vmul.f32 %v1203, %v1203
        %v1708 = vmul.f32 %v1204, %v1204
        %v1709 = vmul.f32 %v1205, %v1205
        %v1710 = vmul.f32 %v1206, %v1206
        %v1711 = vmul.f32 %v1207, %v1207
        %v1712 = vmul.f32 %v1208, %v1208
        %v1713 = vmul.f32 %v1209, %v1209
        %v1714 = vmul.f32 %v1210, %v1210
        %v1715 = vmul.f32 %v1211, %v1211
        %v1716 = vmul.f32 %v1212, %v1212
        %v1717 = vmul.f32 %v1213, %v1213
        %v1718 = vmul.f32 %v1214, %v1214
        %v1719 = vmul.f32 %v1215, %v1215
        %v1720 = vmul.f32 %v1216, %v1216
        %v1721 = vmul.f32 %v1217, %v1217
        %v1722 = vmul.f32 %v1218, %v1218
        %v1723 = vmul.f32 %v1219, %v1219
        %v1724 = vmul.f32 %v1220, %v1220
        %v1725 = vmul.f32 %v1221, %v1221
        %v1726 = vmul.f32 %v1222, %v1222
        %v1727 = vmul.f32 %v1223, %v1223
        %v1728 = vmul.f32 %v1224, %v1224
        %v1729 = vmul.f32 %v1225, %v1225
        %v1730 = vmul.f32 %v1226, %v1226
        %v1731 = vmul.f32 %v1227, %v1227
        %v1732 = vmul.f32 %v1228, %v1228
        %v1733 = vmul.f32 %v1229, %v1229
        %v1734 = vmul.f32 %v1230, %v1230
        %v1735 = vmul.f32 %v1231, %v1231
        %v1736 = vmul.f32 %v1232, %v1232
        %v1737 = vmul.f32 %v1233, %v1233
        %v1738 = vmul.f32 %v1234, %v1234
        %v1739 = vmul.f32 %v1235, %v1235
        %v1740 = vmul.f32 %v1236, %v1236
        %v1741 = vmul.f32 %v1237, %v1237
        %v1742 = vmul.f32 %v1238, %v1238
        %v1743 = vmul.f32 %v1239, %v1239
        %v1744 = vmul.f32 %v1240, %v1240
        %v1745 = vmul.f32 %v1241, %v1241
        %v1746 = vmul.f32 %v1242, %v1242
        %v1747 = vmul.f32 %v1243, %v1243
        %v1748 = vmul.f32 %v1244, %v1244
        %v1749 = vmul.f32 %v1245, %v1245
        %v1750 = vmul.f32 %v1246, %v1246
        %v1751 = vmul.f32 %v1247, %v1247
        %v1752 = vmul.f32 %v1248, %v1248
        %v1753 = vmul.f32 %v1249, %v1249
        %v1754 = vmul.f32 %v1250, %v1250
        %v1755 = vmul.f32 %v1251, %v1251
        %v1756 = vmul.f32 %v1252, %v1252
        %v1757 = vmul.f32 %v1253, %v1253
        %v1758 = vmul.f32 %v1254, %v1254
        %v1759 = vmul.f32 %v1255, %v1255
        %v1760 = vmul.f32 %v1256, %v1256
        %v1761 = vmul.f32 %v1257, %v1257
        %v1762 = vmul.f32 %v1258, %v1258
        %v1763 = vmul.f32 %v1259, %v1259
        %v1764 = vmul.f32 %v1260, %v1260
        %v1765 = vmul.f32 %v1261, %v1261
        %v1766 = vmul.f32 %v1262, %v1262
        %v1767 = vmul.f32 %v1263, %v1263
        %v1768 = vmul.f32 %v1264, %v1264
        %v1769 = vmul.f32 %v1265, %v1265
        %v1770 = vmul.f32 %v1266, %v1266
        %v1771 = vmul.f32 %v1267, %v1267
        %v1772 = vmul.f32 %v1268, %v1268
        %v1773 = vmul.f32 %v1269, %v1269
        %v1774 = vmul.f32 %v1270, %v1270
        %v1775 = vmul.f32 %v1271, %v1271
        %v1776 = vmul.f32 %v1272, %v1272
        %v1777 = vmul.f32 %v1273, %v1273
        %v1778 = vmul.f32 %v1274, %v1274
        %v1779 = vmul.f32 %v1275, %v1275
        %v1780 = vmul.f32 %v1276, %v1276
        %v1781 = vmul.f32 %v1277, %v1277
        %v1782 = vmul.f32 %v1278, %v1278
        %v1783 = vmul.f32 %v1279, %v1279
        %v1784 = vmul.f32 %v1280, %v1280
        %v1785 = vmul.f32 %v1281, %v1281
        %v1786 = vmul.f32 %v1282, %v1282
        %v1787 = vmul.f32 %v1283, %v1283
        %v1788 = vmul.f32 %v1284, %v1284
        %v1789 = vmul.f32 %v1285, %v1285
        %v1790 = vmul.f32 %v1286, %v1286
        %v1791 = vmul.f32 %v1287, %v1287
        %v1792 = vmul.f32 %v1288, %v1288
        %v1793 = vmul.f32 %v1289, %v1289
        %v1794 = vmul.f32 %v1290, %v1290
        %v1795 = vmul.f32 %v1291, %v1291
        %v1796 = vmul.f32 %v1292, %v1292
        %v1797 = vmul.f32 %v1293, %v1293
        %v1798 = vmul.f32 %v1294, %v1294
        %v1799 = vmul.f32 %v1295, %v1295
        %v1800 = vmul.f32 %v1296, %v1296
        %v1801 = vmul.f32 %v1297, %v1297
        %v1802 = vmul.f32 %v1298, %v1298
        %v1803 = vmul.f32 %v1299, %v1299
        %v1804 = vmul.f32 %v1300, %v1300
        %v1805 = vmul.f32 %v1301, %v1301
        %v1806 = vmul.f32 %v1302, %v1302
        %v1807 = vmul.f32 %v1303, %v1303
        %v1808 = vmul.f32 %v1304, %v1304
        %v1809 = vmul.f32 %v1305, %v1305
        %v1810 = vmul.f32 %v1306, %v1306
        %v1811 = vmul.f32 %v1307, %v1307
        %v1812 = vmul.f32 %v1308, %v1308
        %v1813 = vmul.f32 %v1309, %v1309
        %v1814 = vmul.f32 %v1310, %v1310
        %v1815 = vmul.f32 %v1311, %v1311
        %v1816 = vmul.f32 %v1312, %v1312
        %v1817 = vmul.f32 %v1313, %v1313
        %v1818 = vmul.f32 %v1314, %v1314
        %v1819 = vmul.f32 %v1315, %v1315
        %v1820 = vmul.f32 %v1316, %v1316
        %v1821 = vmul.f32 %v1317, %v1317
        %v1822 = vmul.f32 %v1318, %v1318
        %v1823 = vmul.f32 %v1319, %v1319
        %v1824 = vmul.f32 %v1320, %v1320
        %v1825 = vmul.f32 %v1321, %v1321
        %v1826 = vmul.f32 %v1322, %v1322
        %v1827 = vmul.f32 %v1323, %v1323
        %v1828 = vmul.f32 %v1324, %v1324
        %v1829 = vmul.f32 %v1325, %v1325
        %v1830 = vmul.f32 %v1326, %v1326
        %v1831 = vmul.f32 %v1327, %v1327
        %v1832 = vmul.f32 %v1328, %v1328
        %v1833 = vmul.f32 %v1329, %v1329
        %v1834 = vmul.f32 %v1330, %v1330
        %v1835 = vmul.f32 %v1331, %v1331
        %v1836 = vmul.f32 %v1332, %v1332
        %v1837 = vmul.f32 %v1333, %v1333
        %v1838 = vmul.f32 %v1334, %v1334
        %v1839 = vmul.f32 %v1335, %v1335
        %v1840 = vmul.f32 %v1336, %v1336
        %v1841 = vmul.f32 %v1337, %v1337
        %v1842 = vmul.f32 %v1338, %v1338
        %v1843 = vmul.f32 %v1339, %v1339
        %v1844 = vmul.f32 %v1340, %v1340
        %v1845 = vmul.f32 %v1341, %v1341
        %v1846 = vmul.f32 %v1342, %v1342
        %v1847 = vmul.f32 %v1343, %v1343
        %v1848 = vmul.f32 %v1344, %v1344
        %v1849 = vmul.f32 %v1345, %v1345
        %v1850 = vmul.f32 %v1346, %v1346
        %v1851 = vmul.f32 %v1347, %v1347
        %v1852 = vmul.f32 %v1348, %v1348
        %v1853 = vmul.f32 %v1349, %v1349
        %v1854 = vmul.f32 %v1350, %v1350
        %v1855 = vmul.f32 %v1351, %v1351
        %v1856 = vmul.f32 %v1352, %v1352
        %v1857 = vmul.f32 %v1353, %v1353
        %v1858 = vmul.f32 %v1354, %v1354
        %v1859 = vmul.f32 %v1355, %v1355
        %v1860 = vmul.f32 %v1356, %v1356
        %v1861 = vmul.f32 %v1357, %v1357
        %v1862 = vmul.f32 %v1358, %v1358
        %v1863 = vmul.f32 %v1359, %v1359
        %v1864 = vmul.f32 %v1360, %v1360
        %v1865 = vmul.f32 %v1361, %v1361
        %v1866 = vmul.f32 %v1362, %v1362
        %v1867 = vmul.f32 %v1363, %v1363
        %v1868 = vmul.f32 %v1364, %v1364
        %v1869 = vmul.f32 %v1365, %v1365
        %v1870 = vmul.f32 %v1366, %v1366
        %v1871 = vmul.f32 %v1367, %v1367
        %v1872 = vmul.f32 %v1368, %v1368
        %v1873 = vmul.f32 %v1369, %v1369
        %v1874 = vmul.f32 %v1370, %v1370
        %v1875 = vmul.f32 %v1371, %v1371
        %v1876 = vmul.f32 %v1372, %v1372
        %v1877 = vmul.f32 %v1373, %v1373
        %v1878 = vmul.f32 %v1374, %v1374
        %v1879 = vmul.f32 %v1375, %v1375
        %v1880 = vmul.f32 %v1376, %v1376
        %v1881 = vmul.f32 %v1377, %v1377
        %v1882 = vmul.f32 %v1378, %v1378
        %v1883 = vmul.f32 %v1379, %v1379
        %v1884 = vmul.f32 %v1380, %v1380
        %v1885 = vmul.f32 %v1381, %v1381
        %v1886 = vmul.f32 %v1382, %v1382
        %v1887 = vmul.f32 %v1383, %v1383
        %v1888 = vmul.f32 %v1384, %v1384
        %v1889 = vmul.f32 %v1385, %v1385
        %v1890 = vmul.f32 %v1386, %v1386
        %v1891 = vmul.f32 %v1387, %v1387
        %v1892 = vmul.f32 %v1388, %v1388
        %v1893 = vmul.f32 %v1389, %v1389
        %v1894 = vmul.f32 %v1390, %v1390
        %v1895 = vmul.f32 %v1391, %v1391
        %v1896 = vmul.f32 %v1392, %v1392
        %v1897 = vmul.f32 %v1393, %v1393
        %v1898 = vmul.f32 %v1394, %v1394
        %v1899 = vmul.f32 %v1395, %v1395
        %v1900 = vmul.f32 %v1396, %v1396
        %v1901 = vmul.f32 %v1397, %v1397
        %v1902 = vmul.f32 %v1398, %v1398
        %v1903 = vmul.f32 %v1399, %v1399
        %v1904 = vmul.f32 %v1400, %v1400
        %v1905 = vmul.f32 %v1401, %v1401
        %v1906 = vmul.f32 %v1402, %v1402
        %v1907 = vmul.f32 %v1403, %v1403
        %v1908 = vmul.f32 %v1404, %v1404
        %v1909 = vmul.f32 %v1405, %v1405
        %v1910 = vmul.f32 %v1406, %v1406
        %v1911 = vmul.f32 %v1407, %v1407
        %v1912 = vmul.f32 %v1408, %v1408
        %v1913 = vmul.f32 %v1409, %v1409
        %v1914 = vmul.f32 %v1410, %v1410
        %v1915 = vmul.f32 %v1411, %v1411
        %v1916 = vmul.f32 %v1412, %v1412
        %v1917 = vmul.f32 %v1413, %v1413
        %v1918 = vmul.f32 %v1414, %v1414
        %v1919 = vmul.f32 %v1415, %v1415
        %v1920 = vmul.f32 %v1416, %v1416
        %v1921 = vmul.f32 %v1417, %v1417
        %v1922 = vmul.f32 %v1418, %v1418
        %v1923 = vmul.f32 %v1419, %v1419
        %v1924 = vmul.f32 %v1420, %v1420
        %v1925 = vmul.f32 %v1421, %v1421
        %v1926 = vmul.f32 %v1422, %v1422
        %v1927 = vmul.f32 %v1423, %v1423
        %v1928 = vmul.f32 %v1424, %v1424
        %v1929 = vmul.f32 %v1425, %v1425
        %v1930 = vmul.f32 %v1426, %v1426
        %v1931 = vmul.f32 %v1427, %v1427
        %v1932 = vmul.f32 %v1428, %v1428
        %v1933 = vmul.f32 %v1429, %v1429
        %v1934 = vmul.f32 %v1430, %v1430
        %v1935 = vmul.f32 %v1431, %v1431
        %v1936 = vmul.f32 %v1432, %v1432
        %v1937 = vmul.f32 %v1433, %v1433
        %v1938 = vmul.f32 %v1434, %v1434
        %v1939 = vmul.f32 %v1435, %v1435
        %v1940 = vmul.f32 %v1436, %v1436
        %v1941 = vmul.f32 %v1437, %v1437
        %v1942 = vmul.f32 %v1438, %v1438
        %v1943 = vmul.f32 %v1439, %v1439
        %v1944 = vmul.f32 %v1440, %v1440
        %v1945 = vmul.f32 %v1441, %v1441
        %v1946 = vmul.f32 %v1442, %v1442
        %v1947 = vmul.f32 %v1443, %v1443
        %v1948 = vmul.f32 %v1444, %v1444
        %v1949 = vmul.f32 %v1445, %v1445
        %v1950 = vmul.f32 %v1446, %v1446
        %v1951 = vmul.f32 %v1447, %v1447
        %v1952 = vmul.f32 %v1448, %v1448
        %v1953 = vmul.f32 %v1449, %v1449
        %v1954 = vmul.f32 %v1450, %v1450
        %v1955 = vmul.f32 %v1451, %v1451
        %v1956 = vmul.f32 %v1452, %v1452
        %v1957 = vmul.f32 %v1453, %v1453
        %v1958 = vmul.f32 %v1454, %v1454
        %v1959 = vmul.f32 %v1455, %v1455
        %v1960 = vmul.f32 %v1456, %v1456
        %v1961 = vmul.f32 %v1457, %v1457
        %v1962 = vmul.f32 %v1458, %v1458
        %v1963 = vmul.f32 %v1459, %v1459
        %v1964 = vmul.f32 %v1460, %v1460
        %v1965 = vmul.f32 %v1461, %v1461
        %v1966 = vmul.f32 %v1462, %v1462
        %v1967 = vmul.f32 %v1463, %v1463
        %v1968 = vmul.f32 %v1464, %v1464
        %v1969 = vmul.f32 %v1465, %v1465
        %v1970 = vmul.f32 %v1466, %v1466
        %v1971 = vmul.f32 %v1467, %v1467
        %v1972 = vmul.f32 %v1468, %v1468
        %v1973 = vmul.f32 %v1469, %v1469
        %v1974 = vmul.f32 %v1470, %v1470
        %v1975 = vmul.f32 %v1471, %v1471
        %v1976 = vmul.f32 %v1472, %v1472
        %v1977 = vmul.f32 %v1473, %v1473
        %v1978 = vmul.f32 %v1474, %v1474
        %v1979 = vmul.f32 %v1475, %v1475
        %v1980 = vmul.f32 %v1476, %v1476
        %v1981 = vmul.f32 %v1477, %v1477
        %v1982 = vmul.f32 %v1478, %v1478
        %v1983 = vmul.f32 %v1479, %v1479
        %v1984 = vmul.f32 %v1480, %v1480
        %v1985 = vmul.f32 %v1481, %v1481
        %v1986 = vmul.f32 %v1482, %v1482
        %v1987 = vmul.f32 %v1483, %v1483
        %v1988 = vmul.f32 %v1484, %v1484
        %v1989 = vmul.f32 %v1485, %v1485
        %v1990 = vmul.f32 %v1486, %v1486
        %v1991 = vmul.f32 %v1487, %v1487
        %v1992 = vmul.f32 %v1488, %v1488
        %v1993 = vmul.f32 %v1489, %v1489
        %v1994 = vmul.f32 %v1490, %v1490
        %v1995 = vmul.f32 %v1491, %v1491
        %v1996 = vmul.f32 %v1492, %v1492
        %v1997 = vmul.f32 %v1493, %v1493
        %v1998 = vmul.f32 %v1494, %v1494
        %v1999 = vmul.f32 %v1495, %v1495
        %v2000 = vmul.f32 %v1496, %v1496
        %v2001 = vmul.f32 %v1497, %v1497
        %v2002 = vmul.f32 %v1498, %v1498
        %v2003 = vmul.f32 %v1499, %v1499
        %v2004 = vmul.f32 %v1500, %v1500
        %v2005 = vmul.f32 %v1501, %v1501
        %v2006 = vmul.f32 %v1502, %v1502
        %v2007 = vmul.f32 %v1503, %v1503
        %v2008 = vmul.f32 %v1504, %v1504
        %v2009 = vmul.f32 %v1505, %v1505
        %v2010 = vmul.f32 %v1506, %v1506
        %v2011 = vmul.f32 %v1507, %v1507
        %v2012 = vmul.f32 %v1508, %v1508
        %v2013 = vmul.f32 %v1509, %v1509
        %v2014 = vmul.f32 %v1510, %v1510
        %v2015 = vmul.f32 %v1511, %v1511
        %v2016 = vmul.f32 %v1512, %v1512
        %v2017 = vmul.f32 %v1513, %v1513
        %v2018 = vmul.f32 %v1514, %v1514
        %v2019 = vmul.f32 %v1515, %v1515
        %v2020 = vmul.f32 %v1516, %v1516
        %v2021 = vmul.f32 %v1517, %v1517
        %v2022 = vmul.f32 %v1518, %v1518
        %v2023 = vmul.f32 %v1519, %v1519
        %v2024 = vmul.f32 %v1520, %v1520
        %v2025 = vmul.f32 %v1521, %v1521
        %v2026 = vmul.f32 %v1522, %v1522
        %v2027 = vmul.f32 %v1523, %v1523
        %v2028 = vmul.f32 %v1524, %v1524
        %v2029 = vmul.f32 %v1525, %v1525
        %v2030 = vmul.f32 %v1526, %v1526
        %v2031 = vmul.f32 %v1527, %v1527
        %v2032 = vmul.f32 %v1528, %v1528
        %v2033 = vmul.f32 %v1529, %v1529
        %v2034 = vmul.f32 %v1530, %v1530
        %v2035 = vmul.f32 %v1531, %v1531
        %v2036 = vmul.f32 %v1532, %v1532
        %v2037 = vmul.f32 %v1533, %v1533
        %v2038 = vmul.f32 %v1534, %v1534
        %v2039 = vmul.f32 %v1535, %v1535
        %v2040 = vmul.f32 %v1536, %v1536
        %v2041 = vmul.f32 %v1537, %v1537
        %v2042 = vmul.f32 %v1538, %v1538
        %v2043 = vmul.f32 %v1539, %v1539
        %v2044 = vmul.f32 %v1540, %v1540
        %v2045 = vmul.f32 %v1541, %v1541
        %v2046 = vmul.f32 %v1542, %v1542
        %v2047 = vmul.f32 %v1543, %v1543
        %v2048 = vmul.f32 %v1544, %v1544
        %v2049 = vmul.f32 %v1545, %v1545
        %v2050 = vmul.f32 %v1546, %v1546
        %v2051 = vmul.f32 %v1547, %v1547
        %v2052 = vmul.f32 %v1548, %v1548
        %v2053 = vmul.f32 %v1549, %v1549
        %v2054 = vmul.f32 %v1550, %v1550
        %v2055 = vmul.f32 %v1551, %v1551
        %v2056 = vmul.f32 %v1552, %v1552
        %v2057 = vmul.f32 %v1553, %v1553
        %v2058 = vmul.f32 %v1554, %v1554
        %v2059 = vmul.f32 %v1555, %v1555
        %v2060 = vmul.f32 %v1556, %v1556
        %v2061 = vmul.f32 %v1557, %v1557
        %v2062 = vmul.f32 %v1558, %v1558
        %v2063 = vmul.f32 %v1559, %v1559
        %v2064 = vmul.f32 %v1560, %v1560
        %v2065 = vmul.f32 %v1561, %v1561
        %v2066 = vmul.f32 %v1562, %v1562
        %v2067 = vmul.f32 %v1563, %v1563
        %v2068 = vmul.f32 %v1564, %v1564
        %v2069 = vmul.f32 %v1565, %v1565
        %v2070 = vmul.f32 %v1566, %v1566
        %v2071 = vmul.f32 %v1567, %v1567
        %v2072 = vmul.f32 %v1568, %v1568
        %v2073 = vmul.f32 %v1569, %v1569
        %v2074 = vmul.f32 %v1570, %v1570
        %v2075 = vmul.f32 %v1571, %v1571
        %v2076 = vmul.f32 %v1572, %v1572
        %v2077 = vmul.f32 %v1573, %v1573
        %v2078 = vmul.f32 %v1574, %v1574
        %v2079 = vmul.f32 %v1575, %v1575
        %v2080 = vmul.f32 %v1576, %v1576
        %v2081 = vmul.f32 %v1577, %v1577
        %v2082 = vmul.f32 %v1578, %v1578
        %v2083 = vmul.f32 %v1579, %v1579
        %v2084 = vmul.f32 %v1580, %v1580
        %v2085 = vmul.f32 %v1581, %v1581
        %v2086 = vmul.f32 %v1582, %v1582
        %v2087 = vmul.f32 %v1583, %v1583
        %v2088 = vmul.f32 %v1584, %v1584
        %v2089 = vmul.f32 %v1585, %v1585
        %v2090 = vmul.f32 %v1586, %v1586
        %v2091 = vmul.f32 %v1587, %v1587
        %v2092 = vmul.f32 %v1588, %v1588
        %v2093 = vmul.f32 %v1589, %v1589
        %v2094 = vmul.f32 %v1590, %v1590
        %v2095 = vmul.f32 %v1591, %v1591
        %v2096 = vmul.f32 %v1592, %v1592
        %v2097 = vmul.f32 %v1593, %v1593
        %v2098 = vmul.f32 %v1594, %v1594
        %v2099 = vmul.f32 %v1595, %v1595
        %v2100 = vmul.f32 %v1596, %v1596
        %v2101 = vmul.f32 %v1597, %v1597
        %v2102 = vmul.f32 %v1598, %v1598
        %v2103 = vmul.f32 %v1599, %v1599
        %v2104 = vmul.f32 %v1600, %v1600
        %v2105 = vmul.f32 %v1601, %v1601
        %v2106 = vmul.f32 %v1602, %v1602
        %v2107 = vmul.f32 %v1603, %v1603
        %v2108 = vmul.f32 %v1604, %v1604
        %v2109 = vmul.f32 %v1605, %v1605
        %v2110 = vmul.f32 %v1606, %v1606
        %v2111 = vmul.f32 %v1607, %v1607
        %v2112 = vmul.f32 %v1608, %v1608
        %v2113 = vmul.f32 %v1609, %v1609
        %v2114 = vmul.f32 %v1610, %v1610
        %v2115 = vmul.f32 %v1611, %v1611
        %v2116 = vmul.f32 %v1612, %v1612
        %v2117 = vmul.f32 %v1613, %v1613
        %v2118 = vmul.f32 %v1614, %v1614
        %v2119 = vmul.f32 %v1615, %v1615
        %v2120 = vmul.f32 %v1616, %v1616
        %v2121 = vmul.f32 %v1617, %v1617
        %v2122 = vmul.f32 %v1618, %v1618
        %v2123 = vmul.f32 %v1619, %v1619
        %v2124 = vmul.f32 %v1620, %v1620
        %v2125 = vmul.f32 %v1621, %v1621
        %v2126 = vmul.f32 %v1622, %v1622
        %v2127 = vmul.f32 %v1623, %v1623
        %v2128 = vmul.f32 %v1624, %v1624
        %v2129 = vmul.f32 %v1625, %v1625
        %v2130 = vmul.f32 %v1626, %v1626
        %v2131 = vmul.f32 %v1627, %v1627
        %v2132 = vmul.f32 %v1628, %v1628
        %v2133 = vmul.f32 %v1629, %v1629
        %v2134 = vmul.f32 %v1630, %v1630
        %v2135 = vmul.f32 %v1631, %v1631
        %v2136 = vmul.f32 %v1632, %v1632
        %v2137 = vmul.f32 %v1633, %v1633
        %v2138 = vmul.f32 %v1634, %v1634
        %v2139 = vmul.f32 %v1635, %v1635
        %v2140 = vmul.f32 %v1636, %v1636
        %v2141 = vmul.f32 %v1637, %v1637
        %v2142 = vmul.f32 %v1638, %v1638
        %v2143 = vmul.f32 %v1639, %v1639
        %v2144 = vmul.f32 %v1640, %v1640
        %v2145 = vmul.f32 %v1641, %v1641
        %v2146 = vmul.f32 %v1642, %v1642
        %v2147 = vmul.f32 %v1643, %v1643
        %v2148 = vmul.f32 %v1644, %v1644
        %v2149 = vmul.f32 %v1645, %v1645
        %v2150 = vmul.f32 %v1646, %v1646
        %v2151 = vmul.f32 %v1647, %v1647
        %v2152 = vmul.f32 %v1648, %v1648
        %v2153 = vmul.f32 %v1649, %v1649
        %v2154 = vmul.f32 %v1650, %v1650
        %v2155 = vmul.f32 %v1651, %v1651
        %v2156 = vmul.f32 %v1652, %v1652
        %v2157 = vmul.f32 %v1653, %v1653
        %v2158 = vmul.f32 %v1654, %v1654
        %v2159 = vmul.f32 %v1655, %v1655
        %v2160 = vmul.f32 %v1656, %v1656
        %v2161 = vmul.f32 %v1657, %v1657
        %v2162 = vmul.f32 %v1658, %v1658
        %v2163 = vmul.f32 %v1659, %v1659
        %v2164 = vmul.f32 %v1660, %v1660
        %v2165 = vmul.f32 %v1661, %v1661
        %v2166 = vmul.f32 %v1662, %v1662
        %v2167 = vmul.f32 %v1663, %v1663
        %v2168 = vmul.f32 %v1664, %v1664
        %v2169 = vmul.f32 %v1665, %v1665
        %v2170 = vmul.f32 %v1666, %v1666
        %v2171 = vmul.f32 %v1163, 2.0
        %v2172 = vmul.f32 %v1164, 2.0
        %v2173 = vmul.f32 %v1165, 2.0
        %v2174 = vmul.f32 %v1166, 2.0
        %v2175 = vmul.f32 %v1167, 2.0
        %v2176 = vmul.f32 %v1168, 2.0
        %v2177 = vmul.f32 %v1169, 2.0
        %v2178 = vmul.f32 %v1170, 2.0
        %v2179 = vmul.f32 %v1171, 2.0
        %v2180 = vmul.f32 %v1172, 2.0
        %v2181 = vmul.f32 %v1173, 2.0
        %v2182 = vmul.f32 %v1174, 2.0
        %v2183 = vmul.f32 %v1175, 2.0
        %v2184 = vmul.f32 %v1176, 2.0
        %v2185 = vmul.f32 %v1177, 2.0
        %v2186 = vmul.f32 %v1178, 2.0
        %v2187 = vmul.f32 %v1179, 2.0
        %v2188 = vmul.f32 %v1180, 2.0
        %v2189 = vmul.f32 %v1181, 2.0
        %v2190 = vmul.f32 %v1182, 2.0
        %v2191 = vmul.f32 %v1183, 2.0
        %v2192 = vmul.f32 %v1184, 2.0
        %v2193 = vmul.f32 %v1185, 2.0
        %v2194 = vmul.f32 %v1186, 2.0
        %v2195 = vmul.f32 %v1187, 2.0
        %v2196 = vmul.f32 %v1188, 2.0
        %v2197 = vmul.f32 %v1189, 2.0
        %v2198 = vmul.f32 %v1190, 2.0
        %v2199 = vmul.f32 %v1191, 2.0
        %v2200 = vmul.f32 %v1192, 2.0
        %v2201 = vmul.f32 %v1193, 2.0
        %v2202 = vmul.f32 %v1194, 2.0
        %v2203 = vmul.f32 %v1195, 2.0
        %v2204 = vmul.f32 %v1196, 2.0
        %v2205 = vmul.f32 %v1197, 2.0
        %v2206 = vmul.f32 %v1198, 2.0
        %v2207 = vmul.f32 %v1199, 2.0
        %v2208 = vmul.f32 %v1200, 2.0
        %v2209 = vmul.f32 %v1201, 2.0
        %v2210 = vmul.f32 %v1202, 2.0
        %v2211 = vmul.f32 %v1203, 2.0
        %v2212 = vmul.f32 %v1204, 2.0
        %v2213 = vmul.f32 %v1205, 2.0
        %v2214 = vmul.f32 %v1206, 2.0
        %v2215 = vmul.f32 %v1207, 2.0
        %v2216 = vmul.f32 %v1208, 2.0
        %v2217 = vmul.f32 %v1209, 2.0
        %v2218 = vmul.f32 %v1210, 2.0
        %v2219 = vmul.f32 %v1211, 2.0
        %v2220 = vmul.f32 %v1212, 2.0
        %v2221 = vmul.f32 %v1213, 2.0
        %v2222 = vmul.f32 %v1214, 2.0
        %v2223 = vmul.f32 %v1215, 2.0
        %v2224 = vmul.f32 %v1216, 2.0
        %v2225 = vmul.f32 %v1217, 2.0
        %v2226 = vmul.f32 %v1218, 2.0
        %v2227 = vmul.f32 %v1219, 2.0
        %v2228 = vmul.f32 %v1220, 2.0
        %v2229 = vmul.f32 %v1221, 2.0
        %v2230 = vmul.f32 %v1222, 2.0
        %v2231 = vmul.f32 %v1223, 2.0
        %v2232 = vmul.f32 %v1224, 2.0
        %v2233 = vmul.f32 %v1225, 2.0
        %v2234 = vmul.f32 %v1226, 2.0
        %v2235 = vmul.f32 %v1227, 2.0
        %v2236 = vmul.f32 %v1228, 2.0
        %v2237 = vmul.f32 %v1229, 2.0
        %v2238 = vmul.f32 %v1230, 2.0
        %v2239 = vmul.f32 %v1231, 2.0
        %v2240 = vmul.f32 %v1232, 2.0
        %v2241 = vmul.f32 %v1233, 2.0
        %v2242 = vmul.f32 %v1234, 2.0
        %v2243 = vmul.f32 %v1235, 2.0
        %v2244 = vmul.f32 %v1236, 2.0
        %v2245 = vmul.f32 %v1237, 2.0
        %v2246 = vmul.f32 %v1238, 2.0
        %v2247 = vmul.f32 %v1239, 2.0
        %v2248 = vmul.f32 %v1240, 2.0
        %v2249 = vmul.f32 %v1241, 2.0
        %v2250 = vmul.f32 %v1242, 2.0
        %v2251 = vmul.f32 %v1243, 2.0
        %v2252 = vmul.f32 %v1244, 2.0
        %v2253 = vmul.f32 %v1245, 2.0
        %v2254 = vmul.f32 %v1246, 2.0
        %v2255 = vmul.f32 %v1247, 2.0
        %v2256 = vmul.f32 %v1248, 2.0
        %v2257 = vmul.f32 %v1249, 2.0
        %v2258 = vmul.f32 %v1250, 2.0
        %v2259 = vmul.f32 %v1251, 2.0
        %v2260 = vmul.f32 %v1252, 2.0
        %v2261 = vmul.f32 %v1253, 2.0
        %v2262 = vmul.f32 %v1254, 2.0
        %v2263 = vmul.f32 %v1255, 2.0
        %v2264 = vmul.f32 %v1256, 2.0
        %v2265 = vmul.f32 %v1257, 2.0
        %v2266 = vmul.f32 %v1258, 2.0
        %v2267 = vmul.f32 %v1259, 2.0
        %v2268 = vmul.f32 %v1260, 2.0
        %v2269 = vmul.f32 %v1261, 2.0
        %v2270 = vmul.f32 %v1262, 2.0
        %v2271 = vmul.f32 %v1263, 2.0
        %v2272 = vmul.f32 %v1264, 2.0
        %v2273 = vmul.f32 %v1265, 2.0
        %v2274 = vmul.f32 %v1266, 2.0
        %v2275 = vmul.f32 %v1267, 2.0
        %v2276 = vmul.f32 %v1268, 2.0
        %v2277 = vmul.f32 %v1269, 2.0
        %v2278 = vmul.f32 %v1270, 2.0
        %v2279 = vmul.f32 %v1271, 2.0
        %v2280 = vmul.f32 %v1272, 2.0
        %v2281 = vmul.f32 %v1273, 2.0
        %v2282 = vmul.f32 %v1274, 2.0
        %v2283 = vmul.f32 %v1275, 2.0
        %v2284 = vmul.f32 %v1276, 2.0
        %v2285 = vmul.f32 %v1277, 2.0
        %v2286 = vmul.f32 %v1278, 2.0
        %v2287 = vmul.f32 %v1279, 2.0
        %v2288 = vmul.f32 %v1280, 2.0
        %v2289 = vmul.f32 %v1281, 2.0
        %v2290 = vmul.f32 %v1282, 2.0
        %v2291 = vmul.f32 %v1283, 2.0
        %v2292 = vmul.f32 %v1284, 2.0
        %v2293 = vmul.f32 %v1285, 2.0
        %v2294 = vmul.f32 %v1286, 2.0
        %v2295 = vmul.f32 %v1287, 2.0
        %v2296 = vmul.f32 %v1288, 2.0
        %v2297 = vmul.f32 %v1289, 2.0
        %v2298 = vmul.f32 %v1290, 2.0
        %v2299 = vmul.f32 %v1291, 2.0
        %v2300 = vmul.f32 %v1292, 2.0
        %v2301 = vmul.f32 %v1293, 2.0
        %v2302 = vmul.f32 %v1294, 2.0
        %v2303 = vmul.f32 %v1295, 2.0
        %v2304 = vmul.f32 %v1296, 2.0
        %v2305 = vmul.f32 %v1297, 2.0
        %v2306 = vmul.f32 %v1298, 2.0
        %v2307 = vmul.f32 %v1299, 2.0
        %v2308 = vmul.f32 %v1300, 2.0
        %v2309 = vmul.f32 %v1301, 2.0
        %v2310 = vmul.f32 %v1302, 2.0
        %v2311 = vmul.f32 %v1303, 2.0
        %v2312 = vmul.f32 %v1304, 2.0
        %v2313 = vmul.f32 %v1305, 2.0
        %v2314 = vmul.f32 %v1306, 2.0
        %v2315 = vmul.f32 %v1307, 2.0
        %v2316 = vmul.f32 %v1308, 2.0
        %v2317 = vmul.f32 %v1309, 2.0
        %v2318 = vmul.f32 %v1310, 2.0
        %v2319 = vmul.f32 %v1311, 2.0
        %v2320 = vmul.f32 %v1312, 2.0
        %v2321 = vmul.f32 %v1313, 2.0
        %v2322 = vmul.f32 %v1314, 2.0
        %v2323 = vmul.f32 %v1315, 2.0
        %v2324 = vmul.f32 %v1316, 2.0
        %v2325 = vmul.f32 %v1317, 2.0
        %v2326 = vmul.f32 %v1318, 2.0
        %v2327 = vmul.f32 %v1319, 2.0
        %v2328 = vmul.f32 %v1320, 2.0
        %v2329 = vmul.f32 %v1321, 2.0
        %v2330 = vmul.f32 %v1322, 2.0
        %v2331 = vmul.f32 %v1323, 2.0
        %v2332 = vmul.f32 %v1324, 2.0
        %v2333 = vmul.f32 %v1325, 2.0
        %v2334 = vmul.f32 %v1326, 2.0
        %v2335 = vmul.f32 %v1327, 2.0
        %v2336 = vmul.f32 %v1328, 2.0
        %v2337 = vmul.f32 %v1329, 2.0
        %v2338 = vmul.f32 %v1330, 2.0
        %v2339 = vmul.f32 %v1331, 2.0
        %v2340 = vmul.f32 %v1332, 2.0
        %v2341 = vmul.f32 %v1333, 2.0
        %v2342 = vmul.f32 %v1334, 2.0
        %v2343 = vmul.f32 %v1335, 2.0
        %v2344 = vmul.f32 %v1336, 2.0
        %v2345 = vmul.f32 %v1337, 2.0
        %v2346 = vmul.f32 %v1338, 2.0
        %v2347 = vmul.f32 %v1339, 2.0
        %v2348 = vmul.f32 %v1340, 2.0
        %v2349 = vmul.f32 %v1341, 2.0
        %v2350 = vmul.f32 %v1342, 2.0
        %v2351 = vmul.f32 %v1343, 2.0
        %v2352 = vmul.f32 %v1344, 2.0
        %v2353 = vmul.f32 %v1345, 2.0
        %v2354 = vmul.f32 %v1346, 2.0
        %v2355 = vmul.f32 %v1347, 2.0
        %v2356 = vmul.f32 %v1348, 2.0
        %v2357 = vmul.f32 %v1349, 2.0
        %v2358 = vmul.f32 %v1350, 2.0
        %v2359 = vmul.f32 %v1351, 2.0
        %v2360 = vmul.f32 %v1352, 2.0
        %v2361 = vmul.f32 %v1353, 2.0
        %v2362 = vmul.f32 %v1354, 2.0
        %v2363 = vmul.f32 %v1355, 2.0
        %v2364 = vmul.f32 %v1356, 2.0
        %v2365 = vmul.f32 %v1357, 2.0
        %v2366 = vmul.f32 %v1358, 2.0
        %v2367 = vmul.f32 %v1359, 2.0
        %v2368 = vmul.f32 %v1360, 2.0
        %v2369 = vmul.f32 %v1361, 2.0
        %v2370 = vmul.f32 %v1362, 2.0
        %v2371 = vmul.f32 %v1363, 2.0
        %v2372 = vmul.f32 %v1364, 2.0
        %v2373 = vmul.f32 %v1365, 2.0
        %v2374 = vmul.f32 %v1366, 2.0
        %v2375 = vmul.f32 %v1367, 2.0
        %v2376 = vmul.f32 %v1368, 2.0
        %v2377 = vmul.f32 %v1369, 2.0
        %v2378 = vmul.f32 %v1370, 2.0
        %v2379 = vmul.f32 %v1371, 2.0
        %v2380 = vmul.f32 %v1372, 2.0
        %v2381 = vmul.f32 %v1373, 2.0
        %v2382 = vmul.f32 %v1374, 2.0
        %v2383 = vmul.f32 %v1375, 2.0
        %v2384 = vmul.f32 %v1376, 2.0
        %v2385 = vmul.f32 %v1377, 2.0
        %v2386 = vmul.f32 %v1378, 2.0
        %v2387 = vmul.f32 %v1379, 2.0
        %v2388 = vmul.f32 %v1380, 2.0
        %v2389 = vmul.f32 %v1381, 2.0
        %v2390 = vmul.f32 %v1382, 2.0
        %v2391 = vmul.f32 %v1383, 2.0
        %v2392 = vmul.f32 %v1384, 2.0
        %v2393 = vmul.f32 %v1385, 2.0
        %v2394 = vmul.f32 %v1386, 2.0
        %v2395 = vmul.f32 %v1387, 2.0
        %v2396 = vmul.f32 %v1388, 2.0
        %v2397 = vmul.f32 %v1389, 2.0
        %v2398 = vmul.f32 %v1390, 2.0
        %v2399 = vmul.f32 %v1391, 2.0
        %v2400 = vmul.f32 %v1392, 2.0
        %v2401 = vmul.f32 %v1393, 2.0
        %v2402 = vmul.f32 %v1394, 2.0
        %v2403 = vmul.f32 %v1395, 2.0
        %v2404 = vmul.f32 %v1396, 2.0
        %v2405 = vmul.f32 %v1397, 2.0
        %v2406 = vmul.f32 %v1398, 2.0
        %v2407 = vmul.f32 %v1399, 2.0
        %v2408 = vmul.f32 %v1400, 2.0
        %v2409 = vmul.f32 %v1401, 2.0
        %v2410 = vmul.f32 %v1402, 2.0
        %v2411 = vmul.f32 %v1403, 2.0
        %v2412 = vmul.f32 %v1404, 2.0
        %v2413 = vmul.f32 %v1405, 2.0
        %v2414 = vmul.f32 %v1406, 2.0
        %v2415 = vmul.f32 %v1407, 2.0
        %v2416 = vmul.f32 %v1408, 2.0
        %v2417 = vmul.f32 %v1409, 2.0
        %v2418 = vmul.f32 %v1410, 2.0
        %v2419 = vmul.f32 %v1411, 2.0
        %v2420 = vmul.f32 %v1412, 2.0
        %v2421 = vmul.f32 %v1413, 2.0
        %v2422 = vmul.f32 %v1414, 2.0
        %v2423 = vmul.f32 %v1415, 2.0
        %v2424 = vmul.f32 %v1416, 2.0
        %v2425 = vmul.f32 %v1417, 2.0
        %v2426 = vmul.f32 %v1418, 2.0
        %v2427 = vmul.f32 %v1419, 2.0
        %v2428 = vmul.f32 %v1420, 2.0
        %v2429 = vmul.f32 %v1421, 2.0
        %v2430 = vmul.f32 %v1422, 2.0
        %v2431 = vmul.f32 %v1423, 2.0
        %v2432 = vmul.f32 %v1424, 2.0
        %v2433 = vmul.f32 %v1425, 2.0
        %v2434 = vmul.f32 %v1426, 2.0
        %v2435 = vmul.f32 %v1427, 2.0
        %v2436 = vmul.f32 %v1428, 2.0
        %v2437 = vmul.f32 %v1429, 2.0
        %v2438 = vmul.f32 %v1430, 2.0
        %v2439 = vmul.f32 %v1431, 2.0
        %v2440 = vmul.f32 %v1432, 2.0
        %v2441 = vmul.f32 %v1433, 2.0
        %v2442 = vmul.f32 %v1434, 2.0
        %v2443 = vmul.f32 %v1435, 2.0
        %v2444 = vmul.f32 %v1436, 2.0
        %v2445 = vmul.f32 %v1437, 2.0
        %v2446 = vmul.f32 %v1438, 2.0
        %v2447 = vmul.f32 %v1439, 2.0
        %v2448 = vmul.f32 %v1440, 2.0
        %v2449 = vmul.f32 %v1441, 2.0
        %v2450 = vmul.f32 %v1442, 2.0
        %v2451 = vmul.f32 %v1443, 2.0
        %v2452 = vmul.f32 %v1444, 2.0
        %v2453 = vmul.f32 %v1445, 2.0
        %v2454 = vmul.f32 %v1446, 2.0
        %v2455 = vmul.f32 %v1447, 2.0
        %v2456 = vmul.f32 %v1448, 2.0
        %v2457 = vmul.f32 %v1449, 2.0
        %v2458 = vmul.f32 %v1450, 2.0
        %v2459 = vmul.f32 %v1451, 2.0
        %v2460 = vmul.f32 %v1452, 2.0
        %v2461 = vmul.f32 %v1453, 2.0
        %v2462 = vmul.f32 %v1454, 2.0
        %v2463 = vmul.f32 %v1455, 2.0
        %v2464 = vmul.f32 %v1456, 2.0
        %v2465 = vmul.f32 %v1457, 2.0
        %v2466 = vmul.f32 %v1458, 2.0
        %v2467 = vmul.f32 %v1459, 2.0
        %v2468 = vmul.f32 %v1460, 2.0
        %v2469 = vmul.f32 %v1461, 2.0
        %v2470 = vmul.f32 %v1462, 2.0
        %v2471 = vmul.f32 %v1463, 2.0
        %v2472 = vmul.f32 %v1464, 2.0
        %v2473 = vmul.f32 %v1465, 2.0
        %v2474 = vmul.f32 %v1466, 2.0
        %v2475 = vmul.f32 %v1467, 2.0
        %v2476 = vmul.f32 %v1468, 2.0
        %v2477 = vmul.f32 %v1469, 2.0
        %v2478 = vmul.f32 %v1470, 2.0
        %v2479 = vmul.f32 %v1471, 2.0
        %v2480 = vmul.f32 %v1472, 2.0
        %v2481 = vmul.f32 %v1473, 2.0
        %v2482 = vmul.f32 %v1474, 2.0
        %v2483 = vmul.f32 %v1475, 2.0
        %v2484 = vmul.f32 %v1476, 2.0
        %v2485 = vmul.f32 %v1477, 2.0
        %v2486 = vmul.f32 %v1478, 2.0
        %v2487 = vmul.f32 %v1479, 2.0
        %v2488 = vmul.f32 %v1480, 2.0
        %v2489 = vmul.f32 %v1481, 2.0
        %v2490 = vmul.f32 %v1482, 2.0
        %v2491 = vmul.f32 %v1483, 2.0
        %v2492 = vmul.f32 %v1484, 2.0
        %v2493 = vmul.f32 %v1485, 2.0
        %v2494 = vmul.f32 %v1486, 2.0
        %v2495 = vmul.f32 %v1487, 2.0
        %v2496 = vmul.f32 %v1488, 2.0
        %v2497 = vmul.f32 %v1489, 2.0
        %v2498 = vmul.f32 %v1490, 2.0
        %v2499 = vmul.f32 %v1491, 2.0
        %v2500 = vmul.f32 %v1492, 2.0
        %v2501 = vmul.f32 %v1493, 2.0
        %v2502 = vmul.f32 %v1494, 2.0
        %v2503 = vmul.f32 %v1495, 2.0
        %v2504 = vmul.f32 %v1496, 2.0
        %v2505 = vmul.f32 %v1497, 2.0
        %v2506 = vmul.f32 %v1498, 2.0
        %v2507 = vmul.f32 %v1499, 2.0
        %v2508 = vmul.f32 %v1500, 2.0
        %v2509 = vmul.f32 %v1501, 2.0
        %v2510 = vmul.f32 %v1502, 2.0
        %v2511 = vmul.f32 %v1503, 2.0
        %v2512 = vmul.f32 %v1504, 2.0
        %v2513 = vmul.f32 %v1505, 2.0
        %v2514 = vmul.f32 %v1506, 2.0
        %v2515 = vmul.f32 %v1507, 2.0
        %v2516 = vmul.f32 %v1508, 2.0
        %v2517 = vmul.f32 %v1509, 2.0
        %v2518 = vmul.f32 %v1510, 2.0
        %v2519 = vmul.f32 %v1511, 2.0
        %v2520 = vmul.f32 %v1512, 2.0
        %v2521 = vmul.f32 %v1513, 2.0
        %v2522 = vmul.f32 %v1514, 2.0
        %v2523 = vmul.f32 %v1515, 2.0
        %v2524 = vmul.f32 %v1516, 2.0
        %v2525 = vmul.f32 %v1517, 2.0
        %v2526 = vmul.f32 %v1518, 2.0
        %v2527 = vmul.f32 %v1519, 2.0
        %v2528 = vmul.f32 %v1520, 2.0
        %v2529 = vmul.f32 %v1521, 2.0
        %v2530 = vmul.f32 %v1522, 2.0
        %v2531 = vmul.f32 %v1523, 2.0
        %v2532 = vmul.f32 %v1524, 2.0
        %v2533 = vmul.f32 %v1525, 2.0
        %v2534 = vmul.f32 %v1526, 2.0
        %v2535 = vmul.f32 %v1527, 2.0
        %v2536 = vmul.f32 %v1528, 2.0
        %v2537 = vmul.f32 %v1529, 2.0
        %v2538 = vmul.f32 %v1530, 2.0
        %v2539 = vmul.f32 %v1531, 2.0
        %v2540 = vmul.f32 %v1532, 2.0
        %v2541 = vmul.f32 %v1533, 2.0
        %v2542 = vmul.f32 %v1534, 2.0
        %v2543 = vmul.f32 %v1535, 2.0
        %v2544 = vmul.f32 %v1536, 2.0
        %v2545 = vmul.f32 %v1537, 2.0
        %v2546 = vmul.f32 %v1538, 2.0
        %v2547 = vmul.f32 %v1539, 2.0
        %v2548 = vmul.f32 %v1540, 2.0
        %v2549 = vmul.f32 %v1541, 2.0
        %v2550 = vmul.f32 %v1542, 2.0
        %v2551 = vmul.f32 %v1543, 2.0
        %v2552 = vmul.f32 %v1544, 2.0
        %v2553 = vmul.f32 %v1545, 2.0
        %v2554 = vmul.f32 %v1546, 2.0
        %v2555 = vmul.f32 %v1547, 2.0
        %v2556 = vmul.f32 %v1548, 2.0
        %v2557 = vmul.f32 %v1549, 2.0
        %v2558 = vmul.f32 %v1550, 2.0
        %v2559 = vmul.f32 %v1551, 2.0
        %v2560 = vmul.f32 %v1552, 2.0
        %v2561 = vmul.f32 %v1553, 2.0
        %v2562 = vmul.f32 %v1554, 2.0
        %v2563 = vmul.f32 %v1555, 2.0
        %v2564 = vmul.f32 %v1556, 2.0
        %v2565 = vmul.f32 %v1557, 2.0
        %v2566 = vmul.f32 %v1558, 2.0
        %v2567 = vmul.f32 %v1559, 2.0
        %v2568 = vmul.f32 %v1560, 2.0
        %v2569 = vmul.f32 %v1561, 2.0
        %v2570 = vmul.f32 %v1562, 2.0
        %v2571 = vmul.f32 %v1563, 2.0
        %v2572 = vmul.f32 %v1564, 2.0
        %v2573 = vmul.f32 %v1565, 2.0
        %v2574 = vmul.f32 %v1566, 2.0
        %v2575 = vmul.f32 %v1567, 2.0
        %v2576 = vmul.f32 %v1568, 2.0
        %v2577 = vmul.f32 %v1569, 2.0
        %v2578 = vmul.f32 %v1570, 2.0
        %v2579 = vmul.f32 %v1571, 2.0
        %v2580 = vmul.f32 %v1572, 2.0
        %v2581 = vmul.f32 %v1573, 2.0
        %v2582 = vmul.f32 %v1574, 2.0
        %v2583 = vmul.f32 %v1575, 2.0
        %v2584 = vmul.f32 %v1576, 2.0
        %v2585 = vmul.f32 %v1577, 2.0
        %v2586 = vmul.f32 %v1578, 2.0
        %v2587 = vmul.f32 %v1579, 2.0
        %v2588 = vmul.f32 %v1580, 2.0
        %v2589 = vmul.f32 %v1581, 2.0
        %v2590 = vmul.f32 %v1582, 2.0
        %v2591 = vmul.f32 %v1583, 2.0
        %v2592 = vmul.f32 %v1584, 2.0
        %v2593 = vmul.f32 %v1585, 2.0
        %v2594 = vmul.f32 %v1586, 2.0
        %v2595 = vmul.f32 %v1587, 2.0
        %v2596 = vmul.f32 %v1588, 2.0
        %v2597 = vmul.f32 %v1589, 2.0
        %v2598 = vmul.f32 %v1590, 2.0
        %v2599 = vmul.f32 %v1591, 2.0
        %v2600 = vmul.f32 %v1592, 2.0
        %v2601 = vmul.f32 %v1593, 2.0
        %v2602 = vmul.f32 %v1594, 2.0
        %v2603 = vmul.f32 %v1595, 2.0
        %v2604 = vmul.f32 %v1596, 2.0
        %v2605 = vmul.f32 %v1597, 2.0
        %v2606 = vmul.f32 %v1598, 2.0
        %v2607 = vmul.f32 %v1599, 2.0
        %v2608 = vmul.f32 %v1600, 2.0
        %v2609 = vmul.f32 %v1601, 2.0
        %v2610 = vmul.f32 %v1602, 2.0
        %v2611 = vmul.f32 %v1603, 2.0
        %v2612 = vmul.f32 %v1604, 2.0
        %v2613 = vmul.f32 %v1605, 2.0
        %v2614 = vmul.f32 %v1606, 2.0
        %v2615 = vmul.f32 %v1607, 2.0
        %v2616 = vmul.f32 %v1608, 2.0
        %v2617 = vmul.f32 %v1609, 2.0
        %v2618 = vmul.f32 %v1610, 2.0
        %v2619 = vmul.f32 %v1611, 2.0
        %v2620 = vmul.f32 %v1612, 2.0
        %v2621 = vmul.f32 %v1613, 2.0
        %v2622 = vmul.f32 %v1614, 2.0
        %v2623 = vmul.f32 %v1615, 2.0
        %v2624 = vmul.f32 %v1616, 2.0
        %v2625 = vmul.f32 %v1617, 2.0
        %v2626 = vmul.f32 %v1618, 2.0
        %v2627 = vmul.f32 %v1619, 2.0
        %v2628 = vmul.f32 %v1620, 2.0
        %v2629 = vmul.f32 %v1621, 2.0
        %v2630 = vmul.f32 %v1622, 2.0
        %v2631 = vmul.f32 %v1623, 2.0
        %v2632 = vmul.f32 %v1624, 2.0
        %v2633 = vmul.f32 %v1625, 2.0
        %v2634 = vmul.f32 %v1626, 2.0
        %v2635 = vmul.f32 %v1627, 2.0
        %v2636 = vmul.f32 %v1628, 2.0
        %v2637 = vmul.f32 %v1629, 2.0
        %v2638 = vmul.f32 %v1630, 2.0
        %v2639 = vmul.f32 %v1631, 2.0
        %v2640 = vmul.f32 %v1632, 2.0
        %v2641 = vmul.f32 %v1633, 2.0
        %v2642 = vmul.f32 %v1634, 2.0
        %v2643 = vmul.f32 %v1635, 2.0
        %v2644 = vmul.f32 %v1636, 2.0
        %v2645 = vmul.f32 %v1637, 2.0
        %v2646 = vmul.f32 %v1638, 2.0
        %v2647 = vmul.f32 %v1639, 2.0
        %v2648 = vmul.f32 %v1640, 2.0
        %v2649 = vmul.f32 %v1641, 2.0
        %v2650 = vmul.f32 %v1642, 2.0
        %v2651 = vmul.f32 %v1643, 2.0
        %v2652 = vmul.f32 %v1644, 2.0
        %v2653 = vmul.f32 %v1645, 2.0
        %v2654 = vmul.f32 %v1646, 2.0
        %v2655 = vmul.f32 %v1647, 2.0
        %v2656 = vmul.f32 %v1648, 2.0
        %v2657 = vmul.f32 %v1649, 2.0
        %v2658 = vmul.f32 %v1650, 2.0
        %v2659 = vmul.f32 %v1651, 2.0
        %v2660 = vmul.f32 %v1652, 2.0
        %v2661 = vmul.f32 %v1653, 2.0
        %v2662 = vmul.f32 %v1654, 2.0
        %v2663 = vmul.f32 %v1655, 2.0
        %v2664 = vmul.f32 %v1656, 2.0
        %v2665 = vmul.f32 %v1657, 2.0
        %v2666 = vmul.f32 %v1658, 2.0
        %v2667 = vmul.f32 %v1659, 2.0
        %v2668 = vmul.f32 %v1660, 2.0
        %v2669 = vmul.f32 %v1661, 2.0
        %v2670 = vmul.f32 %v1662, 2.0
        %v2671 = vmul.f32 %v1663, 2.0
        %v2672 = vmul.f32 %v1664, 2.0
        %v2673 = vmul.f32 %v1665, 2.0
        %v2674 = vmul.f32 %v1666, 2.0
        %v2675 = vsub.f32 %v2171, 3.0
        %v2676 = vsub.f32 %v2172, 3.0
        %v2677 = vsub.f32 %v2173, 3.0
        %v2678 = vsub.f32 %v2174, 3.0
        %v2679 = vsub.f32 %v2175, 3.0
        %v2680 = vsub.f32 %v2176, 3.0
        %v2681 = vsub.f32 %v2177, 3.0
        %v2682 = vsub.f32 %v2178, 3.0
        %v2683 = vsub.f32 %v2179, 3.0
        %v2684 = vsub.f32 %v2180, 3.0
        %v2685 = vsub.f32 %v2181, 3.0
        %v2686 = vsub.f32 %v2182, 3.0
        %v2687 = vsub.f32 %v2183, 3.0
        %v2688 = vsub.f32 %v2184, 3.0
        %v2689 = vsub.f32 %v2185, 3.0
        %v2690 = vsub.f32 %v2186, 3.0
        %v2691 = vsub.f32 %v2187, 3.0
        %v2692 = vsub.f32 %v2188, 3.0
        %v2693 = vsub.f32 %v2189, 3.0
        %v2694 = vsub.f32 %v2190, 3.0
        %v2695 = vsub.f32 %v2191, 3.0
        %v2696 = vsub.f32 %v2192, 3.0
        %v2697 = vsub.f32 %v2193, 3.0
        %v2698 = vsub.f32 %v2194, 3.0
        %v2699 = vsub.f32 %v2195, 3.0
        %v2700 = vsub.f32 %v2196, 3.0
        %v2701 = vsub.f32 %v2197, 3.0
        %v2702 = vsub.f32 %v2198, 3.0
        %v2703 = vsub.f32 %v2199, 3.0
        %v2704 = vsub.f32 %v2200, 3.0
        %v2705 = vsub.f32 %v2201, 3.0
        %v2706 = vsub.f32 %v2202, 3.0
        %v2707 = vsub.f32 %v2203, 3.0
        %v2708 = vsub.f32 %v2204, 3.0
        %v2709 = vsub.f32 %v2205, 3.0
        %v2710 = vsub.f32 %v2206, 3.0
        %v2711 = vsub.f32 %v2207, 3.0
        %v2712 = vsub.f32 %v2208, 3.0
        %v2713 = vsub.f32 %v2209, 3.0
        %v2714 = vsub.f32 %v2210, 3.0
        %v2715 = vsub.f32 %v2211, 3.0
        %v2716 = vsub.f32 %v2212, 3.0
        %v2717 = vsub.f32 %v2213, 3.0
        %v2718 = vsub.f32 %v2214, 3.0
        %v2719 = vsub.f32 %v2215, 3.0
        %v2720 = vsub.f32 %v2216, 3.0
        %v2721 = vsub.f32 %v2217, 3.0
        %v2722 = vsub.f32 %v2218, 3.0
        %v2723 = vsub.f32 %v2219, 3.0
        %v2724 = vsub.f32 %v2220, 3.0
        %v2725 = vsub.f32 %v2221, 3.0
        %v2726 = vsub.f32 %v2222, 3.0
        %v2727 = vsub.f32 %v2223, 3.0
        %v2728 = vsub.f32 %v2224, 3.0
        %v2729 = vsub.f32 %v2225, 3.0
        %v2730 = vsub.f32 %v2226, 3.0
        %v2731 = vsub.f32 %v2227, 3.0
        %v2732 = vsub.f32 %v2228, 3.0
        %v2733 = vsub.f32 %v2229, 3.0
        %v2734 = vsub.f32 %v2230, 3.0
        %v2735 = vsub.f32 %v2231, 3.0
        %v2736 = vsub.f32 %v2232, 3.0
        %v2737 = vsub.f32 %v2233, 3.0
        %v2738 = vsub.f32 %v2234, 3.0
        %v2739 = vsub.f32 %v2235, 3.0
        %v2740 = vsub.f32 %v2236, 3.0
        %v2741 = vsub.f32 %v2237, 3.0
        %v2742 = vsub.f32 %v2238, 3.0
        %v2743 = vsub.f32 %v2239, 3.0
        %v2744 = vsub.f32 %v2240, 3.0
        %v2745 = vsub.f32 %v2241, 3.0
        %v2746 = vsub.f32 %v2242, 3.0
        %v2747 = vsub.f32 %v2243, 3.0
        %v2748 = vsub.f32 %v2244, 3.0
        %v2749 = vsub.f32 %v2245, 3.0
        %v2750 = vsub.f32 %v2246, 3.0
        %v2751 = vsub.f32 %v2247, 3.0
        %v2752 = vsub.f32 %v2248, 3.0
        %v2753 = vsub.f32 %v2249, 3.0
        %v2754 = vsub.f32 %v2250, 3.0
        %v2755 = vsub.f32 %v2251, 3.0
        %v2756 = vsub.f32 %v2252, 3.0
        %v2757 = vsub.f32 %v2253, 3.0
        %v2758 = vsub.f32 %v2254, 3.0
        %v2759 = vsub.f32 %v2255, 3.0
        %v2760 = vsub.f32 %v2256, 3.0
        %v2761 = vsub.f32 %v2257, 3.0
        %v2762 = vsub.f32 %v2258, 3.0
        %v2763 = vsub.f32 %v2259, 3.0
        %v2764 = vsub.f32 %v2260, 3.0
        %v2765 = vsub.f32 %v2261, 3.0
        %v2766 = vsub.f32 %v2262, 3.0
        %v2767 = vsub.f32 %v2263, 3.0
        %v2768 = vsub.f32 %v2264, 3.0
        %v2769 = vsub.f32 %v2265, 3.0
        %v2770 = vsub.f32 %v2266, 3.0
        %v2771 = vsub.f32 %v2267, 3.0
        %v2772 = vsub.f32 %v2268, 3.0
        %v2773 = vsub.f32 %v2269, 3.0
        %v2774 = vsub.f32 %v2270, 3.0
        %v2775 = vsub.f32 %v2271, 3.0
        %v2776 = vsub.f32 %v2272, 3.0
        %v2777 = vsub.f32 %v2273, 3.0
        %v2778 = vsub.f32 %v2274, 3.0
        %v2779 = vsub.f32 %v2275, 3.0
        %v2780 = vsub.f32 %v2276, 3.0
        %v2781 = vsub.f32 %v2277, 3.0
        %v2782 = vsub.f32 %v2278, 3.0
        %v2783 = vsub.f32 %v2279, 3.0
        %v2784 = vsub.f32 %v2280, 3.0
        %v2785 = vsub.f32 %v2281, 3.0
        %v2786 = vsub.f32 %v2282, 3.0
        %v2787 = vsub.f32 %v2283, 3.0
        %v2788 = vsub.f32 %v2284, 3.0
        %v2789 = vsub.f32 %v2285, 3.0
        %v2790 = vsub.f32 %v2286, 3.0
        %v2791 = vsub.f32 %v2287, 3.0
        %v2792 = vsub.f32 %v2288, 3.0
        %v2793 = vsub.f32 %v2289, 3.0
        %v2794 = vsub.f32 %v2290, 3.0
        %v2795 = vsub.f32 %v2291, 3.0
        %v2796 = vsub.f32 %v2292, 3.0
        %v2797 = vsub.f32 %v2293, 3.0
        %v2798 = vsub.f32 %v2294, 3.0
        %v2799 = vsub.f32 %v2295, 3.0
        %v2800 = vsub.f32 %v2296, 3.0
        %v2801 = vsub.f32 %v2297, 3.0
        %v2802 = vsub.f32 %v2298, 3.0
        %v2803 = vsub.f32 %v2299, 3.0
        %v2804 = vsub.f32 %v2300, 3.0
        %v2805 = vsub.f32 %v2301, 3.0
        %v2806 = vsub.f32 %v2302, 3.0
        %v2807 = vsub.f32 %v2303, 3.0
        %v2808 = vsub.f32 %v2304, 3.0
        %v2809 = vsub.f32 %v2305, 3.0
        %v2810 = vsub.f32 %v2306, 3.0
        %v2811 = vsub.f32 %v2307, 3.0
        %v2812 = vsub.f32 %v2308, 3.0
        %v2813 = vsub.f32 %v2309, 3.0
        %v2814 = vsub.f32 %v2310, 3.0
        %v2815 = vsub.f32 %v2311, 3.0
        %v2816 = vsub.f32 %v2312, 3.0
        %v2817 = vsub.f32 %v2313, 3.0
        %v2818 = vsub.f32 %v2314, 3.0
        %v2819 = vsub.f32 %v2315, 3.0
        %v2820 = vsub.f32 %v2316, 3.0
        %v2821 = vsub.f32 %v2317, 3.0
        %v2822 = vsub.f32 %v2318, 3.0
        %v2823 = vsub.f32 %v2319, 3.0
        %v2824 = vsub.f32 %v2320, 3.0
        %v2825 = vsub.f32 %v2321, 3.0
        %v2826 = vsub.f32 %v2322, 3.0
        %v2827 = vsub.f32 %v2323, 3.0
        %v2828 = vsub.f32 %v2324, 3.0
        %v2829 = vsub.f32 %v2325, 3.0
        %v2830 = vsub.f32 %v2326, 3.0
        %v2831 = vsub.f32 %v2327, 3.0
        %v2832 = vsub.f32 %v2328, 3.0
        %v2833 = vsub.f32 %v2329, 3.0
        %v2834 = vsub.f32 %v2330, 3.0
        %v2835 = vsub.f32 %v2331, 3.0
        %v2836 = vsub.f32 %v2332, 3.0
        %v2837 = vsub.f32 %v2333, 3.0
        %v2838 = vsub.f32 %v2334, 3.0
        %v2839 = vsub.f32 %v2335, 3.0
        %v2840 = vsub.f32 %v2336, 3.0
        %v2841 = vsub.f32 %v2337, 3.0
        %v2842 = vsub.f32 %v2338, 3.0
        %v2843 = vsub.f32 %v2339, 3.0
        %v2844 = vsub.f32 %v2340, 3.0
        %v2845 = vsub.f32 %v2341, 3.0
        %v2846 = vsub.f32 %v2342, 3.0
        %v2847 = vsub.f32 %v2343, 3.0
        %v2848 = vsub.f32 %v2344, 3.0
        %v2849 = vsub.f32 %v2345, 3.0
        %v2850 = vsub.f32 %v2346, 3.0
        %v2851 = vsub.f32 %v2347, 3.0
        %v2852 = vsub.f32 %v2348, 3.0
        %v2853 = vsub.f32 %v2349, 3.0
        %v2854 = vsub.f32 %v2350, 3.0
        %v2855 = vsub.f32 %v2351, 3.0
        %v2856 = vsub.f32 %v2352, 3.0
        %v2857 = vsub.f32 %v2353, 3.0
        %v2858 = vsub.f32 %v2354, 3.0
        %v2859 = vsub.f32 %v2355, 3.0
        %v2860 = vsub.f32 %v2356, 3.0
        %v2861 = vsub.f32 %v2357, 3.0
        %v2862 = vsub.f32 %v2358, 3.0
        %v2863 = vsub.f32 %v2359, 3.0
        %v2864 = vsub.f32 %v2360, 3.0
        %v2865 = vsub.f32 %v2361, 3.0
        %v2866 = vsub.f32 %v2362, 3.0
        %v2867 = vsub.f32 %v2363, 3.0
        %v2868 = vsub.f32 %v2364, 3.0
        %v2869 = vsub.f32 %v2365, 3.0
        %v2870 = vsub.f32 %v2366, 3.0
        %v2871 = vsub.f32 %v2367, 3.0
        %v2872 = vsub.f32 %v2368, 3.0
        %v2873 = vsub.f32 %v2369, 3.0
        %v2874 = vsub.f32 %v2370, 3.0
        %v2875 = vsub.f32 %v2371, 3.0
        %v2876 = vsub.f32 %v2372, 3.0
        %v2877 = vsub.f32 %v2373, 3.0
        %v2878 = vsub.f32 %v2374, 3.0
        %v2879 = vsub.f32 %v2375, 3.0
        %v2880 = vsub.f32 %v2376, 3.0
        %v2881 = vsub.f32 %v2377, 3.0
        %v2882 = vsub.f32 %v2378, 3.0
        %v2883 = vsub.f32 %v2379, 3.0
        %v2884 = vsub.f32 %v2380, 3.0
        %v2885 = vsub.f32 %v2381, 3.0
        %v2886 = vsub.f32 %v2382, 3.0
        %v2887 = vsub.f32 %v2383, 3.0
        %v2888 = vsub.f32 %v2384, 3.0
        %v2889 = vsub.f32 %v2385, 3.0
        %v2890 = vsub.f32 %v2386, 3.0
        %v2891 = vsub.f32 %v2387, 3.0
        %v2892 = vsub.f32 %v2388, 3.0
        %v2893 = vsub.f32 %v2389, 3.0
        %v2894 = vsub.f32 %v2390, 3.0
        %v2895 = vsub.f32 %v2391, 3.0
        %v2896 = vsub.f32 %v2392, 3.0
        %v2897 = vsub.f32 %v2393, 3.0
        %v2898 = vsub.f32 %v2394, 3.0
        %v2899 = vsub.f32 %v2395, 3.0
        %v2900 = vsub.f32 %v2396, 3.0
        %v2901 = vsub.f32 %v2397, 3.0
        %v2902 = vsub.f32 %v2398, 3.0
        %v2903 = vsub.f32 %v2399, 3.0
        %v2904 = vsub.f32 %v2400, 3.0
        %v2905 = vsub.f32 %v2401, 3.0
        %v2906 = vsub.f32 %v2402, 3.0
        %v2907 = vsub.f32 %v2403, 3.0
        %v2908 = vsub.f32 %v2404, 3.0
        %v2909 = vsub.f32 %v2405, 3.0
        %v2910 = vsub.f32 %v2406, 3.0
        %v2911 = vsub.f32 %v2407, 3.0
        %v2912 = vsub.f32 %v2408, 3.0
        %v2913 = vsub.f32 %v2409, 3.0
        %v2914 = vsub.f32 %v2410, 3.0
        %v2915 = vsub.f32 %v2411, 3.0
        %v2916 = vsub.f32 %v2412, 3.0
        %v2917 = vsub.f32 %v2413, 3.0
        %v2918 = vsub.f32 %v2414, 3.0
        %v2919 = vsub.f32 %v2415, 3.0
        %v2920 = vsub.f32 %v2416, 3.0
        %v2921 = vsub.f32 %v2417, 3.0
        %v2922 = vsub.f32 %v2418, 3.0
        %v2923 = vsub.f32 %v2419, 3.0
        %v2924 = vsub.f32 %v2420, 3.0
        %v2925 = vsub.f32 %v2421, 3.0
        %v2926 = vsub.f32 %v2422, 3.0
        %v2927 = vsub.f32 %v2423, 3.0
        %v2928 = vsub.f32 %v2424, 3.0
        %v2929 = vsub.f32 %v2425, 3.0
        %v2930 = vsub.f32 %v2426, 3.0
        %v2931 = vsub.f32 %v2427, 3.0
        %v2932 = vsub.f32 %v2428, 3.0
        %v2933 = vsub.f32 %v2429, 3.0
        %v2934 = vsub.f32 %v2430, 3.0
        %v2935 = vsub.f32 %v2431, 3.0
        %v2936 = vsub.f32 %v2432, 3.0
        %v2937 = vsub.f32 %v2433, 3.0
        %v2938 = vsub.f32 %v2434, 3.0
        %v2939 = vsub.f32 %v2435, 3.0
        %v2940 = vsub.f32 %v2436, 3.0
        %v2941 = vsub.f32 %v2437, 3.0
        %v2942 = vsub.f32 %v2438, 3.0
        %v2943 = vsub.f32 %v2439, 3.0
        %v2944 = vsub.f32 %v2440, 3.0
        %v2945 = vsub.f32 %v2441, 3.0
        %v2946 = vsub.f32 %v2442, 3.0
        %v2947 = vsub.f32 %v2443, 3.0
        %v2948 = vsub.f32 %v2444, 3.0
        %v2949 = vsub.f32 %v2445, 3.0
        %v2950 = vsub.f32 %v2446, 3.0
        %v2951 = vsub.f32 %v2447, 3.0
        %v2952 = vsub.f32 %v2448, 3.0
        %v2953 = vsub.f32 %v2449, 3.0
        %v2954 = vsub.f32 %v2450, 3.0
        %v2955 = vsub.f32 %v2451, 3.0
        %v2956 = vsub.f32 %v2452, 3.0
        %v2957 = vsub.f32 %v2453, 3.0
        %v2958 = vsub.f32 %v2454, 3.0
        %v2959 = vsub.f32 %v2455, 3.0
        %v2960 = vsub.f32 %v2456, 3.0
        %v2961 = vsub.f32 %v2457, 3.0
        %v2962 = vsub.f32 %v2458, 3.0
        %v2963 = vsub.f32 %v2459, 3.0
        %v2964 = vsub.f32 %v2460, 3.0
        %v2965 = vsub.f32 %v2461, 3.0
        %v2966 = vsub.f32 %v2462, 3.0
        %v2967 = vsub.f32 %v2463, 3.0
        %v2968 = vsub.f32 %v2464, 3.0
        %v2969 = vsub.f32 %v2465, 3.0
        %v2970 = vsub.f32 %v2466, 3.0
        %v2971 = vsub.f32 %v2467, 3.0
        %v2972 = vsub.f32 %v2468, 3.0
        %v2973 = vsub.f32 %v2469, 3.0
        %v2974 = vsub.f32 %v2470, 3.0
        %v2975 = vsub.f32 %v2471, 3.0
        %v2976 = vsub.f32 %v2472, 3.0
        %v2977 = vsub.f32 %v2473, 3.0
        %v2978 = vsub.f32 %v2474, 3.0
        %v2979 = vsub.f32 %v2475, 3.0
        %v2980 = vsub.f32 %v2476, 3.0
        %v2981 = vsub.f32 %v2477, 3.0
        %v2982 = vsub.f32 %v2478, 3.0
        %v2983 = vsub.f32 %v2479, 3.0
        %v2984 = vsub.f32 %v2480, 3.0
        %v2985 = vsub.f32 %v2481, 3.0
        %v2986 = vsub.f32 %v2482, 3.0
        %v2987 = vsub.f32 %v2483, 3.0
        %v2988 = vsub.f32 %v2484, 3.0
        %v2989 = vsub.f32 %v2485, 3.0
        %v2990 = vsub.f32 %v2486, 3.0
        %v2991 = vsub.f32 %v2487, 3.0
        %v2992 = vsub.f32 %v2488, 3.0
        %v2993 = vsub.f32 %v2489, 3.0
        %v2994 = vsub.f32 %v2490, 3.0
        %v2995 = vsub.f32 %v2491, 3.0
        %v2996 = vsub.f32 %v2492, 3.0
        %v2997 = vsub.f32 %v2493, 3.0
        %v2998 = vsub.f32 %v2494, 3.0
        %v2999 = vsub.f32 %v2495, 3.0
        %v3000 = vsub.f32 %v2496, 3.0
        %v3001 = vsub.f32 %v2497, 3.0
        %v3002 = vsub.f32 %v2498, 3.0
        %v3003 = vsub.f32 %v2499, 3.0
        %v3004 = vsub.f32 %v2500, 3.0
        %v3005 = vsub.f32 %v2501, 3.0
        %v3006 = vsub.f32 %v2502, 3.0
        %v3007 = vsub.f32 %v2503, 3.0
        %v3008 = vsub.f32 %v2504, 3.0
        %v3009 = vsub.f32 %v2505, 3.0
        %v3010 = vsub.f32 %v2506, 3.0
        %v3011 = vsub.f32 %v2507, 3.0
        %v3012 = vsub.f32 %v2508, 3.0
        %v3013 = vsub.f32 %v2509, 3.0
        %v3014 = vsub.f32 %v2510, 3.0
        %v3015 = vsub.f32 %v2511, 3.0
        %v3016 = vsub.f32 %v2512, 3.0
        %v3017 = vsub.f32 %v2513, 3.0
        %v3018 = vsub.f32 %v2514, 3.0
        %v3019 = vsub.f32 %v2515, 3.0
        %v3020 = vsub.f32 %v2516, 3.0
        %v3021 = vsub.f32 %v2517, 3.0
        %v3022 = vsub.f32 %v2518, 3.0
        %v3023 = vsub.f32 %v2519, 3.0
        %v3024 = vsub.f32 %v2520, 3.0
        %v3025 = vsub.f32 %v2521, 3.0
        %v3026 = vsub.f32 %v2522, 3.0
        %v3027 = vsub.f32 %v2523, 3.0
        %v3028 = vsub.f32 %v2524, 3.0
        %v3029 = vsub.f32 %v2525, 3.0
        %v3030 = vsub.f32 %v2526, 3.0
        %v3031 = vsub.f32 %v2527, 3.0
        %v3032 = vsub.f32 %v2528, 3.0
        %v3033 = vsub.f32 %v2529, 3.0
        %v3034 = vsub.f32 %v2530, 3.0
        %v3035 = vsub.f32 %v2531, 3.0
        %v3036 = vsub.f32 %v2532, 3.0
        %v3037 = vsub.f32 %v2533, 3.0
        %v3038 = vsub.f32 %v2534, 3.0
        %v3039 = vsub.f32 %v2535, 3.0
        %v3040 = vsub.f32 %v2536, 3.0
        %v3041 = vsub.f32 %v2537, 3.0
        %v3042 = vsub.f32 %v2538, 3.0
        %v3043 = vsub.f32 %v2539, 3.0
        %v3044 = vsub.f32 %v2540, 3.0
        %v3045 = vsub.f32 %v2541, 3.0
        %v3046 = vsub.f32 %v2542, 3.0
        %v3047 = vsub.f32 %v2543, 3.0
        %v3048 = vsub.f32 %v2544, 3.0
        %v3049 = vsub.f32 %v2545, 3.0
        %v3050 = vsub.f32 %v2546, 3.0
        %v3051 = vsub.f32 %v2547, 3.0
        %v3052 = vsub.f32 %v2548, 3.0
        %v3053 = vsub.f32 %v2549, 3.0
        %v3054 = vsub.f32 %v2550, 3.0
        %v3055 = vsub.f32 %v2551, 3.0
        %v3056 = vsub.f32 %v2552, 3.0
        %v3057 = vsub.f32 %v2553, 3.0
        %v3058 = vsub.f32 %v2554, 3.0
        %v3059 = vsub.f32 %v2555, 3.0
        %v3060 = vsub.f32 %v2556, 3.0
        %v3061 = vsub.f32 %v2557, 3.0
        %v3062 = vsub.f32 %v2558, 3.0
        %v3063 = vsub.f32 %v2559, 3.0
        %v3064 = vsub.f32 %v2560, 3.0
        %v3065 = vsub.f32 %v2561, 3.0
        %v3066 = vsub.f32 %v2562, 3.0
        %v3067 = vsub.f32 %v2563, 3.0
        %v3068 = vsub.f32 %v2564, 3.0
        %v3069 = vsub.f32 %v2565, 3.0
        %v3070 = vsub.f32 %v2566, 3.0
        %v3071 = vsub.f32 %v2567, 3.0
        %v3072 = vsub.f32 %v2568, 3.0
        %v3073 = vsub.f32 %v2569, 3.0
        %v3074 = vsub.f32 %v2570, 3.0
        %v3075 = vsub.f32 %v2571, 3.0
        %v3076 = vsub.f32 %v2572, 3.0
        %v3077 = vsub.f32 %v2573, 3.0
        %v3078 = vsub.f32 %v2574, 3.0
        %v3079 = vsub.f32 %v2575, 3.0
        %v3080 = vsub.f32 %v2576, 3.0
        %v3081 = vsub.f32 %v2577, 3.0
        %v3082 = vsub.f32 %v2578, 3.0
        %v3083 = vsub.f32 %v2579, 3.0
        %v3084 = vsub.f32 %v2580, 3.0
        %v3085 = vsub.f32 %v2581, 3.0
        %v3086 = vsub.f32 %v2582, 3.0
        %v3087 = vsub.f32 %v2583, 3.0
        %v3088 = vsub.f32 %v2584, 3.0
        %v3089 = vsub.f32 %v2585, 3.0
        %v3090 = vsub.f32 %v2586, 3.0
        %v3091 = vsub.f32 %v2587, 3.0
        %v3092 = vsub.f32 %v2588, 3.0
        %v3093 = vsub.f32 %v2589, 3.0
        %v3094 = vsub.f32 %v2590, 3.0
        %v3095 = vsub.f32 %v2591, 3.0
        %v3096 = vsub.f32 %v2592, 3.0
        %v3097 = vsub.f32 %v2593, 3.0
        %v3098 = vsub.f32 %v2594, 3.0
        %v3099 = vsub.f32 %v2595, 3.0
        %v3100 = vsub.f32 %v2596, 3.0
        %v3101 = vsub.f32 %v2597, 3.0
        %v3102 = vsub.f32 %v2598, 3.0
        %v3103 = vsub.f32 %v2599, 3.0
        %v3104 = vsub.f32 %v2600, 3.0
        %v3105 = vsub.f32 %v2601, 3.0
        %v3106 = vsub.f32 %v2602, 3.0
        %v3107 = vsub.f32 %v2603, 3.0
        %v3108 = vsub.f32 %v2604, 3.0
        %v3109 = vsub.f32 %v2605, 3.0
        %v3110 = vsub.f32 %v2606, 3.0
        %v3111 = vsub.f32 %v2607, 3.0
        %v3112 = vsub.f32 %v2608, 3.0
        %v3113 = vsub.f32 %v2609, 3.0
        %v3114 = vsub.f32 %v2610, 3.0
        %v3115 = vsub.f32 %v2611, 3.0
        %v3116 = vsub.f32 %v2612, 3.0
        %v3117 = vsub.f32 %v2613, 3.0
        %v3118 = vsub.f32 %v2614, 3.0
        %v3119 = vsub.f32 %v2615, 3.0
        %v3120 = vsub.f32 %v2616, 3.0
        %v3121 = vsub.f32 %v2617, 3.0
        %v3122 = vsub.f32 %v2618, 3.0
        %v3123 = vsub.f32 %v2619, 3.0
        %v3124 = vsub.f32 %v2620, 3.0
        %v3125 = vsub.f32 %v2621, 3.0
        %v3126 = vsub.f32 %v2622, 3.0
        %v3127 = vsub.f32 %v2623, 3.0
        %v3128 = vsub.f32 %v2624, 3.0
        %v3129 = vsub.f32 %v2625, 3.0
        %v3130 = vsub.f32 %v2626, 3.0
        %v3131 = vsub.f32 %v2627, 3.0
        %v3132 = vsub.f32 %v2628, 3.0
        %v3133 = vsub.f32 %v2629, 3.0
        %v3134 = vsub.f32 %v2630, 3.0
        %v3135 = vsub.f32 %v2631, 3.0
        %v3136 = vsub.f32 %v2632, 3.0
        %v3137 = vsub.f32 %v2633, 3.0
        %v3138 = vsub.f32 %v2634, 3.0
        %v3139 = vsub.f32 %v2635, 3.0
        %v3140 = vsub.f32 %v2636, 3.0
        %v3141 = vsub.f32 %v2637, 3.0
        %v3142 = vsub.f32 %v2638, 3.0
        %v3143 = vsub.f32 %v2639, 3.0
        %v3144 = vsub.f32 %v2640, 3.0
        %v3145 = vsub.f32 %v2641, 3.0
        %v3146 = vsub.f32 %v2642, 3.0
        %v3147 = vsub.f32 %v2643, 3.0
        %v3148 = vsub.f32 %v2644, 3.0
        %v3149 = vsub.f32 %v2645, 3.0
        %v3150 = vsub.f32 %v2646, 3.0
        %v3151 = vsub.f32 %v2647, 3.0
        %v3152 = vsub.f32 %v2648, 3.0
        %v3153 = vsub.f32 %v2649, 3.0
        %v3154 = vsub.f32 %v2650, 3.0
        %v3155 = vsub.f32 %v2651, 3.0
        %v3156 = vsub.f32 %v2652, 3.0
        %v3157 = vsub.f32 %v2653, 3.0
        %v3158 = vsub.f32 %v2654, 3.0
        %v3159 = vsub.f32 %v2655, 3.0
        %v3160 = vsub.f32 %v2656, 3.0
        %v3161 = vsub.f32 %v2657, 3.0
        %v3162 = vsub.f32 %v2658, 3.0
        %v3163 = vsub.f32 %v2659, 3.0
        %v3164 = vsub.f32 %v2660, 3.0
        %v3165 = vsub.f32 %v2661, 3.0
        %v3166 = vsub.f32 %v2662, 3.0
        %v3167 = vsub.f32 %v2663, 3.0
        %v3168 = vsub.f32 %v2664, 3.0
        %v3169 = vsub.f32 %v2665, 3.0
        %v3170 = vsub.f32 %v2666, 3.0
        %v3171 = vsub.f32 %v2667, 3.0
        %v3172 = vsub.f32 %v2668, 3.0
        %v3173 = vsub.f32 %v2669, 3.0
        %v3174 = vsub.f32 %v2670, 3.0
        %v3175 = vsub.f32 %v2671, 3.0
        %v3176 = vsub.f32 %v2672, 3.0
        %v3177 = vsub.f32 %v2673, 3.0
        %v3178 = vsub.f32 %v2674, 3.0
        %v3179 = vmul.f32 %v1667, %v2675
        %v3180 = vmul.f32 %v1668, %v2676
        %v3181 = vmul.f32 %v1669, %v2677
        %v3182 = vmul.f32 %v1670, %v2678
        %v3183 = vmul.f32 %v1671, %v2679
        %v3184 = vmul.f32 %v1672, %v2680
        %v3185 = vmul.f32 %v1673, %v2681
        %v3186 = vmul.f32 %v1674, %v2682
        %v3187 = vmul.f32 %v1675, %v2683
        %v3188 = vmul.f32 %v1676, %v2684
        %v3189 = vmul.f32 %v1677, %v2685
        %v3190 = vmul.f32 %v1678, %v2686
        %v3191 = vmul.f32 %v1679, %v2687
        %v3192 = vmul.f32 %v1680, %v2688
        %v3193 = vmul.f32 %v1681, %v2689
        %v3194 = vmul.f32 %v1682, %v2690
        %v3195 = vmul.f32 %v1683, %v2691
        %v3196 = vmul.f32 %v1684, %v2692
        %v3197 = vmul.f32 %v1685, %v2693
        %v3198 = vmul.f32 %v1686, %v2694
        %v3199 = vmul.f32 %v1687, %v2695
        %v3200 = vmul.f32 %v1688, %v2696
        %v3201 = vmul.f32 %v1689, %v2697
        %v3202 = vmul.f32 %v1690, %v2698
        %v3203 = vmul.f32 %v1691, %v2699
        %v3204 = vmul.f32 %v1692, %v2700
        %v3205 = vmul.f32 %v1693, %v2701
        %v3206 = vmul.f32 %v1694, %v2702
        %v3207 = vmul.f32 %v1695, %v2703
        %v3208 = vmul.f32 %v1696, %v2704
        %v3209 = vmul.f32 %v1697, %v2705
        %v3210 = vmul.f32 %v1698, %v2706
        %v3211 = vmul.f32 %v1699, %v2707
        %v3212 = vmul.f32 %v1700, %v2708
        %v3213 = vmul.f32 %v1701, %v2709
        %v3214 = vmul.f32 %v1702, %v2710
        %v3215 = vmul.f32 %v1703, %v2711
        %v3216 = vmul.f32 %v1704, %v2712
        %v3217 = vmul.f32 %v1705, %v2713
        %v3218 = vmul.f32 %v1706, %v2714
        %v3219 = vmul.f32 %v1707, %v2715
        %v3220 = vmul.f32 %v1708, %v2716
        %v3221 = vmul.f32 %v1709, %v2717
        %v3222 = vmul.f32 %v1710, %v2718
        %v3223 = vmul.f32 %v1711, %v2719
        %v3224 = vmul.f32 %v1712, %v2720
        %v3225 = vmul.f32 %v1713, %v2721
        %v3226 = vmul.f32 %v1714, %v2722
        %v3227 = vmul.f32 %v1715, %v2723
        %v3228 = vmul.f32 %v1716, %v2724
        %v3229 = vmul.f32 %v1717, %v2725
        %v3230 = vmul.f32 %v1718, %v2726
        %v3231 = vmul.f32 %v1719, %v2727
        %v3232 = vmul.f32 %v1720, %v2728
        %v3233 = vmul.f32 %v1721, %v2729
        %v3234 = vmul.f32 %v1722, %v2730
        %v3235 = vmul.f32 %v1723, %v2731
        %v3236 = vmul.f32 %v1724, %v2732
        %v3237 = vmul.f32 %v1725, %v2733
        %v3238 = vmul.f32 %v1726, %v2734
        %v3239 = vmul.f32 %v1727, %v2735
        %v3240 = vmul.f32 %v1728, %v2736
        %v3241 = vmul.f32 %v1729, %v2737
        %v3242 = vmul.f32 %v1730, %v2738
        %v3243 = vmul.f32 %v1731, %v2739
        %v3244 = vmul.f32 %v1732, %v2740
        %v3245 = vmul.f32 %v1733, %v2741
        %v3246 = vmul.f32 %v1734, %v2742
        %v3247 = vmul.f32 %v1735, %v2743
        %v3248 = vmul.f32 %v1736, %v2744
        %v3249 = vmul.f32 %v1737, %v2745
        %v3250 = vmul.f32 %v1738, %v2746
        %v3251 = vmul.f32 %v1739, %v2747
        %v3252 = vmul.f32 %v1740, %v2748
        %v3253 = vmul.f32 %v1741, %v2749
        %v3254 = vmul.f32 %v1742, %v2750
        %v3255 = vmul.f32 %v1743, %v2751
        %v3256 = vmul.f32 %v1744, %v2752
        %v3257 = vmul.f32 %v1745, %v2753
        %v3258 = vmul.f32 %v1746, %v2754
        %v3259 = vmul.f32 %v1747, %v2755
        %v3260 = vmul.f32 %v1748, %v2756
        %v3261 = vmul.f32 %v1749, %v2757
        %v3262 = vmul.f32 %v1750, %v2758
        %v3263 = vmul.f32 %v1751, %v2759
        %v3264 = vmul.f32 %v1752, %v2760
        %v3265 = vmul.f32 %v1753, %v2761
        %v3266 = vmul.f32 %v1754, %v2762
        %v3267 = vmul.f32 %v1755, %v2763
        %v3268 = vmul.f32 %v1756, %v2764
        %v3269 = vmul.f32 %v1757, %v2765
        %v3270 = vmul.f32 %v1758, %v2766
        %v3271 = vmul.f32 %v1759, %v2767
        %v3272 = vmul.f32 %v1760, %v2768
        %v3273 = vmul.f32 %v1761, %v2769
        %v3274 = vmul.f32 %v1762, %v2770
        %v3275 = vmul.f32 %v1763, %v2771
        %v3276 = vmul.f32 %v1764, %v2772
        %v3277 = vmul.f32 %v1765, %v2773
        %v3278 = vmul.f32 %v1766, %v2774
        %v3279 = vmul.f32 %v1767, %v2775
        %v3280 = vmul.f32 %v1768, %v2776
        %v3281 = vmul.f32 %v1769, %v2777
        %v3282 = vmul.f32 %v1770, %v2778
        %v3283 = vmul.f32 %v1771, %v2779
        %v3284 = vmul.f32 %v1772, %v2780
        %v3285 = vmul.f32 %v1773, %v2781
        %v3286 = vmul.f32 %v1774, %v2782
        %v3287 = vmul.f32 %v1775, %v2783
        %v3288 = vmul.f32 %v1776, %v2784
        %v3289 = vmul.f32 %v1777, %v2785
        %v3290 = vmul.f32 %v1778, %v2786
        %v3291 = vmul.f32 %v1779, %v2787
        %v3292 = vmul.f32 %v1780, %v2788
        %v3293 = vmul.f32 %v1781, %v2789
        %v3294 = vmul.f32 %v1782, %v2790
        %v3295 = vmul.f32 %v1783, %v2791
        %v3296 = vmul.f32 %v1784, %v2792
        %v3297 = vmul.f32 %v1785, %v2793
        %v3298 = vmul.f32 %v1786, %v2794
        %v3299 = vmul.f32 %v1787, %v2795
        %v3300 = vmul.f32 %v1788, %v2796
        %v3301 = vmul.f32 %v1789, %v2797
        %v3302 = vmul.f32 %v1790, %v2798
        %v3303 = vmul.f32 %v1791, %v2799
        %v3304 = vmul.f32 %v1792, %v2800
        %v3305 = vmul.f32 %v1793, %v2801
        %v3306 = vmul.f32 %v1794, %v2802
        %v3307 = vmul.f32 %v1795, %v2803
        %v3308 = vmul.f32 %v1796, %v2804
        %v3309 = vmul.f32 %v1797, %v2805
        %v3310 = vmul.f32 %v1798, %v2806
        %v3311 = vmul.f32 %v1799, %v2807
        %v3312 = vmul.f32 %v1800, %v2808
        %v3313 = vmul.f32 %v1801, %v2809
        %v3314 = vmul.f32 %v1802, %v2810
        %v3315 = vmul.f32 %v1803, %v2811
        %v3316 = vmul.f32 %v1804, %v2812
        %v3317 = vmul.f32 %v1805, %v2813
        %v3318 = vmul.f32 %v1806, %v2814
        %v3319 = vmul.f32 %v1807, %v2815
        %v3320 = vmul.f32 %v1808, %v2816
        %v3321 = vmul.f32 %v1809, %v2817
        %v3322 = vmul.f32 %v1810, %v2818
        %v3323 = vmul.f32 %v1811, %v2819
        %v3324 = vmul.f32 %v1812, %v2820
        %v3325 = vmul.f32 %v1813, %v2821
        %v3326 = vmul.f32 %v1814, %v2822
        %v3327 = vmul.f32 %v1815, %v2823
        %v3328 = vmul.f32 %v1816, %v2824
        %v3329 = vmul.f32 %v1817, %v2825
        %v3330 = vmul.f32 %v1818, %v2826
        %v3331 = vmul.f32 %v1819, %v2827
        %v3332 = vmul.f32 %v1820, %v2828
        %v3333 = vmul.f32 %v1821, %v2829
        %v3334 = vmul.f32 %v1822, %v2830
        %v3335 = vmul.f32 %v1823, %v2831
        %v3336 = vmul.f32 %v1824, %v2832
        %v3337 = vmul.f32 %v1825, %v2833
        %v3338 = vmul.f32 %v1826, %v2834
        %v3339 = vmul.f32 %v1827, %v2835
        %v3340 = vmul.f32 %v1828, %v2836
        %v3341 = vmul.f32 %v1829, %v2837
        %v3342 = vmul.f32 %v1830, %v2838
        %v3343 = vmul.f32 %v1831, %v2839
        %v3344 = vmul.f32 %v1832, %v2840
        %v3345 = vmul.f32 %v1833, %v2841
        %v3346 = vmul.f32 %v1834, %v2842
        %v3347 = vmul.f32 %v1835, %v2843
        %v3348 = vmul.f32 %v1836, %v2844
        %v3349 = vmul.f32 %v1837, %v2845
        %v3350 = vmul.f32 %v1838, %v2846
        %v3351 = vmul.f32 %v1839, %v2847
        %v3352 = vmul.f32 %v1840, %v2848
        %v3353 = vmul.f32 %v1841, %v2849
        %v3354 = vmul.f32 %v1842, %v2850
        %v3355 = vmul.f32 %v1843, %v2851
        %v3356 = vmul.f32 %v1844, %v2852
        %v3357 = vmul.f32 %v1845, %v2853
        %v3358 = vmul.f32 %v1846, %v2854
        %v3359 = vmul.f32 %v1847, %v2855
        %v3360 = vmul.f32 %v1848, %v2856
        %v3361 = vmul.f32 %v1849, %v2857
        %v3362 = vmul.f32 %v1850, %v2858
        %v3363 = vmul.f32 %v1851, %v2859
        %v3364 = vmul.f32 %v1852, %v2860
        %v3365 = vmul.f32 %v1853, %v2861
        %v3366 = vmul.f32 %v1854, %v2862
        %v3367 = vmul.f32 %v1855, %v2863
        %v3368 = vmul.f32 %v1856, %v2864
        %v3369 = vmul.f32 %v1857, %v2865
        %v3370 = vmul.f32 %v1858, %v2866
        %v3371 = vmul.f32 %v1859, %v2867
        %v3372 = vmul.f32 %v1860, %v2868
        %v3373 = vmul.f32 %v1861, %v2869
        %v3374 = vmul.f32 %v1862, %v2870
        %v3375 = vmul.f32 %v1863, %v2871
        %v3376 = vmul.f32 %v1864, %v2872
        %v3377 = vmul.f32 %v1865, %v2873
        %v3378 = vmul.f32 %v1866, %v2874
        %v3379 = vmul.f32 %v1867, %v2875
        %v3380 = vmul.f32 %v1868, %v2876
        %v3381 = vmul.f32 %v1869, %v2877
        %v3382 = vmul.f32 %v1870, %v2878
        %v3383 = vmul.f32 %v1871, %v2879
        %v3384 = vmul.f32 %v1872, %v2880
        %v3385 = vmul.f32 %v1873, %v2881
        %v3386 = vmul.f32 %v1874, %v2882
        %v3387 = vmul.f32 %v1875, %v2883
        %v3388 = vmul.f32 %v1876, %v2884
        %v3389 = vmul.f32 %v1877, %v2885
        %v3390 = vmul.f32 %v1878, %v2886
        %v3391 = vmul.f32 %v1879, %v2887
        %v3392 = vmul.f32 %v1880, %v2888
        %v3393 = vmul.f32 %v1881, %v2889
        %v3394 = vmul.f32 %v1882, %v2890
        %v3395 = vmul.f32 %v1883, %v2891
        %v3396 = vmul.f32 %v1884, %v2892
        %v3397 = vmul.f32 %v1885, %v2893
        %v3398 = vmul.f32 %v1886, %v2894
        %v3399 = vmul.f32 %v1887, %v2895
        %v3400 = vmul.f32 %v1888, %v2896
        %v3401 = vmul.f32 %v1889, %v2897
        %v3402 = vmul.f32 %v1890, %v2898
        %v3403 = vmul.f32 %v1891, %v2899
        %v3404 = vmul.f32 %v1892, %v2900
        %v3405 = vmul.f32 %v1893, %v2901
        %v3406 = vmul.f32 %v1894, %v2902
        %v3407 = vmul.f32 %v1895, %v2903
        %v3408 = vmul.f32 %v1896, %v2904
        %v3409 = vmul.f32 %v1897, %v2905
        %v3410 = vmul.f32 %v1898, %v2906
        %v3411 = vmul.f32 %v1899, %v2907
        %v3412 = vmul.f32 %v1900, %v2908
        %v3413 = vmul.f32 %v1901, %v2909
        %v3414 = vmul.f32 %v1902, %v2910
        %v3415 = vmul.f32 %v1903, %v2911
        %v3416 = vmul.f32 %v1904, %v2912
        %v3417 = vmul.f32 %v1905, %v2913
        %v3418 = vmul.f32 %v1906, %v2914
        %v3419 = vmul.f32 %v1907, %v2915
        %v3420 = vmul.f32 %v1908, %v2916
        %v3421 = vmul.f32 %v1909, %v2917
        %v3422 = vmul.f32 %v1910, %v2918
        %v3423 = vmul.f32 %v1911, %v2919
        %v3424 = vmul.f32 %v1912, %v2920
        %v3425 = vmul.f32 %v1913, %v2921
        %v3426 = vmul.f32 %v1914, %v2922
        %v3427 = vmul.f32 %v1915, %v2923
        %v3428 = vmul.f32 %v1916, %v2924
        %v3429 = vmul.f32 %v1917, %v2925
        %v3430 = vmul.f32 %v1918, %v2926
        %v3431 = vmul.f32 %v1919, %v2927
        %v3432 = vmul.f32 %v1920, %v2928
        %v3433 = vmul.f32 %v1921, %v2929
        %v3434 = vmul.f32 %v1922, %v2930
        %v3435 = vmul.f32 %v1923, %v2931
        %v3436 = vmul.f32 %v1924, %v2932
        %v3437 = vmul.f32 %v1925, %v2933
        %v3438 = vmul.f32 %v1926, %v2934
        %v3439 = vmul.f32 %v1927, %v2935
        %v3440 = vmul.f32 %v1928, %v2936
        %v3441 = vmul.f32 %v1929, %v2937
        %v3442 = vmul.f32 %v1930, %v2938
        %v3443 = vmul.f32 %v1931, %v2939
        %v3444 = vmul.f32 %v1932, %v2940
        %v3445 = vmul.f32 %v1933, %v2941
        %v3446 = vmul.f32 %v1934, %v2942
        %v3447 = vmul.f32 %v1935, %v2943
        %v3448 = vmul.f32 %v1936, %v2944
        %v3449 = vmul.f32 %v1937, %v2945
        %v3450 = vmul.f32 %v1938, %v2946
        %v3451 = vmul.f32 %v1939, %v2947
        %v3452 = vmul.f32 %v1940, %v2948
        %v3453 = vmul.f32 %v1941, %v2949
        %v3454 = vmul.f32 %v1942, %v2950
        %v3455 = vmul.f32 %v1943, %v2951
        %v3456 = vmul.f32 %v1944, %v2952
        %v3457 = vmul.f32 %v1945, %v2953
        %v3458 = vmul.f32 %v1946, %v2954
        %v3459 = vmul.f32 %v1947, %v2955
        %v3460 = vmul.f32 %v1948, %v2956
        %v3461 = vmul.f32 %v1949, %v2957
        %v3462 = vmul.f32 %v1950, %v2958
        %v3463 = vmul.f32 %v1951, %v2959
        %v3464 = vmul.f32 %v1952, %v2960
        %v3465 = vmul.f32 %v1953, %v2961
        %v3466 = vmul.f32 %v1954, %v2962
        %v3467 = vmul.f32 %v1955, %v2963
        %v3468 = vmul.f32 %v1956, %v2964
        %v3469 = vmul.f32 %v1957, %v2965
        %v3470 = vmul.f32 %v1958, %v2966
        %v3471 = vmul.f32 %v1959, %v2967
        %v3472 = vmul.f32 %v1960, %v2968
        %v3473 = vmul.f32 %v1961, %v2969
        %v3474 = vmul.f32 %v1962, %v2970
        %v3475 = vmul.f32 %v1963, %v2971
        %v3476 = vmul.f32 %v1964, %v2972
        %v3477 = vmul.f32 %v1965, %v2973
        %v3478 = vmul.f32 %v1966, %v2974
        %v3479 = vmul.f32 %v1967, %v2975
        %v3480 = vmul.f32 %v1968, %v2976
        %v3481 = vmul.f32 %v1969, %v2977
        %v3482 = vmul.f32 %v1970, %v2978
        %v3483 = vmul.f32 %v1971, %v2979
        %v3484 = vmul.f32 %v1972, %v2980
        %v3485 = vmul.f32 %v1973, %v2981
        %v3486 = vmul.f32 %v1974, %v2982
        %v3487 = vmul.f32 %v1975, %v2983
        %v3488 = vmul.f32 %v1976, %v2984
        %v3489 = vmul.f32 %v1977, %v2985
        %v3490 = vmul.f32 %v1978, %v2986
        %v3491 = vmul.f32 %v1979, %v2987
        %v3492 = vmul.f32 %v1980, %v2988
        %v3493 = vmul.f32 %v1981, %v2989
        %v3494 = vmul.f32 %v1982, %v2990
        %v3495 = vmul.f32 %v1983, %v2991
        %v3496 = vmul.f32 %v1984, %v2992
        %v3497 = vmul.f32 %v1985, %v2993
        %v3498 = vmul.f32 %v1986, %v2994
        %v3499 = vmul.f32 %v1987, %v2995
        %v3500 = vmul.f32 %v1988, %v2996
        %v3501 = vmul.f32 %v1989, %v2997
        %v3502 = vmul.f32 %v1990, %v2998
        %v3503 = vmul.f32 %v1991, %v2999
        %v3504 = vmul.f32 %v1992, %v3000
        %v3505 = vmul.f32 %v1993, %v3001
        %v3506 = vmul.f32 %v1994, %v3002
        %v3507 = vmul.f32 %v1995, %v3003
        %v3508 = vmul.f32 %v1996, %v3004
        %v3509 = vmul.f32 %v1997, %v3005
        %v3510 = vmul.f32 %v1998, %v3006
        %v3511 = vmul.f32 %v1999, %v3007
        %v3512 = vmul.f32 %v2000, %v3008
        %v3513 = vmul.f32 %v2001, %v3009
        %v3514 = vmul.f32 %v2002, %v3010
        %v3515 = vmul.f32 %v2003, %v3011
        %v3516 = vmul.f32 %v2004, %v3012
        %v3517 = vmul.f32 %v2005, %v3013
        %v3518 = vmul.f32 %v2006, %v3014
        %v3519 = vmul.f32 %v2007, %v3015
        %v3520 = vmul.f32 %v2008, %v3016
        %v3521 = vmul.f32 %v2009, %v3017
        %v3522 = vmul.f32 %v2010, %v3018
        %v3523 = vmul.f32 %v2011, %v3019
        %v3524 = vmul.f32 %v2012, %v3020
        %v3525 = vmul.f32 %v2013, %v3021
        %v3526 = vmul.f32 %v2014, %v3022
        %v3527 = vmul.f32 %v2015, %v3023
        %v3528 = vmul.f32 %v2016, %v3024
        %v3529 = vmul.f32 %v2017, %v3025
        %v3530 = vmul.f32 %v2018, %v3026
        %v3531 = vmul.f32 %v2019, %v3027
        %v3532 = vmul.f32 %v2020, %v3028
        %v3533 = vmul.f32 %v2021, %v3029
        %v3534 = vmul.f32 %v2022, %v3030
        %v3535 = vmul.f32 %v2023, %v3031
        %v3536 = vmul.f32 %v2024, %v3032
        %v3537 = vmul.f32 %v2025, %v3033
        %v3538 = vmul.f32 %v2026, %v3034
        %v3539 = vmul.f32 %v2027, %v3035
        %v3540 = vmul.f32 %v2028, %v3036
        %v3541 = vmul.f32 %v2029, %v3037
        %v3542 = vmul.f32 %v2030, %v3038
        %v3543 = vmul.f32 %v2031, %v3039
        %v3544 = vmul.f32 %v2032, %v3040
        %v3545 = vmul.f32 %v2033, %v3041
        %v3546 = vmul.f32 %v2034, %v3042
        %v3547 = vmul.f32 %v2035, %v3043
        %v3548 = vmul.f32 %v2036, %v3044
        %v3549 = vmul.f32 %v2037, %v3045
        %v3550 = vmul.f32 %v2038, %v3046
        %v3551 = vmul.f32 %v2039, %v3047
        %v3552 = vmul.f32 %v2040, %v3048
        %v3553 = vmul.f32 %v2041, %v3049
        %v3554 = vmul.f32 %v2042, %v3050
        %v3555 = vmul.f32 %v2043, %v3051
        %v3556 = vmul.f32 %v2044, %v3052
        %v3557 = vmul.f32 %v2045, %v3053
        %v3558 = vmul.f32 %v2046, %v3054
        %v3559 = vmul.f32 %v2047, %v3055
        %v3560 = vmul.f32 %v2048, %v3056
        %v3561 = vmul.f32 %v2049, %v3057
        %v3562 = vmul.f32 %v2050, %v3058
        %v3563 = vmul.f32 %v2051, %v3059
        %v3564 = vmul.f32 %v2052, %v3060
        %v3565 = vmul.f32 %v2053, %v3061
        %v3566 = vmul.f32 %v2054, %v3062
        %v3567 = vmul.f32 %v2055, %v3063
        %v3568 = vmul.f32 %v2056, %v3064
        %v3569 = vmul.f32 %v2057, %v3065
        %v3570 = vmul.f32 %v2058, %v3066
        %v3571 = vmul.f32 %v2059, %v3067
        %v3572 = vmul.f32 %v2060, %v3068
        %v3573 = vmul.f32 %v2061, %v3069
        %v3574 = vmul.f32 %v2062, %v3070
        %v3575 = vmul.f32 %v2063, %v3071
        %v3576 = vmul.f32 %v2064, %v3072
        %v3577 = vmul.f32 %v2065, %v3073
        %v3578 = vmul.f32 %v2066, %v3074
        %v3579 = vmul.f32 %v2067, %v3075
        %v3580 = vmul.f32 %v2068, %v3076
        %v3581 = vmul.f32 %v2069, %v3077
        %v3582 = vmul.f32 %v2070, %v3078
        %v3583 = vmul.f32 %v2071, %v3079
        %v3584 = vmul.f32 %v2072, %v3080
        %v3585 = vmul.f32 %v2073, %v3081
        %v3586 = vmul.f32 %v2074, %v3082
        %v3587 = vmul.f32 %v2075, %v3083
        %v3588 = vmul.f32 %v2076, %v3084
        %v3589 = vmul.f32 %v2077, %v3085
        %v3590 = vmul.f32 %v2078, %v3086
        %v3591 = vmul.f32 %v2079, %v3087
        %v3592 = vmul.f32 %v2080, %v3088
        %v3593 = vmul.f32 %v2081, %v3089
        %v3594 = vmul.f32 %v2082, %v3090
        %v3595 = vmul.f32 %v2083, %v3091
        %v3596 = vmul.f32 %v2084, %v3092
        %v3597 = vmul.f32 %v2085, %v3093
        %v3598 = vmul.f32 %v2086, %v3094
        %v3599 = vmul.f32 %v2087, %v3095
        %v3600 = vmul.f32 %v2088, %v3096
        %v3601 = vmul.f32 %v2089, %v3097
        %v3602 = vmul.f32 %v2090, %v3098
        %v3603 = vmul.f32 %v2091, %v3099
        %v3604 = vmul.f32 %v2092, %v3100
        %v3605 = vmul.f32 %v2093, %v3101
        %v3606 = vmul.f32 %v2094, %v3102
        %v3607 = vmul.f32 %v2095, %v3103
        %v3608 = vmul.f32 %v2096, %v3104
        %v3609 = vmul.f32 %v2097, %v3105
        %v3610 = vmul.f32 %v2098, %v3106
        %v3611 = vmul.f32 %v2099, %v3107
        %v3612 = vmul.f32 %v2100, %v3108
        %v3613 = vmul.f32 %v2101, %v3109
        %v3614 = vmul.f32 %v2102, %v3110
        %v3615 = vmul.f32 %v2103, %v3111
        %v3616 = vmul.f32 %v2104, %v3112
        %v3617 = vmul.f32 %v2105, %v3113
        %v3618 = vmul.f32 %v2106, %v3114
        %v3619 = vmul.f32 %v2107, %v3115
        %v3620 = vmul.f32 %v2108, %v3116
        %v3621 = vmul.f32 %v2109, %v3117
        %v3622 = vmul.f32 %v2110, %v3118
        %v3623 = vmul.f32 %v2111, %v3119
        %v3624 = vmul.f32 %v2112, %v3120
        %v3625 = vmul.f32 %v2113, %v3121
        %v3626 = vmul.f32 %v2114, %v3122
        %v3627 = vmul.f32 %v2115, %v3123
        %v3628 = vmul.f32 %v2116, %v3124
        %v3629 = vmul.f32 %v2117, %v3125
        %v3630 = vmul.f32 %v2118, %v3126
        %v3631 = vmul.f32 %v2119, %v3127
        %v3632 = vmul.f32 %v2120, %v3128
        %v3633 = vmul.f32 %v2121, %v3129
        %v3634 = vmul.f32 %v2122, %v3130
        %v3635 = vmul.f32 %v2123, %v3131
        %v3636 = vmul.f32 %v2124, %v3132
        %v3637 = vmul.f32 %v2125, %v3133
        %v3638 = vmul.f32 %v2126, %v3134
        %v3639 = vmul.f32 %v2127, %v3135
        %v3640 = vmul.f32 %v2128, %v3136
        %v3641 = vmul.f32 %v2129, %v3137
        %v3642 = vmul.f32 %v2130, %v3138
        %v3643 = vmul.f32 %v2131, %v3139
        %v3644 = vmul.f32 %v2132, %v3140
        %v3645 = vmul.f32 %v2133, %v3141
        %v3646 = vmul.f32 %v2134, %v3142
        %v3647 = vmul.f32 %v2135, %v3143
        %v3648 = vmul.f32 %v2136, %v3144
        %v3649 = vmul.f32 %v2137, %v3145
        %v3650 = vmul.f32 %v2138, %v3146
        %v3651 = vmul.f32 %v2139, %v3147
        %v3652 = vmul.f32 %v2140, %v3148
        %v3653 = vmul.f32 %v2141, %v3149
        %v3654 = vmul.f32 %v2142, %v3150
        %v3655 = vmul.f32 %v2143, %v3151
        %v3656 = vmul.f32 %v2144, %v3152
        %v3657 = vmul.f32 %v2145, %v3153
        %v3658 = vmul.f32 %v2146, %v3154
        %v3659 = vmul.f32 %v2147, %v3155
        %v3660 = vmul.f32 %v2148, %v3156
        %v3661 = vmul.f32 %v2149, %v3157
        %v3662 = vmul.f32 %v2150, %v3158
        %v3663 = vmul.f32 %v2151, %v3159
        %v3664 = vmul.f32 %v2152, %v3160
        %v3665 = vmul.f32 %v2153, %v3161
        %v3666 = vmul.f32 %v2154, %v3162
        %v3667 = vmul.f32 %v2155, %v3163
        %v3668 = vmul.f32 %v2156, %v3164
        %v3669 = vmul.f32 %v2157, %v3165
        %v3670 = vmul.f32 %v2158, %v3166
        %v3671 = vmul.f32 %v2159, %v3167
        %v3672 = vmul.f32 %v2160, %v3168
        %v3673 = vmul.f32 %v2161, %v3169
        %v3674 = vmul.f32 %v2162, %v3170
        %v3675 = vmul.f32 %v2163, %v3171
        %v3676 = vmul.f32 %v2164, %v3172
        %v3677 = vmul.f32 %v2165, %v3173
        %v3678 = vmul.f32 %v2166, %v3174
        %v3679 = vmul.f32 %v2167, %v3175
        %v3680 = vmul.f32 %v2168, %v3176
        %v3681 = vmul.f32 %v2169, %v3177
        %v3682 = vmul.f32 %v2170, %v3178
        %v3683 = vadd.f32 %v3179, 1.0
        %v3684 = vadd.f32 %v3180, 1.0
        %v3685 = vadd.f32 %v3181, 1.0
        %v3686 = vadd.f32 %v3182, 1.0
        %v3687 = vadd.f32 %v3183, 1.0
        %v3688 = vadd.f32 %v3184, 1.0
        %v3689 = vadd.f32 %v3185, 1.0
        %v3690 = vadd.f32 %v3186, 1.0
        %v3691 = vadd.f32 %v3187, 1.0
        %v3692 = vadd.f32 %v3188, 1.0
        %v3693 = vadd.f32 %v3189, 1.0
        %v3694 = vadd.f32 %v3190, 1.0
        %v3695 = vadd.f32 %v3191, 1.0
        %v3696 = vadd.f32 %v3192, 1.0
        %v3697 = vadd.f32 %v3193, 1.0
        %v3698 = vadd.f32 %v3194, 1.0
        %v3699 = vadd.f32 %v3195, 1.0
        %v3700 = vadd.f32 %v3196, 1.0
        %v3701 = vadd.f32 %v3197, 1.0
        %v3702 = vadd.f32 %v3198, 1.0
        %v3703 = vadd.f32 %v3199, 1.0
        %v3704 = vadd.f32 %v3200, 1.0
        %v3705 = vadd.f32 %v3201, 1.0
        %v3706 = vadd.f32 %v3202, 1.0
        %v3707 = vadd.f32 %v3203, 1.0
        %v3708 = vadd.f32 %v3204, 1.0
        %v3709 = vadd.f32 %v3205, 1.0
        %v3710 = vadd.f32 %v3206, 1.0
        %v3711 = vadd.f32 %v3207, 1.0
        %v3712 = vadd.f32 %v3208, 1.0
        %v3713 = vadd.f32 %v3209, 1.0
        %v3714 = vadd.f32 %v3210, 1.0
        %v3715 = vadd.f32 %v3211, 1.0
        %v3716 = vadd.f32 %v3212, 1.0
        %v3717 = vadd.f32 %v3213, 1.0
        %v3718 = vadd.f32 %v3214, 1.0
        %v3719 = vadd.f32 %v3215, 1.0
        %v3720 = vadd.f32 %v3216, 1.0
        %v3721 = vadd.f32 %v3217, 1.0
        %v3722 = vadd.f32 %v3218, 1.0
        %v3723 = vadd.f32 %v3219, 1.0
        %v3724 = vadd.f32 %v3220, 1.0
        %v3725 = vadd.f32 %v3221, 1.0
        %v3726 = vadd.f32 %v3222, 1.0
        %v3727 = vadd.f32 %v3223, 1.0
        %v3728 = vadd.f32 %v3224, 1.0
        %v3729 = vadd.f32 %v3225, 1.0
        %v3730 = vadd.f32 %v3226, 1.0
        %v3731 = vadd.f32 %v3227, 1.0
        %v3732 = vadd.f32 %v3228, 1.0
        %v3733 = vadd.f32 %v3229, 1.0
        %v3734 = vadd.f32 %v3230, 1.0
        %v3735 = vadd.f32 %v3231, 1.0
        %v3736 = vadd.f32 %v3232, 1.0
        %v3737 = vadd.f32 %v3233, 1.0
        %v3738 = vadd.f32 %v3234, 1.0
        %v3739 = vadd.f32 %v3235, 1.0
        %v3740 = vadd.f32 %v3236, 1.0
        %v3741 = vadd.f32 %v3237, 1.0
        %v3742 = vadd.f32 %v3238, 1.0
        %v3743 = vadd.f32 %v3239, 1.0
        %v3744 = vadd.f32 %v3240, 1.0
        %v3745 = vadd.f32 %v3241, 1.0
        %v3746 = vadd.f32 %v3242, 1.0
        %v3747 = vadd.f32 %v3243, 1.0
        %v3748 = vadd.f32 %v3244, 1.0
        %v3749 = vadd.f32 %v3245, 1.0
        %v3750 = vadd.f32 %v3246, 1.0
        %v3751 = vadd.f32 %v3247, 1.0
        %v3752 = vadd.f32 %v3248, 1.0
        %v3753 = vadd.f32 %v3249, 1.0
        %v3754 = vadd.f32 %v3250, 1.0
        %v3755 = vadd.f32 %v3251, 1.0
        %v3756 = vadd.f32 %v3252, 1.0
        %v3757 = vadd.f32 %v3253, 1.0
        %v3758 = vadd.f32 %v3254, 1.0
        %v3759 = vadd.f32 %v3255, 1.0
        %v3760 = vadd.f32 %v3256, 1.0
        %v3761 = vadd.f32 %v3257, 1.0
        %v3762 = vadd.f32 %v3258, 1.0
        %v3763 = vadd.f32 %v3259, 1.0
        %v3764 = vadd.f32 %v3260, 1.0
        %v3765 = vadd.f32 %v3261, 1.0
        %v3766 = vadd.f32 %v3262, 1.0
        %v3767 = vadd.f32 %v3263, 1.0
        %v3768 = vadd.f32 %v3264, 1.0
        %v3769 = vadd.f32 %v3265, 1.0
        %v3770 = vadd.f32 %v3266, 1.0
        %v3771 = vadd.f32 %v3267, 1.0
        %v3772 = vadd.f32 %v3268, 1.0
        %v3773 = vadd.f32 %v3269, 1.0
        %v3774 = vadd.f32 %v3270, 1.0
        %v3775 = vadd.f32 %v3271, 1.0
        %v3776 = vadd.f32 %v3272, 1.0
        %v3777 = vadd.f32 %v3273, 1.0
        %v3778 = vadd.f32 %v3274, 1.0
        %v3779 = vadd.f32 %v3275, 1.0
        %v3780 = vadd.f32 %v3276, 1.0
        %v3781 = vadd.f32 %v3277, 1.0
        %v3782 = vadd.f32 %v3278, 1.0
        %v3783 = vadd.f32 %v3279, 1.0
        %v3784 = vadd.f32 %v3280, 1.0
        %v3785 = vadd.f32 %v3281, 1.0
        %v3786 = vadd.f32 %v3282, 1.0
        %v3787 = vadd.f32 %v3283, 1.0
        %v3788 = vadd.f32 %v3284, 1.0
        %v3789 = vadd.f32 %v3285, 1.0
        %v3790 = vadd.f32 %v3286, 1.0
        %v3791 = vadd.f32 %v3287, 1.0
        %v3792 = vadd.f32 %v3288, 1.0
        %v3793 = vadd.f32 %v3289, 1.0
        %v3794 = vadd.f32 %v3290, 1.0
        %v3795 = vadd.f32 %v3291, 1.0
        %v3796 = vadd.f32 %v3292, 1.0
        %v3797 = vadd.f32 %v3293, 1.0
        %v3798 = vadd.f32 %v3294, 1.0
        %v3799 = vadd.f32 %v3295, 1.0
        %v3800 = vadd.f32 %v3296, 1.0
        %v3801 = vadd.f32 %v3297, 1.0
        %v3802 = vadd.f32 %v3298, 1.0
        %v3803 = vadd.f32 %v3299, 1.0
        %v3804 = vadd.f32 %v3300, 1.0
        %v3805 = vadd.f32 %v3301, 1.0
        %v3806 = vadd.f32 %v3302, 1.0
        %v3807 = vadd.f32 %v3303, 1.0
        %v3808 = vadd.f32 %v3304, 1.0
        %v3809 = vadd.f32 %v3305, 1.0
        %v3810 = vadd.f32 %v3306, 1.0
        %v3811 = vadd.f32 %v3307, 1.0
        %v3812 = vadd.f32 %v3308, 1.0
        %v3813 = vadd.f32 %v3309, 1.0
        %v3814 = vadd.f32 %v3310, 1.0
        %v3815 = vadd.f32 %v3311, 1.0
        %v3816 = vadd.f32 %v3312, 1.0
        %v3817 = vadd.f32 %v3313, 1.0
        %v3818 = vadd.f32 %v3314, 1.0
        %v3819 = vadd.f32 %v3315, 1.0
        %v3820 = vadd.f32 %v3316, 1.0
        %v3821 = vadd.f32 %v3317, 1.0
        %v3822 = vadd.f32 %v3318, 1.0
        %v3823 = vadd.f32 %v3319, 1.0
        %v3824 = vadd.f32 %v3320, 1.0
        %v3825 = vadd.f32 %v3321, 1.0
        %v3826 = vadd.f32 %v3322, 1.0
        %v3827 = vadd.f32 %v3323, 1.0
        %v3828 = vadd.f32 %v3324, 1.0
        %v3829 = vadd.f32 %v3325, 1.0
        %v3830 = vadd.f32 %v3326, 1.0
        %v3831 = vadd.f32 %v3327, 1.0
        %v3832 = vadd.f32 %v3328, 1.0
        %v3833 = vadd.f32 %v3329, 1.0
        %v3834 = vadd.f32 %v3330, 1.0
        %v3835 = vadd.f32 %v3331, 1.0
        %v3836 = vadd.f32 %v3332, 1.0
        %v3837 = vadd.f32 %v3333, 1.0
        %v3838 = vadd.f32 %v3334, 1.0
        %v3839 = vadd.f32 %v3335, 1.0
        %v3840 = vadd.f32 %v3336, 1.0
        %v3841 = vadd.f32 %v3337, 1.0
        %v3842 = vadd.f32 %v3338, 1.0
        %v3843 = vadd.f32 %v3339, 1.0
        %v3844 = vadd.f32 %v3340, 1.0
        %v3845 = vadd.f32 %v3341, 1.0
        %v3846 = vadd.f32 %v3342, 1.0
        %v3847 = vadd.f32 %v3343, 1.0
        %v3848 = vadd.f32 %v3344, 1.0
        %v3849 = vadd.f32 %v3345, 1.0
        %v3850 = vadd.f32 %v3346, 1.0
        %v3851 = vadd.f32 %v3347, 1.0
        %v3852 = vadd.f32 %v3348, 1.0
        %v3853 = vadd.f32 %v3349, 1.0
        %v3854 = vadd.f32 %v3350, 1.0
        %v3855 = vadd.f32 %v3351, 1.0
        %v3856 = vadd.f32 %v3352, 1.0
        %v3857 = vadd.f32 %v3353, 1.0
        %v3858 = vadd.f32 %v3354, 1.0
        %v3859 = vadd.f32 %v3355, 1.0
        %v3860 = vadd.f32 %v3356, 1.0
        %v3861 = vadd.f32 %v3357, 1.0
        %v3862 = vadd.f32 %v3358, 1.0
        %v3863 = vadd.f32 %v3359, 1.0
        %v3864 = vadd.f32 %v3360, 1.0
        %v3865 = vadd.f32 %v3361, 1.0
        %v3866 = vadd.f32 %v3362, 1.0
        %v3867 = vadd.f32 %v3363, 1.0
        %v3868 = vadd.f32 %v3364, 1.0
        %v3869 = vadd.f32 %v3365, 1.0
        %v3870 = vadd.f32 %v3366, 1.0
        %v3871 = vadd.f32 %v3367, 1.0
        %v3872 = vadd.f32 %v3368, 1.0
        %v3873 = vadd.f32 %v3369, 1.0
        %v3874 = vadd.f32 %v3370, 1.0
        %v3875 = vadd.f32 %v3371, 1.0
        %v3876 = vadd.f32 %v3372, 1.0
        %v3877 = vadd.f32 %v3373, 1.0
        %v3878 = vadd.f32 %v3374, 1.0
        %v3879 = vadd.f32 %v3375, 1.0
        %v3880 = vadd.f32 %v3376, 1.0
        %v3881 = vadd.f32 %v3377, 1.0
        %v3882 = vadd.f32 %v3378, 1.0
        %v3883 = vadd.f32 %v3379, 1.0
        %v3884 = vadd.f32 %v3380, 1.0
        %v3885 = vadd.f32 %v3381, 1.0
        %v3886 = vadd.f32 %v3382, 1.0
        %v3887 = vadd.f32 %v3383, 1.0
        %v3888 = vadd.f32 %v3384, 1.0
        %v3889 = vadd.f32 %v3385, 1.0
        %v3890 = vadd.f32 %v3386, 1.0
        %v3891 = vadd.f32 %v3387, 1.0
        %v3892 = vadd.f32 %v3388, 1.0
        %v3893 = vadd.f32 %v3389, 1.0
        %v3894 = vadd.f32 %v3390, 1.0
        %v3895 = vadd.f32 %v3391, 1.0
        %v3896 = vadd.f32 %v3392, 1.0
        %v3897 = vadd.f32 %v3393, 1.0
        %v3898 = vadd.f32 %v3394, 1.0
        %v3899 = vadd.f32 %v3395, 1.0
        %v3900 = vadd.f32 %v3396, 1.0
        %v3901 = vadd.f32 %v3397, 1.0
        %v3902 = vadd.f32 %v3398, 1.0
        %v3903 = vadd.f32 %v3399, 1.0
        %v3904 = vadd.f32 %v3400, 1.0
        %v3905 = vadd.f32 %v3401, 1.0
        %v3906 = vadd.f32 %v3402, 1.0
        %v3907 = vadd.f32 %v3403, 1.0
        %v3908 = vadd.f32 %v3404, 1.0
        %v3909 = vadd.f32 %v3405, 1.0
        %v3910 = vadd.f32 %v3406, 1.0
        %v3911 = vadd.f32 %v3407, 1.0
        %v3912 = vadd.f32 %v3408, 1.0
        %v3913 = vadd.f32 %v3409, 1.0
        %v3914 = vadd.f32 %v3410, 1.0
        %v3915 = vadd.f32 %v3411, 1.0
        %v3916 = vadd.f32 %v3412, 1.0
        %v3917 = vadd.f32 %v3413, 1.0
        %v3918 = vadd.f32 %v3414, 1.0
        %v3919 = vadd.f32 %v3415, 1.0
        %v3920 = vadd.f32 %v3416, 1.0
        %v3921 = vadd.f32 %v3417, 1.0
        %v3922 = vadd.f32 %v3418, 1.0
        %v3923 = vadd.f32 %v3419, 1.0
        %v3924 = vadd.f32 %v3420, 1.0
        %v3925 = vadd.f32 %v3421, 1.0
        %v3926 = vadd.f32 %v3422, 1.0
        %v3927 = vadd.f32 %v3423, 1.0
        %v3928 = vadd.f32 %v3424, 1.0
        %v3929 = vadd.f32 %v3425, 1.0
        %v3930 = vadd.f32 %v3426, 1.0
        %v3931 = vadd.f32 %v3427, 1.0
        %v3932 = vadd.f32 %v3428, 1.0
        %v3933 = vadd.f32 %v3429, 1.0
        %v3934 = vadd.f32 %v3430, 1.0
        %v3935 = vadd.f32 %v3431, 1.0
        %v3936 = vadd.f32 %v3432, 1.0
        %v3937 = vadd.f32 %v3433, 1.0
        %v3938 = vadd.f32 %v3434, 1.0
        %v3939 = vadd.f32 %v3435, 1.0
        %v3940 = vadd.f32 %v3436, 1.0
        %v3941 = vadd.f32 %v3437, 1.0
        %v3942 = vadd.f32 %v3438, 1.0
        %v3943 = vadd.f32 %v3439, 1.0
        %v3944 = vadd.f32 %v3440, 1.0
        %v3945 = vadd.f32 %v3441, 1.0
        %v3946 = vadd.f32 %v3442, 1.0
        %v3947 = vadd.f32 %v3443, 1.0
        %v3948 = vadd.f32 %v3444, 1.0
        %v3949 = vadd.f32 %v3445, 1.0
        %v3950 = vadd.f32 %v3446, 1.0
        %v3951 = vadd.f32 %v3447, 1.0
        %v3952 = vadd.f32 %v3448, 1.0
        %v3953 = vadd.f32 %v3449, 1.0
        %v3954 = vadd.f32 %v3450, 1.0
        %v3955 = vadd.f32 %v3451, 1.0
        %v3956 = vadd.f32 %v3452, 1.0
        %v3957 = vadd.f32 %v3453, 1.0
        %v3958 = vadd.f32 %v3454, 1.0
        %v3959 = vadd.f32 %v3455, 1.0
        %v3960 = vadd.f32 %v3456, 1.0
        %v3961 = vadd.f32 %v3457, 1.0
        %v3962 = vadd.f32 %v3458, 1.0
        %v3963 = vadd.f32 %v3459, 1.0
        %v3964 = vadd.f32 %v3460, 1.0
        %v3965 = vadd.f32 %v3461, 1.0
        %v3966 = vadd.f32 %v3462, 1.0
        %v3967 = vadd.f32 %v3463, 1.0
        %v3968 = vadd.f32 %v3464, 1.0
        %v3969 = vadd.f32 %v3465, 1.0
        %v3970 = vadd.f32 %v3466, 1.0
        %v3971 = vadd.f32 %v3467, 1.0
        %v3972 = vadd.f32 %v3468, 1.0
        %v3973 = vadd.f32 %v3469, 1.0
        %v3974 = vadd.f32 %v3470, 1.0
        %v3975 = vadd.f32 %v3471, 1.0
        %v3976 = vadd.f32 %v3472, 1.0
        %v3977 = vadd.f32 %v3473, 1.0
        %v3978 = vadd.f32 %v3474, 1.0
        %v3979 = vadd.f32 %v3475, 1.0
        %v3980 = vadd.f32 %v3476, 1.0
        %v3981 = vadd.f32 %v3477, 1.0
        %v3982 = vadd.f32 %v3478, 1.0
        %v3983 = vadd.f32 %v3479, 1.0
        %v3984 = vadd.f32 %v3480, 1.0
        %v3985 = vadd.f32 %v3481, 1.0
        %v3986 = vadd.f32 %v3482, 1.0
        %v3987 = vadd.f32 %v3483, 1.0
        %v3988 = vadd.f32 %v3484, 1.0
        %v3989 = vadd.f32 %v3485, 1.0
        %v3990 = vadd.f32 %v3486, 1.0
        %v3991 = vadd.f32 %v3487, 1.0
        %v3992 = vadd.f32 %v3488, 1.0
        %v3993 = vadd.f32 %v3489, 1.0
        %v3994 = vadd.f32 %v3490, 1.0
        %v3995 = vadd.f32 %v3491, 1.0
        %v3996 = vadd.f32 %v3492, 1.0
        %v3997 = vadd.f32 %v3493, 1.0
        %v3998 = vadd.f32 %v3494, 1.0
        %v3999 = vadd.f32 %v3495, 1.0
        %v4000 = vadd.f32 %v3496, 1.0
        %v4001 = vadd.f32 %v3497, 1.0
        %v4002 = vadd.f32 %v3498, 1.0
        %v4003 = vadd.f32 %v3499, 1.0
        %v4004 = vadd.f32 %v3500, 1.0
        %v4005 = vadd.f32 %v3501, 1.0
        %v4006 = vadd.f32 %v3502, 1.0
        %v4007 = vadd.f32 %v3503, 1.0
        %v4008 = vadd.f32 %v3504, 1.0
        %v4009 = vadd.f32 %v3505, 1.0
        %v4010 = vadd.f32 %v3506, 1.0
        %v4011 = vadd.f32 %v3507, 1.0
        %v4012 = vadd.f32 %v3508, 1.0
        %v4013 = vadd.f32 %v3509, 1.0
        %v4014 = vadd.f32 %v3510, 1.0
        %v4015 = vadd.f32 %v3511, 1.0
        %v4016 = vadd.f32 %v3512, 1.0
        %v4017 = vadd.f32 %v3513, 1.0
        %v4018 = vadd.f32 %v3514, 1.0
        %v4019 = vadd.f32 %v3515, 1.0
        %v4020 = vadd.f32 %v3516, 1.0
        %v4021 = vadd.f32 %v3517, 1.0
        %v4022 = vadd.f32 %v3518, 1.0
        %v4023 = vadd.f32 %v3519, 1.0
        %v4024 = vadd.f32 %v3520, 1.0
        %v4025 = vadd.f32 %v3521, 1.0
        %v4026 = vadd.f32 %v3522, 1.0
        %v4027 = vadd.f32 %v3523, 1.0
        %v4028 = vadd.f32 %v3524, 1.0
        %v4029 = vadd.f32 %v3525, 1.0
        %v4030 = vadd.f32 %v3526, 1.0
        %v4031 = vadd.f32 %v3527, 1.0
        %v4032 = vadd.f32 %v3528, 1.0
        %v4033 = vadd.f32 %v3529, 1.0
        %v4034 = vadd.f32 %v3530, 1.0
        %v4035 = vadd.f32 %v3531, 1.0
        %v4036 = vadd.f32 %v3532, 1.0
        %v4037 = vadd.f32 %v3533, 1.0
        %v4038 = vadd.f32 %v3534, 1.0
        %v4039 = vadd.f32 %v3535, 1.0
        %v4040 = vadd.f32 %v3536, 1.0
        %v4041 = vadd.f32 %v3537, 1.0
        %v4042 = vadd.f32 %v3538, 1.0
        %v4043 = vadd.f32 %v3539, 1.0
        %v4044 = vadd.f32 %v3540, 1.0
        %v4045 = vadd.f32 %v3541, 1.0
        %v4046 = vadd.f32 %v3542, 1.0
        %v4047 = vadd.f32 %v3543, 1.0
        %v4048 = vadd.f32 %v3544, 1.0
        %v4049 = vadd.f32 %v3545, 1.0
        %v4050 = vadd.f32 %v3546, 1.0
        %v4051 = vadd.f32 %v3547, 1.0
        %v4052 = vadd.f32 %v3548, 1.0
        %v4053 = vadd.f32 %v3549, 1.0
        %v4054 = vadd.f32 %v3550, 1.0
        %v4055 = vadd.f32 %v3551, 1.0
        %v4056 = vadd.f32 %v3552, 1.0
        %v4057 = vadd.f32 %v3553, 1.0
        %v4058 = vadd.f32 %v3554, 1.0
        %v4059 = vadd.f32 %v3555, 1.0
        %v4060 = vadd.f32 %v3556, 1.0
        %v4061 = vadd.f32 %v3557, 1.0
        %v4062 = vadd.f32 %v3558, 1.0
        %v4063 = vadd.f32 %v3559, 1.0
        %v4064 = vadd.f32 %v3560, 1.0
        %v4065 = vadd.f32 %v3561, 1.0
        %v4066 = vadd.f32 %v3562, 1.0
        %v4067 = vadd.f32 %v3563, 1.0
        %v4068 = vadd.f32 %v3564, 1.0
        %v4069 = vadd.f32 %v3565, 1.0
        %v4070 = vadd.f32 %v3566, 1.0
        %v4071 = vadd.f32 %v3567, 1.0
        %v4072 = vadd.f32 %v3568, 1.0
        %v4073 = vadd.f32 %v3569, 1.0
        %v4074 = vadd.f32 %v3570, 1.0
        %v4075 = vadd.f32 %v3571, 1.0
        %v4076 = vadd.f32 %v3572, 1.0
        %v4077 = vadd.f32 %v3573, 1.0
        %v4078 = vadd.f32 %v3574, 1.0
        %v4079 = vadd.f32 %v3575, 1.0
        %v4080 = vadd.f32 %v3576, 1.0
        %v4081 = vadd.f32 %v3577, 1.0
        %v4082 = vadd.f32 %v3578, 1.0
        %v4083 = vadd.f32 %v3579, 1.0
        %v4084 = vadd.f32 %v3580, 1.0
        %v4085 = vadd.f32 %v3581, 1.0
        %v4086 = vadd.f32 %v3582, 1.0
        %v4087 = vadd.f32 %v3583, 1.0
        %v4088 = vadd.f32 %v3584, 1.0
        %v4089 = vadd.f32 %v3585, 1.0
        %v4090 = vadd.f32 %v3586, 1.0
        %v4091 = vadd.f32 %v3587, 1.0
        %v4092 = vadd.f32 %v3588, 1.0
        %v4093 = vadd.f32 %v3589, 1.0
        %v4094 = vadd.f32 %v3590, 1.0
        %v4095 = vadd.f32 %v3591, 1.0
        %v4096 = vadd.f32 %v3592, 1.0
        %v4097 = vadd.f32 %v3593, 1.0
        %v4098 = vadd.f32 %v3594, 1.0
        %v4099 = vadd.f32 %v3595, 1.0
        %v4100 = vadd.f32 %v3596, 1.0
        %v4101 = vadd.f32 %v3597, 1.0
        %v4102 = vadd.f32 %v3598, 1.0
        %v4103 = vadd.f32 %v3599, 1.0
        %v4104 = vadd.f32 %v3600, 1.0
        %v4105 = vadd.f32 %v3601, 1.0
        %v4106 = vadd.f32 %v3602, 1.0
        %v4107 = vadd.f32 %v3603, 1.0
        %v4108 = vadd.f32 %v3604, 1.0
        %v4109 = vadd.f32 %v3605, 1.0
        %v4110 = vadd.f32 %v3606, 1.0
        %v4111 = vadd.f32 %v3607, 1.0
        %v4112 = vadd.f32 %v3608, 1.0
        %v4113 = vadd.f32 %v3609, 1.0
        %v4114 = vadd.f32 %v3610, 1.0
        %v4115 = vadd.f32 %v3611, 1.0
        %v4116 = vadd.f32 %v3612, 1.0
        %v4117 = vadd.f32 %v3613, 1.0
        %v4118 = vadd.f32 %v3614, 1.0
        %v4119 = vadd.f32 %v3615, 1.0
        %v4120 = vadd.f32 %v3616, 1.0
        %v4121 = vadd.f32 %v3617, 1.0
        %v4122 = vadd.f32 %v3618, 1.0
        %v4123 = vadd.f32 %v3619, 1.0
        %v4124 = vadd.f32 %v3620, 1.0
        %v4125 = vadd.f32 %v3621, 1.0
        %v4126 = vadd.f32 %v3622, 1.0
        %v4127 = vadd.f32 %v3623, 1.0
        %v4128 = vadd.f32 %v3624, 1.0
        %v4129 = vadd.f32 %v3625, 1.0
        %v4130 = vadd.f32 %v3626, 1.0
        %v4131 = vadd.f32 %v3627, 1.0
        %v4132 = vadd.f32 %v3628, 1.0
        %v4133 = vadd.f32 %v3629, 1.0
        %v4134 = vadd.f32 %v3630, 1.0
        %v4135 = vadd.f32 %v3631, 1.0
        %v4136 = vadd.f32 %v3632, 1.0
        %v4137 = vadd.f32 %v3633, 1.0
        %v4138 = vadd.f32 %v3634, 1.0
        %v4139 = vadd.f32 %v3635, 1.0
        %v4140 = vadd.f32 %v3636, 1.0
        %v4141 = vadd.f32 %v3637, 1.0
        %v4142 = vadd.f32 %v3638, 1.0
        %v4143 = vadd.f32 %v3639, 1.0
        %v4144 = vadd.f32 %v3640, 1.0
        %v4145 = vadd.f32 %v3641, 1.0
        %v4146 = vadd.f32 %v3642, 1.0
        %v4147 = vadd.f32 %v3643, 1.0
        %v4148 = vadd.f32 %v3644, 1.0
        %v4149 = vadd.f32 %v3645, 1.0
        %v4150 = vadd.f32 %v3646, 1.0
        %v4151 = vadd.f32 %v3647, 1.0
        %v4152 = vadd.f32 %v3648, 1.0
        %v4153 = vadd.f32 %v3649, 1.0
        %v4154 = vadd.f32 %v3650, 1.0
        %v4155 = vadd.f32 %v3651, 1.0
        %v4156 = vadd.f32 %v3652, 1.0
        %v4157 = vadd.f32 %v3653, 1.0
        %v4158 = vadd.f32 %v3654, 1.0
        %v4159 = vadd.f32 %v3655, 1.0
        %v4160 = vadd.f32 %v3656, 1.0
        %v4161 = vadd.f32 %v3657, 1.0
        %v4162 = vadd.f32 %v3658, 1.0
        %v4163 = vadd.f32 %v3659, 1.0
        %v4164 = vadd.f32 %v3660, 1.0
        %v4165 = vadd.f32 %v3661, 1.0
        %v4166 = vadd.f32 %v3662, 1.0
        %v4167 = vadd.f32 %v3663, 1.0
        %v4168 = vadd.f32 %v3664, 1.0
        %v4169 = vadd.f32 %v3665, 1.0
        %v4170 = vadd.f32 %v3666, 1.0
        %v4171 = vadd.f32 %v3667, 1.0
        %v4172 = vadd.f32 %v3668, 1.0
        %v4173 = vadd.f32 %v3669, 1.0
        %v4174 = vadd.f32 %v3670, 1.0
        %v4175 = vadd.f32 %v3671, 1.0
        %v4176 = vadd.f32 %v3672, 1.0
        %v4177 = vadd.f32 %v3673, 1.0
        %v4178 = vadd.f32 %v3674, 1.0
        %v4179 = vadd.f32 %v3675, 1.0
        %v4180 = vadd.f32 %v3676, 1.0
        %v4181 = vadd.f32 %v3677, 1.0
        %v4182 = vadd.f32 %v3678, 1.0
        %v4183 = vadd.f32 %v3679, 1.0
        %v4184 = vadd.f32 %v3680, 1.0
        %v4185 = vadd.f32 %v3681, 1.0
        %v4186 = vadd.f32 %v3682, 1.0
        %vm4187 = vcmp.gt.f32.partialorder %v155, 4.6595
        %vm4188 = vcmp.gt.f32.partialorder %v156, 4.6595
        %vm4189 = vcmp.gt.f32.partialorder %v157, 4.6595
        %vm4190 = vcmp.gt.f32.partialorder %v158, 4.6595
        %vm4191 = vcmp.gt.f32.partialorder %v159, 4.6595
        %vm4192 = vcmp.gt.f32.partialorder %v160, 4.6595
        %vm4193 = vcmp.gt.f32.partialorder %v161, 4.6595
        %vm4194 = vcmp.gt.f32.partialorder %v162, 4.6595
        %vm4195 = vcmp.gt.f32.partialorder %v163, 4.6595
        %vm4196 = vcmp.gt.f32.partialorder %v164, 4.6595
        %vm4197 = vcmp.gt.f32.partialorder %v165, 4.6595
        %vm4198 = vcmp.gt.f32.partialorder %v166, 4.6595
        %vm4199 = vcmp.gt.f32.partialorder %v167, 4.6595
        %vm4200 = vcmp.gt.f32.partialorder %v168, 4.6595
        %vm4201 = vcmp.gt.f32.partialorder %v169, 4.6595
        %vm4202 = vcmp.gt.f32.partialorder %v170, 4.6595
        %vm4203 = vcmp.gt.f32.partialorder %v171, 4.6595
        %vm4204 = vcmp.gt.f32.partialorder %v172, 4.6595
        %vm4205 = vcmp.gt.f32.partialorder %v173, 4.6595
        %vm4206 = vcmp.gt.f32.partialorder %v174, 4.6595
        %vm4207 = vcmp.gt.f32.partialorder %v175, 4.6595
        %vm4208 = vcmp.gt.f32.partialorder %v176, 4.6595
        %vm4209 = vcmp.gt.f32.partialorder %v177, 4.6595
        %vm4210 = vcmp.gt.f32.partialorder %v178, 4.6595
        %vm4211 = vcmp.gt.f32.partialorder %v179, 4.6595
        %vm4212 = vcmp.gt.f32.partialorder %v180, 4.6595
        %vm4213 = vcmp.gt.f32.partialorder %v181, 4.6595
        %vm4214 = vcmp.gt.f32.partialorder %v182, 4.6595
        %vm4215 = vcmp.gt.f32.partialorder %v183, 4.6595
        %vm4216 = vcmp.gt.f32.partialorder %v184, 4.6595
        %vm4217 = vcmp.gt.f32.partialorder %v185, 4.6595
        %vm4218 = vcmp.gt.f32.partialorder %v186, 4.6595
        %vm4219 = vcmp.gt.f32.partialorder %v187, 4.6595
        %vm4220 = vcmp.gt.f32.partialorder %v188, 4.6595
        %vm4221 = vcmp.gt.f32.partialorder %v189, 4.6595
        %vm4222 = vcmp.gt.f32.partialorder %v190, 4.6595
        %vm4223 = vcmp.gt.f32.partialorder %v191, 4.6595
        %vm4224 = vcmp.gt.f32.partialorder %v192, 4.6595
        %vm4225 = vcmp.gt.f32.partialorder %v193, 4.6595
        %vm4226 = vcmp.gt.f32.partialorder %v194, 4.6595
        %vm4227 = vcmp.gt.f32.partialorder %v195, 4.6595
        %vm4228 = vcmp.gt.f32.partialorder %v196, 4.6595
        %vm4229 = vcmp.gt.f32.partialorder %v197, 4.6595
        %vm4230 = vcmp.gt.f32.partialorder %v198, 4.6595
        %vm4231 = vcmp.gt.f32.partialorder %v199, 4.6595
        %vm4232 = vcmp.gt.f32.partialorder %v200, 4.6595
        %vm4233 = vcmp.gt.f32.partialorder %v201, 4.6595
        %vm4234 = vcmp.gt.f32.partialorder %v202, 4.6595
        %vm4235 = vcmp.gt.f32.partialorder %v203, 4.6595
        %vm4236 = vcmp.gt.f32.partialorder %v204, 4.6595
        %vm4237 = vcmp.gt.f32.partialorder %v205, 4.6595
        %vm4238 = vcmp.gt.f32.partialorder %v206, 4.6595
        %vm4239 = vcmp.gt.f32.partialorder %v207, 4.6595
        %vm4240 = vcmp.gt.f32.partialorder %v208, 4.6595
        %vm4241 = vcmp.gt.f32.partialorder %v209, 4.6595
        %vm4242 = vcmp.gt.f32.partialorder %v210, 4.6595
        %vm4243 = vcmp.gt.f32.partialorder %v211, 4.6595
        %vm4244 = vcmp.gt.f32.partialorder %v212, 4.6595
        %vm4245 = vcmp.gt.f32.partialorder %v213, 4.6595
        %vm4246 = vcmp.gt.f32.partialorder %v214, 4.6595
        %vm4247 = vcmp.gt.f32.partialorder %v215, 4.6595
        %vm4248 = vcmp.gt.f32.partialorder %v216, 4.6595
        %vm4249 = vcmp.gt.f32.partialorder %v217, 4.6595
        %vm4250 = vcmp.gt.f32.partialorder %v218, 4.6595
        %vm4251 = vcmp.gt.f32.partialorder %v219, 4.6595
        %vm4252 = vcmp.gt.f32.partialorder %v220, 4.6595
        %vm4253 = vcmp.gt.f32.partialorder %v221, 4.6595
        %vm4254 = vcmp.gt.f32.partialorder %v222, 4.6595
        %vm4255 = vcmp.gt.f32.partialorder %v223, 4.6595
        %vm4256 = vcmp.gt.f32.partialorder %v224, 4.6595
        %vm4257 = vcmp.gt.f32.partialorder %v225, 4.6595
        %vm4258 = vcmp.gt.f32.partialorder %v226, 4.6595
        %vm4259 = vcmp.gt.f32.partialorder %v227, 4.6595
        %vm4260 = vcmp.gt.f32.partialorder %v228, 4.6595
        %vm4261 = vcmp.gt.f32.partialorder %v229, 4.6595
        %vm4262 = vcmp.gt.f32.partialorder %v230, 4.6595
        %vm4263 = vcmp.gt.f32.partialorder %v231, 4.6595
        %vm4264 = vcmp.gt.f32.partialorder %v232, 4.6595
        %vm4265 = vcmp.gt.f32.partialorder %v233, 4.6595
        %vm4266 = vcmp.gt.f32.partialorder %v234, 4.6595
        %vm4267 = vcmp.gt.f32.partialorder %v235, 4.6595
        %vm4268 = vcmp.gt.f32.partialorder %v236, 4.6595
        %vm4269 = vcmp.gt.f32.partialorder %v237, 4.6595
        %vm4270 = vcmp.gt.f32.partialorder %v238, 4.6595
        %vm4271 = vcmp.gt.f32.partialorder %v239, 4.6595
        %vm4272 = vcmp.gt.f32.partialorder %v240, 4.6595
        %vm4273 = vcmp.gt.f32.partialorder %v241, 4.6595
        %vm4274 = vcmp.gt.f32.partialorder %v242, 4.6595
        %vm4275 = vcmp.gt.f32.partialorder %v243, 4.6595
        %vm4276 = vcmp.gt.f32.partialorder %v244, 4.6595
        %vm4277 = vcmp.gt.f32.partialorder %v245, 4.6595
        %vm4278 = vcmp.gt.f32.partialorder %v246, 4.6595
        %vm4279 = vcmp.gt.f32.partialorder %v247, 4.6595
        %vm4280 = vcmp.gt.f32.partialorder %v248, 4.6595
        %vm4281 = vcmp.gt.f32.partialorder %v249, 4.6595
        %vm4282 = vcmp.gt.f32.partialorder %v250, 4.6595
        %vm4283 = vcmp.gt.f32.partialorder %v251, 4.6595
        %vm4284 = vcmp.gt.f32.partialorder %v252, 4.6595
        %vm4285 = vcmp.gt.f32.partialorder %v253, 4.6595
        %vm4286 = vcmp.gt.f32.partialorder %v254, 4.6595
        %vm4287 = vcmp.gt.f32.partialorder %v255, 4.6595
        %vm4288 = vcmp.gt.f32.partialorder %v256, 4.6595
        %vm4289 = vcmp.gt.f32.partialorder %v257, 4.6595
        %vm4290 = vcmp.gt.f32.partialorder %v258, 4.6595
        %vm4291 = vcmp.gt.f32.partialorder %v259, 4.6595
        %vm4292 = vcmp.gt.f32.partialorder %v260, 4.6595
        %vm4293 = vcmp.gt.f32.partialorder %v261, 4.6595
        %vm4294 = vcmp.gt.f32.partialorder %v262, 4.6595
        %vm4295 = vcmp.gt.f32.partialorder %v263, 4.6595
        %vm4296 = vcmp.gt.f32.partialorder %v264, 4.6595
        %vm4297 = vcmp.gt.f32.partialorder %v265, 4.6595
        %vm4298 = vcmp.gt.f32.partialorder %v266, 4.6595
        %vm4299 = vcmp.gt.f32.partialorder %v267, 4.6595
        %vm4300 = vcmp.gt.f32.partialorder %v268, 4.6595
        %vm4301 = vcmp.gt.f32.partialorder %v269, 4.6595
        %vm4302 = vcmp.gt.f32.partialorder %v270, 4.6595
        %vm4303 = vcmp.gt.f32.partialorder %v271, 4.6595
        %vm4304 = vcmp.gt.f32.partialorder %v272, 4.6595
        %vm4305 = vcmp.gt.f32.partialorder %v273, 4.6595
        %vm4306 = vcmp.gt.f32.partialorder %v274, 4.6595
        %vm4307 = vcmp.gt.f32.partialorder %v275, 4.6595
        %vm4308 = vcmp.gt.f32.partialorder %v276, 4.6595
        %vm4309 = vcmp.gt.f32.partialorder %v277, 4.6595
        %vm4310 = vcmp.gt.f32.partialorder %v278, 4.6595
        %vm4311 = vcmp.gt.f32.partialorder %v279, 4.6595
        %vm4312 = vcmp.gt.f32.partialorder %v280, 4.6595
        %vm4313 = vcmp.gt.f32.partialorder %v281, 4.6595
        %vm4314 = vcmp.gt.f32.partialorder %v282, 4.6595
        %vm4315 = vcmp.gt.f32.partialorder %v283, 4.6595
        %vm4316 = vcmp.gt.f32.partialorder %v284, 4.6595
        %vm4317 = vcmp.gt.f32.partialorder %v285, 4.6595
        %vm4318 = vcmp.gt.f32.partialorder %v286, 4.6595
        %vm4319 = vcmp.gt.f32.partialorder %v287, 4.6595
        %vm4320 = vcmp.gt.f32.partialorder %v288, 4.6595
        %vm4321 = vcmp.gt.f32.partialorder %v289, 4.6595
        %vm4322 = vcmp.gt.f32.partialorder %v290, 4.6595
        %vm4323 = vcmp.gt.f32.partialorder %v291, 4.6595
        %vm4324 = vcmp.gt.f32.partialorder %v292, 4.6595
        %vm4325 = vcmp.gt.f32.partialorder %v293, 4.6595
        %vm4326 = vcmp.gt.f32.partialorder %v294, 4.6595
        %vm4327 = vcmp.gt.f32.partialorder %v295, 4.6595
        %vm4328 = vcmp.gt.f32.partialorder %v296, 4.6595
        %vm4329 = vcmp.gt.f32.partialorder %v297, 4.6595
        %vm4330 = vcmp.gt.f32.partialorder %v298, 4.6595
        %vm4331 = vcmp.gt.f32.partialorder %v299, 4.6595
        %vm4332 = vcmp.gt.f32.partialorder %v300, 4.6595
        %vm4333 = vcmp.gt.f32.partialorder %v301, 4.6595
        %vm4334 = vcmp.gt.f32.partialorder %v302, 4.6595
        %vm4335 = vcmp.gt.f32.partialorder %v303, 4.6595
        %vm4336 = vcmp.gt.f32.partialorder %v304, 4.6595
        %vm4337 = vcmp.gt.f32.partialorder %v305, 4.6595
        %vm4338 = vcmp.gt.f32.partialorder %v306, 4.6595
        %vm4339 = vcmp.gt.f32.partialorder %v307, 4.6595
        %vm4340 = vcmp.gt.f32.partialorder %v308, 4.6595
        %vm4341 = vcmp.gt.f32.partialorder %v309, 4.6595
        %vm4342 = vcmp.gt.f32.partialorder %v310, 4.6595
        %vm4343 = vcmp.gt.f32.partialorder %v311, 4.6595
        %vm4344 = vcmp.gt.f32.partialorder %v312, 4.6595
        %vm4345 = vcmp.gt.f32.partialorder %v313, 4.6595
        %vm4346 = vcmp.gt.f32.partialorder %v314, 4.6595
        %vm4347 = vcmp.gt.f32.partialorder %v315, 4.6595
        %vm4348 = vcmp.gt.f32.partialorder %v316, 4.6595
        %vm4349 = vcmp.gt.f32.partialorder %v317, 4.6595
        %vm4350 = vcmp.gt.f32.partialorder %v318, 4.6595
        %vm4351 = vcmp.gt.f32.partialorder %v319, 4.6595
        %vm4352 = vcmp.gt.f32.partialorder %v320, 4.6595
        %vm4353 = vcmp.gt.f32.partialorder %v321, 4.6595
        %vm4354 = vcmp.gt.f32.partialorder %v322, 4.6595
        %vm4355 = vcmp.gt.f32.partialorder %v323, 4.6595
        %vm4356 = vcmp.gt.f32.partialorder %v324, 4.6595
        %vm4357 = vcmp.gt.f32.partialorder %v325, 4.6595
        %vm4358 = vcmp.gt.f32.partialorder %v326, 4.6595
        %vm4359 = vcmp.gt.f32.partialorder %v327, 4.6595
        %vm4360 = vcmp.gt.f32.partialorder %v328, 4.6595
        %vm4361 = vcmp.gt.f32.partialorder %v329, 4.6595
        %vm4362 = vcmp.gt.f32.partialorder %v330, 4.6595
        %vm4363 = vcmp.gt.f32.partialorder %v331, 4.6595
        %vm4364 = vcmp.gt.f32.partialorder %v332, 4.6595
        %vm4365 = vcmp.gt.f32.partialorder %v333, 4.6595
        %vm4366 = vcmp.gt.f32.partialorder %v334, 4.6595
        %vm4367 = vcmp.gt.f32.partialorder %v335, 4.6595
        %vm4368 = vcmp.gt.f32.partialorder %v336, 4.6595
        %vm4369 = vcmp.gt.f32.partialorder %v337, 4.6595
        %vm4370 = vcmp.gt.f32.partialorder %v338, 4.6595
        %vm4371 = vcmp.gt.f32.partialorder %v339, 4.6595
        %vm4372 = vcmp.gt.f32.partialorder %v340, 4.6595
        %vm4373 = vcmp.gt.f32.partialorder %v341, 4.6595
        %vm4374 = vcmp.gt.f32.partialorder %v342, 4.6595
        %vm4375 = vcmp.gt.f32.partialorder %v343, 4.6595
        %vm4376 = vcmp.gt.f32.partialorder %v344, 4.6595
        %vm4377 = vcmp.gt.f32.partialorder %v345, 4.6595
        %vm4378 = vcmp.gt.f32.partialorder %v346, 4.6595
        %vm4379 = vcmp.gt.f32.partialorder %v347, 4.6595
        %vm4380 = vcmp.gt.f32.partialorder %v348, 4.6595
        %vm4381 = vcmp.gt.f32.partialorder %v349, 4.6595
        %vm4382 = vcmp.gt.f32.partialorder %v350, 4.6595
        %vm4383 = vcmp.gt.f32.partialorder %v351, 4.6595
        %vm4384 = vcmp.gt.f32.partialorder %v352, 4.6595
        %vm4385 = vcmp.gt.f32.partialorder %v353, 4.6595
        %vm4386 = vcmp.gt.f32.partialorder %v354, 4.6595
        %vm4387 = vcmp.gt.f32.partialorder %v355, 4.6595
        %vm4388 = vcmp.gt.f32.partialorder %v356, 4.6595
        %vm4389 = vcmp.gt.f32.partialorder %v357, 4.6595
        %vm4390 = vcmp.gt.f32.partialorder %v358, 4.6595
        %vm4391 = vcmp.gt.f32.partialorder %v359, 4.6595
        %vm4392 = vcmp.gt.f32.partialorder %v360, 4.6595
        %vm4393 = vcmp.gt.f32.partialorder %v361, 4.6595
        %vm4394 = vcmp.gt.f32.partialorder %v362, 4.6595
        %vm4395 = vcmp.gt.f32.partialorder %v363, 4.6595
        %vm4396 = vcmp.gt.f32.partialorder %v364, 4.6595
        %vm4397 = vcmp.gt.f32.partialorder %v365, 4.6595
        %vm4398 = vcmp.gt.f32.partialorder %v366, 4.6595
        %vm4399 = vcmp.gt.f32.partialorder %v367, 4.6595
        %vm4400 = vcmp.gt.f32.partialorder %v368, 4.6595
        %vm4401 = vcmp.gt.f32.partialorder %v369, 4.6595
        %vm4402 = vcmp.gt.f32.partialorder %v370, 4.6595
        %vm4403 = vcmp.gt.f32.partialorder %v371, 4.6595
        %vm4404 = vcmp.gt.f32.partialorder %v372, 4.6595
        %vm4405 = vcmp.gt.f32.partialorder %v373, 4.6595
        %vm4406 = vcmp.gt.f32.partialorder %v374, 4.6595
        %vm4407 = vcmp.gt.f32.partialorder %v375, 4.6595
        %vm4408 = vcmp.gt.f32.partialorder %v376, 4.6595
        %vm4409 = vcmp.gt.f32.partialorder %v377, 4.6595
        %vm4410 = vcmp.gt.f32.partialorder %v378, 4.6595
        %vm4411 = vcmp.gt.f32.partialorder %v379, 4.6595
        %vm4412 = vcmp.gt.f32.partialorder %v380, 4.6595
        %vm4413 = vcmp.gt.f32.partialorder %v381, 4.6595
        %vm4414 = vcmp.gt.f32.partialorder %v382, 4.6595
        %vm4415 = vcmp.gt.f32.partialorder %v383, 4.6595
        %vm4416 = vcmp.gt.f32.partialorder %v384, 4.6595
        %vm4417 = vcmp.gt.f32.partialorder %v385, 4.6595
        %vm4418 = vcmp.gt.f32.partialorder %v386, 4.6595
        %vm4419 = vcmp.gt.f32.partialorder %v387, 4.6595
        %vm4420 = vcmp.gt.f32.partialorder %v388, 4.6595
        %vm4421 = vcmp.gt.f32.partialorder %v389, 4.6595
        %vm4422 = vcmp.gt.f32.partialorder %v390, 4.6595
        %vm4423 = vcmp.gt.f32.partialorder %v391, 4.6595
        %vm4424 = vcmp.gt.f32.partialorder %v392, 4.6595
        %vm4425 = vcmp.gt.f32.partialorder %v393, 4.6595
        %vm4426 = vcmp.gt.f32.partialorder %v394, 4.6595
        %vm4427 = vcmp.gt.f32.partialorder %v395, 4.6595
        %vm4428 = vcmp.gt.f32.partialorder %v396, 4.6595
        %vm4429 = vcmp.gt.f32.partialorder %v397, 4.6595
        %vm4430 = vcmp.gt.f32.partialorder %v398, 4.6595
        %vm4431 = vcmp.gt.f32.partialorder %v399, 4.6595
        %vm4432 = vcmp.gt.f32.partialorder %v400, 4.6595
        %vm4433 = vcmp.gt.f32.partialorder %v401, 4.6595
        %vm4434 = vcmp.gt.f32.partialorder %v402, 4.6595
        %vm4435 = vcmp.gt.f32.partialorder %v403, 4.6595
        %vm4436 = vcmp.gt.f32.partialorder %v404, 4.6595
        %vm4437 = vcmp.gt.f32.partialorder %v405, 4.6595
        %vm4438 = vcmp.gt.f32.partialorder %v406, 4.6595
        %vm4439 = vcmp.gt.f32.partialorder %v407, 4.6595
        %vm4440 = vcmp.gt.f32.partialorder %v408, 4.6595
        %vm4441 = vcmp.gt.f32.partialorder %v409, 4.6595
        %vm4442 = vcmp.gt.f32.partialorder %v410, 4.6595
        %vm4443 = vcmp.gt.f32.partialorder %v411, 4.6595
        %vm4444 = vcmp.gt.f32.partialorder %v412, 4.6595
        %vm4445 = vcmp.gt.f32.partialorder %v413, 4.6595
        %vm4446 = vcmp.gt.f32.partialorder %v414, 4.6595
        %vm4447 = vcmp.gt.f32.partialorder %v415, 4.6595
        %vm4448 = vcmp.gt.f32.partialorder %v416, 4.6595
        %vm4449 = vcmp.gt.f32.partialorder %v417, 4.6595
        %vm4450 = vcmp.gt.f32.partialorder %v418, 4.6595
        %vm4451 = vcmp.gt.f32.partialorder %v419, 4.6595
        %vm4452 = vcmp.gt.f32.partialorder %v420, 4.6595
        %vm4453 = vcmp.gt.f32.partialorder %v421, 4.6595
        %vm4454 = vcmp.gt.f32.partialorder %v422, 4.6595
        %vm4455 = vcmp.gt.f32.partialorder %v423, 4.6595
        %vm4456 = vcmp.gt.f32.partialorder %v424, 4.6595
        %vm4457 = vcmp.gt.f32.partialorder %v425, 4.6595
        %vm4458 = vcmp.gt.f32.partialorder %v426, 4.6595
        %vm4459 = vcmp.gt.f32.partialorder %v427, 4.6595
        %vm4460 = vcmp.gt.f32.partialorder %v428, 4.6595
        %vm4461 = vcmp.gt.f32.partialorder %v429, 4.6595
        %vm4462 = vcmp.gt.f32.partialorder %v430, 4.6595
        %vm4463 = vcmp.gt.f32.partialorder %v431, 4.6595
        %vm4464 = vcmp.gt.f32.partialorder %v432, 4.6595
        %vm4465 = vcmp.gt.f32.partialorder %v433, 4.6595
        %vm4466 = vcmp.gt.f32.partialorder %v434, 4.6595
        %vm4467 = vcmp.gt.f32.partialorder %v435, 4.6595
        %vm4468 = vcmp.gt.f32.partialorder %v436, 4.6595
        %vm4469 = vcmp.gt.f32.partialorder %v437, 4.6595
        %vm4470 = vcmp.gt.f32.partialorder %v438, 4.6595
        %vm4471 = vcmp.gt.f32.partialorder %v439, 4.6595
        %vm4472 = vcmp.gt.f32.partialorder %v440, 4.6595
        %vm4473 = vcmp.gt.f32.partialorder %v441, 4.6595
        %vm4474 = vcmp.gt.f32.partialorder %v442, 4.6595
        %vm4475 = vcmp.gt.f32.partialorder %v443, 4.6595
        %vm4476 = vcmp.gt.f32.partialorder %v444, 4.6595
        %vm4477 = vcmp.gt.f32.partialorder %v445, 4.6595
        %vm4478 = vcmp.gt.f32.partialorder %v446, 4.6595
        %vm4479 = vcmp.gt.f32.partialorder %v447, 4.6595
        %vm4480 = vcmp.gt.f32.partialorder %v448, 4.6595
        %vm4481 = vcmp.gt.f32.partialorder %v449, 4.6595
        %vm4482 = vcmp.gt.f32.partialorder %v450, 4.6595
        %vm4483 = vcmp.gt.f32.partialorder %v451, 4.6595
        %vm4484 = vcmp.gt.f32.partialorder %v452, 4.6595
        %vm4485 = vcmp.gt.f32.partialorder %v453, 4.6595
        %vm4486 = vcmp.gt.f32.partialorder %v454, 4.6595
        %vm4487 = vcmp.gt.f32.partialorder %v455, 4.6595
        %vm4488 = vcmp.gt.f32.partialorder %v456, 4.6595
        %vm4489 = vcmp.gt.f32.partialorder %v457, 4.6595
        %vm4490 = vcmp.gt.f32.partialorder %v458, 4.6595
        %vm4491 = vcmp.gt.f32.partialorder %v459, 4.6595
        %vm4492 = vcmp.gt.f32.partialorder %v460, 4.6595
        %vm4493 = vcmp.gt.f32.partialorder %v461, 4.6595
        %vm4494 = vcmp.gt.f32.partialorder %v462, 4.6595
        %vm4495 = vcmp.gt.f32.partialorder %v463, 4.6595
        %vm4496 = vcmp.gt.f32.partialorder %v464, 4.6595
        %vm4497 = vcmp.gt.f32.partialorder %v465, 4.6595
        %vm4498 = vcmp.gt.f32.partialorder %v466, 4.6595
        %vm4499 = vcmp.gt.f32.partialorder %v467, 4.6595
        %vm4500 = vcmp.gt.f32.partialorder %v468, 4.6595
        %vm4501 = vcmp.gt.f32.partialorder %v469, 4.6595
        %vm4502 = vcmp.gt.f32.partialorder %v470, 4.6595
        %vm4503 = vcmp.gt.f32.partialorder %v471, 4.6595
        %vm4504 = vcmp.gt.f32.partialorder %v472, 4.6595
        %vm4505 = vcmp.gt.f32.partialorder %v473, 4.6595
        %vm4506 = vcmp.gt.f32.partialorder %v474, 4.6595
        %vm4507 = vcmp.gt.f32.partialorder %v475, 4.6595
        %vm4508 = vcmp.gt.f32.partialorder %v476, 4.6595
        %vm4509 = vcmp.gt.f32.partialorder %v477, 4.6595
        %vm4510 = vcmp.gt.f32.partialorder %v478, 4.6595
        %vm4511 = vcmp.gt.f32.partialorder %v479, 4.6595
        %vm4512 = vcmp.gt.f32.partialorder %v480, 4.6595
        %vm4513 = vcmp.gt.f32.partialorder %v481, 4.6595
        %vm4514 = vcmp.gt.f32.partialorder %v482, 4.6595
        %vm4515 = vcmp.gt.f32.partialorder %v483, 4.6595
        %vm4516 = vcmp.gt.f32.partialorder %v484, 4.6595
        %vm4517 = vcmp.gt.f32.partialorder %v485, 4.6595
        %vm4518 = vcmp.gt.f32.partialorder %v486, 4.6595
        %vm4519 = vcmp.gt.f32.partialorder %v487, 4.6595
        %vm4520 = vcmp.gt.f32.partialorder %v488, 4.6595
        %vm4521 = vcmp.gt.f32.partialorder %v489, 4.6595
        %vm4522 = vcmp.gt.f32.partialorder %v490, 4.6595
        %vm4523 = vcmp.gt.f32.partialorder %v491, 4.6595
        %vm4524 = vcmp.gt.f32.partialorder %v492, 4.6595
        %vm4525 = vcmp.gt.f32.partialorder %v493, 4.6595
        %vm4526 = vcmp.gt.f32.partialorder %v494, 4.6595
        %vm4527 = vcmp.gt.f32.partialorder %v495, 4.6595
        %vm4528 = vcmp.gt.f32.partialorder %v496, 4.6595
        %vm4529 = vcmp.gt.f32.partialorder %v497, 4.6595
        %vm4530 = vcmp.gt.f32.partialorder %v498, 4.6595
        %vm4531 = vcmp.gt.f32.partialorder %v499, 4.6595
        %vm4532 = vcmp.gt.f32.partialorder %v500, 4.6595
        %vm4533 = vcmp.gt.f32.partialorder %v501, 4.6595
        %vm4534 = vcmp.gt.f32.partialorder %v502, 4.6595
        %vm4535 = vcmp.gt.f32.partialorder %v503, 4.6595
        %vm4536 = vcmp.gt.f32.partialorder %v504, 4.6595
        %vm4537 = vcmp.gt.f32.partialorder %v505, 4.6595
        %vm4538 = vcmp.gt.f32.partialorder %v506, 4.6595
        %vm4539 = vcmp.gt.f32.partialorder %v507, 4.6595
        %vm4540 = vcmp.gt.f32.partialorder %v508, 4.6595
        %vm4541 = vcmp.gt.f32.partialorder %v509, 4.6595
        %vm4542 = vcmp.gt.f32.partialorder %v510, 4.6595
        %vm4543 = vcmp.gt.f32.partialorder %v511, 4.6595
        %vm4544 = vcmp.gt.f32.partialorder %v512, 4.6595
        %vm4545 = vcmp.gt.f32.partialorder %v513, 4.6595
        %vm4546 = vcmp.gt.f32.partialorder %v514, 4.6595
        %vm4547 = vcmp.gt.f32.partialorder %v515, 4.6595
        %vm4548 = vcmp.gt.f32.partialorder %v516, 4.6595
        %vm4549 = vcmp.gt.f32.partialorder %v517, 4.6595
        %vm4550 = vcmp.gt.f32.partialorder %v518, 4.6595
        %vm4551 = vcmp.gt.f32.partialorder %v519, 4.6595
        %vm4552 = vcmp.gt.f32.partialorder %v520, 4.6595
        %vm4553 = vcmp.gt.f32.partialorder %v521, 4.6595
        %vm4554 = vcmp.gt.f32.partialorder %v522, 4.6595
        %vm4555 = vcmp.gt.f32.partialorder %v523, 4.6595
        %vm4556 = vcmp.gt.f32.partialorder %v524, 4.6595
        %vm4557 = vcmp.gt.f32.partialorder %v525, 4.6595
        %vm4558 = vcmp.gt.f32.partialorder %v526, 4.6595
        %vm4559 = vcmp.gt.f32.partialorder %v527, 4.6595
        %vm4560 = vcmp.gt.f32.partialorder %v528, 4.6595
        %vm4561 = vcmp.gt.f32.partialorder %v529, 4.6595
        %vm4562 = vcmp.gt.f32.partialorder %v530, 4.6595
        %vm4563 = vcmp.gt.f32.partialorder %v531, 4.6595
        %vm4564 = vcmp.gt.f32.partialorder %v532, 4.6595
        %vm4565 = vcmp.gt.f32.partialorder %v533, 4.6595
        %vm4566 = vcmp.gt.f32.partialorder %v534, 4.6595
        %vm4567 = vcmp.gt.f32.partialorder %v535, 4.6595
        %vm4568 = vcmp.gt.f32.partialorder %v536, 4.6595
        %vm4569 = vcmp.gt.f32.partialorder %v537, 4.6595
        %vm4570 = vcmp.gt.f32.partialorder %v538, 4.6595
        %vm4571 = vcmp.gt.f32.partialorder %v539, 4.6595
        %vm4572 = vcmp.gt.f32.partialorder %v540, 4.6595
        %vm4573 = vcmp.gt.f32.partialorder %v541, 4.6595
        %vm4574 = vcmp.gt.f32.partialorder %v542, 4.6595
        %vm4575 = vcmp.gt.f32.partialorder %v543, 4.6595
        %vm4576 = vcmp.gt.f32.partialorder %v544, 4.6595
        %vm4577 = vcmp.gt.f32.partialorder %v545, 4.6595
        %vm4578 = vcmp.gt.f32.partialorder %v546, 4.6595
        %vm4579 = vcmp.gt.f32.partialorder %v547, 4.6595
        %vm4580 = vcmp.gt.f32.partialorder %v548, 4.6595
        %vm4581 = vcmp.gt.f32.partialorder %v549, 4.6595
        %vm4582 = vcmp.gt.f32.partialorder %v550, 4.6595
        %vm4583 = vcmp.gt.f32.partialorder %v551, 4.6595
        %vm4584 = vcmp.gt.f32.partialorder %v552, 4.6595
        %vm4585 = vcmp.gt.f32.partialorder %v553, 4.6595
        %vm4586 = vcmp.gt.f32.partialorder %v554, 4.6595
        %vm4587 = vcmp.gt.f32.partialorder %v555, 4.6595
        %vm4588 = vcmp.gt.f32.partialorder %v556, 4.6595
        %vm4589 = vcmp.gt.f32.partialorder %v557, 4.6595
        %vm4590 = vcmp.gt.f32.partialorder %v558, 4.6595
        %vm4591 = vcmp.gt.f32.partialorder %v559, 4.6595
        %vm4592 = vcmp.gt.f32.partialorder %v560, 4.6595
        %vm4593 = vcmp.gt.f32.partialorder %v561, 4.6595
        %vm4594 = vcmp.gt.f32.partialorder %v562, 4.6595
        %vm4595 = vcmp.gt.f32.partialorder %v563, 4.6595
        %vm4596 = vcmp.gt.f32.partialorder %v564, 4.6595
        %vm4597 = vcmp.gt.f32.partialorder %v565, 4.6595
        %vm4598 = vcmp.gt.f32.partialorder %v566, 4.6595
        %vm4599 = vcmp.gt.f32.partialorder %v567, 4.6595
        %vm4600 = vcmp.gt.f32.partialorder %v568, 4.6595
        %vm4601 = vcmp.gt.f32.partialorder %v569, 4.6595
        %vm4602 = vcmp.gt.f32.partialorder %v570, 4.6595
        %vm4603 = vcmp.gt.f32.partialorder %v571, 4.6595
        %vm4604 = vcmp.gt.f32.partialorder %v572, 4.6595
        %vm4605 = vcmp.gt.f32.partialorder %v573, 4.6595
        %vm4606 = vcmp.gt.f32.partialorder %v574, 4.6595
        %vm4607 = vcmp.gt.f32.partialorder %v575, 4.6595
        %vm4608 = vcmp.gt.f32.partialorder %v576, 4.6595
        %vm4609 = vcmp.gt.f32.partialorder %v577, 4.6595
        %vm4610 = vcmp.gt.f32.partialorder %v578, 4.6595
        %vm4611 = vcmp.gt.f32.partialorder %v579, 4.6595
        %vm4612 = vcmp.gt.f32.partialorder %v580, 4.6595
        %vm4613 = vcmp.gt.f32.partialorder %v581, 4.6595
        %vm4614 = vcmp.gt.f32.partialorder %v582, 4.6595
        %vm4615 = vcmp.gt.f32.partialorder %v583, 4.6595
        %vm4616 = vcmp.gt.f32.partialorder %v584, 4.6595
        %vm4617 = vcmp.gt.f32.partialorder %v585, 4.6595
        %vm4618 = vcmp.gt.f32.partialorder %v586, 4.6595
        %vm4619 = vcmp.gt.f32.partialorder %v587, 4.6595
        %vm4620 = vcmp.gt.f32.partialorder %v588, 4.6595
        %vm4621 = vcmp.gt.f32.partialorder %v589, 4.6595
        %vm4622 = vcmp.gt.f32.partialorder %v590, 4.6595
        %vm4623 = vcmp.gt.f32.partialorder %v591, 4.6595
        %vm4624 = vcmp.gt.f32.partialorder %v592, 4.6595
        %vm4625 = vcmp.gt.f32.partialorder %v593, 4.6595
        %vm4626 = vcmp.gt.f32.partialorder %v594, 4.6595
        %vm4627 = vcmp.gt.f32.partialorder %v595, 4.6595
        %vm4628 = vcmp.gt.f32.partialorder %v596, 4.6595
        %vm4629 = vcmp.gt.f32.partialorder %v597, 4.6595
        %vm4630 = vcmp.gt.f32.partialorder %v598, 4.6595
        %vm4631 = vcmp.gt.f32.partialorder %v599, 4.6595
        %vm4632 = vcmp.gt.f32.partialorder %v600, 4.6595
        %vm4633 = vcmp.gt.f32.partialorder %v601, 4.6595
        %vm4634 = vcmp.gt.f32.partialorder %v602, 4.6595
        %vm4635 = vcmp.gt.f32.partialorder %v603, 4.6595
        %vm4636 = vcmp.gt.f32.partialorder %v604, 4.6595
        %vm4637 = vcmp.gt.f32.partialorder %v605, 4.6595
        %vm4638 = vcmp.gt.f32.partialorder %v606, 4.6595
        %vm4639 = vcmp.gt.f32.partialorder %v607, 4.6595
        %vm4640 = vcmp.gt.f32.partialorder %v608, 4.6595
        %vm4641 = vcmp.gt.f32.partialorder %v609, 4.6595
        %vm4642 = vcmp.gt.f32.partialorder %v610, 4.6595
        %vm4643 = vcmp.gt.f32.partialorder %v611, 4.6595
        %vm4644 = vcmp.gt.f32.partialorder %v612, 4.6595
        %vm4645 = vcmp.gt.f32.partialorder %v613, 4.6595
        %vm4646 = vcmp.gt.f32.partialorder %v614, 4.6595
        %vm4647 = vcmp.gt.f32.partialorder %v615, 4.6595
        %vm4648 = vcmp.gt.f32.partialorder %v616, 4.6595
        %vm4649 = vcmp.gt.f32.partialorder %v617, 4.6595
        %vm4650 = vcmp.gt.f32.partialorder %v618, 4.6595
        %vm4651 = vcmp.gt.f32.partialorder %v619, 4.6595
        %vm4652 = vcmp.gt.f32.partialorder %v620, 4.6595
        %vm4653 = vcmp.gt.f32.partialorder %v621, 4.6595
        %vm4654 = vcmp.gt.f32.partialorder %v622, 4.6595
        %vm4655 = vcmp.gt.f32.partialorder %v623, 4.6595
        %vm4656 = vcmp.gt.f32.partialorder %v624, 4.6595
        %vm4657 = vcmp.gt.f32.partialorder %v625, 4.6595
        %vm4658 = vcmp.gt.f32.partialorder %v626, 4.6595
        %vm4659 = vcmp.gt.f32.partialorder %v627, 4.6595
        %vm4660 = vcmp.gt.f32.partialorder %v628, 4.6595
        %vm4661 = vcmp.gt.f32.partialorder %v629, 4.6595
        %vm4662 = vcmp.gt.f32.partialorder %v630, 4.6595
        %vm4663 = vcmp.gt.f32.partialorder %v631, 4.6595
        %vm4664 = vcmp.gt.f32.partialorder %v632, 4.6595
        %vm4665 = vcmp.gt.f32.partialorder %v633, 4.6595
        %vm4666 = vcmp.gt.f32.partialorder %v634, 4.6595
        %vm4667 = vcmp.gt.f32.partialorder %v635, 4.6595
        %vm4668 = vcmp.gt.f32.partialorder %v636, 4.6595
        %vm4669 = vcmp.gt.f32.partialorder %v637, 4.6595
        %vm4670 = vcmp.gt.f32.partialorder %v638, 4.6595
        %vm4671 = vcmp.gt.f32.partialorder %v639, 4.6595
        %vm4672 = vcmp.gt.f32.partialorder %v640, 4.6595
        %vm4673 = vcmp.gt.f32.partialorder %v641, 4.6595
        %vm4674 = vcmp.gt.f32.partialorder %v642, 4.6595
        %vm4675 = vcmp.gt.f32.partialorder %v643, 4.6595
        %vm4676 = vcmp.gt.f32.partialorder %v644, 4.6595
        %vm4677 = vcmp.gt.f32.partialorder %v645, 4.6595
        %vm4678 = vcmp.gt.f32.partialorder %v646, 4.6595
        %vm4679 = vcmp.gt.f32.partialorder %v647, 4.6595
        %vm4680 = vcmp.gt.f32.partialorder %v648, 4.6595
        %vm4681 = vcmp.gt.f32.partialorder %v649, 4.6595
        %vm4682 = vcmp.gt.f32.partialorder %v650, 4.6595
        %vm4683 = vcmp.gt.f32.partialorder %v651, 4.6595
        %vm4684 = vcmp.gt.f32.partialorder %v652, 4.6595
        %vm4685 = vcmp.gt.f32.partialorder %v653, 4.6595
        %vm4686 = vcmp.gt.f32.partialorder %v654, 4.6595
        %vm4687 = vcmp.gt.f32.partialorder %v655, 4.6595
        %vm4688 = vcmp.gt.f32.partialorder %v656, 4.6595
        %vm4689 = vcmp.gt.f32.partialorder %v657, 4.6595
        %vm4690 = vcmp.gt.f32.partialorder %v658, 4.6595
        %v4691 = vsel %vm4187, %v3683, 1.0
        %v4692 = vsel %vm4188, %v3684, 1.0
        %v4693 = vsel %vm4189, %v3685, 1.0
        %v4694 = vsel %vm4190, %v3686, 1.0
        %v4695 = vsel %vm4191, %v3687, 1.0
        %v4696 = vsel %vm4192, %v3688, 1.0
        %v4697 = vsel %vm4193, %v3689, 1.0
        %v4698 = vsel %vm4194, %v3690, 1.0
        %v4699 = vsel %vm4195, %v3691, 1.0
        %v4700 = vsel %vm4196, %v3692, 1.0
        %v4701 = vsel %vm4197, %v3693, 1.0
        %v4702 = vsel %vm4198, %v3694, 1.0
        %v4703 = vsel %vm4199, %v3695, 1.0
        %v4704 = vsel %vm4200, %v3696, 1.0
        %v4705 = vsel %vm4201, %v3697, 1.0
        %v4706 = vsel %vm4202, %v3698, 1.0
        %v4707 = vsel %vm4203, %v3699, 1.0
        %v4708 = vsel %vm4204, %v3700, 1.0
        %v4709 = vsel %vm4205, %v3701, 1.0
        %v4710 = vsel %vm4206, %v3702, 1.0
        %v4711 = vsel %vm4207, %v3703, 1.0
        %v4712 = vsel %vm4208, %v3704, 1.0
        %v4713 = vsel %vm4209, %v3705, 1.0
        %v4714 = vsel %vm4210, %v3706, 1.0
        %v4715 = vsel %vm4211, %v3707, 1.0
        %v4716 = vsel %vm4212, %v3708, 1.0
        %v4717 = vsel %vm4213, %v3709, 1.0
        %v4718 = vsel %vm4214, %v3710, 1.0
        %v4719 = vsel %vm4215, %v3711, 1.0
        %v4720 = vsel %vm4216, %v3712, 1.0
        %v4721 = vsel %vm4217, %v3713, 1.0
        %v4722 = vsel %vm4218, %v3714, 1.0
        %v4723 = vsel %vm4219, %v3715, 1.0
        %v4724 = vsel %vm4220, %v3716, 1.0
        %v4725 = vsel %vm4221, %v3717, 1.0
        %v4726 = vsel %vm4222, %v3718, 1.0
        %v4727 = vsel %vm4223, %v3719, 1.0
        %v4728 = vsel %vm4224, %v3720, 1.0
        %v4729 = vsel %vm4225, %v3721, 1.0
        %v4730 = vsel %vm4226, %v3722, 1.0
        %v4731 = vsel %vm4227, %v3723, 1.0
        %v4732 = vsel %vm4228, %v3724, 1.0
        %v4733 = vsel %vm4229, %v3725, 1.0
        %v4734 = vsel %vm4230, %v3726, 1.0
        %v4735 = vsel %vm4231, %v3727, 1.0
        %v4736 = vsel %vm4232, %v3728, 1.0
        %v4737 = vsel %vm4233, %v3729, 1.0
        %v4738 = vsel %vm4234, %v3730, 1.0
        %v4739 = vsel %vm4235, %v3731, 1.0
        %v4740 = vsel %vm4236, %v3732, 1.0
        %v4741 = vsel %vm4237, %v3733, 1.0
        %v4742 = vsel %vm4238, %v3734, 1.0
        %v4743 = vsel %vm4239, %v3735, 1.0
        %v4744 = vsel %vm4240, %v3736, 1.0
        %v4745 = vsel %vm4241, %v3737, 1.0
        %v4746 = vsel %vm4242, %v3738, 1.0
        %v4747 = vsel %vm4243, %v3739, 1.0
        %v4748 = vsel %vm4244, %v3740, 1.0
        %v4749 = vsel %vm4245, %v3741, 1.0
        %v4750 = vsel %vm4246, %v3742, 1.0
        %v4751 = vsel %vm4247, %v3743, 1.0
        %v4752 = vsel %vm4248, %v3744, 1.0
        %v4753 = vsel %vm4249, %v3745, 1.0
        %v4754 = vsel %vm4250, %v3746, 1.0
        %v4755 = vsel %vm4251, %v3747, 1.0
        %v4756 = vsel %vm4252, %v3748, 1.0
        %v4757 = vsel %vm4253, %v3749, 1.0
        %v4758 = vsel %vm4254, %v3750, 1.0
        %v4759 = vsel %vm4255, %v3751, 1.0
        %v4760 = vsel %vm4256, %v3752, 1.0
        %v4761 = vsel %vm4257, %v3753, 1.0
        %v4762 = vsel %vm4258, %v3754, 1.0
        %v4763 = vsel %vm4259, %v3755, 1.0
        %v4764 = vsel %vm4260, %v3756, 1.0
        %v4765 = vsel %vm4261, %v3757, 1.0
        %v4766 = vsel %vm4262, %v3758, 1.0
        %v4767 = vsel %vm4263, %v3759, 1.0
        %v4768 = vsel %vm4264, %v3760, 1.0
        %v4769 = vsel %vm4265, %v3761, 1.0
        %v4770 = vsel %vm4266, %v3762, 1.0
        %v4771 = vsel %vm4267, %v3763, 1.0
        %v4772 = vsel %vm4268, %v3764, 1.0
        %v4773 = vsel %vm4269, %v3765, 1.0
        %v4774 = vsel %vm4270, %v3766, 1.0
        %v4775 = vsel %vm4271, %v3767, 1.0
        %v4776 = vsel %vm4272, %v3768, 1.0
        %v4777 = vsel %vm4273, %v3769, 1.0
        %v4778 = vsel %vm4274, %v3770, 1.0
        %v4779 = vsel %vm4275, %v3771, 1.0
        %v4780 = vsel %vm4276, %v3772, 1.0
        %v4781 = vsel %vm4277, %v3773, 1.0
        %v4782 = vsel %vm4278, %v3774, 1.0
        %v4783 = vsel %vm4279, %v3775, 1.0
        %v4784 = vsel %vm4280, %v3776, 1.0
        %v4785 = vsel %vm4281, %v3777, 1.0
        %v4786 = vsel %vm4282, %v3778, 1.0
        %v4787 = vsel %vm4283, %v3779, 1.0
        %v4788 = vsel %vm4284, %v3780, 1.0
        %v4789 = vsel %vm4285, %v3781, 1.0
        %v4790 = vsel %vm4286, %v3782, 1.0
        %v4791 = vsel %vm4287, %v3783, 1.0
        %v4792 = vsel %vm4288, %v3784, 1.0
        %v4793 = vsel %vm4289, %v3785, 1.0
        %v4794 = vsel %vm4290, %v3786, 1.0
        %v4795 = vsel %vm4291, %v3787, 1.0
        %v4796 = vsel %vm4292, %v3788, 1.0
        %v4797 = vsel %vm4293, %v3789, 1.0
        %v4798 = vsel %vm4294, %v3790, 1.0
        %v4799 = vsel %vm4295, %v3791, 1.0
        %v4800 = vsel %vm4296, %v3792, 1.0
        %v4801 = vsel %vm4297, %v3793, 1.0
        %v4802 = vsel %vm4298, %v3794, 1.0
        %v4803 = vsel %vm4299, %v3795, 1.0
        %v4804 = vsel %vm4300, %v3796, 1.0
        %v4805 = vsel %vm4301, %v3797, 1.0
        %v4806 = vsel %vm4302, %v3798, 1.0
        %v4807 = vsel %vm4303, %v3799, 1.0
        %v4808 = vsel %vm4304, %v3800, 1.0
        %v4809 = vsel %vm4305, %v3801, 1.0
        %v4810 = vsel %vm4306, %v3802, 1.0
        %v4811 = vsel %vm4307, %v3803, 1.0
        %v4812 = vsel %vm4308, %v3804, 1.0
        %v4813 = vsel %vm4309, %v3805, 1.0
        %v4814 = vsel %vm4310, %v3806, 1.0
        %v4815 = vsel %vm4311, %v3807, 1.0
        %v4816 = vsel %vm4312, %v3808, 1.0
        %v4817 = vsel %vm4313, %v3809, 1.0
        %v4818 = vsel %vm4314, %v3810, 1.0
        %v4819 = vsel %vm4315, %v3811, 1.0
        %v4820 = vsel %vm4316, %v3812, 1.0
        %v4821 = vsel %vm4317, %v3813, 1.0
        %v4822 = vsel %vm4318, %v3814, 1.0
        %v4823 = vsel %vm4319, %v3815, 1.0
        %v4824 = vsel %vm4320, %v3816, 1.0
        %v4825 = vsel %vm4321, %v3817, 1.0
        %v4826 = vsel %vm4322, %v3818, 1.0
        %v4827 = vsel %vm4323, %v3819, 1.0
        %v4828 = vsel %vm4324, %v3820, 1.0
        %v4829 = vsel %vm4325, %v3821, 1.0
        %v4830 = vsel %vm4326, %v3822, 1.0
        %v4831 = vsel %vm4327, %v3823, 1.0
        %v4832 = vsel %vm4328, %v3824, 1.0
        %v4833 = vsel %vm4329, %v3825, 1.0
        %v4834 = vsel %vm4330, %v3826, 1.0
        %v4835 = vsel %vm4331, %v3827, 1.0
        %v4836 = vsel %vm4332, %v3828, 1.0
        %v4837 = vsel %vm4333, %v3829, 1.0
        %v4838 = vsel %vm4334, %v3830, 1.0
        %v4839 = vsel %vm4335, %v3831, 1.0
        %v4840 = vsel %vm4336, %v3832, 1.0
        %v4841 = vsel %vm4337, %v3833, 1.0
        %v4842 = vsel %vm4338, %v3834, 1.0
        %v4843 = vsel %vm4339, %v3835, 1.0
        %v4844 = vsel %vm4340, %v3836, 1.0
        %v4845 = vsel %vm4341, %v3837, 1.0
        %v4846 = vsel %vm4342, %v3838, 1.0
        %v4847 = vsel %vm4343, %v3839, 1.0
        %v4848 = vsel %vm4344, %v3840, 1.0
        %v4849 = vsel %vm4345, %v3841, 1.0
        %v4850 = vsel %vm4346, %v3842, 1.0
        %v4851 = vsel %vm4347, %v3843, 1.0
        %v4852 = vsel %vm4348, %v3844, 1.0
        %v4853 = vsel %vm4349, %v3845, 1.0
        %v4854 = vsel %vm4350, %v3846, 1.0
        %v4855 = vsel %vm4351, %v3847, 1.0
        %v4856 = vsel %vm4352, %v3848, 1.0
        %v4857 = vsel %vm4353, %v3849, 1.0
        %v4858 = vsel %vm4354, %v3850, 1.0
        %v4859 = vsel %vm4355, %v3851, 1.0
        %v4860 = vsel %vm4356, %v3852, 1.0
        %v4861 = vsel %vm4357, %v3853, 1.0
        %v4862 = vsel %vm4358, %v3854, 1.0
        %v4863 = vsel %vm4359, %v3855, 1.0
        %v4864 = vsel %vm4360, %v3856, 1.0
        %v4865 = vsel %vm4361, %v3857, 1.0
        %v4866 = vsel %vm4362, %v3858, 1.0
        %v4867 = vsel %vm4363, %v3859, 1.0
        %v4868 = vsel %vm4364, %v3860, 1.0
        %v4869 = vsel %vm4365, %v3861, 1.0
        %v4870 = vsel %vm4366, %v3862, 1.0
        %v4871 = vsel %vm4367, %v3863, 1.0
        %v4872 = vsel %vm4368, %v3864, 1.0
        %v4873 = vsel %vm4369, %v3865, 1.0
        %v4874 = vsel %vm4370, %v3866, 1.0
        %v4875 = vsel %vm4371, %v3867, 1.0
        %v4876 = vsel %vm4372, %v3868, 1.0
        %v4877 = vsel %vm4373, %v3869, 1.0
        %v4878 = vsel %vm4374, %v3870, 1.0
        %v4879 = vsel %vm4375, %v3871, 1.0
        %v4880 = vsel %vm4376, %v3872, 1.0
        %v4881 = vsel %vm4377, %v3873, 1.0
        %v4882 = vsel %vm4378, %v3874, 1.0
        %v4883 = vsel %vm4379, %v3875, 1.0
        %v4884 = vsel %vm4380, %v3876, 1.0
        %v4885 = vsel %vm4381, %v3877, 1.0
        %v4886 = vsel %vm4382, %v3878, 1.0
        %v4887 = vsel %vm4383, %v3879, 1.0
        %v4888 = vsel %vm4384, %v3880, 1.0
        %v4889 = vsel %vm4385, %v3881, 1.0
        %v4890 = vsel %vm4386, %v3882, 1.0
        %v4891 = vsel %vm4387, %v3883, 1.0
        %v4892 = vsel %vm4388, %v3884, 1.0
        %v4893 = vsel %vm4389, %v3885, 1.0
        %v4894 = vsel %vm4390, %v3886, 1.0
        %v4895 = vsel %vm4391, %v3887, 1.0
        %v4896 = vsel %vm4392, %v3888, 1.0
        %v4897 = vsel %vm4393, %v3889, 1.0
        %v4898 = vsel %vm4394, %v3890, 1.0
        %v4899 = vsel %vm4395, %v3891, 1.0
        %v4900 = vsel %vm4396, %v3892, 1.0
        %v4901 = vsel %vm4397, %v3893, 1.0
        %v4902 = vsel %vm4398, %v3894, 1.0
        %v4903 = vsel %vm4399, %v3895, 1.0
        %v4904 = vsel %vm4400, %v3896, 1.0
        %v4905 = vsel %vm4401, %v3897, 1.0
        %v4906 = vsel %vm4402, %v3898, 1.0
        %v4907 = vsel %vm4403, %v3899, 1.0
        %v4908 = vsel %vm4404, %v3900, 1.0
        %v4909 = vsel %vm4405, %v3901, 1.0
        %v4910 = vsel %vm4406, %v3902, 1.0
        %v4911 = vsel %vm4407, %v3903, 1.0
        %v4912 = vsel %vm4408, %v3904, 1.0
        %v4913 = vsel %vm4409, %v3905, 1.0
        %v4914 = vsel %vm4410, %v3906, 1.0
        %v4915 = vsel %vm4411, %v3907, 1.0
        %v4916 = vsel %vm4412, %v3908, 1.0
        %v4917 = vsel %vm4413, %v3909, 1.0
        %v4918 = vsel %vm4414, %v3910, 1.0
        %v4919 = vsel %vm4415, %v3911, 1.0
        %v4920 = vsel %vm4416, %v3912, 1.0
        %v4921 = vsel %vm4417, %v3913, 1.0
        %v4922 = vsel %vm4418, %v3914, 1.0
        %v4923 = vsel %vm4419, %v3915, 1.0
        %v4924 = vsel %vm4420, %v3916, 1.0
        %v4925 = vsel %vm4421, %v3917, 1.0
        %v4926 = vsel %vm4422, %v3918, 1.0
        %v4927 = vsel %vm4423, %v3919, 1.0
        %v4928 = vsel %vm4424, %v3920, 1.0
        %v4929 = vsel %vm4425, %v3921, 1.0
        %v4930 = vsel %vm4426, %v3922, 1.0
        %v4931 = vsel %vm4427, %v3923, 1.0
        %v4932 = vsel %vm4428, %v3924, 1.0
        %v4933 = vsel %vm4429, %v3925, 1.0
        %v4934 = vsel %vm4430, %v3926, 1.0
        %v4935 = vsel %vm4431, %v3927, 1.0
        %v4936 = vsel %vm4432, %v3928, 1.0
        %v4937 = vsel %vm4433, %v3929, 1.0
        %v4938 = vsel %vm4434, %v3930, 1.0
        %v4939 = vsel %vm4435, %v3931, 1.0
        %v4940 = vsel %vm4436, %v3932, 1.0
        %v4941 = vsel %vm4437, %v3933, 1.0
        %v4942 = vsel %vm4438, %v3934, 1.0
        %v4943 = vsel %vm4439, %v3935, 1.0
        %v4944 = vsel %vm4440, %v3936, 1.0
        %v4945 = vsel %vm4441, %v3937, 1.0
        %v4946 = vsel %vm4442, %v3938, 1.0
        %v4947 = vsel %vm4443, %v3939, 1.0
        %v4948 = vsel %vm4444, %v3940, 1.0
        %v4949 = vsel %vm4445, %v3941, 1.0
        %v4950 = vsel %vm4446, %v3942, 1.0
        %v4951 = vsel %vm4447, %v3943, 1.0
        %v4952 = vsel %vm4448, %v3944, 1.0
        %v4953 = vsel %vm4449, %v3945, 1.0
        %v4954 = vsel %vm4450, %v3946, 1.0
        %v4955 = vsel %vm4451, %v3947, 1.0
        %v4956 = vsel %vm4452, %v3948, 1.0
        %v4957 = vsel %vm4453, %v3949, 1.0
        %v4958 = vsel %vm4454, %v3950, 1.0
        %v4959 = vsel %vm4455, %v3951, 1.0
        %v4960 = vsel %vm4456, %v3952, 1.0
        %v4961 = vsel %vm4457, %v3953, 1.0
        %v4962 = vsel %vm4458, %v3954, 1.0
        %v4963 = vsel %vm4459, %v3955, 1.0
        %v4964 = vsel %vm4460, %v3956, 1.0
        %v4965 = vsel %vm4461, %v3957, 1.0
        %v4966 = vsel %vm4462, %v3958, 1.0
        %v4967 = vsel %vm4463, %v3959, 1.0
        %v4968 = vsel %vm4464, %v3960, 1.0
        %v4969 = vsel %vm4465, %v3961, 1.0
        %v4970 = vsel %vm4466, %v3962, 1.0
        %v4971 = vsel %vm4467, %v3963, 1.0
        %v4972 = vsel %vm4468, %v3964, 1.0
        %v4973 = vsel %vm4469, %v3965, 1.0
        %v4974 = vsel %vm4470, %v3966, 1.0
        %v4975 = vsel %vm4471, %v3967, 1.0
        %v4976 = vsel %vm4472, %v3968, 1.0
        %v4977 = vsel %vm4473, %v3969, 1.0
        %v4978 = vsel %vm4474, %v3970, 1.0
        %v4979 = vsel %vm4475, %v3971, 1.0
        %v4980 = vsel %vm4476, %v3972, 1.0
        %v4981 = vsel %vm4477, %v3973, 1.0
        %v4982 = vsel %vm4478, %v3974, 1.0
        %v4983 = vsel %vm4479, %v3975, 1.0
        %v4984 = vsel %vm4480, %v3976, 1.0
        %v4985 = vsel %vm4481, %v3977, 1.0
        %v4986 = vsel %vm4482, %v3978, 1.0
        %v4987 = vsel %vm4483, %v3979, 1.0
        %v4988 = vsel %vm4484, %v3980, 1.0
        %v4989 = vsel %vm4485, %v3981, 1.0
        %v4990 = vsel %vm4486, %v3982, 1.0
        %v4991 = vsel %vm4487, %v3983, 1.0
        %v4992 = vsel %vm4488, %v3984, 1.0
        %v4993 = vsel %vm4489, %v3985, 1.0
        %v4994 = vsel %vm4490, %v3986, 1.0
        %v4995 = vsel %vm4491, %v3987, 1.0
        %v4996 = vsel %vm4492, %v3988, 1.0
        %v4997 = vsel %vm4493, %v3989, 1.0
        %v4998 = vsel %vm4494, %v3990, 1.0
        %v4999 = vsel %vm4495, %v3991, 1.0
        %v5000 = vsel %vm4496, %v3992, 1.0
        %v5001 = vsel %vm4497, %v3993, 1.0
        %v5002 = vsel %vm4498, %v3994, 1.0
        %v5003 = vsel %vm4499, %v3995, 1.0
        %v5004 = vsel %vm4500, %v3996, 1.0
        %v5005 = vsel %vm4501, %v3997, 1.0
        %v5006 = vsel %vm4502, %v3998, 1.0
        %v5007 = vsel %vm4503, %v3999, 1.0
        %v5008 = vsel %vm4504, %v4000, 1.0
        %v5009 = vsel %vm4505, %v4001, 1.0
        %v5010 = vsel %vm4506, %v4002, 1.0
        %v5011 = vsel %vm4507, %v4003, 1.0
        %v5012 = vsel %vm4508, %v4004, 1.0
        %v5013 = vsel %vm4509, %v4005, 1.0
        %v5014 = vsel %vm4510, %v4006, 1.0
        %v5015 = vsel %vm4511, %v4007, 1.0
        %v5016 = vsel %vm4512, %v4008, 1.0
        %v5017 = vsel %vm4513, %v4009, 1.0
        %v5018 = vsel %vm4514, %v4010, 1.0
        %v5019 = vsel %vm4515, %v4011, 1.0
        %v5020 = vsel %vm4516, %v4012, 1.0
        %v5021 = vsel %vm4517, %v4013, 1.0
        %v5022 = vsel %vm4518, %v4014, 1.0
        %v5023 = vsel %vm4519, %v4015, 1.0
        %v5024 = vsel %vm4520, %v4016, 1.0
        %v5025 = vsel %vm4521, %v4017, 1.0
        %v5026 = vsel %vm4522, %v4018, 1.0
        %v5027 = vsel %vm4523, %v4019, 1.0
        %v5028 = vsel %vm4524, %v4020, 1.0
        %v5029 = vsel %vm4525, %v4021, 1.0
        %v5030 = vsel %vm4526, %v4022, 1.0
        %v5031 = vsel %vm4527, %v4023, 1.0
        %v5032 = vsel %vm4528, %v4024, 1.0
        %v5033 = vsel %vm4529, %v4025, 1.0
        %v5034 = vsel %vm4530, %v4026, 1.0
        %v5035 = vsel %vm4531, %v4027, 1.0
        %v5036 = vsel %vm4532, %v4028, 1.0
        %v5037 = vsel %vm4533, %v4029, 1.0
        %v5038 = vsel %vm4534, %v4030, 1.0
        %v5039 = vsel %vm4535, %v4031, 1.0
        %v5040 = vsel %vm4536, %v4032, 1.0
        %v5041 = vsel %vm4537, %v4033, 1.0
        %v5042 = vsel %vm4538, %v4034, 1.0
        %v5043 = vsel %vm4539, %v4035, 1.0
        %v5044 = vsel %vm4540, %v4036, 1.0
        %v5045 = vsel %vm4541, %v4037, 1.0
        %v5046 = vsel %vm4542, %v4038, 1.0
        %v5047 = vsel %vm4543, %v4039, 1.0
        %v5048 = vsel %vm4544, %v4040, 1.0
        %v5049 = vsel %vm4545, %v4041, 1.0
        %v5050 = vsel %vm4546, %v4042, 1.0
        %v5051 = vsel %vm4547, %v4043, 1.0
        %v5052 = vsel %vm4548, %v4044, 1.0
        %v5053 = vsel %vm4549, %v4045, 1.0
        %v5054 = vsel %vm4550, %v4046, 1.0
        %v5055 = vsel %vm4551, %v4047, 1.0
        %v5056 = vsel %vm4552, %v4048, 1.0
        %v5057 = vsel %vm4553, %v4049, 1.0
        %v5058 = vsel %vm4554, %v4050, 1.0
        %v5059 = vsel %vm4555, %v4051, 1.0
        %v5060 = vsel %vm4556, %v4052, 1.0
        %v5061 = vsel %vm4557, %v4053, 1.0
        %v5062 = vsel %vm4558, %v4054, 1.0
        %v5063 = vsel %vm4559, %v4055, 1.0
        %v5064 = vsel %vm4560, %v4056, 1.0
        %v5065 = vsel %vm4561, %v4057, 1.0
        %v5066 = vsel %vm4562, %v4058, 1.0
        %v5067 = vsel %vm4563, %v4059, 1.0
        %v5068 = vsel %vm4564, %v4060, 1.0
        %v5069 = vsel %vm4565, %v4061, 1.0
        %v5070 = vsel %vm4566, %v4062, 1.0
        %v5071 = vsel %vm4567, %v4063, 1.0
        %v5072 = vsel %vm4568, %v4064, 1.0
        %v5073 = vsel %vm4569, %v4065, 1.0
        %v5074 = vsel %vm4570, %v4066, 1.0
        %v5075 = vsel %vm4571, %v4067, 1.0
        %v5076 = vsel %vm4572, %v4068, 1.0
        %v5077 = vsel %vm4573, %v4069, 1.0
        %v5078 = vsel %vm4574, %v4070, 1.0
        %v5079 = vsel %vm4575, %v4071, 1.0
        %v5080 = vsel %vm4576, %v4072, 1.0
        %v5081 = vsel %vm4577, %v4073, 1.0
        %v5082 = vsel %vm4578, %v4074, 1.0
        %v5083 = vsel %vm4579, %v4075, 1.0
        %v5084 = vsel %vm4580, %v4076, 1.0
        %v5085 = vsel %vm4581, %v4077, 1.0
        %v5086 = vsel %vm4582, %v4078, 1.0
        %v5087 = vsel %vm4583, %v4079, 1.0
        %v5088 = vsel %vm4584, %v4080, 1.0
        %v5089 = vsel %vm4585, %v4081, 1.0
        %v5090 = vsel %vm4586, %v4082, 1.0
        %v5091 = vsel %vm4587, %v4083, 1.0
        %v5092 = vsel %vm4588, %v4084, 1.0
        %v5093 = vsel %vm4589, %v4085, 1.0
        %v5094 = vsel %vm4590, %v4086, 1.0
        %v5095 = vsel %vm4591, %v4087, 1.0
        %v5096 = vsel %vm4592, %v4088, 1.0
        %v5097 = vsel %vm4593, %v4089, 1.0
        %v5098 = vsel %vm4594, %v4090, 1.0
        %v5099 = vsel %vm4595, %v4091, 1.0
        %v5100 = vsel %vm4596, %v4092, 1.0
        %v5101 = vsel %vm4597, %v4093, 1.0
        %v5102 = vsel %vm4598, %v4094, 1.0
        %v5103 = vsel %vm4599, %v4095, 1.0
        %v5104 = vsel %vm4600, %v4096, 1.0
        %v5105 = vsel %vm4601, %v4097, 1.0
        %v5106 = vsel %vm4602, %v4098, 1.0
        %v5107 = vsel %vm4603, %v4099, 1.0
        %v5108 = vsel %vm4604, %v4100, 1.0
        %v5109 = vsel %vm4605, %v4101, 1.0
        %v5110 = vsel %vm4606, %v4102, 1.0
        %v5111 = vsel %vm4607, %v4103, 1.0
        %v5112 = vsel %vm4608, %v4104, 1.0
        %v5113 = vsel %vm4609, %v4105, 1.0
        %v5114 = vsel %vm4610, %v4106, 1.0
        %v5115 = vsel %vm4611, %v4107, 1.0
        %v5116 = vsel %vm4612, %v4108, 1.0
        %v5117 = vsel %vm4613, %v4109, 1.0
        %v5118 = vsel %vm4614, %v4110, 1.0
        %v5119 = vsel %vm4615, %v4111, 1.0
        %v5120 = vsel %vm4616, %v4112, 1.0
        %v5121 = vsel %vm4617, %v4113, 1.0
        %v5122 = vsel %vm4618, %v4114, 1.0
        %v5123 = vsel %vm4619, %v4115, 1.0
        %v5124 = vsel %vm4620, %v4116, 1.0
        %v5125 = vsel %vm4621, %v4117, 1.0
        %v5126 = vsel %vm4622, %v4118, 1.0
        %v5127 = vsel %vm4623, %v4119, 1.0
        %v5128 = vsel %vm4624, %v4120, 1.0
        %v5129 = vsel %vm4625, %v4121, 1.0
        %v5130 = vsel %vm4626, %v4122, 1.0
        %v5131 = vsel %vm4627, %v4123, 1.0
        %v5132 = vsel %vm4628, %v4124, 1.0
        %v5133 = vsel %vm4629, %v4125, 1.0
        %v5134 = vsel %vm4630, %v4126, 1.0
        %v5135 = vsel %vm4631, %v4127, 1.0
        %v5136 = vsel %vm4632, %v4128, 1.0
        %v5137 = vsel %vm4633, %v4129, 1.0
        %v5138 = vsel %vm4634, %v4130, 1.0
        %v5139 = vsel %vm4635, %v4131, 1.0
        %v5140 = vsel %vm4636, %v4132, 1.0
        %v5141 = vsel %vm4637, %v4133, 1.0
        %v5142 = vsel %vm4638, %v4134, 1.0
        %v5143 = vsel %vm4639, %v4135, 1.0
        %v5144 = vsel %vm4640, %v4136, 1.0
        %v5145 = vsel %vm4641, %v4137, 1.0
        %v5146 = vsel %vm4642, %v4138, 1.0
        %v5147 = vsel %vm4643, %v4139, 1.0
        %v5148 = vsel %vm4644, %v4140, 1.0
        %v5149 = vsel %vm4645, %v4141, 1.0
        %v5150 = vsel %vm4646, %v4142, 1.0
        %v5151 = vsel %vm4647, %v4143, 1.0
        %v5152 = vsel %vm4648, %v4144, 1.0
        %v5153 = vsel %vm4649, %v4145, 1.0
        %v5154 = vsel %vm4650, %v4146, 1.0
        %v5155 = vsel %vm4651, %v4147, 1.0
        %v5156 = vsel %vm4652, %v4148, 1.0
        %v5157 = vsel %vm4653, %v4149, 1.0
        %v5158 = vsel %vm4654, %v4150, 1.0
        %v5159 = vsel %vm4655, %v4151, 1.0
        %v5160 = vsel %vm4656, %v4152, 1.0
        %v5161 = vsel %vm4657, %v4153, 1.0
        %v5162 = vsel %vm4658, %v4154, 1.0
        %v5163 = vsel %vm4659, %v4155, 1.0
        %v5164 = vsel %vm4660, %v4156, 1.0
        %v5165 = vsel %vm4661, %v4157, 1.0
        %v5166 = vsel %vm4662, %v4158, 1.0
        %v5167 = vsel %vm4663, %v4159, 1.0
        %v5168 = vsel %vm4664, %v4160, 1.0
        %v5169 = vsel %vm4665, %v4161, 1.0
        %v5170 = vsel %vm4666, %v4162, 1.0
        %v5171 = vsel %vm4667, %v4163, 1.0
        %v5172 = vsel %vm4668, %v4164, 1.0
        %v5173 = vsel %vm4669, %v4165, 1.0
        %v5174 = vsel %vm4670, %v4166, 1.0
        %v5175 = vsel %vm4671, %v4167, 1.0
        %v5176 = vsel %vm4672, %v4168, 1.0
        %v5177 = vsel %vm4673, %v4169, 1.0
        %v5178 = vsel %vm4674, %v4170, 1.0
        %v5179 = vsel %vm4675, %v4171, 1.0
        %v5180 = vsel %vm4676, %v4172, 1.0
        %v5181 = vsel %vm4677, %v4173, 1.0
        %v5182 = vsel %vm4678, %v4174, 1.0
        %v5183 = vsel %vm4679, %v4175, 1.0
        %v5184 = vsel %vm4680, %v4176, 1.0
        %v5185 = vsel %vm4681, %v4177, 1.0
        %v5186 = vsel %vm4682, %v4178, 1.0
        %v5187 = vsel %vm4683, %v4179, 1.0
        %v5188 = vsel %vm4684, %v4180, 1.0
        %v5189 = vsel %vm4685, %v4181, 1.0
        %v5190 = vsel %vm4686, %v4182, 1.0
        %v5191 = vsel %vm4687, %v4183, 1.0
        %v5192 = vsel %vm4688, %v4184, 1.0
        %v5193 = vsel %vm4689, %v4185, 1.0
        %v5194 = vsel %vm4690, %v4186, 1.0
        %vm5195 = vcmp.gt.f32.partialorder %v155, 5.0
        %vm5196 = vcmp.gt.f32.partialorder %v156, 5.0
        %vm5197 = vcmp.gt.f32.partialorder %v157, 5.0
        %vm5198 = vcmp.gt.f32.partialorder %v158, 5.0
        %vm5199 = vcmp.gt.f32.partialorder %v159, 5.0
        %vm5200 = vcmp.gt.f32.partialorder %v160, 5.0
        %vm5201 = vcmp.gt.f32.partialorder %v161, 5.0
        %vm5202 = vcmp.gt.f32.partialorder %v162, 5.0
        %vm5203 = vcmp.gt.f32.partialorder %v163, 5.0
        %vm5204 = vcmp.gt.f32.partialorder %v164, 5.0
        %vm5205 = vcmp.gt.f32.partialorder %v165, 5.0
        %vm5206 = vcmp.gt.f32.partialorder %v166, 5.0
        %vm5207 = vcmp.gt.f32.partialorder %v167, 5.0
        %vm5208 = vcmp.gt.f32.partialorder %v168, 5.0
        %vm5209 = vcmp.gt.f32.partialorder %v169, 5.0
        %vm5210 = vcmp.gt.f32.partialorder %v170, 5.0
        %vm5211 = vcmp.gt.f32.partialorder %v171, 5.0
        %vm5212 = vcmp.gt.f32.partialorder %v172, 5.0
        %vm5213 = vcmp.gt.f32.partialorder %v173, 5.0
        %vm5214 = vcmp.gt.f32.partialorder %v174, 5.0
        %vm5215 = vcmp.gt.f32.partialorder %v175, 5.0
        %vm5216 = vcmp.gt.f32.partialorder %v176, 5.0
        %vm5217 = vcmp.gt.f32.partialorder %v177, 5.0
        %vm5218 = vcmp.gt.f32.partialorder %v178, 5.0
        %vm5219 = vcmp.gt.f32.partialorder %v179, 5.0
        %vm5220 = vcmp.gt.f32.partialorder %v180, 5.0
        %vm5221 = vcmp.gt.f32.partialorder %v181, 5.0
        %vm5222 = vcmp.gt.f32.partialorder %v182, 5.0
        %vm5223 = vcmp.gt.f32.partialorder %v183, 5.0
        %vm5224 = vcmp.gt.f32.partialorder %v184, 5.0
        %vm5225 = vcmp.gt.f32.partialorder %v185, 5.0
        %vm5226 = vcmp.gt.f32.partialorder %v186, 5.0
        %vm5227 = vcmp.gt.f32.partialorder %v187, 5.0
        %vm5228 = vcmp.gt.f32.partialorder %v188, 5.0
        %vm5229 = vcmp.gt.f32.partialorder %v189, 5.0
        %vm5230 = vcmp.gt.f32.partialorder %v190, 5.0
        %vm5231 = vcmp.gt.f32.partialorder %v191, 5.0
        %vm5232 = vcmp.gt.f32.partialorder %v192, 5.0
        %vm5233 = vcmp.gt.f32.partialorder %v193, 5.0
        %vm5234 = vcmp.gt.f32.partialorder %v194, 5.0
        %vm5235 = vcmp.gt.f32.partialorder %v195, 5.0
        %vm5236 = vcmp.gt.f32.partialorder %v196, 5.0
        %vm5237 = vcmp.gt.f32.partialorder %v197, 5.0
        %vm5238 = vcmp.gt.f32.partialorder %v198, 5.0
        %vm5239 = vcmp.gt.f32.partialorder %v199, 5.0
        %vm5240 = vcmp.gt.f32.partialorder %v200, 5.0
        %vm5241 = vcmp.gt.f32.partialorder %v201, 5.0
        %vm5242 = vcmp.gt.f32.partialorder %v202, 5.0
        %vm5243 = vcmp.gt.f32.partialorder %v203, 5.0
        %vm5244 = vcmp.gt.f32.partialorder %v204, 5.0
        %vm5245 = vcmp.gt.f32.partialorder %v205, 5.0
        %vm5246 = vcmp.gt.f32.partialorder %v206, 5.0
        %vm5247 = vcmp.gt.f32.partialorder %v207, 5.0
        %vm5248 = vcmp.gt.f32.partialorder %v208, 5.0
        %vm5249 = vcmp.gt.f32.partialorder %v209, 5.0
        %vm5250 = vcmp.gt.f32.partialorder %v210, 5.0
        %vm5251 = vcmp.gt.f32.partialorder %v211, 5.0
        %vm5252 = vcmp.gt.f32.partialorder %v212, 5.0
        %vm5253 = vcmp.gt.f32.partialorder %v213, 5.0
        %vm5254 = vcmp.gt.f32.partialorder %v214, 5.0
        %vm5255 = vcmp.gt.f32.partialorder %v215, 5.0
        %vm5256 = vcmp.gt.f32.partialorder %v216, 5.0
        %vm5257 = vcmp.gt.f32.partialorder %v217, 5.0
        %vm5258 = vcmp.gt.f32.partialorder %v218, 5.0
        %vm5259 = vcmp.gt.f32.partialorder %v219, 5.0
        %vm5260 = vcmp.gt.f32.partialorder %v220, 5.0
        %vm5261 = vcmp.gt.f32.partialorder %v221, 5.0
        %vm5262 = vcmp.gt.f32.partialorder %v222, 5.0
        %vm5263 = vcmp.gt.f32.partialorder %v223, 5.0
        %vm5264 = vcmp.gt.f32.partialorder %v224, 5.0
        %vm5265 = vcmp.gt.f32.partialorder %v225, 5.0
        %vm5266 = vcmp.gt.f32.partialorder %v226, 5.0
        %vm5267 = vcmp.gt.f32.partialorder %v227, 5.0
        %vm5268 = vcmp.gt.f32.partialorder %v228, 5.0
        %vm5269 = vcmp.gt.f32.partialorder %v229, 5.0
        %vm5270 = vcmp.gt.f32.partialorder %v230, 5.0
        %vm5271 = vcmp.gt.f32.partialorder %v231, 5.0
        %vm5272 = vcmp.gt.f32.partialorder %v232, 5.0
        %vm5273 = vcmp.gt.f32.partialorder %v233, 5.0
        %vm5274 = vcmp.gt.f32.partialorder %v234, 5.0
        %vm5275 = vcmp.gt.f32.partialorder %v235, 5.0
        %vm5276 = vcmp.gt.f32.partialorder %v236, 5.0
        %vm5277 = vcmp.gt.f32.partialorder %v237, 5.0
        %vm5278 = vcmp.gt.f32.partialorder %v238, 5.0
        %vm5279 = vcmp.gt.f32.partialorder %v239, 5.0
        %vm5280 = vcmp.gt.f32.partialorder %v240, 5.0
        %vm5281 = vcmp.gt.f32.partialorder %v241, 5.0
        %vm5282 = vcmp.gt.f32.partialorder %v242, 5.0
        %vm5283 = vcmp.gt.f32.partialorder %v243, 5.0
        %vm5284 = vcmp.gt.f32.partialorder %v244, 5.0
        %vm5285 = vcmp.gt.f32.partialorder %v245, 5.0
        %vm5286 = vcmp.gt.f32.partialorder %v246, 5.0
        %vm5287 = vcmp.gt.f32.partialorder %v247, 5.0
        %vm5288 = vcmp.gt.f32.partialorder %v248, 5.0
        %vm5289 = vcmp.gt.f32.partialorder %v249, 5.0
        %vm5290 = vcmp.gt.f32.partialorder %v250, 5.0
        %vm5291 = vcmp.gt.f32.partialorder %v251, 5.0
        %vm5292 = vcmp.gt.f32.partialorder %v252, 5.0
        %vm5293 = vcmp.gt.f32.partialorder %v253, 5.0
        %vm5294 = vcmp.gt.f32.partialorder %v254, 5.0
        %vm5295 = vcmp.gt.f32.partialorder %v255, 5.0
        %vm5296 = vcmp.gt.f32.partialorder %v256, 5.0
        %vm5297 = vcmp.gt.f32.partialorder %v257, 5.0
        %vm5298 = vcmp.gt.f32.partialorder %v258, 5.0
        %vm5299 = vcmp.gt.f32.partialorder %v259, 5.0
        %vm5300 = vcmp.gt.f32.partialorder %v260, 5.0
        %vm5301 = vcmp.gt.f32.partialorder %v261, 5.0
        %vm5302 = vcmp.gt.f32.partialorder %v262, 5.0
        %vm5303 = vcmp.gt.f32.partialorder %v263, 5.0
        %vm5304 = vcmp.gt.f32.partialorder %v264, 5.0
        %vm5305 = vcmp.gt.f32.partialorder %v265, 5.0
        %vm5306 = vcmp.gt.f32.partialorder %v266, 5.0
        %vm5307 = vcmp.gt.f32.partialorder %v267, 5.0
        %vm5308 = vcmp.gt.f32.partialorder %v268, 5.0
        %vm5309 = vcmp.gt.f32.partialorder %v269, 5.0
        %vm5310 = vcmp.gt.f32.partialorder %v270, 5.0
        %vm5311 = vcmp.gt.f32.partialorder %v271, 5.0
        %vm5312 = vcmp.gt.f32.partialorder %v272, 5.0
        %vm5313 = vcmp.gt.f32.partialorder %v273, 5.0
        %vm5314 = vcmp.gt.f32.partialorder %v274, 5.0
        %vm5315 = vcmp.gt.f32.partialorder %v275, 5.0
        %vm5316 = vcmp.gt.f32.partialorder %v276, 5.0
        %vm5317 = vcmp.gt.f32.partialorder %v277, 5.0
        %vm5318 = vcmp.gt.f32.partialorder %v278, 5.0
        %vm5319 = vcmp.gt.f32.partialorder %v279, 5.0
        %vm5320 = vcmp.gt.f32.partialorder %v280, 5.0
        %vm5321 = vcmp.gt.f32.partialorder %v281, 5.0
        %vm5322 = vcmp.gt.f32.partialorder %v282, 5.0
        %vm5323 = vcmp.gt.f32.partialorder %v283, 5.0
        %vm5324 = vcmp.gt.f32.partialorder %v284, 5.0
        %vm5325 = vcmp.gt.f32.partialorder %v285, 5.0
        %vm5326 = vcmp.gt.f32.partialorder %v286, 5.0
        %vm5327 = vcmp.gt.f32.partialorder %v287, 5.0
        %vm5328 = vcmp.gt.f32.partialorder %v288, 5.0
        %vm5329 = vcmp.gt.f32.partialorder %v289, 5.0
        %vm5330 = vcmp.gt.f32.partialorder %v290, 5.0
        %vm5331 = vcmp.gt.f32.partialorder %v291, 5.0
        %vm5332 = vcmp.gt.f32.partialorder %v292, 5.0
        %vm5333 = vcmp.gt.f32.partialorder %v293, 5.0
        %vm5334 = vcmp.gt.f32.partialorder %v294, 5.0
        %vm5335 = vcmp.gt.f32.partialorder %v295, 5.0
        %vm5336 = vcmp.gt.f32.partialorder %v296, 5.0
        %vm5337 = vcmp.gt.f32.partialorder %v297, 5.0
        %vm5338 = vcmp.gt.f32.partialorder %v298, 5.0
        %vm5339 = vcmp.gt.f32.partialorder %v299, 5.0
        %vm5340 = vcmp.gt.f32.partialorder %v300, 5.0
        %vm5341 = vcmp.gt.f32.partialorder %v301, 5.0
        %vm5342 = vcmp.gt.f32.partialorder %v302, 5.0
        %vm5343 = vcmp.gt.f32.partialorder %v303, 5.0
        %vm5344 = vcmp.gt.f32.partialorder %v304, 5.0
        %vm5345 = vcmp.gt.f32.partialorder %v305, 5.0
        %vm5346 = vcmp.gt.f32.partialorder %v306, 5.0
        %vm5347 = vcmp.gt.f32.partialorder %v307, 5.0
        %vm5348 = vcmp.gt.f32.partialorder %v308, 5.0
        %vm5349 = vcmp.gt.f32.partialorder %v309, 5.0
        %vm5350 = vcmp.gt.f32.partialorder %v310, 5.0
        %vm5351 = vcmp.gt.f32.partialorder %v311, 5.0
        %vm5352 = vcmp.gt.f32.partialorder %v312, 5.0
        %vm5353 = vcmp.gt.f32.partialorder %v313, 5.0
        %vm5354 = vcmp.gt.f32.partialorder %v314, 5.0
        %vm5355 = vcmp.gt.f32.partialorder %v315, 5.0
        %vm5356 = vcmp.gt.f32.partialorder %v316, 5.0
        %vm5357 = vcmp.gt.f32.partialorder %v317, 5.0
        %vm5358 = vcmp.gt.f32.partialorder %v318, 5.0
        %vm5359 = vcmp.gt.f32.partialorder %v319, 5.0
        %vm5360 = vcmp.gt.f32.partialorder %v320, 5.0
        %vm5361 = vcmp.gt.f32.partialorder %v321, 5.0
        %vm5362 = vcmp.gt.f32.partialorder %v322, 5.0
        %vm5363 = vcmp.gt.f32.partialorder %v323, 5.0
        %vm5364 = vcmp.gt.f32.partialorder %v324, 5.0
        %vm5365 = vcmp.gt.f32.partialorder %v325, 5.0
        %vm5366 = vcmp.gt.f32.partialorder %v326, 5.0
        %vm5367 = vcmp.gt.f32.partialorder %v327, 5.0
        %vm5368 = vcmp.gt.f32.partialorder %v328, 5.0
        %vm5369 = vcmp.gt.f32.partialorder %v329, 5.0
        %vm5370 = vcmp.gt.f32.partialorder %v330, 5.0
        %vm5371 = vcmp.gt.f32.partialorder %v331, 5.0
        %vm5372 = vcmp.gt.f32.partialorder %v332, 5.0
        %vm5373 = vcmp.gt.f32.partialorder %v333, 5.0
        %vm5374 = vcmp.gt.f32.partialorder %v334, 5.0
        %vm5375 = vcmp.gt.f32.partialorder %v335, 5.0
        %vm5376 = vcmp.gt.f32.partialorder %v336, 5.0
        %vm5377 = vcmp.gt.f32.partialorder %v337, 5.0
        %vm5378 = vcmp.gt.f32.partialorder %v338, 5.0
        %vm5379 = vcmp.gt.f32.partialorder %v339, 5.0
        %vm5380 = vcmp.gt.f32.partialorder %v340, 5.0
        %vm5381 = vcmp.gt.f32.partialorder %v341, 5.0
        %vm5382 = vcmp.gt.f32.partialorder %v342, 5.0
        %vm5383 = vcmp.gt.f32.partialorder %v343, 5.0
        %vm5384 = vcmp.gt.f32.partialorder %v344, 5.0
        %vm5385 = vcmp.gt.f32.partialorder %v345, 5.0
        %vm5386 = vcmp.gt.f32.partialorder %v346, 5.0
        %vm5387 = vcmp.gt.f32.partialorder %v347, 5.0
        %vm5388 = vcmp.gt.f32.partialorder %v348, 5.0
        %vm5389 = vcmp.gt.f32.partialorder %v349, 5.0
        %vm5390 = vcmp.gt.f32.partialorder %v350, 5.0
        %vm5391 = vcmp.gt.f32.partialorder %v351, 5.0
        %vm5392 = vcmp.gt.f32.partialorder %v352, 5.0
        %vm5393 = vcmp.gt.f32.partialorder %v353, 5.0
        %vm5394 = vcmp.gt.f32.partialorder %v354, 5.0
        %vm5395 = vcmp.gt.f32.partialorder %v355, 5.0
        %vm5396 = vcmp.gt.f32.partialorder %v356, 5.0
        %vm5397 = vcmp.gt.f32.partialorder %v357, 5.0
        %vm5398 = vcmp.gt.f32.partialorder %v358, 5.0
        %vm5399 = vcmp.gt.f32.partialorder %v359, 5.0
        %vm5400 = vcmp.gt.f32.partialorder %v360, 5.0
        %vm5401 = vcmp.gt.f32.partialorder %v361, 5.0
        %vm5402 = vcmp.gt.f32.partialorder %v362, 5.0
        %vm5403 = vcmp.gt.f32.partialorder %v363, 5.0
        %vm5404 = vcmp.gt.f32.partialorder %v364, 5.0
        %vm5405 = vcmp.gt.f32.partialorder %v365, 5.0
        %vm5406 = vcmp.gt.f32.partialorder %v366, 5.0
        %vm5407 = vcmp.gt.f32.partialorder %v367, 5.0
        %vm5408 = vcmp.gt.f32.partialorder %v368, 5.0
        %vm5409 = vcmp.gt.f32.partialorder %v369, 5.0
        %vm5410 = vcmp.gt.f32.partialorder %v370, 5.0
        %vm5411 = vcmp.gt.f32.partialorder %v371, 5.0
        %vm5412 = vcmp.gt.f32.partialorder %v372, 5.0
        %vm5413 = vcmp.gt.f32.partialorder %v373, 5.0
        %vm5414 = vcmp.gt.f32.partialorder %v374, 5.0
        %vm5415 = vcmp.gt.f32.partialorder %v375, 5.0
        %vm5416 = vcmp.gt.f32.partialorder %v376, 5.0
        %vm5417 = vcmp.gt.f32.partialorder %v377, 5.0
        %vm5418 = vcmp.gt.f32.partialorder %v378, 5.0
        %vm5419 = vcmp.gt.f32.partialorder %v379, 5.0
        %vm5420 = vcmp.gt.f32.partialorder %v380, 5.0
        %vm5421 = vcmp.gt.f32.partialorder %v381, 5.0
        %vm5422 = vcmp.gt.f32.partialorder %v382, 5.0
        %vm5423 = vcmp.gt.f32.partialorder %v383, 5.0
        %vm5424 = vcmp.gt.f32.partialorder %v384, 5.0
        %vm5425 = vcmp.gt.f32.partialorder %v385, 5.0
        %vm5426 = vcmp.gt.f32.partialorder %v386, 5.0
        %vm5427 = vcmp.gt.f32.partialorder %v387, 5.0
        %vm5428 = vcmp.gt.f32.partialorder %v388, 5.0
        %vm5429 = vcmp.gt.f32.partialorder %v389, 5.0
        %vm5430 = vcmp.gt.f32.partialorder %v390, 5.0
        %vm5431 = vcmp.gt.f32.partialorder %v391, 5.0
        %vm5432 = vcmp.gt.f32.partialorder %v392, 5.0
        %vm5433 = vcmp.gt.f32.partialorder %v393, 5.0
        %vm5434 = vcmp.gt.f32.partialorder %v394, 5.0
        %vm5435 = vcmp.gt.f32.partialorder %v395, 5.0
        %vm5436 = vcmp.gt.f32.partialorder %v396, 5.0
        %vm5437 = vcmp.gt.f32.partialorder %v397, 5.0
        %vm5438 = vcmp.gt.f32.partialorder %v398, 5.0
        %vm5439 = vcmp.gt.f32.partialorder %v399, 5.0
        %vm5440 = vcmp.gt.f32.partialorder %v400, 5.0
        %vm5441 = vcmp.gt.f32.partialorder %v401, 5.0
        %vm5442 = vcmp.gt.f32.partialorder %v402, 5.0
        %vm5443 = vcmp.gt.f32.partialorder %v403, 5.0
        %vm5444 = vcmp.gt.f32.partialorder %v404, 5.0
        %vm5445 = vcmp.gt.f32.partialorder %v405, 5.0
        %vm5446 = vcmp.gt.f32.partialorder %v406, 5.0
        %vm5447 = vcmp.gt.f32.partialorder %v407, 5.0
        %vm5448 = vcmp.gt.f32.partialorder %v408, 5.0
        %vm5449 = vcmp.gt.f32.partialorder %v409, 5.0
        %vm5450 = vcmp.gt.f32.partialorder %v410, 5.0
        %vm5451 = vcmp.gt.f32.partialorder %v411, 5.0
        %vm5452 = vcmp.gt.f32.partialorder %v412, 5.0
        %vm5453 = vcmp.gt.f32.partialorder %v413, 5.0
        %vm5454 = vcmp.gt.f32.partialorder %v414, 5.0
        %vm5455 = vcmp.gt.f32.partialorder %v415, 5.0
        %vm5456 = vcmp.gt.f32.partialorder %v416, 5.0
        %vm5457 = vcmp.gt.f32.partialorder %v417, 5.0
        %vm5458 = vcmp.gt.f32.partialorder %v418, 5.0
        %vm5459 = vcmp.gt.f32.partialorder %v419, 5.0
        %vm5460 = vcmp.gt.f32.partialorder %v420, 5.0
        %vm5461 = vcmp.gt.f32.partialorder %v421, 5.0
        %vm5462 = vcmp.gt.f32.partialorder %v422, 5.0
        %vm5463 = vcmp.gt.f32.partialorder %v423, 5.0
        %vm5464 = vcmp.gt.f32.partialorder %v424, 5.0
        %vm5465 = vcmp.gt.f32.partialorder %v425, 5.0
        %vm5466 = vcmp.gt.f32.partialorder %v426, 5.0
        %vm5467 = vcmp.gt.f32.partialorder %v427, 5.0
        %vm5468 = vcmp.gt.f32.partialorder %v428, 5.0
        %vm5469 = vcmp.gt.f32.partialorder %v429, 5.0
        %vm5470 = vcmp.gt.f32.partialorder %v430, 5.0
        %vm5471 = vcmp.gt.f32.partialorder %v431, 5.0
        %vm5472 = vcmp.gt.f32.partialorder %v432, 5.0
        %vm5473 = vcmp.gt.f32.partialorder %v433, 5.0
        %vm5474 = vcmp.gt.f32.partialorder %v434, 5.0
        %vm5475 = vcmp.gt.f32.partialorder %v435, 5.0
        %vm5476 = vcmp.gt.f32.partialorder %v436, 5.0
        %vm5477 = vcmp.gt.f32.partialorder %v437, 5.0
        %vm5478 = vcmp.gt.f32.partialorder %v438, 5.0
        %vm5479 = vcmp.gt.f32.partialorder %v439, 5.0
        %vm5480 = vcmp.gt.f32.partialorder %v440, 5.0
        %vm5481 = vcmp.gt.f32.partialorder %v441, 5.0
        %vm5482 = vcmp.gt.f32.partialorder %v442, 5.0
        %vm5483 = vcmp.gt.f32.partialorder %v443, 5.0
        %vm5484 = vcmp.gt.f32.partialorder %v444, 5.0
        %vm5485 = vcmp.gt.f32.partialorder %v445, 5.0
        %vm5486 = vcmp.gt.f32.partialorder %v446, 5.0
        %vm5487 = vcmp.gt.f32.partialorder %v447, 5.0
        %vm5488 = vcmp.gt.f32.partialorder %v448, 5.0
        %vm5489 = vcmp.gt.f32.partialorder %v449, 5.0
        %vm5490 = vcmp.gt.f32.partialorder %v450, 5.0
        %vm5491 = vcmp.gt.f32.partialorder %v451, 5.0
        %vm5492 = vcmp.gt.f32.partialorder %v452, 5.0
        %vm5493 = vcmp.gt.f32.partialorder %v453, 5.0
        %vm5494 = vcmp.gt.f32.partialorder %v454, 5.0
        %vm5495 = vcmp.gt.f32.partialorder %v455, 5.0
        %vm5496 = vcmp.gt.f32.partialorder %v456, 5.0
        %vm5497 = vcmp.gt.f32.partialorder %v457, 5.0
        %vm5498 = vcmp.gt.f32.partialorder %v458, 5.0
        %vm5499 = vcmp.gt.f32.partialorder %v459, 5.0
        %vm5500 = vcmp.gt.f32.partialorder %v460, 5.0
        %vm5501 = vcmp.gt.f32.partialorder %v461, 5.0
        %vm5502 = vcmp.gt.f32.partialorder %v462, 5.0
        %vm5503 = vcmp.gt.f32.partialorder %v463, 5.0
        %vm5504 = vcmp.gt.f32.partialorder %v464, 5.0
        %vm5505 = vcmp.gt.f32.partialorder %v465, 5.0
        %vm5506 = vcmp.gt.f32.partialorder %v466, 5.0
        %vm5507 = vcmp.gt.f32.partialorder %v467, 5.0
        %vm5508 = vcmp.gt.f32.partialorder %v468, 5.0
        %vm5509 = vcmp.gt.f32.partialorder %v469, 5.0
        %vm5510 = vcmp.gt.f32.partialorder %v470, 5.0
        %vm5511 = vcmp.gt.f32.partialorder %v471, 5.0
        %vm5512 = vcmp.gt.f32.partialorder %v472, 5.0
        %vm5513 = vcmp.gt.f32.partialorder %v473, 5.0
        %vm5514 = vcmp.gt.f32.partialorder %v474, 5.0
        %vm5515 = vcmp.gt.f32.partialorder %v475, 5.0
        %vm5516 = vcmp.gt.f32.partialorder %v476, 5.0
        %vm5517 = vcmp.gt.f32.partialorder %v477, 5.0
        %vm5518 = vcmp.gt.f32.partialorder %v478, 5.0
        %vm5519 = vcmp.gt.f32.partialorder %v479, 5.0
        %vm5520 = vcmp.gt.f32.partialorder %v480, 5.0
        %vm5521 = vcmp.gt.f32.partialorder %v481, 5.0
        %vm5522 = vcmp.gt.f32.partialorder %v482, 5.0
        %vm5523 = vcmp.gt.f32.partialorder %v483, 5.0
        %vm5524 = vcmp.gt.f32.partialorder %v484, 5.0
        %vm5525 = vcmp.gt.f32.partialorder %v485, 5.0
        %vm5526 = vcmp.gt.f32.partialorder %v486, 5.0
        %vm5527 = vcmp.gt.f32.partialorder %v487, 5.0
        %vm5528 = vcmp.gt.f32.partialorder %v488, 5.0
        %vm5529 = vcmp.gt.f32.partialorder %v489, 5.0
        %vm5530 = vcmp.gt.f32.partialorder %v490, 5.0
        %vm5531 = vcmp.gt.f32.partialorder %v491, 5.0
        %vm5532 = vcmp.gt.f32.partialorder %v492, 5.0
        %vm5533 = vcmp.gt.f32.partialorder %v493, 5.0
        %vm5534 = vcmp.gt.f32.partialorder %v494, 5.0
        %vm5535 = vcmp.gt.f32.partialorder %v495, 5.0
        %vm5536 = vcmp.gt.f32.partialorder %v496, 5.0
        %vm5537 = vcmp.gt.f32.partialorder %v497, 5.0
        %vm5538 = vcmp.gt.f32.partialorder %v498, 5.0
        %vm5539 = vcmp.gt.f32.partialorder %v499, 5.0
        %vm5540 = vcmp.gt.f32.partialorder %v500, 5.0
        %vm5541 = vcmp.gt.f32.partialorder %v501, 5.0
        %vm5542 = vcmp.gt.f32.partialorder %v502, 5.0
        %vm5543 = vcmp.gt.f32.partialorder %v503, 5.0
        %vm5544 = vcmp.gt.f32.partialorder %v504, 5.0
        %vm5545 = vcmp.gt.f32.partialorder %v505, 5.0
        %vm5546 = vcmp.gt.f32.partialorder %v506, 5.0
        %vm5547 = vcmp.gt.f32.partialorder %v507, 5.0
        %vm5548 = vcmp.gt.f32.partialorder %v508, 5.0
        %vm5549 = vcmp.gt.f32.partialorder %v509, 5.0
        %vm5550 = vcmp.gt.f32.partialorder %v510, 5.0
        %vm5551 = vcmp.gt.f32.partialorder %v511, 5.0
        %vm5552 = vcmp.gt.f32.partialorder %v512, 5.0
        %vm5553 = vcmp.gt.f32.partialorder %v513, 5.0
        %vm5554 = vcmp.gt.f32.partialorder %v514, 5.0
        %vm5555 = vcmp.gt.f32.partialorder %v515, 5.0
        %vm5556 = vcmp.gt.f32.partialorder %v516, 5.0
        %vm5557 = vcmp.gt.f32.partialorder %v517, 5.0
        %vm5558 = vcmp.gt.f32.partialorder %v518, 5.0
        %vm5559 = vcmp.gt.f32.partialorder %v519, 5.0
        %vm5560 = vcmp.gt.f32.partialorder %v520, 5.0
        %vm5561 = vcmp.gt.f32.partialorder %v521, 5.0
        %vm5562 = vcmp.gt.f32.partialorder %v522, 5.0
        %vm5563 = vcmp.gt.f32.partialorder %v523, 5.0
        %vm5564 = vcmp.gt.f32.partialorder %v524, 5.0
        %vm5565 = vcmp.gt.f32.partialorder %v525, 5.0
        %vm5566 = vcmp.gt.f32.partialorder %v526, 5.0
        %vm5567 = vcmp.gt.f32.partialorder %v527, 5.0
        %vm5568 = vcmp.gt.f32.partialorder %v528, 5.0
        %vm5569 = vcmp.gt.f32.partialorder %v529, 5.0
        %vm5570 = vcmp.gt.f32.partialorder %v530, 5.0
        %vm5571 = vcmp.gt.f32.partialorder %v531, 5.0
        %vm5572 = vcmp.gt.f32.partialorder %v532, 5.0
        %vm5573 = vcmp.gt.f32.partialorder %v533, 5.0
        %vm5574 = vcmp.gt.f32.partialorder %v534, 5.0
        %vm5575 = vcmp.gt.f32.partialorder %v535, 5.0
        %vm5576 = vcmp.gt.f32.partialorder %v536, 5.0
        %vm5577 = vcmp.gt.f32.partialorder %v537, 5.0
        %vm5578 = vcmp.gt.f32.partialorder %v538, 5.0
        %vm5579 = vcmp.gt.f32.partialorder %v539, 5.0
        %vm5580 = vcmp.gt.f32.partialorder %v540, 5.0
        %vm5581 = vcmp.gt.f32.partialorder %v541, 5.0
        %vm5582 = vcmp.gt.f32.partialorder %v542, 5.0
        %vm5583 = vcmp.gt.f32.partialorder %v543, 5.0
        %vm5584 = vcmp.gt.f32.partialorder %v544, 5.0
        %vm5585 = vcmp.gt.f32.partialorder %v545, 5.0
        %vm5586 = vcmp.gt.f32.partialorder %v546, 5.0
        %vm5587 = vcmp.gt.f32.partialorder %v547, 5.0
        %vm5588 = vcmp.gt.f32.partialorder %v548, 5.0
        %vm5589 = vcmp.gt.f32.partialorder %v549, 5.0
        %vm5590 = vcmp.gt.f32.partialorder %v550, 5.0
        %vm5591 = vcmp.gt.f32.partialorder %v551, 5.0
        %vm5592 = vcmp.gt.f32.partialorder %v552, 5.0
        %vm5593 = vcmp.gt.f32.partialorder %v553, 5.0
        %vm5594 = vcmp.gt.f32.partialorder %v554, 5.0
        %vm5595 = vcmp.gt.f32.partialorder %v555, 5.0
        %vm5596 = vcmp.gt.f32.partialorder %v556, 5.0
        %vm5597 = vcmp.gt.f32.partialorder %v557, 5.0
        %vm5598 = vcmp.gt.f32.partialorder %v558, 5.0
        %vm5599 = vcmp.gt.f32.partialorder %v559, 5.0
        %vm5600 = vcmp.gt.f32.partialorder %v560, 5.0
        %vm5601 = vcmp.gt.f32.partialorder %v561, 5.0
        %vm5602 = vcmp.gt.f32.partialorder %v562, 5.0
        %vm5603 = vcmp.gt.f32.partialorder %v563, 5.0
        %vm5604 = vcmp.gt.f32.partialorder %v564, 5.0
        %vm5605 = vcmp.gt.f32.partialorder %v565, 5.0
        %vm5606 = vcmp.gt.f32.partialorder %v566, 5.0
        %vm5607 = vcmp.gt.f32.partialorder %v567, 5.0
        %vm5608 = vcmp.gt.f32.partialorder %v568, 5.0
        %vm5609 = vcmp.gt.f32.partialorder %v569, 5.0
        %vm5610 = vcmp.gt.f32.partialorder %v570, 5.0
        %vm5611 = vcmp.gt.f32.partialorder %v571, 5.0
        %vm5612 = vcmp.gt.f32.partialorder %v572, 5.0
        %vm5613 = vcmp.gt.f32.partialorder %v573, 5.0
        %vm5614 = vcmp.gt.f32.partialorder %v574, 5.0
        %vm5615 = vcmp.gt.f32.partialorder %v575, 5.0
        %vm5616 = vcmp.gt.f32.partialorder %v576, 5.0
        %vm5617 = vcmp.gt.f32.partialorder %v577, 5.0
        %vm5618 = vcmp.gt.f32.partialorder %v578, 5.0
        %vm5619 = vcmp.gt.f32.partialorder %v579, 5.0
        %vm5620 = vcmp.gt.f32.partialorder %v580, 5.0
        %vm5621 = vcmp.gt.f32.partialorder %v581, 5.0
        %vm5622 = vcmp.gt.f32.partialorder %v582, 5.0
        %vm5623 = vcmp.gt.f32.partialorder %v583, 5.0
        %vm5624 = vcmp.gt.f32.partialorder %v584, 5.0
        %vm5625 = vcmp.gt.f32.partialorder %v585, 5.0
        %vm5626 = vcmp.gt.f32.partialorder %v586, 5.0
        %vm5627 = vcmp.gt.f32.partialorder %v587, 5.0
        %vm5628 = vcmp.gt.f32.partialorder %v588, 5.0
        %vm5629 = vcmp.gt.f32.partialorder %v589, 5.0
        %vm5630 = vcmp.gt.f32.partialorder %v590, 5.0
        %vm5631 = vcmp.gt.f32.partialorder %v591, 5.0
        %vm5632 = vcmp.gt.f32.partialorder %v592, 5.0
        %vm5633 = vcmp.gt.f32.partialorder %v593, 5.0
        %vm5634 = vcmp.gt.f32.partialorder %v594, 5.0
        %vm5635 = vcmp.gt.f32.partialorder %v595, 5.0
        %vm5636 = vcmp.gt.f32.partialorder %v596, 5.0
        %vm5637 = vcmp.gt.f32.partialorder %v597, 5.0
        %vm5638 = vcmp.gt.f32.partialorder %v598, 5.0
        %vm5639 = vcmp.gt.f32.partialorder %v599, 5.0
        %vm5640 = vcmp.gt.f32.partialorder %v600, 5.0
        %vm5641 = vcmp.gt.f32.partialorder %v601, 5.0
        %vm5642 = vcmp.gt.f32.partialorder %v602, 5.0
        %vm5643 = vcmp.gt.f32.partialorder %v603, 5.0
        %vm5644 = vcmp.gt.f32.partialorder %v604, 5.0
        %vm5645 = vcmp.gt.f32.partialorder %v605, 5.0
        %vm5646 = vcmp.gt.f32.partialorder %v606, 5.0
        %vm5647 = vcmp.gt.f32.partialorder %v607, 5.0
        %vm5648 = vcmp.gt.f32.partialorder %v608, 5.0
        %vm5649 = vcmp.gt.f32.partialorder %v609, 5.0
        %vm5650 = vcmp.gt.f32.partialorder %v610, 5.0
        %vm5651 = vcmp.gt.f32.partialorder %v611, 5.0
        %vm5652 = vcmp.gt.f32.partialorder %v612, 5.0
        %vm5653 = vcmp.gt.f32.partialorder %v613, 5.0
        %vm5654 = vcmp.gt.f32.partialorder %v614, 5.0
        %vm5655 = vcmp.gt.f32.partialorder %v615, 5.0
        %vm5656 = vcmp.gt.f32.partialorder %v616, 5.0
        %vm5657 = vcmp.gt.f32.partialorder %v617, 5.0
        %vm5658 = vcmp.gt.f32.partialorder %v618, 5.0
        %vm5659 = vcmp.gt.f32.partialorder %v619, 5.0
        %vm5660 = vcmp.gt.f32.partialorder %v620, 5.0
        %vm5661 = vcmp.gt.f32.partialorder %v621, 5.0
        %vm5662 = vcmp.gt.f32.partialorder %v622, 5.0
        %vm5663 = vcmp.gt.f32.partialorder %v623, 5.0
        %vm5664 = vcmp.gt.f32.partialorder %v624, 5.0
        %vm5665 = vcmp.gt.f32.partialorder %v625, 5.0
        %vm5666 = vcmp.gt.f32.partialorder %v626, 5.0
        %vm5667 = vcmp.gt.f32.partialorder %v627, 5.0
        %vm5668 = vcmp.gt.f32.partialorder %v628, 5.0
        %vm5669 = vcmp.gt.f32.partialorder %v629, 5.0
        %vm5670 = vcmp.gt.f32.partialorder %v630, 5.0
        %vm5671 = vcmp.gt.f32.partialorder %v631, 5.0
        %vm5672 = vcmp.gt.f32.partialorder %v632, 5.0
        %vm5673 = vcmp.gt.f32.partialorder %v633, 5.0
        %vm5674 = vcmp.gt.f32.partialorder %v634, 5.0
        %vm5675 = vcmp.gt.f32.partialorder %v635, 5.0
        %vm5676 = vcmp.gt.f32.partialorder %v636, 5.0
        %vm5677 = vcmp.gt.f32.partialorder %v637, 5.0
        %vm5678 = vcmp.gt.f32.partialorder %v638, 5.0
        %vm5679 = vcmp.gt.f32.partialorder %v639, 5.0
        %vm5680 = vcmp.gt.f32.partialorder %v640, 5.0
        %vm5681 = vcmp.gt.f32.partialorder %v641, 5.0
        %vm5682 = vcmp.gt.f32.partialorder %v642, 5.0
        %vm5683 = vcmp.gt.f32.partialorder %v643, 5.0
        %vm5684 = vcmp.gt.f32.partialorder %v644, 5.0
        %vm5685 = vcmp.gt.f32.partialorder %v645, 5.0
        %vm5686 = vcmp.gt.f32.partialorder %v646, 5.0
        %vm5687 = vcmp.gt.f32.partialorder %v647, 5.0
        %vm5688 = vcmp.gt.f32.partialorder %v648, 5.0
        %vm5689 = vcmp.gt.f32.partialorder %v649, 5.0
        %vm5690 = vcmp.gt.f32.partialorder %v650, 5.0
        %vm5691 = vcmp.gt.f32.partialorder %v651, 5.0
        %vm5692 = vcmp.gt.f32.partialorder %v652, 5.0
        %vm5693 = vcmp.gt.f32.partialorder %v653, 5.0
        %vm5694 = vcmp.gt.f32.partialorder %v654, 5.0
        %vm5695 = vcmp.gt.f32.partialorder %v655, 5.0
        %vm5696 = vcmp.gt.f32.partialorder %v656, 5.0
        %vm5697 = vcmp.gt.f32.partialorder %v657, 5.0
        %vm5698 = vcmp.gt.f32.partialorder %v658, 5.0
        %v5699 = vsel %vm5195, 0.0, %v4691
        %v5700 = vsel %vm5196, 0.0, %v4692
        %v5701 = vsel %vm5197, 0.0, %v4693
        %v5702 = vsel %vm5198, 0.0, %v4694
        %v5703 = vsel %vm5199, 0.0, %v4695
        %v5704 = vsel %vm5200, 0.0, %v4696
        %v5705 = vsel %vm5201, 0.0, %v4697
        %v5706 = vsel %vm5202, 0.0, %v4698
        %v5707 = vsel %vm5203, 0.0, %v4699
        %v5708 = vsel %vm5204, 0.0, %v4700
        %v5709 = vsel %vm5205, 0.0, %v4701
        %v5710 = vsel %vm5206, 0.0, %v4702
        %v5711 = vsel %vm5207, 0.0, %v4703
        %v5712 = vsel %vm5208, 0.0, %v4704
        %v5713 = vsel %vm5209, 0.0, %v4705
        %v5714 = vsel %vm5210, 0.0, %v4706
        %v5715 = vsel %vm5211, 0.0, %v4707
        %v5716 = vsel %vm5212, 0.0, %v4708
        %v5717 = vsel %vm5213, 0.0, %v4709
        %v5718 = vsel %vm5214, 0.0, %v4710
        %v5719 = vsel %vm5215, 0.0, %v4711
        %v5720 = vsel %vm5216, 0.0, %v4712
        %v5721 = vsel %vm5217, 0.0, %v4713
        %v5722 = vsel %vm5218, 0.0, %v4714
        %v5723 = vsel %vm5219, 0.0, %v4715
        %v5724 = vsel %vm5220, 0.0, %v4716
        %v5725 = vsel %vm5221, 0.0, %v4717
        %v5726 = vsel %vm5222, 0.0, %v4718
        %v5727 = vsel %vm5223, 0.0, %v4719
        %v5728 = vsel %vm5224, 0.0, %v4720
        %v5729 = vsel %vm5225, 0.0, %v4721
        %v5730 = vsel %vm5226, 0.0, %v4722
        %v5731 = vsel %vm5227, 0.0, %v4723
        %v5732 = vsel %vm5228, 0.0, %v4724
        %v5733 = vsel %vm5229, 0.0, %v4725
        %v5734 = vsel %vm5230, 0.0, %v4726
        %v5735 = vsel %vm5231, 0.0, %v4727
        %v5736 = vsel %vm5232, 0.0, %v4728
        %v5737 = vsel %vm5233, 0.0, %v4729
        %v5738 = vsel %vm5234, 0.0, %v4730
        %v5739 = vsel %vm5235, 0.0, %v4731
        %v5740 = vsel %vm5236, 0.0, %v4732
        %v5741 = vsel %vm5237, 0.0, %v4733
        %v5742 = vsel %vm5238, 0.0, %v4734
        %v5743 = vsel %vm5239, 0.0, %v4735
        %v5744 = vsel %vm5240, 0.0, %v4736
        %v5745 = vsel %vm5241, 0.0, %v4737
        %v5746 = vsel %vm5242, 0.0, %v4738
        %v5747 = vsel %vm5243, 0.0, %v4739
        %v5748 = vsel %vm5244, 0.0, %v4740
        %v5749 = vsel %vm5245, 0.0, %v4741
        %v5750 = vsel %vm5246, 0.0, %v4742
        %v5751 = vsel %vm5247, 0.0, %v4743
        %v5752 = vsel %vm5248, 0.0, %v4744
        %v5753 = vsel %vm5249, 0.0, %v4745
        %v5754 = vsel %vm5250, 0.0, %v4746
        %v5755 = vsel %vm5251, 0.0, %v4747
        %v5756 = vsel %vm5252, 0.0, %v4748
        %v5757 = vsel %vm5253, 0.0, %v4749
        %v5758 = vsel %vm5254, 0.0, %v4750
        %v5759 = vsel %vm5255, 0.0, %v4751
        %v5760 = vsel %vm5256, 0.0, %v4752
        %v5761 = vsel %vm5257, 0.0, %v4753
        %v5762 = vsel %vm5258, 0.0, %v4754
        %v5763 = vsel %vm5259, 0.0, %v4755
        %v5764 = vsel %vm5260, 0.0, %v4756
        %v5765 = vsel %vm5261, 0.0, %v4757
        %v5766 = vsel %vm5262, 0.0, %v4758
        %v5767 = vsel %vm5263, 0.0, %v4759
        %v5768 = vsel %vm5264, 0.0, %v4760
        %v5769 = vsel %vm5265, 0.0, %v4761
        %v5770 = vsel %vm5266, 0.0, %v4762
        %v5771 = vsel %vm5267, 0.0, %v4763
        %v5772 = vsel %vm5268, 0.0, %v4764
        %v5773 = vsel %vm5269, 0.0, %v4765
        %v5774 = vsel %vm5270, 0.0, %v4766
        %v5775 = vsel %vm5271, 0.0, %v4767
        %v5776 = vsel %vm5272, 0.0, %v4768
        %v5777 = vsel %vm5273, 0.0, %v4769
        %v5778 = vsel %vm5274, 0.0, %v4770
        %v5779 = vsel %vm5275, 0.0, %v4771
        %v5780 = vsel %vm5276, 0.0, %v4772
        %v5781 = vsel %vm5277, 0.0, %v4773
        %v5782 = vsel %vm5278, 0.0, %v4774
        %v5783 = vsel %vm5279, 0.0, %v4775
        %v5784 = vsel %vm5280, 0.0, %v4776
        %v5785 = vsel %vm5281, 0.0, %v4777
        %v5786 = vsel %vm5282, 0.0, %v4778
        %v5787 = vsel %vm5283, 0.0, %v4779
        %v5788 = vsel %vm5284, 0.0, %v4780
        %v5789 = vsel %vm5285, 0.0, %v4781
        %v5790 = vsel %vm5286, 0.0, %v4782
        %v5791 = vsel %vm5287, 0.0, %v4783
        %v5792 = vsel %vm5288, 0.0, %v4784
        %v5793 = vsel %vm5289, 0.0, %v4785
        %v5794 = vsel %vm5290, 0.0, %v4786
        %v5795 = vsel %vm5291, 0.0, %v4787
        %v5796 = vsel %vm5292, 0.0, %v4788
        %v5797 = vsel %vm5293, 0.0, %v4789
        %v5798 = vsel %vm5294, 0.0, %v4790
        %v5799 = vsel %vm5295, 0.0, %v4791
        %v5800 = vsel %vm5296, 0.0, %v4792
        %v5801 = vsel %vm5297, 0.0, %v4793
        %v5802 = vsel %vm5298, 0.0, %v4794
        %v5803 = vsel %vm5299, 0.0, %v4795
        %v5804 = vsel %vm5300, 0.0, %v4796
        %v5805 = vsel %vm5301, 0.0, %v4797
        %v5806 = vsel %vm5302, 0.0, %v4798
        %v5807 = vsel %vm5303, 0.0, %v4799
        %v5808 = vsel %vm5304, 0.0, %v4800
        %v5809 = vsel %vm5305, 0.0, %v4801
        %v5810 = vsel %vm5306, 0.0, %v4802
        %v5811 = vsel %vm5307, 0.0, %v4803
        %v5812 = vsel %vm5308, 0.0, %v4804
        %v5813 = vsel %vm5309, 0.0, %v4805
        %v5814 = vsel %vm5310, 0.0, %v4806
        %v5815 = vsel %vm5311, 0.0, %v4807
        %v5816 = vsel %vm5312, 0.0, %v4808
        %v5817 = vsel %vm5313, 0.0, %v4809
        %v5818 = vsel %vm5314, 0.0, %v4810
        %v5819 = vsel %vm5315, 0.0, %v4811
        %v5820 = vsel %vm5316, 0.0, %v4812
        %v5821 = vsel %vm5317, 0.0, %v4813
        %v5822 = vsel %vm5318, 0.0, %v4814
        %v5823 = vsel %vm5319, 0.0, %v4815
        %v5824 = vsel %vm5320, 0.0, %v4816
        %v5825 = vsel %vm5321, 0.0, %v4817
        %v5826 = vsel %vm5322, 0.0, %v4818
        %v5827 = vsel %vm5323, 0.0, %v4819
        %v5828 = vsel %vm5324, 0.0, %v4820
        %v5829 = vsel %vm5325, 0.0, %v4821
        %v5830 = vsel %vm5326, 0.0, %v4822
        %v5831 = vsel %vm5327, 0.0, %v4823
        %v5832 = vsel %vm5328, 0.0, %v4824
        %v5833 = vsel %vm5329, 0.0, %v4825
        %v5834 = vsel %vm5330, 0.0, %v4826
        %v5835 = vsel %vm5331, 0.0, %v4827
        %v5836 = vsel %vm5332, 0.0, %v4828
        %v5837 = vsel %vm5333, 0.0, %v4829
        %v5838 = vsel %vm5334, 0.0, %v4830
        %v5839 = vsel %vm5335, 0.0, %v4831
        %v5840 = vsel %vm5336, 0.0, %v4832
        %v5841 = vsel %vm5337, 0.0, %v4833
        %v5842 = vsel %vm5338, 0.0, %v4834
        %v5843 = vsel %vm5339, 0.0, %v4835
        %v5844 = vsel %vm5340, 0.0, %v4836
        %v5845 = vsel %vm5341, 0.0, %v4837
        %v5846 = vsel %vm5342, 0.0, %v4838
        %v5847 = vsel %vm5343, 0.0, %v4839
        %v5848 = vsel %vm5344, 0.0, %v4840
        %v5849 = vsel %vm5345, 0.0, %v4841
        %v5850 = vsel %vm5346, 0.0, %v4842
        %v5851 = vsel %vm5347, 0.0, %v4843
        %v5852 = vsel %vm5348, 0.0, %v4844
        %v5853 = vsel %vm5349, 0.0, %v4845
        %v5854 = vsel %vm5350, 0.0, %v4846
        %v5855 = vsel %vm5351, 0.0, %v4847
        %v5856 = vsel %vm5352, 0.0, %v4848
        %v5857 = vsel %vm5353, 0.0, %v4849
        %v5858 = vsel %vm5354, 0.0, %v4850
        %v5859 = vsel %vm5355, 0.0, %v4851
        %v5860 = vsel %vm5356, 0.0, %v4852
        %v5861 = vsel %vm5357, 0.0, %v4853
        %v5862 = vsel %vm5358, 0.0, %v4854
        %v5863 = vsel %vm5359, 0.0, %v4855
        %v5864 = vsel %vm5360, 0.0, %v4856
        %v5865 = vsel %vm5361, 0.0, %v4857
        %v5866 = vsel %vm5362, 0.0, %v4858
        %v5867 = vsel %vm5363, 0.0, %v4859
        %v5868 = vsel %vm5364, 0.0, %v4860
        %v5869 = vsel %vm5365, 0.0, %v4861
        %v5870 = vsel %vm5366, 0.0, %v4862
        %v5871 = vsel %vm5367, 0.0, %v4863
        %v5872 = vsel %vm5368, 0.0, %v4864
        %v5873 = vsel %vm5369, 0.0, %v4865
        %v5874 = vsel %vm5370, 0.0, %v4866
        %v5875 = vsel %vm5371, 0.0, %v4867
        %v5876 = vsel %vm5372, 0.0, %v4868
        %v5877 = vsel %vm5373, 0.0, %v4869
        %v5878 = vsel %vm5374, 0.0, %v4870
        %v5879 = vsel %vm5375, 0.0, %v4871
        %v5880 = vsel %vm5376, 0.0, %v4872
        %v5881 = vsel %vm5377, 0.0, %v4873
        %v5882 = vsel %vm5378, 0.0, %v4874
        %v5883 = vsel %vm5379, 0.0, %v4875
        %v5884 = vsel %vm5380, 0.0, %v4876
        %v5885 = vsel %vm5381, 0.0, %v4877
        %v5886 = vsel %vm5382, 0.0, %v4878
        %v5887 = vsel %vm5383, 0.0, %v4879
        %v5888 = vsel %vm5384, 0.0, %v4880
        %v5889 = vsel %vm5385, 0.0, %v4881
        %v5890 = vsel %vm5386, 0.0, %v4882
        %v5891 = vsel %vm5387, 0.0, %v4883
        %v5892 = vsel %vm5388, 0.0, %v4884
        %v5893 = vsel %vm5389, 0.0, %v4885
        %v5894 = vsel %vm5390, 0.0, %v4886
        %v5895 = vsel %vm5391, 0.0, %v4887
        %v5896 = vsel %vm5392, 0.0, %v4888
        %v5897 = vsel %vm5393, 0.0, %v4889
        %v5898 = vsel %vm5394, 0.0, %v4890
        %v5899 = vsel %vm5395, 0.0, %v4891
        %v5900 = vsel %vm5396, 0.0, %v4892
        %v5901 = vsel %vm5397, 0.0, %v4893
        %v5902 = vsel %vm5398, 0.0, %v4894
        %v5903 = vsel %vm5399, 0.0, %v4895
        %v5904 = vsel %vm5400, 0.0, %v4896
        %v5905 = vsel %vm5401, 0.0, %v4897
        %v5906 = vsel %vm5402, 0.0, %v4898
        %v5907 = vsel %vm5403, 0.0, %v4899
        %v5908 = vsel %vm5404, 0.0, %v4900
        %v5909 = vsel %vm5405, 0.0, %v4901
        %v5910 = vsel %vm5406, 0.0, %v4902
        %v5911 = vsel %vm5407, 0.0, %v4903
        %v5912 = vsel %vm5408, 0.0, %v4904
        %v5913 = vsel %vm5409, 0.0, %v4905
        %v5914 = vsel %vm5410, 0.0, %v4906
        %v5915 = vsel %vm5411, 0.0, %v4907
        %v5916 = vsel %vm5412, 0.0, %v4908
        %v5917 = vsel %vm5413, 0.0, %v4909
        %v5918 = vsel %vm5414, 0.0, %v4910
        %v5919 = vsel %vm5415, 0.0, %v4911
        %v5920 = vsel %vm5416, 0.0, %v4912
        %v5921 = vsel %vm5417, 0.0, %v4913
        %v5922 = vsel %vm5418, 0.0, %v4914
        %v5923 = vsel %vm5419, 0.0, %v4915
        %v5924 = vsel %vm5420, 0.0, %v4916
        %v5925 = vsel %vm5421, 0.0, %v4917
        %v5926 = vsel %vm5422, 0.0, %v4918
        %v5927 = vsel %vm5423, 0.0, %v4919
        %v5928 = vsel %vm5424, 0.0, %v4920
        %v5929 = vsel %vm5425, 0.0, %v4921
        %v5930 = vsel %vm5426, 0.0, %v4922
        %v5931 = vsel %vm5427, 0.0, %v4923
        %v5932 = vsel %vm5428, 0.0, %v4924
        %v5933 = vsel %vm5429, 0.0, %v4925
        %v5934 = vsel %vm5430, 0.0, %v4926
        %v5935 = vsel %vm5431, 0.0, %v4927
        %v5936 = vsel %vm5432, 0.0, %v4928
        %v5937 = vsel %vm5433, 0.0, %v4929
        %v5938 = vsel %vm5434, 0.0, %v4930
        %v5939 = vsel %vm5435, 0.0, %v4931
        %v5940 = vsel %vm5436, 0.0, %v4932
        %v5941 = vsel %vm5437, 0.0, %v4933
        %v5942 = vsel %vm5438, 0.0, %v4934
        %v5943 = vsel %vm5439, 0.0, %v4935
        %v5944 = vsel %vm5440, 0.0, %v4936
        %v5945 = vsel %vm5441, 0.0, %v4937
        %v5946 = vsel %vm5442, 0.0, %v4938
        %v5947 = vsel %vm5443, 0.0, %v4939
        %v5948 = vsel %vm5444, 0.0, %v4940
        %v5949 = vsel %vm5445, 0.0, %v4941
        %v5950 = vsel %vm5446, 0.0, %v4942
        %v5951 = vsel %vm5447, 0.0, %v4943
        %v5952 = vsel %vm5448, 0.0, %v4944
        %v5953 = vsel %vm5449, 0.0, %v4945
        %v5954 = vsel %vm5450, 0.0, %v4946
        %v5955 = vsel %vm5451, 0.0, %v4947
        %v5956 = vsel %vm5452, 0.0, %v4948
        %v5957 = vsel %vm5453, 0.0, %v4949
        %v5958 = vsel %vm5454, 0.0, %v4950
        %v5959 = vsel %vm5455, 0.0, %v4951
        %v5960 = vsel %vm5456, 0.0, %v4952
        %v5961 = vsel %vm5457, 0.0, %v4953
        %v5962 = vsel %vm5458, 0.0, %v4954
        %v5963 = vsel %vm5459, 0.0, %v4955
        %v5964 = vsel %vm5460, 0.0, %v4956
        %v5965 = vsel %vm5461, 0.0, %v4957
        %v5966 = vsel %vm5462, 0.0, %v4958
        %v5967 = vsel %vm5463, 0.0, %v4959
        %v5968 = vsel %vm5464, 0.0, %v4960
        %v5969 = vsel %vm5465, 0.0, %v4961
        %v5970 = vsel %vm5466, 0.0, %v4962
        %v5971 = vsel %vm5467, 0.0, %v4963
        %v5972 = vsel %vm5468, 0.0, %v4964
        %v5973 = vsel %vm5469, 0.0, %v4965
        %v5974 = vsel %vm5470, 0.0, %v4966
        %v5975 = vsel %vm5471, 0.0, %v4967
        %v5976 = vsel %vm5472, 0.0, %v4968
        %v5977 = vsel %vm5473, 0.0, %v4969
        %v5978 = vsel %vm5474, 0.0, %v4970
        %v5979 = vsel %vm5475, 0.0, %v4971
        %v5980 = vsel %vm5476, 0.0, %v4972
        %v5981 = vsel %vm5477, 0.0, %v4973
        %v5982 = vsel %vm5478, 0.0, %v4974
        %v5983 = vsel %vm5479, 0.0, %v4975
        %v5984 = vsel %vm5480, 0.0, %v4976
        %v5985 = vsel %vm5481, 0.0, %v4977
        %v5986 = vsel %vm5482, 0.0, %v4978
        %v5987 = vsel %vm5483, 0.0, %v4979
        %v5988 = vsel %vm5484, 0.0, %v4980
        %v5989 = vsel %vm5485, 0.0, %v4981
        %v5990 = vsel %vm5486, 0.0, %v4982
        %v5991 = vsel %vm5487, 0.0, %v4983
        %v5992 = vsel %vm5488, 0.0, %v4984
        %v5993 = vsel %vm5489, 0.0, %v4985
        %v5994 = vsel %vm5490, 0.0, %v4986
        %v5995 = vsel %vm5491, 0.0, %v4987
        %v5996 = vsel %vm5492, 0.0, %v4988
        %v5997 = vsel %vm5493, 0.0, %v4989
        %v5998 = vsel %vm5494, 0.0, %v4990
        %v5999 = vsel %vm5495, 0.0, %v4991
        %v6000 = vsel %vm5496, 0.0, %v4992
        %v6001 = vsel %vm5497, 0.0, %v4993
        %v6002 = vsel %vm5498, 0.0, %v4994
        %v6003 = vsel %vm5499, 0.0, %v4995
        %v6004 = vsel %vm5500, 0.0, %v4996
        %v6005 = vsel %vm5501, 0.0, %v4997
        %v6006 = vsel %vm5502, 0.0, %v4998
        %v6007 = vsel %vm5503, 0.0, %v4999
        %v6008 = vsel %vm5504, 0.0, %v5000
        %v6009 = vsel %vm5505, 0.0, %v5001
        %v6010 = vsel %vm5506, 0.0, %v5002
        %v6011 = vsel %vm5507, 0.0, %v5003
        %v6012 = vsel %vm5508, 0.0, %v5004
        %v6013 = vsel %vm5509, 0.0, %v5005
        %v6014 = vsel %vm5510, 0.0, %v5006
        %v6015 = vsel %vm5511, 0.0, %v5007
        %v6016 = vsel %vm5512, 0.0, %v5008
        %v6017 = vsel %vm5513, 0.0, %v5009
        %v6018 = vsel %vm5514, 0.0, %v5010
        %v6019 = vsel %vm5515, 0.0, %v5011
        %v6020 = vsel %vm5516, 0.0, %v5012
        %v6021 = vsel %vm5517, 0.0, %v5013
        %v6022 = vsel %vm5518, 0.0, %v5014
        %v6023 = vsel %vm5519, 0.0, %v5015
        %v6024 = vsel %vm5520, 0.0, %v5016
        %v6025 = vsel %vm5521, 0.0, %v5017
        %v6026 = vsel %vm5522, 0.0, %v5018
        %v6027 = vsel %vm5523, 0.0, %v5019
        %v6028 = vsel %vm5524, 0.0, %v5020
        %v6029 = vsel %vm5525, 0.0, %v5021
        %v6030 = vsel %vm5526, 0.0, %v5022
        %v6031 = vsel %vm5527, 0.0, %v5023
        %v6032 = vsel %vm5528, 0.0, %v5024
        %v6033 = vsel %vm5529, 0.0, %v5025
        %v6034 = vsel %vm5530, 0.0, %v5026
        %v6035 = vsel %vm5531, 0.0, %v5027
        %v6036 = vsel %vm5532, 0.0, %v5028
        %v6037 = vsel %vm5533, 0.0, %v5029
        %v6038 = vsel %vm5534, 0.0, %v5030
        %v6039 = vsel %vm5535, 0.0, %v5031
        %v6040 = vsel %vm5536, 0.0, %v5032
        %v6041 = vsel %vm5537, 0.0, %v5033
        %v6042 = vsel %vm5538, 0.0, %v5034
        %v6043 = vsel %vm5539, 0.0, %v5035
        %v6044 = vsel %vm5540, 0.0, %v5036
        %v6045 = vsel %vm5541, 0.0, %v5037
        %v6046 = vsel %vm5542, 0.0, %v5038
        %v6047 = vsel %vm5543, 0.0, %v5039
        %v6048 = vsel %vm5544, 0.0, %v5040
        %v6049 = vsel %vm5545, 0.0, %v5041
        %v6050 = vsel %vm5546, 0.0, %v5042
        %v6051 = vsel %vm5547, 0.0, %v5043
        %v6052 = vsel %vm5548, 0.0, %v5044
        %v6053 = vsel %vm5549, 0.0, %v5045
        %v6054 = vsel %vm5550, 0.0, %v5046
        %v6055 = vsel %vm5551, 0.0, %v5047
        %v6056 = vsel %vm5552, 0.0, %v5048
        %v6057 = vsel %vm5553, 0.0, %v5049
        %v6058 = vsel %vm5554, 0.0, %v5050
        %v6059 = vsel %vm5555, 0.0, %v5051
        %v6060 = vsel %vm5556, 0.0, %v5052
        %v6061 = vsel %vm5557, 0.0, %v5053
        %v6062 = vsel %vm5558, 0.0, %v5054
        %v6063 = vsel %vm5559, 0.0, %v5055
        %v6064 = vsel %vm5560, 0.0, %v5056
        %v6065 = vsel %vm5561, 0.0, %v5057
        %v6066 = vsel %vm5562, 0.0, %v5058
        %v6067 = vsel %vm5563, 0.0, %v5059
        %v6068 = vsel %vm5564, 0.0, %v5060
        %v6069 = vsel %vm5565, 0.0, %v5061
        %v6070 = vsel %vm5566, 0.0, %v5062
        %v6071 = vsel %vm5567, 0.0, %v5063
        %v6072 = vsel %vm5568, 0.0, %v5064
        %v6073 = vsel %vm5569, 0.0, %v5065
        %v6074 = vsel %vm5570, 0.0, %v5066
        %v6075 = vsel %vm5571, 0.0, %v5067
        %v6076 = vsel %vm5572, 0.0, %v5068
        %v6077 = vsel %vm5573, 0.0, %v5069
        %v6078 = vsel %vm5574, 0.0, %v5070
        %v6079 = vsel %vm5575, 0.0, %v5071
        %v6080 = vsel %vm5576, 0.0, %v5072
        %v6081 = vsel %vm5577, 0.0, %v5073
        %v6082 = vsel %vm5578, 0.0, %v5074
        %v6083 = vsel %vm5579, 0.0, %v5075
        %v6084 = vsel %vm5580, 0.0, %v5076
        %v6085 = vsel %vm5581, 0.0, %v5077
        %v6086 = vsel %vm5582, 0.0, %v5078
        %v6087 = vsel %vm5583, 0.0, %v5079
        %v6088 = vsel %vm5584, 0.0, %v5080
        %v6089 = vsel %vm5585, 0.0, %v5081
        %v6090 = vsel %vm5586, 0.0, %v5082
        %v6091 = vsel %vm5587, 0.0, %v5083
        %v6092 = vsel %vm5588, 0.0, %v5084
        %v6093 = vsel %vm5589, 0.0, %v5085
        %v6094 = vsel %vm5590, 0.0, %v5086
        %v6095 = vsel %vm5591, 0.0, %v5087
        %v6096 = vsel %vm5592, 0.0, %v5088
        %v6097 = vsel %vm5593, 0.0, %v5089
        %v6098 = vsel %vm5594, 0.0, %v5090
        %v6099 = vsel %vm5595, 0.0, %v5091
        %v6100 = vsel %vm5596, 0.0, %v5092
        %v6101 = vsel %vm5597, 0.0, %v5093
        %v6102 = vsel %vm5598, 0.0, %v5094
        %v6103 = vsel %vm5599, 0.0, %v5095
        %v6104 = vsel %vm5600, 0.0, %v5096
        %v6105 = vsel %vm5601, 0.0, %v5097
        %v6106 = vsel %vm5602, 0.0, %v5098
        %v6107 = vsel %vm5603, 0.0, %v5099
        %v6108 = vsel %vm5604, 0.0, %v5100
        %v6109 = vsel %vm5605, 0.0, %v5101
        %v6110 = vsel %vm5606, 0.0, %v5102
        %v6111 = vsel %vm5607, 0.0, %v5103
        %v6112 = vsel %vm5608, 0.0, %v5104
        %v6113 = vsel %vm5609, 0.0, %v5105
        %v6114 = vsel %vm5610, 0.0, %v5106
        %v6115 = vsel %vm5611, 0.0, %v5107
        %v6116 = vsel %vm5612, 0.0, %v5108
        %v6117 = vsel %vm5613, 0.0, %v5109
        %v6118 = vsel %vm5614, 0.0, %v5110
        %v6119 = vsel %vm5615, 0.0, %v5111
        %v6120 = vsel %vm5616, 0.0, %v5112
        %v6121 = vsel %vm5617, 0.0, %v5113
        %v6122 = vsel %vm5618, 0.0, %v5114
        %v6123 = vsel %vm5619, 0.0, %v5115
        %v6124 = vsel %vm5620, 0.0, %v5116
        %v6125 = vsel %vm5621, 0.0, %v5117
        %v6126 = vsel %vm5622, 0.0, %v5118
        %v6127 = vsel %vm5623, 0.0, %v5119
        %v6128 = vsel %vm5624, 0.0, %v5120
        %v6129 = vsel %vm5625, 0.0, %v5121
        %v6130 = vsel %vm5626, 0.0, %v5122
        %v6131 = vsel %vm5627, 0.0, %v5123
        %v6132 = vsel %vm5628, 0.0, %v5124
        %v6133 = vsel %vm5629, 0.0, %v5125
        %v6134 = vsel %vm5630, 0.0, %v5126
        %v6135 = vsel %vm5631, 0.0, %v5127
        %v6136 = vsel %vm5632, 0.0, %v5128
        %v6137 = vsel %vm5633, 0.0, %v5129
        %v6138 = vsel %vm5634, 0.0, %v5130
        %v6139 = vsel %vm5635, 0.0, %v5131
        %v6140 = vsel %vm5636, 0.0, %v5132
        %v6141 = vsel %vm5637, 0.0, %v5133
        %v6142 = vsel %vm5638, 0.0, %v5134
        %v6143 = vsel %vm5639, 0.0, %v5135
        %v6144 = vsel %vm5640, 0.0, %v5136
        %v6145 = vsel %vm5641, 0.0, %v5137
        %v6146 = vsel %vm5642, 0.0, %v5138
        %v6147 = vsel %vm5643, 0.0, %v5139
        %v6148 = vsel %vm5644, 0.0, %v5140
        %v6149 = vsel %vm5645, 0.0, %v5141
        %v6150 = vsel %vm5646, 0.0, %v5142
        %v6151 = vsel %vm5647, 0.0, %v5143
        %v6152 = vsel %vm5648, 0.0, %v5144
        %v6153 = vsel %vm5649, 0.0, %v5145
        %v6154 = vsel %vm5650, 0.0, %v5146
        %v6155 = vsel %vm5651, 0.0, %v5147
        %v6156 = vsel %vm5652, 0.0, %v5148
        %v6157 = vsel %vm5653, 0.0, %v5149
        %v6158 = vsel %vm5654, 0.0, %v5150
        %v6159 = vsel %vm5655, 0.0, %v5151
        %v6160 = vsel %vm5656, 0.0, %v5152
        %v6161 = vsel %vm5657, 0.0, %v5153
        %v6162 = vsel %vm5658, 0.0, %v5154
        %v6163 = vsel %vm5659, 0.0, %v5155
        %v6164 = vsel %vm5660, 0.0, %v5156
        %v6165 = vsel %vm5661, 0.0, %v5157
        %v6166 = vsel %vm5662, 0.0, %v5158
        %v6167 = vsel %vm5663, 0.0, %v5159
        %v6168 = vsel %vm5664, 0.0, %v5160
        %v6169 = vsel %vm5665, 0.0, %v5161
        %v6170 = vsel %vm5666, 0.0, %v5162
        %v6171 = vsel %vm5667, 0.0, %v5163
        %v6172 = vsel %vm5668, 0.0, %v5164
        %v6173 = vsel %vm5669, 0.0, %v5165
        %v6174 = vsel %vm5670, 0.0, %v5166
        %v6175 = vsel %vm5671, 0.0, %v5167
        %v6176 = vsel %vm5672, 0.0, %v5168
        %v6177 = vsel %vm5673, 0.0, %v5169
        %v6178 = vsel %vm5674, 0.0, %v5170
        %v6179 = vsel %vm5675, 0.0, %v5171
        %v6180 = vsel %vm5676, 0.0, %v5172
        %v6181 = vsel %vm5677, 0.0, %v5173
        %v6182 = vsel %vm5678, 0.0, %v5174
        %v6183 = vsel %vm5679, 0.0, %v5175
        %v6184 = vsel %vm5680, 0.0, %v5176
        %v6185 = vsel %vm5681, 0.0, %v5177
        %v6186 = vsel %vm5682, 0.0, %v5178
        %v6187 = vsel %vm5683, 0.0, %v5179
        %v6188 = vsel %vm5684, 0.0, %v5180
        %v6189 = vsel %vm5685, 0.0, %v5181
        %v6190 = vsel %vm5686, 0.0, %v5182
        %v6191 = vsel %vm5687, 0.0, %v5183
        %v6192 = vsel %vm5688, 0.0, %v5184
        %v6193 = vsel %vm5689, 0.0, %v5185
        %v6194 = vsel %vm5690, 0.0, %v5186
        %v6195 = vsel %vm5691, 0.0, %v5187
        %v6196 = vsel %vm5692, 0.0, %v5188
        %v6197 = vsel %vm5693, 0.0, %v5189
        %v6198 = vsel %vm5694, 0.0, %v5190
        %v6199 = vsel %vm5695, 0.0, %v5191
        %v6200 = vsel %vm5696, 0.0, %v5192
        %v6201 = vsel %vm5697, 0.0, %v5193
        %v6202 = vsel %vm5698, 0.0, %v5194
        %6203 = vst [vmem:[%s142] sm:$0xff] %v5699
        %6204 = vst [vmem:[%s142 + $0x8] sm:$0xff] %v5700
        %6205 = vst [vmem:[%s142 + $0x10] sm:$0xff] %v5701
        %6206 = vst [vmem:[%s142 + $0x18] sm:$0xff] %v5702
        %6207 = vst [vmem:[%s142 + $0x20] sm:$0xff] %v5703
        %6208 = vst [vmem:[%s142 + $0x28] sm:$0xff] %v5704
        %6209 = vst [vmem:[%s142 + $0x30] sm:$0xff] %v5705
        %6210 = vst [vmem:[%s142 + $0x38] sm:$0xff] %v5706
        %6211 = vst [vmem:[%s142 + $0x40] sm:$0xff] %v5707
        %6212 = vst [vmem:[%s142 + $0x48] sm:$0xff] %v5708
        %6213 = vst [vmem:[%s142 + $0x50] sm:$0xff] %v5709
        %6214 = vst [vmem:[%s142 + $0x58] sm:$0xff] %v5710
        %6215 = vst [vmem:[%s142 + $0x60] sm:$0xff] %v5711
        %6216 = vst [vmem:[%s142 + $0x68] sm:$0xff] %v5712
        %6217 = vst [vmem:[%s142 + $0x70] sm:$0xff] %v5713
        %6218 = vst [vmem:[%s142 + $0x78] sm:$0xff] %v5714
        %6219 = vst [vmem:[%s142 + $0x80] sm:$0xff] %v5715
        %6220 = vst [vmem:[%s142 + $0x88] sm:$0xff] %v5716
        %6221 = vst [vmem:[%s142 + $0x90] sm:$0xff] %v5717
        %6222 = vst [vmem:[%s142 + $0x98] sm:$0xff] %v5718
        %6223 = vst [vmem:[%s142 + $0xa0] sm:$0xff] %v5719
        %6224 = vst [vmem:[%s142 + $0xa8] sm:$0xff] %v5720
        %6225 = vst [vmem:[%s142 + $0xb0] sm:$0xff] %v5721
        %6226 = vst [vmem:[%s142 + $0xb8] sm:$0xff] %v5722
        %6227 = vst [vmem:[%s142 + $0xc0] sm:$0xff] %v5723
        %6228 = vst [vmem:[%s142 + $0xc8] sm:$0xff] %v5724
        %6229 = vst [vmem:[%s142 + $0xd0] sm:$0xff] %v5725
        %6230 = vst [vmem:[%s142 + $0xd8] sm:$0xff] %v5726
        %6231 = vst [vmem:[%s142 + $0xe0] sm:$0xff] %v5727
        %6232 = vst [vmem:[%s142 + $0xe8] sm:$0xff] %v5728
        %6233 = vst [vmem:[%s142 + $0xf0] sm:$0xff] %v5729
        %6234 = vst [vmem:[%s142 + $0xf8] sm:$0xff] %v5730
        %6235 = vst [vmem:[%s142 + $0x100] sm:$0xff] %v5731
        %6236 = vst [vmem:[%s142 + $0x108] sm:$0xff] %v5732
        %6237 = vst [vmem:[%s142 + $0x110] sm:$0xff] %v5733
        %6238 = vst [vmem:[%s142 + $0x118] sm:$0xff] %v5734
        %6239 = vst [vmem:[%s142 + $0x120] sm:$0xff] %v5735
        %6240 = vst [vmem:[%s142 + $0x128] sm:$0xff] %v5736
        %6241 = vst [vmem:[%s142 + $0x130] sm:$0xff] %v5737
        %6242 = vst [vmem:[%s142 + $0x138] sm:$0xff] %v5738
        %6243 = vst [vmem:[%s142 + $0x140] sm:$0xff] %v5739
        %6244 = vst [vmem:[%s142 + $0x148] sm:$0xff] %v5740
        %6245 = vst [vmem:[%s142 + $0x150] sm:$0xff] %v5741
        %6246 = vst [vmem:[%s142 + $0x158] sm:$0xff] %v5742
        %6247 = vst [vmem:[%s142 + $0x160] sm:$0xff] %v5743
        %6248 = vst [vmem:[%s142 + $0x168] sm:$0xff] %v5744
        %6249 = vst [vmem:[%s142 + $0x170] sm:$0xff] %v5745
        %6250 = vst [vmem:[%s142 + $0x178] sm:$0xff] %v5746
        %6251 = vst [vmem:[%s142 + $0x180] sm:$0xff] %v5747
        %6252 = vst [vmem:[%s142 + $0x188] sm:$0xff] %v5748
        %6253 = vst [vmem:[%s142 + $0x190] sm:$0xff] %v5749
        %6254 = vst [vmem:[%s142 + $0x198] sm:$0xff] %v5750
        %6255 = vst [vmem:[%s142 + $0x1a0] sm:$0xff] %v5751
        %6256 = vst [vmem:[%s142 + $0x1a8] sm:$0xff] %v5752
        %6257 = vst [vmem:[%s142 + $0x1b0] sm:$0xff] %v5753
        %6258 = vst [vmem:[%s142 + $0x1b8] sm:$0xff] %v5754
        %6259 = vst [vmem:[%s142 + $0x1c0] sm:$0xff] %v5755
        %6260 = vst [vmem:[%s142 + $0x1c8] sm:$0xff] %v5756
        %6261 = vst [vmem:[%s142 + $0x1d0] sm:$0xff] %v5757
        %6262 = vst [vmem:[%s142 + $0x1d8] sm:$0xff] %v5758
        %6263 = vst [vmem:[%s142 + $0x1e0] sm:$0xff] %v5759
        %6264 = vst [vmem:[%s142 + $0x1e8] sm:$0xff] %v5760
        %6265 = vst [vmem:[%s142 + $0x1f0] sm:$0xff] %v5761
        %6266 = vst [vmem:[%s142 + $0x1f8] sm:$0xff] %v5762
        %6267 = vst [vmem:[%s142 + $0x200] sm:$0xff] %v5763
        %6268 = vst [vmem:[%s142 + $0x208] sm:$0xff] %v5764
        %6269 = vst [vmem:[%s142 + $0x210] sm:$0xff] %v5765
        %6270 = vst [vmem:[%s142 + $0x218] sm:$0xff] %v5766
        %6271 = vst [vmem:[%s142 + $0x220] sm:$0xff] %v5767
        %6272 = vst [vmem:[%s142 + $0x228] sm:$0xff] %v5768
        %6273 = vst [vmem:[%s142 + $0x230] sm:$0xff] %v5769
        %6274 = vst [vmem:[%s142 + $0x238] sm:$0xff] %v5770
        %6275 = vst [vmem:[%s142 + $0x240] sm:$0xff] %v5771
        %6276 = vst [vmem:[%s142 + $0x248] sm:$0xff] %v5772
        %6277 = vst [vmem:[%s142 + $0x250] sm:$0xff] %v5773
        %6278 = vst [vmem:[%s142 + $0x258] sm:$0xff] %v5774
        %6279 = vst [vmem:[%s142 + $0x260] sm:$0xff] %v5775
        %6280 = vst [vmem:[%s142 + $0x268] sm:$0xff] %v5776
        %6281 = vst [vmem:[%s142 + $0x270] sm:$0xff] %v5777
        %6282 = vst [vmem:[%s142 + $0x278] sm:$0xff] %v5778
        %6283 = vst [vmem:[%s142 + $0x280] sm:$0xff] %v5779
        %6284 = vst [vmem:[%s142 + $0x288] sm:$0xff] %v5780
        %6285 = vst [vmem:[%s142 + $0x290] sm:$0xff] %v5781
        %6286 = vst [vmem:[%s142 + $0x298] sm:$0xff] %v5782
        %6287 = vst [vmem:[%s142 + $0x2a0] sm:$0xff] %v5783
        %6288 = vst [vmem:[%s142 + $0x2a8] sm:$0xff] %v5784
        %6289 = vst [vmem:[%s142 + $0x2b0] sm:$0xff] %v5785
        %6290 = vst [vmem:[%s142 + $0x2b8] sm:$0xff] %v5786
        %6291 = vst [vmem:[%s142 + $0x2c0] sm:$0xff] %v5787
        %6292 = vst [vmem:[%s142 + $0x2c8] sm:$0xff] %v5788
        %6293 = vst [vmem:[%s142 + $0x2d0] sm:$0xff] %v5789
        %6294 = vst [vmem:[%s142 + $0x2d8] sm:$0xff] %v5790
        %6295 = vst [vmem:[%s142 + $0x2e0] sm:$0xff] %v5791
        %6296 = vst [vmem:[%s142 + $0x2e8] sm:$0xff] %v5792
        %6297 = vst [vmem:[%s142 + $0x2f0] sm:$0xff] %v5793
        %6298 = vst [vmem:[%s142 + $0x2f8] sm:$0xff] %v5794
        %6299 = vst [vmem:[%s142 + $0x300] sm:$0xff] %v5795
        %6300 = vst [vmem:[%s142 + $0x308] sm:$0xff] %v5796
        %6301 = vst [vmem:[%s142 + $0x310] sm:$0xff] %v5797
        %6302 = vst [vmem:[%s142 + $0x318] sm:$0xff] %v5798
        %6303 = vst [vmem:[%s142 + $0x320] sm:$0xff] %v5799
        %6304 = vst [vmem:[%s142 + $0x328] sm:$0xff] %v5800
        %6305 = vst [vmem:[%s142 + $0x330] sm:$0xff] %v5801
        %6306 = vst [vmem:[%s142 + $0x338] sm:$0xff] %v5802
        %6307 = vst [vmem:[%s142 + $0x340] sm:$0xff] %v5803
        %6308 = vst [vmem:[%s142 + $0x348] sm:$0xff] %v5804
        %6309 = vst [vmem:[%s142 + $0x350] sm:$0xff] %v5805
        %6310 = vst [vmem:[%s142 + $0x358] sm:$0xff] %v5806
        %6311 = vst [vmem:[%s142 + $0x360] sm:$0xff] %v5807
        %6312 = vst [vmem:[%s142 + $0x368] sm:$0xff] %v5808
        %6313 = vst [vmem:[%s142 + $0x370] sm:$0xff] %v5809
        %6314 = vst [vmem:[%s142 + $0x378] sm:$0xff] %v5810
        %6315 = vst [vmem:[%s142 + $0x380] sm:$0xff] %v5811
        %6316 = vst [vmem:[%s142 + $0x388] sm:$0xff] %v5812
        %6317 = vst [vmem:[%s142 + $0x390] sm:$0xff] %v5813
        %6318 = vst [vmem:[%s142 + $0x398] sm:$0xff] %v5814
        %6319 = vst [vmem:[%s142 + $0x3a0] sm:$0xff] %v5815
        %6320 = vst [vmem:[%s142 + $0x3a8] sm:$0xff] %v5816
        %6321 = vst [vmem:[%s142 + $0x3b0] sm:$0xff] %v5817
        %6322 = vst [vmem:[%s142 + $0x3b8] sm:$0xff] %v5818
        %6323 = vst [vmem:[%s142 + $0x3c0] sm:$0xff] %v5819
        %6324 = vst [vmem:[%s142 + $0x3c8] sm:$0xff] %v5820
        %6325 = vst [vmem:[%s142 + $0x3d0] sm:$0xff] %v5821
        %6326 = vst [vmem:[%s142 + $0x3d8] sm:$0xff] %v5822
        %6327 = vst [vmem:[%s142 + $0x3e0] sm:$0xff] %v5823
        %6328 = vst [vmem:[%s142 + $0x3e8] sm:$0xff] %v5824
        %6329 = vst [vmem:[%s142 + $0x3f0] sm:$0xff] %v5825
        %6330 = vst [vmem:[%s142 + $0x3f8] sm:$0xff] %v5826
        %6331 = vst [vmem:[%s142 + $0x400] sm:$0xff] %v5827
        %6332 = vst [vmem:[%s142 + $0x408] sm:$0xff] %v5828
        %6333 = vst [vmem:[%s142 + $0x410] sm:$0xff] %v5829
        %6334 = vst [vmem:[%s142 + $0x418] sm:$0xff] %v5830
        %6335 = vst [vmem:[%s142 + $0x420] sm:$0xff] %v5831
        %6336 = vst [vmem:[%s142 + $0x428] sm:$0xff] %v5832
        %6337 = vst [vmem:[%s142 + $0x430] sm:$0xff] %v5833
        %6338 = vst [vmem:[%s142 + $0x438] sm:$0xff] %v5834
        %6339 = vst [vmem:[%s142 + $0x440] sm:$0xff] %v5835
        %6340 = vst [vmem:[%s142 + $0x448] sm:$0xff] %v5836
        %6341 = vst [vmem:[%s142 + $0x450] sm:$0xff] %v5837
        %6342 = vst [vmem:[%s142 + $0x458] sm:$0xff] %v5838
        %6343 = vst [vmem:[%s142 + $0x460] sm:$0xff] %v5839
        %6344 = vst [vmem:[%s142 + $0x468] sm:$0xff] %v5840
        %6345 = vst [vmem:[%s142 + $0x470] sm:$0xff] %v5841
        %6346 = vst [vmem:[%s142 + $0x478] sm:$0xff] %v5842
        %6347 = vst [vmem:[%s142 + $0x480] sm:$0xff] %v5843
        %6348 = vst [vmem:[%s142 + $0x488] sm:$0xff] %v5844
        %6349 = vst [vmem:[%s142 + $0x490] sm:$0xff] %v5845
        %6350 = vst [vmem:[%s142 + $0x498] sm:$0xff] %v5846
        %6351 = vst [vmem:[%s142 + $0x4a0] sm:$0xff] %v5847
        %6352 = vst [vmem:[%s142 + $0x4a8] sm:$0xff] %v5848
        %6353 = vst [vmem:[%s142 + $0x4b0] sm:$0xff] %v5849
        %6354 = vst [vmem:[%s142 + $0x4b8] sm:$0xff] %v5850
        %6355 = vst [vmem:[%s142 + $0x4c0] sm:$0xff] %v5851
        %6356 = vst [vmem:[%s142 + $0x4c8] sm:$0xff] %v5852
        %6357 = vst [vmem:[%s142 + $0x4d0] sm:$0xff] %v5853
        %6358 = vst [vmem:[%s142 + $0x4d8] sm:$0xff] %v5854
        %6359 = vst [vmem:[%s142 + $0x4e0] sm:$0xff] %v5855
        %6360 = vst [vmem:[%s142 + $0x4e8] sm:$0xff] %v5856
        %6361 = vst [vmem:[%s142 + $0x4f0] sm:$0xff] %v5857
        %6362 = vst [vmem:[%s142 + $0x4f8] sm:$0xff] %v5858
        %6363 = vst [vmem:[%s142 + $0x500] sm:$0xff] %v5859
        %6364 = vst [vmem:[%s142 + $0x508] sm:$0xff] %v5860
        %6365 = vst [vmem:[%s142 + $0x510] sm:$0xff] %v5861
        %6366 = vst [vmem:[%s142 + $0x518] sm:$0xff] %v5862
        %6367 = vst [vmem:[%s142 + $0x520] sm:$0xff] %v5863
        %6368 = vst [vmem:[%s142 + $0x528] sm:$0xff] %v5864
        %6369 = vst [vmem:[%s142 + $0x530] sm:$0xff] %v5865
        %6370 = vst [vmem:[%s142 + $0x538] sm:$0xff] %v5866
        %6371 = vst [vmem:[%s142 + $0x540] sm:$0xff] %v5867
        %6372 = vst [vmem:[%s142 + $0x548] sm:$0xff] %v5868
        %6373 = vst [vmem:[%s142 + $0x550] sm:$0xff] %v5869
        %6374 = vst [vmem:[%s142 + $0x558] sm:$0xff] %v5870
        %6375 = vst [vmem:[%s142 + $0x560] sm:$0xff] %v5871
        %6376 = vst [vmem:[%s142 + $0x568] sm:$0xff] %v5872
        %6377 = vst [vmem:[%s142 + $0x570] sm:$0xff] %v5873
        %6378 = vst [vmem:[%s142 + $0x578] sm:$0xff] %v5874
        %6379 = vst [vmem:[%s142 + $0x580] sm:$0xff] %v5875
        %6380 = vst [vmem:[%s142 + $0x588] sm:$0xff] %v5876
        %6381 = vst [vmem:[%s142 + $0x590] sm:$0xff] %v5877
        %6382 = vst [vmem:[%s142 + $0x598] sm:$0xff] %v5878
        %6383 = vst [vmem:[%s142 + $0x5a0] sm:$0xff] %v5879
        %6384 = vst [vmem:[%s142 + $0x5a8] sm:$0xff] %v5880
        %6385 = vst [vmem:[%s142 + $0x5b0] sm:$0xff] %v5881
        %6386 = vst [vmem:[%s142 + $0x5b8] sm:$0xff] %v5882
        %6387 = vst [vmem:[%s142 + $0x5c0] sm:$0xff] %v5883
        %6388 = vst [vmem:[%s142 + $0x5c8] sm:$0xff] %v5884
        %6389 = vst [vmem:[%s142 + $0x5d0] sm:$0xff] %v5885
        %6390 = vst [vmem:[%s142 + $0x5d8] sm:$0xff] %v5886
        %6391 = vst [vmem:[%s142 + $0x5e0] sm:$0xff] %v5887
        %6392 = vst [vmem:[%s142 + $0x5e8] sm:$0xff] %v5888
        %6393 = vst [vmem:[%s142 + $0x5f0] sm:$0xff] %v5889
        %6394 = vst [vmem:[%s142 + $0x5f8] sm:$0xff] %v5890
        %6395 = vst [vmem:[%s142 + $0x600] sm:$0xff] %v5891
        %6396 = vst [vmem:[%s142 + $0x608] sm:$0xff] %v5892
        %6397 = vst [vmem:[%s142 + $0x610] sm:$0xff] %v5893
        %6398 = vst [vmem:[%s142 + $0x618] sm:$0xff] %v5894
        %6399 = vst [vmem:[%s142 + $0x620] sm:$0xff] %v5895
        %6400 = vst [vmem:[%s142 + $0x628] sm:$0xff] %v5896
        %6401 = vst [vmem:[%s142 + $0x630] sm:$0xff] %v5897
        %6402 = vst [vmem:[%s142 + $0x638] sm:$0xff] %v5898
        %6403 = vst [vmem:[%s142 + $0x640] sm:$0xff] %v5899
        %6404 = vst [vmem:[%s142 + $0x648] sm:$0xff] %v5900
        %6405 = vst [vmem:[%s142 + $0x650] sm:$0xff] %v5901
        %6406 = vst [vmem:[%s142 + $0x658] sm:$0xff] %v5902
        %6407 = vst [vmem:[%s142 + $0x660] sm:$0xff] %v5903
        %6408 = vst [vmem:[%s142 + $0x668] sm:$0xff] %v5904
        %6409 = vst [vmem:[%s142 + $0x670] sm:$0xff] %v5905
        %6410 = vst [vmem:[%s142 + $0x678] sm:$0xff] %v5906
        %6411 = vst [vmem:[%s142 + $0x680] sm:$0xff] %v5907
        %6412 = vst [vmem:[%s142 + $0x688] sm:$0xff] %v5908
        %6413 = vst [vmem:[%s142 + $0x690] sm:$0xff] %v5909
        %6414 = vst [vmem:[%s142 + $0x698] sm:$0xff] %v5910
        %6415 = vst [vmem:[%s142 + $0x6a0] sm:$0xff] %v5911
        %6416 = vst [vmem:[%s142 + $0x6a8] sm:$0xff] %v5912
        %6417 = vst [vmem:[%s142 + $0x6b0] sm:$0xff] %v5913
        %6418 = vst [vmem:[%s142 + $0x6b8] sm:$0xff] %v5914
        %6419 = vst [vmem:[%s142 + $0x6c0] sm:$0xff] %v5915
        %6420 = vst [vmem:[%s142 + $0x6c8] sm:$0xff] %v5916
        %6421 = vst [vmem:[%s142 + $0x6d0] sm:$0xff] %v5917
        %6422 = vst [vmem:[%s142 + $0x6d8] sm:$0xff] %v5918
        %6423 = vst [vmem:[%s142 + $0x6e0] sm:$0xff] %v5919
        %6424 = vst [vmem:[%s142 + $0x6e8] sm:$0xff] %v5920
        %6425 = vst [vmem:[%s142 + $0x6f0] sm:$0xff] %v5921
        %6426 = vst [vmem:[%s142 + $0x6f8] sm:$0xff] %v5922
        %6427 = vst [vmem:[%s142 + $0x700] sm:$0xff] %v5923
        %6428 = vst [vmem:[%s142 + $0x708] sm:$0xff] %v5924
        %6429 = vst [vmem:[%s142 + $0x710] sm:$0xff] %v5925
        %6430 = vst [vmem:[%s142 + $0x718] sm:$0xff] %v5926
        %6431 = vst [vmem:[%s142 + $0x720] sm:$0xff] %v5927
        %6432 = vst [vmem:[%s142 + $0x728] sm:$0xff] %v5928
        %6433 = vst [vmem:[%s142 + $0x730] sm:$0xff] %v5929
        %6434 = vst [vmem:[%s142 + $0x738] sm:$0xff] %v5930
        %6435 = vst [vmem:[%s142 + $0x740] sm:$0xff] %v5931
        %6436 = vst [vmem:[%s142 + $0x748] sm:$0xff] %v5932
        %6437 = vst [vmem:[%s142 + $0x750] sm:$0xff] %v5933
        %6438 = vst [vmem:[%s142 + $0x758] sm:$0xff] %v5934
        %6439 = vst [vmem:[%s142 + $0x760] sm:$0xff] %v5935
        %6440 = vst [vmem:[%s142 + $0x768] sm:$0xff] %v5936
        %6441 = vst [vmem:[%s142 + $0x770] sm:$0xff] %v5937
        %6442 = vst [vmem:[%s142 + $0x778] sm:$0xff] %v5938
        %6443 = vst [vmem:[%s142 + $0x780] sm:$0xff] %v5939
        %6444 = vst [vmem:[%s142 + $0x788] sm:$0xff] %v5940
        %6445 = vst [vmem:[%s142 + $0x790] sm:$0xff] %v5941
        %6446 = vst [vmem:[%s142 + $0x798] sm:$0xff] %v5942
        %6447 = vst [vmem:[%s142 + $0x7a0] sm:$0xff] %v5943
        %6448 = vst [vmem:[%s142 + $0x7a8] sm:$0xff] %v5944
        %6449 = vst [vmem:[%s142 + $0x7b0] sm:$0xff] %v5945
        %6450 = vst [vmem:[%s142 + $0x7b8] sm:$0xff] %v5946
        %6451 = vst [vmem:[%s142 + $0x7c0] sm:$0xff] %v5947
        %6452 = vst [vmem:[%s142 + $0x7c8] sm:$0xff] %v5948
        %6453 = vst [vmem:[%s142 + $0x7d0] sm:$0xff] %v5949
        %6454 = vst [vmem:[%s142 + $0x7d8] sm:$0xff] %v5950
        %6455 = vst [vmem:[%s142 + $0x7e0] sm:$0xff] %v5951
        %6456 = vst [vmem:[%s142 + $0x7e8] sm:$0xff] %v5952
        %6457 = vst [vmem:[%s142 + $0x7f0] sm:$0xff] %v5953
        %6458 = vst [vmem:[%s142 + $0x7f8] sm:$0xff] %v5954
        %6459 = vst [vmem:[%s142 + $0x800] sm:$0xff] %v5955
        %6460 = vst [vmem:[%s142 + $0x808] sm:$0xff] %v5956
        %6461 = vst [vmem:[%s142 + $0x810] sm:$0xff] %v5957
        %6462 = vst [vmem:[%s142 + $0x818] sm:$0xff] %v5958
        %6463 = vst [vmem:[%s142 + $0x820] sm:$0xff] %v5959
        %6464 = vst [vmem:[%s142 + $0x828] sm:$0xff] %v5960
        %6465 = vst [vmem:[%s142 + $0x830] sm:$0xff] %v5961
        %6466 = vst [vmem:[%s142 + $0x838] sm:$0xff] %v5962
        %6467 = vst [vmem:[%s142 + $0x840] sm:$0xff] %v5963
        %6468 = vst [vmem:[%s142 + $0x848] sm:$0xff] %v5964
        %6469 = vst [vmem:[%s142 + $0x850] sm:$0xff] %v5965
        %6470 = vst [vmem:[%s142 + $0x858] sm:$0xff] %v5966
        %6471 = vst [vmem:[%s142 + $0x860] sm:$0xff] %v5967
        %6472 = vst [vmem:[%s142 + $0x868] sm:$0xff] %v5968
        %6473 = vst [vmem:[%s142 + $0x870] sm:$0xff] %v5969
        %6474 = vst [vmem:[%s142 + $0x878] sm:$0xff] %v5970
        %6475 = vst [vmem:[%s142 + $0x880] sm:$0xff] %v5971
        %6476 = vst [vmem:[%s142 + $0x888] sm:$0xff] %v5972
        %6477 = vst [vmem:[%s142 + $0x890] sm:$0xff] %v5973
        %6478 = vst [vmem:[%s142 + $0x898] sm:$0xff] %v5974
        %6479 = vst [vmem:[%s142 + $0x8a0] sm:$0xff] %v5975
        %6480 = vst [vmem:[%s142 + $0x8a8] sm:$0xff] %v5976
        %6481 = vst [vmem:[%s142 + $0x8b0] sm:$0xff] %v5977
        %6482 = vst [vmem:[%s142 + $0x8b8] sm:$0xff] %v5978
        %6483 = vst [vmem:[%s142 + $0x8c0] sm:$0xff] %v5979
        %6484 = vst [vmem:[%s142 + $0x8c8] sm:$0xff] %v5980
        %6485 = vst [vmem:[%s142 + $0x8d0] sm:$0xff] %v5981
        %6486 = vst [vmem:[%s142 + $0x8d8] sm:$0xff] %v5982
        %6487 = vst [vmem:[%s142 + $0x8e0] sm:$0xff] %v5983
        %6488 = vst [vmem:[%s142 + $0x8e8] sm:$0xff] %v5984
        %6489 = vst [vmem:[%s142 + $0x8f0] sm:$0xff] %v5985
        %6490 = vst [vmem:[%s142 + $0x8f8] sm:$0xff] %v5986
        %6491 = vst [vmem:[%s142 + $0x900] sm:$0xff] %v5987
        %6492 = vst [vmem:[%s142 + $0x908] sm:$0xff] %v5988
        %6493 = vst [vmem:[%s142 + $0x910] sm:$0xff] %v5989
        %6494 = vst [vmem:[%s142 + $0x918] sm:$0xff] %v5990
        %6495 = vst [vmem:[%s142 + $0x920] sm:$0xff] %v5991
        %6496 = vst [vmem:[%s142 + $0x928] sm:$0xff] %v5992
        %6497 = vst [vmem:[%s142 + $0x930] sm:$0xff] %v5993
        %6498 = vst [vmem:[%s142 + $0x938] sm:$0xff] %v5994
        %6499 = vst [vmem:[%s142 + $0x940] sm:$0xff] %v5995
        %6500 = vst [vmem:[%s142 + $0x948] sm:$0xff] %v5996
        %6501 = vst [vmem:[%s142 + $0x950] sm:$0xff] %v5997
        %6502 = vst [vmem:[%s142 + $0x958] sm:$0xff] %v5998
        %6503 = vst [vmem:[%s142 + $0x960] sm:$0xff] %v5999
        %6504 = vst [vmem:[%s142 + $0x968] sm:$0xff] %v6000
        %6505 = vst [vmem:[%s142 + $0x970] sm:$0xff] %v6001
        %6506 = vst [vmem:[%s142 + $0x978] sm:$0xff] %v6002
        %6507 = vst [vmem:[%s142 + $0x980] sm:$0xff] %v6003
        %6508 = vst [vmem:[%s142 + $0x988] sm:$0xff] %v6004
        %6509 = vst [vmem:[%s142 + $0x990] sm:$0xff] %v6005
        %6510 = vst [vmem:[%s142 + $0x998] sm:$0xff] %v6006
        %6511 = vst [vmem:[%s142 + $0x9a0] sm:$0xff] %v6007
        %6512 = vst [vmem:[%s142 + $0x9a8] sm:$0xff] %v6008
        %6513 = vst [vmem:[%s142 + $0x9b0] sm:$0xff] %v6009
        %6514 = vst [vmem:[%s142 + $0x9b8] sm:$0xff] %v6010
        %6515 = vst [vmem:[%s142 + $0x9c0] sm:$0xff] %v6011
        %6516 = vst [vmem:[%s142 + $0x9c8] sm:$0xff] %v6012
        %6517 = vst [vmem:[%s142 + $0x9d0] sm:$0xff] %v6013
        %6518 = vst [vmem:[%s142 + $0x9d8] sm:$0xff] %v6014
        %6519 = vst [vmem:[%s142 + $0x9e0] sm:$0xff] %v6015
        %6520 = vst [vmem:[%s142 + $0x9e8] sm:$0xff] %v6016
        %6521 = vst [vmem:[%s142 + $0x9f0] sm:$0xff] %v6017
        %6522 = vst [vmem:[%s142 + $0x9f8] sm:$0xff] %v6018
        %6523 = vst [vmem:[%s142 + $0xa00] sm:$0xff] %v6019
        %6524 = vst [vmem:[%s142 + $0xa08] sm:$0xff] %v6020
        %6525 = vst [vmem:[%s142 + $0xa10] sm:$0xff] %v6021
        %6526 = vst [vmem:[%s142 + $0xa18] sm:$0xff] %v6022
        %6527 = vst [vmem:[%s142 + $0xa20] sm:$0xff] %v6023
        %6528 = vst [vmem:[%s142 + $0xa28] sm:$0xff] %v6024
        %6529 = vst [vmem:[%s142 + $0xa30] sm:$0xff] %v6025
        %6530 = vst [vmem:[%s142 + $0xa38] sm:$0xff] %v6026
        %6531 = vst [vmem:[%s142 + $0xa40] sm:$0xff] %v6027
        %6532 = vst [vmem:[%s142 + $0xa48] sm:$0xff] %v6028
        %6533 = vst [vmem:[%s142 + $0xa50] sm:$0xff] %v6029
        %6534 = vst [vmem:[%s142 + $0xa58] sm:$0xff] %v6030
        %6535 = vst [vmem:[%s142 + $0xa60] sm:$0xff] %v6031
        %6536 = vst [vmem:[%s142 + $0xa68] sm:$0xff] %v6032
        %6537 = vst [vmem:[%s142 + $0xa70] sm:$0xff] %v6033
        %6538 = vst [vmem:[%s142 + $0xa78] sm:$0xff] %v6034
        %6539 = vst [vmem:[%s142 + $0xa80] sm:$0xff] %v6035
        %6540 = vst [vmem:[%s142 + $0xa88] sm:$0xff] %v6036
        %6541 = vst [vmem:[%s142 + $0xa90] sm:$0xff] %v6037
        %6542 = vst [vmem:[%s142 + $0xa98] sm:$0xff] %v6038
        %6543 = vst [vmem:[%s142 + $0xaa0] sm:$0xff] %v6039
        %6544 = vst [vmem:[%s142 + $0xaa8] sm:$0xff] %v6040
        %6545 = vst [vmem:[%s142 + $0xab0] sm:$0xff] %v6041
        %6546 = vst [vmem:[%s142 + $0xab8] sm:$0xff] %v6042
        %6547 = vst [vmem:[%s142 + $0xac0] sm:$0xff] %v6043
        %6548 = vst [vmem:[%s142 + $0xac8] sm:$0xff] %v6044
        %6549 = vst [vmem:[%s142 + $0xad0] sm:$0xff] %v6045
        %6550 = vst [vmem:[%s142 + $0xad8] sm:$0xff] %v6046
        %6551 = vst [vmem:[%s142 + $0xae0] sm:$0xff] %v6047
        %6552 = vst [vmem:[%s142 + $0xae8] sm:$0xff] %v6048
        %6553 = vst [vmem:[%s142 + $0xaf0] sm:$0xff] %v6049
        %6554 = vst [vmem:[%s142 + $0xaf8] sm:$0xff] %v6050
        %6555 = vst [vmem:[%s142 + $0xb00] sm:$0xff] %v6051
        %6556 = vst [vmem:[%s142 + $0xb08] sm:$0xff] %v6052
        %6557 = vst [vmem:[%s142 + $0xb10] sm:$0xff] %v6053
        %6558 = vst [vmem:[%s142 + $0xb18] sm:$0xff] %v6054
        %6559 = vst [vmem:[%s142 + $0xb20] sm:$0xff] %v6055
        %6560 = vst [vmem:[%s142 + $0xb28] sm:$0xff] %v6056
        %6561 = vst [vmem:[%s142 + $0xb30] sm:$0xff] %v6057
        %6562 = vst [vmem:[%s142 + $0xb38] sm:$0xff] %v6058
        %6563 = vst [vmem:[%s142 + $0xb40] sm:$0xff] %v6059
        %6564 = vst [vmem:[%s142 + $0xb48] sm:$0xff] %v6060
        %6565 = vst [vmem:[%s142 + $0xb50] sm:$0xff] %v6061
        %6566 = vst [vmem:[%s142 + $0xb58] sm:$0xff] %v6062
        %6567 = vst [vmem:[%s142 + $0xb60] sm:$0xff] %v6063
        %6568 = vst [vmem:[%s142 + $0xb68] sm:$0xff] %v6064
        %6569 = vst [vmem:[%s142 + $0xb70] sm:$0xff] %v6065
        %6570 = vst [vmem:[%s142 + $0xb78] sm:$0xff] %v6066
        %6571 = vst [vmem:[%s142 + $0xb80] sm:$0xff] %v6067
        %6572 = vst [vmem:[%s142 + $0xb88] sm:$0xff] %v6068
        %6573 = vst [vmem:[%s142 + $0xb90] sm:$0xff] %v6069
        %6574 = vst [vmem:[%s142 + $0xb98] sm:$0xff] %v6070
        %6575 = vst [vmem:[%s142 + $0xba0] sm:$0xff] %v6071
        %6576 = vst [vmem:[%s142 + $0xba8] sm:$0xff] %v6072
        %6577 = vst [vmem:[%s142 + $0xbb0] sm:$0xff] %v6073
        %6578 = vst [vmem:[%s142 + $0xbb8] sm:$0xff] %v6074
        %6579 = vst [vmem:[%s142 + $0xbc0] sm:$0xff] %v6075
        %6580 = vst [vmem:[%s142 + $0xbc8] sm:$0xff] %v6076
        %6581 = vst [vmem:[%s142 + $0xbd0] sm:$0xff] %v6077
        %6582 = vst [vmem:[%s142 + $0xbd8] sm:$0xff] %v6078
        %6583 = vst [vmem:[%s142 + $0xbe0] sm:$0xff] %v6079
        %6584 = vst [vmem:[%s142 + $0xbe8] sm:$0xff] %v6080
        %6585 = vst [vmem:[%s142 + $0xbf0] sm:$0xff] %v6081
        %6586 = vst [vmem:[%s142 + $0xbf8] sm:$0xff] %v6082
        %6587 = vst [vmem:[%s142 + $0xc00] sm:$0xff] %v6083
        %6588 = vst [vmem:[%s142 + $0xc08] sm:$0xff] %v6084
        %6589 = vst [vmem:[%s142 + $0xc10] sm:$0xff] %v6085
        %6590 = vst [vmem:[%s142 + $0xc18] sm:$0xff] %v6086
        %6591 = vst [vmem:[%s142 + $0xc20] sm:$0xff] %v6087
        %6592 = vst [vmem:[%s142 + $0xc28] sm:$0xff] %v6088
        %6593 = vst [vmem:[%s142 + $0xc30] sm:$0xff] %v6089
        %6594 = vst [vmem:[%s142 + $0xc38] sm:$0xff] %v6090
        %6595 = vst [vmem:[%s142 + $0xc40] sm:$0xff] %v6091
        %6596 = vst [vmem:[%s142 + $0xc48] sm:$0xff] %v6092
        %6597 = vst [vmem:[%s142 + $0xc50] sm:$0xff] %v6093
        %6598 = vst [vmem:[%s142 + $0xc58] sm:$0xff] %v6094
        %6599 = vst [vmem:[%s142 + $0xc60] sm:$0xff] %v6095
        %6600 = vst [vmem:[%s142 + $0xc68] sm:$0xff] %v6096
        %6601 = vst [vmem:[%s142 + $0xc70] sm:$0xff] %v6097
        %6602 = vst [vmem:[%s142 + $0xc78] sm:$0xff] %v6098
        %6603 = vst [vmem:[%s142 + $0xc80] sm:$0xff] %v6099
        %6604 = vst [vmem:[%s142 + $0xc88] sm:$0xff] %v6100
        %6605 = vst [vmem:[%s142 + $0xc90] sm:$0xff] %v6101
        %6606 = vst [vmem:[%s142 + $0xc98] sm:$0xff] %v6102
        %6607 = vst [vmem:[%s142 + $0xca0] sm:$0xff] %v6103
        %6608 = vst [vmem:[%s142 + $0xca8] sm:$0xff] %v6104
        %6609 = vst [vmem:[%s142 + $0xcb0] sm:$0xff] %v6105
        %6610 = vst [vmem:[%s142 + $0xcb8] sm:$0xff] %v6106
        %6611 = vst [vmem:[%s142 + $0xcc0] sm:$0xff] %v6107
        %6612 = vst [vmem:[%s142 + $0xcc8] sm:$0xff] %v6108
        %6613 = vst [vmem:[%s142 + $0xcd0] sm:$0xff] %v6109
        %6614 = vst [vmem:[%s142 + $0xcd8] sm:$0xff] %v6110
        %6615 = vst [vmem:[%s142 + $0xce0] sm:$0xff] %v6111
        %6616 = vst [vmem:[%s142 + $0xce8] sm:$0xff] %v6112
        %6617 = vst [vmem:[%s142 + $0xcf0] sm:$0xff] %v6113
        %6618 = vst [vmem:[%s142 + $0xcf8] sm:$0xff] %v6114
        %6619 = vst [vmem:[%s142 + $0xd00] sm:$0xff] %v6115
        %6620 = vst [vmem:[%s142 + $0xd08] sm:$0xff] %v6116
        %6621 = vst [vmem:[%s142 + $0xd10] sm:$0xff] %v6117
        %6622 = vst [vmem:[%s142 + $0xd18] sm:$0xff] %v6118
        %6623 = vst [vmem:[%s142 + $0xd20] sm:$0xff] %v6119
        %6624 = vst [vmem:[%s142 + $0xd28] sm:$0xff] %v6120
        %6625 = vst [vmem:[%s142 + $0xd30] sm:$0xff] %v6121
        %6626 = vst [vmem:[%s142 + $0xd38] sm:$0xff] %v6122
        %6627 = vst [vmem:[%s142 + $0xd40] sm:$0xff] %v6123
        %6628 = vst [vmem:[%s142 + $0xd48] sm:$0xff] %v6124
        %6629 = vst [vmem:[%s142 + $0xd50] sm:$0xff] %v6125
        %6630 = vst [vmem:[%s142 + $0xd58] sm:$0xff] %v6126
        %6631 = vst [vmem:[%s142 + $0xd60] sm:$0xff] %v6127
        %6632 = vst [vmem:[%s142 + $0xd68] sm:$0xff] %v6128
        %6633 = vst [vmem:[%s142 + $0xd70] sm:$0xff] %v6129
        %6634 = vst [vmem:[%s142 + $0xd78] sm:$0xff] %v6130
        %6635 = vst [vmem:[%s142 + $0xd80] sm:$0xff] %v6131
        %6636 = vst [vmem:[%s142 + $0xd88] sm:$0xff] %v6132
        %6637 = vst [vmem:[%s142 + $0xd90] sm:$0xff] %v6133
        %6638 = vst [vmem:[%s142 + $0xd98] sm:$0xff] %v6134
        %6639 = vst [vmem:[%s142 + $0xda0] sm:$0xff] %v6135
        %6640 = vst [vmem:[%s142 + $0xda8] sm:$0xff] %v6136
        %6641 = vst [vmem:[%s142 + $0xdb0] sm:$0xff] %v6137
        %6642 = vst [vmem:[%s142 + $0xdb8] sm:$0xff] %v6138
        %6643 = vst [vmem:[%s142 + $0xdc0] sm:$0xff] %v6139
        %6644 = vst [vmem:[%s142 + $0xdc8] sm:$0xff] %v6140
        %6645 = vst [vmem:[%s142 + $0xdd0] sm:$0xff] %v6141
        %6646 = vst [vmem:[%s142 + $0xdd8] sm:$0xff] %v6142
        %6647 = vst [vmem:[%s142 + $0xde0] sm:$0xff] %v6143
        %6648 = vst [vmem:[%s142 + $0xde8] sm:$0xff] %v6144
        %6649 = vst [vmem:[%s142 + $0xdf0] sm:$0xff] %v6145
        %6650 = vst [vmem:[%s142 + $0xdf8] sm:$0xff] %v6146
        %6651 = vst [vmem:[%s142 + $0xe00] sm:$0xff] %v6147
        %6652 = vst [vmem:[%s142 + $0xe08] sm:$0xff] %v6148
        %6653 = vst [vmem:[%s142 + $0xe10] sm:$0xff] %v6149
        %6654 = vst [vmem:[%s142 + $0xe18] sm:$0xff] %v6150
        %6655 = vst [vmem:[%s142 + $0xe20] sm:$0xff] %v6151
        %6656 = vst [vmem:[%s142 + $0xe28] sm:$0xff] %v6152
        %6657 = vst [vmem:[%s142 + $0xe30] sm:$0xff] %v6153
        %6658 = vst [vmem:[%s142 + $0xe38] sm:$0xff] %v6154
        %6659 = vst [vmem:[%s142 + $0xe40] sm:$0xff] %v6155
        %6660 = vst [vmem:[%s142 + $0xe48] sm:$0xff] %v6156
        %6661 = vst [vmem:[%s142 + $0xe50] sm:$0xff] %v6157
        %6662 = vst [vmem:[%s142 + $0xe58] sm:$0xff] %v6158
        %6663 = vst [vmem:[%s142 + $0xe60] sm:$0xff] %v6159
        %6664 = vst [vmem:[%s142 + $0xe68] sm:$0xff] %v6160
        %6665 = vst [vmem:[%s142 + $0xe70] sm:$0xff] %v6161
        %6666 = vst [vmem:[%s142 + $0xe78] sm:$0xff] %v6162
        %6667 = vst [vmem:[%s142 + $0xe80] sm:$0xff] %v6163
        %6668 = vst [vmem:[%s142 + $0xe88] sm:$0xff] %v6164
        %6669 = vst [vmem:[%s142 + $0xe90] sm:$0xff] %v6165
        %6670 = vst [vmem:[%s142 + $0xe98] sm:$0xff] %v6166
        %6671 = vst [vmem:[%s142 + $0xea0] sm:$0xff] %v6167
        %6672 = vst [vmem:[%s142 + $0xea8] sm:$0xff] %v6168
        %6673 = vst [vmem:[%s142 + $0xeb0] sm:$0xff] %v6169
        %6674 = vst [vmem:[%s142 + $0xeb8] sm:$0xff] %v6170
        %6675 = vst [vmem:[%s142 + $0xec0] sm:$0xff] %v6171
        %6676 = vst [vmem:[%s142 + $0xec8] sm:$0xff] %v6172
        %6677 = vst [vmem:[%s142 + $0xed0] sm:$0xff] %v6173
        %6678 = vst [vmem:[%s142 + $0xed8] sm:$0xff] %v6174
        %6679 = vst [vmem:[%s142 + $0xee0] sm:$0xff] %v6175
        %6680 = vst [vmem:[%s142 + $0xee8] sm:$0xff] %v6176
        %6681 = vst [vmem:[%s142 + $0xef0] sm:$0xff] %v6177
        %6682 = vst [vmem:[%s142 + $0xef8] sm:$0xff] %v6178
        %6683 = vst [vmem:[%s142 + $0xf00] sm:$0xff] %v6179
        %6684 = vst [vmem:[%s142 + $0xf08] sm:$0xff] %v6180
        %6685 = vst [vmem:[%s142 + $0xf10] sm:$0xff] %v6181
        %6686 = vst [vmem:[%s142 + $0xf18] sm:$0xff] %v6182
        %6687 = vst [vmem:[%s142 + $0xf20] sm:$0xff] %v6183
        %6688 = vst [vmem:[%s142 + $0xf28] sm:$0xff] %v6184
        %6689 = vst [vmem:[%s142 + $0xf30] sm:$0xff] %v6185
        %6690 = vst [vmem:[%s142 + $0xf38] sm:$0xff] %v6186
        %6691 = vst [vmem:[%s142 + $0xf40] sm:$0xff] %v6187
        %6692 = vst [vmem:[%s142 + $0xf48] sm:$0xff] %v6188
        %6693 = vst [vmem:[%s142 + $0xf50] sm:$0xff] %v6189
        %6694 = vst [vmem:[%s142 + $0xf58] sm:$0xff] %v6190
        %6695 = vst [vmem:[%s142 + $0xf60] sm:$0xff] %v6191
        %6696 = vst [vmem:[%s142 + $0xf68] sm:$0xff] %v6192
        %6697 = vst [vmem:[%s142 + $0xf70] sm:$0xff] %v6193
        %6698 = vst [vmem:[%s142 + $0xf78] sm:$0xff] %v6194
        %6699 = vst [vmem:[%s142 + $0xf80] sm:$0xff] %v6195
        %6700 = vst [vmem:[%s142 + $0xf88] sm:$0xff] %v6196
        %6701 = vst [vmem:[%s142 + $0xf90] sm:$0xff] %v6197
        %6702 = vst [vmem:[%s142 + $0xf98] sm:$0xff] %v6198
        %6703 = vst [vmem:[%s142 + $0xfa0] sm:$0xff] %v6199
        %6704 = vst [vmem:[%s142 + $0xfa8] sm:$0xff] %v6200
        %6705 = vst [vmem:[%s142 + $0xfb0] sm:$0xff] %v6201
        %6706 = vst [vmem:[%s142 + $0xfb8] sm:$0xff] %v6202
        %s6707 = sand.u32 %s52, 1
        %s6708 = scalar_lea.sflag [#allocation4], %s6707
        %s6709 = sand.u32 %s52, 1
        %s6710 = smul.addr %s6709, 4032
        %s6711 = scalar_lea.vmem [#allocation5], %s6710
        // Predicated region
        $region29: #{tpu_custom_call.1} parent=23 // pred_check
          %p6712 = pneg %p62
        $region30: #{tpu_custom_call.1} parent=23 // pred_check_branch
          %6714 = sbr.rel (%p6712) target = $region32
        $region31: #{tpu_custom_call.1} parent=23 // pred_region
          %s6715 = smul.u32 63, %s18
          %s6716 = ssub.s32 125, %s6715
          %p6717 = scmp.lt.s32.totalorder %s6716, 63
          %s6718 = scalar_select %p6717, %s6716, 63
          %s6719 = smul.u32 128, %s6718
          %s6720 = smul.u32 %s6719, 8
          %s6722 = ssub.s32 64512, %s6720
          %6723 = vsyncadd %s6708, %s6722
          %p6724 = scmp.ne.s32.totalorder 0, %s6720
          %s6725 = smul.addr %s6715, 8
          %s6726 = smul.addr %s6725, 128
          %s6727 = scalar_lea.hbm %s1, %s6726
          %s6728 = smul.u32 64, %s6718
          %s6729 = sshll.u32 %s6711, 4
          %s6730 = int_to_ptr.vmem [resolvable:$true] %s6729
          %s6731 = sshll.u32 %s6728, 4
          %6735 = dma.vmem_to_hbm [thread:$0]  (%p6724), %s6730, %s6731, %s6727, %s6708, 1024, 1024, 64
        $region32: #{tpu_custom_call.1} parent=23 // pred_fallthru
          _
      $region24: #{tpu_custom_call.1} parent=5 // pred_fallthru
        _
      %p6736 = scmp.le.s32.totalorder 2, %s13
      // Predicated region
      $region33: #{tpu_custom_call.1} parent=5 // pred_check
        %p6737 = pneg %p6736
      $region34: #{tpu_custom_call.1} parent=5 // pred_check_branch
        %6739 = sbr.rel (%p6737) target = $region36
      $region35: #{tpu_custom_call.1} parent=5 // pred_region
        %s6740 = ssub.s32 %s13, 2
        // Predicated region
        $region37: #{tpu_custom_call.1} parent=35 // pred_check
          %p6741 = pneg %p68
        $region38: #{tpu_custom_call.1} parent=35 // pred_check_branch
          %6743 = sbr.rel (%p6741) target = $region40
        $region39: #{tpu_custom_call.1} parent=35 // pred_region
          %s6744 = sand.u32 %s53, 1
          %s6745 = scalar_lea.sflag [#allocation4], %s6744
          %s6746 = sand.u32 %s53, 1
          %s6747 = smul.addr %s6746, 4032
          %s6748 = scalar_lea.vmem [#allocation5], %s6747
          %6749 = dma.done %s6745, 64512
        $region40: #{tpu_custom_call.1} parent=35 // pred_fallthru
          _
      $region36: #{tpu_custom_call.1} parent=5 // pred_fallthru
        _
    $region6: #{tpu_custom_call.1} parent=1 // loop_footer
      %s17 = sadd.s32 1, %s13
    $region7: #{tpu_custom_call.1} parent=1 // loop_footer_branch
      %12 = sbr.rel target = $region3
    $region8: #{tpu_custom_call.1} parent=1 // loop_exit
      _
    %6750 = vsyncpa [#allocation3], 1
    %s6751 = scalar_lea.sflag [#allocation3], 1
    %6752 = vsyncpa %s6751, 1
    %6753 = vsyncpa [#allocation4], 1
    %s6754 = scalar_lea.sflag [#allocation4], 1
    %6755 = vsyncpa %s6754, 1

</llo_original>
